<compile_context>
chip_gen: v5e
topology: v5e:2x2
jax: 0.10.0
libtpu: 0.0.40
codegen_flags: <defaults>
</compile_context>

<pallas_src>
import functools

import numpy as np
import jax
import jax.numpy as jnp
from jax.experimental import pallas as pl
from jax.experimental.pallas import tpu as pltpu

SCALE = 201.0 * 0.005  # the (features * 201.0 * 0.005) factor before each conv ReLU


# ------------------------------ fused kernel -------------------------------- #

def _fused_kernel(x_ref, t1_ref, t2_ref, w1f_ref, w2p_ref, o_ref, *,
                  k, oh1, oh2, num_class):
    """Whole forward pass for one batch tile, fully VMEM resident.

    x_ref:   (bt, H, W)        input images (C_in == 1), f32
    t1_ref:  (k*W, OW1*OC1)    conv1 im2col weights (SCALE folded), bf16
    t2_ref:  (k*OW1*OC1, OW2*OC2) conv2 im2col weights (pool1 cols + SCALE folded), bf16
    w1f_ref: (OH2*OW2*OC2, 768) linear1 weights with pool2 + Flatten folded, bf16
    w2p_ref: (768, 128)        linear2 weights, transposed, class dim zero-padded, bf16
    o_ref:   (bt, 128)         softmax output (padded classes have prob 0), f32
    """
    f32, bf16 = jnp.float32, jnp.bfloat16
    bt = x_ref.shape[0]

    x = x_ref[...]                                                           # (bt, H, W)

    # ---- conv1: ONE batched matmul (im2col over the k kernel rows) + fused ReLU.
    xcat = jnp.concatenate([x[:, kh:kh + oh1, :] for kh in range(k)], axis=-1)
    a1 = jnp.dot(xcat.reshape(bt * oh1, -1).astype(bf16), t1_ref[...],
                 preferred_element_type=f32)                                 # (bt*24, 144)
    a1 = jnp.maximum(a1, 0.0)

    # ---- pool1 rows: sum adjacent row pairs (0.25 + column average folded into t2).
    a1r = a1.reshape(bt, oh1 // 2, 2, a1.shape[-1]).sum(axis=2)              # (bt, 12, 144)

    # ---- conv2: ONE batched matmul (pool1 columns + SCALE folded) + fused ReLU.
    pcat = jnp.concatenate([a1r[:, kh:kh + oh2, :] for kh in range(k)], axis=-1)
    a2 = jnp.dot(pcat.reshape(bt * oh2, -1).astype(bf16), t2_ref[...],
                 preferred_element_type=f32)                                 # (bt*8, 96)
    a2 = jnp.maximum(a2, 0.0).reshape(bt, oh2, -1)                           # (bt, 8, 96)

    # ---- pool2 + Flatten are folded into w1f: lay each image out as one lane-dense row.
    feat = jnp.concatenate([a2[:, r, :] for r in range(oh2)], axis=-1)       # (bt, 768)

    # ---- linear1 + ReLU, linear2 (class dim padded to 128 lanes): two big matmuls.
    h = jnp.maximum(jnp.dot(feat.astype(bf16), w1f_ref[...],
                            preferred_element_type=f32), 0.0)                # (bt, 768)
    logits = jnp.dot(h.astype(bf16), w2p_ref[...],
                     preferred_element_type=f32)                             # (bt, 128)

    # ---- softmax over the real classes only; exact division (rows sum to 1).
    lane = jax.lax.broadcasted_iota(jnp.int32, logits.shape, dimension=1)
    logits = jnp.where(lane < num_class, logits, -1e30)
    m = jnp.max(logits, axis=-1, keepdims=True)
    e = jnp.exp(logits - m)
    o_ref[...] = e / jnp.sum(e, axis=-1, keepdims=True)


# --------------------- load-time weight re-packing (numpy) ------------------ #

def pack_params(params, height, width, *, pad_classes_to=128, dtype=jnp.bfloat16):
    """Pack the PyTorch-layout weights once, outside jit (load-time work)."""
    w1 = np.asarray(params["conv1"], np.float32)   # (OC1, 1, K, K)
    w2 = np.asarray(params["conv2"], np.float32)   # (OC2, OC1, K, K)
    l1 = np.asarray(params["lin1"], np.float32)    # (768, OC2*hp2*wp2)
    l2 = np.asarray(params["lin2"], np.float32)    # (num_class, 768)

    # Folding SCALE into the conv weights is only valid because SCALE > 0
    # (ReLU commutes with a positive scale).
    assert SCALE > 0.0

    oc1, _, k, _ = w1.shape
    oc2 = w2.shape[0]
    oh1, ow1 = height - k + 1, width - k + 1          # 24, 24
    hp1, wp1 = oh1 // 2, ow1 // 2                     # 12, 12
    oh2, ow2 = hp1 - k + 1, wp1 - k + 1               # 8, 8
    hp2, wp2 = oh2 // 2, ow2 // 2                     # 4, 4

    # conv1 -> single (K*W, OW1*OC1) im2col matrix, SCALE folded.
    # t1[kh*W + (ow+kw), ow*OC1 + o] = SCALE * w1[o, 0, kh, kw]
    t1 = np.zeros((k, width, ow1, oc1), np.float32)
    for kh in range(k):
        for kw in range(k):
            for j in range(ow1):
                t1[kh, j + kw, j, :] += SCALE * w1[:, 0, kh, kw]
    t1 = t1.reshape(k * width, ow1 * oc1)

    # conv2 -> single (K*OW1*OC1, OW2*OC2) matrix; pool1 column-average (with the
    # 0.25, the row sum is done in-kernel) and SCALE folded.
    # t2[kh*144 + w1_idx*OC1 + c, ow2*OC2 + o2] = 0.25*SCALE*w2[o2, c, kh, kw]
    #   with w1_idx = 2*(ow2+kw) + dc, dc in {0,1}.
    t2 = np.zeros((k, ow1, oc1, ow2, oc2), np.float32)
    for kh in range(k):
        for kw in range(k):
            for j in range(ow2):
                for dc in range(2):
                    t2[kh, 2 * (j + kw) + dc, :, j, :] += 0.25 * SCALE * w2[:, :, kh, kw].T
    t2 = t2.reshape(k * ow1 * oc1, ow2 * oc2)

    # pool2 + Flatten(NCHW) + linear1 -> single (OH2*OW2*OC2, 768) matrix.
    # w1f[r*96 + c*OC2 + o2, n] = 0.25 * l1[n, o2*(hp2*wp2) + (r//2)*wp2 + (c//2)]
    n_hidden = l1.shape[0]
    l1r = l1.reshape(n_hidden, oc2, hp2, wp2)
    w1f = np.zeros((oh2, ow2, oc2, n_hidden), np.float32)
    for r in range(oh2):
        for c in range(ow2):
            w1f[r, c] = 0.25 * l1r[:, :, r // 2, c // 2].T
    w1f = w1f.reshape(oh2 * ow2 * oc2, n_hidden)

    # linear2, transposed, class dim zero-padded to a lane-dense 128.
    num_class = l2.shape[0]
    w2p = np.zeros((n_hidden, pad_classes_to), np.float32)
    w2p[:, :num_class] = l2.T

    return {
        "t1": jnp.asarray(t1, dtype),
        "t2": jnp.asarray(t2, dtype),
        "w1f": jnp.asarray(w1f, dtype),
        "w2p": jnp.asarray(w2p, dtype),
    }


# ------------------------------ forward pass -------------------------------- #

def forward(x, packed, *, num_class, block_b=128):
    """netModels('c06c12f2').forward for NCHW f32 input, using packed weights."""
    t1, t2, w1f, w2p = packed["t1"], packed["t2"], packed["w1f"], packed["w2p"]
    B = x.shape[0]
    H, W = x.shape[-2], x.shape[-1]
    k = t1.shape[0] // W
    oh1 = H - k + 1
    oh2 = oh1 // 2 - k + 1
    n_pad_class = w2p.shape[1]

    x3 = x.reshape(B, H, W).astype(jnp.float32)   # C_in == 1

    if B <= block_b:
        bt = B
    else:
        bt = block_b
        assert bt % 8 == 0, "block_b must be a multiple of 8 when tiling the batch"
    b_pad = pl.cdiv(B, bt) * bt
    if b_pad != B:
        x3 = jnp.pad(x3, ((0, b_pad - B), (0, 0), (0, 0)))

    kern = functools.partial(_fused_kernel, k=k, oh1=oh1, oh2=oh2, num_class=num_class)
    out = pl.pallas_call(
        kern,
        out_shape=jax.ShapeDtypeStruct((b_pad, n_pad_class), jnp.float32),
        grid=(b_pad // bt,),
        in_specs=[
            pl.BlockSpec((bt, H, W), lambda i: (i, 0, 0)),   # batch-tiled input
            pl.BlockSpec(t1.shape, lambda i: (0, 0)),        # weights resident every step
            pl.BlockSpec(t2.shape, lambda i: (0, 0)),
            pl.BlockSpec(w1f.shape, lambda i: (0, 0)),
            pl.BlockSpec(w2p.shape, lambda i: (0, 0)),
        ],
        out_specs=pl.BlockSpec((bt, n_pad_class), lambda i: (i, 0)),
        compiler_params=pltpu.CompilerParams(
            dimension_semantics=("parallel",),   # v7x: shard batch tiles over the 2 TCs
        ),
    )(x3, t1, t2, w1f, w2p)
    return out[:B, :num_class]


# --------------------------- pure-JAX reference ------------------------------ #

def reference_forward(x, params):
    w1, w2, l1, l2 = params["conv1"], params["conv2"], params["lin1"], params["lin2"]
    hp = jax.lax.Precision.HIGHEST
    y = jax.lax.conv_general_dilated(
        x, w1, window_strides=(1, 1), padding="VALID",
        dimension_numbers=("NCHW", "OIHW", "NCHW"), precision=hp)
    y = jnp.maximum(y * SCALE, 0.0)
    b, c, h, w = y.shape
    y = y.reshape(b, c, h // 2, 2, w // 2, 2).mean(axis=(3, 5))
    y = jax.lax.conv_general_dilated(
        y, w2, window_strides=(1, 1), padding="VALID",
        dimension_numbers=("NCHW", "OIHW", "NCHW"), precision=hp)
    y = jnp.maximum(y * SCALE, 0.0)
    b, c, h, w = y.shape
    y = y.reshape(b, c, h // 2, 2, w // 2, 2).mean(axis=(3, 5))
    feat = y.reshape(b, -1)
    h1 = jnp.maximum(jnp.dot(feat, l1.T, precision=hp), 0.0)
    logits = jnp.dot(h1, l2.T, precision=hp)
    return jax.nn.softmax(logits, axis=1)


# --------------------------------- main -------------------------------------- #

if __name__ == "__main__":
    key = jax.random.PRNGKey(0)
    k1, k2, k3, k4, kx = jax.random.split(key, 5)

    B, num_class = 32, 10
    H = W = 28  # two k=5 valid convs + two 2x2 pools -> 12*4*4 = 192 features

    x = jax.random.normal(kx, (B, 1, H, W), jnp.float32)
    params = {
        "conv1": jax.random.normal(k1, (6, 1, 5, 5), jnp.float32) * 0.1,
        "conv2": jax.random.normal(k2, (12, 6, 5, 5), jnp.float32) * 0.1,
        "lin1":  jax.random.normal(k3, (768, 12 * 4 * 4), jnp.float32) * 0.05,
        "lin2":  jax.random.normal(k4, (num_class, 768), jnp.float32) * 0.05,
    }

    # Weight packing done ONCE outside jit (load-time), per the review.
    packed = pack_params(params, H, W)

    fwd = jax.jit(functools.partial(forward, num_class=num_class, block_b=16))
    out = jax.block_until_ready(fwd(x, packed))
    ref = jax.block_until_ready(reference_forward(x, params))

    assert out.shape == (B, num_class)
    assert bool(jnp.all(jnp.isfinite(out)))
    assert jnp.allclose(jnp.sum(out, axis=1), 1.0, atol=1e-4)   # exact softmax normalization
    assert jnp.allclose(out, ref, atol=2e-2)                    # bf16-matmul vs f32 reference
    print("KERNEL_OK")
</pallas_src>

<mosaic_0001>
module attributes {stable_mosaic.version = 11 : i64} {
  func.func @_fused_kernel(%arg0: i32, %arg1: memref<16x28x28xf32, #tpu.memory_space<vmem>>, %arg2: memref<140x144xbf16, #tpu.memory_space<vmem>>, %arg3: memref<720x96xbf16, #tpu.memory_space<vmem>>, %arg4: memref<768x768xbf16, #tpu.memory_space<vmem>>, %arg5: memref<768x128xbf16, #tpu.memory_space<vmem>>, %arg6: memref<16x128xf32, #tpu.memory_space<vmem>>) attributes {dimension_semantics = [#tpu.dimension_semantics<parallel>], iteration_bounds = array<i64: 2>, scalar_prefetch = 0 : i64, scratch_operands = 0 : i64, tpu.core_type = #tpu.core_type<tc>, window_params = [{transform_indices = @transform_0, window_bounds = array<i64: 16, 28, 28>}, {pipeline_mode = #tpu.pipeline_mode<synchronous>, transform_indices = @transform_1, window_bounds = array<i64: 140, 144>}, {pipeline_mode = #tpu.pipeline_mode<synchronous>, transform_indices = @transform_2, window_bounds = array<i64: 720, 96>}, {pipeline_mode = #tpu.pipeline_mode<synchronous>, transform_indices = @transform_3, window_bounds = array<i64: 768, 768>}, {pipeline_mode = #tpu.pipeline_mode<synchronous>, transform_indices = @transform_4, window_bounds = array<i64: 768, 128>}, {transform_indices = @transform_5, window_bounds = array<i64: 16, 128>}]} {
    %c0 = arith.constant 0 : index
    %c0_0 = arith.constant 0 : index
    %c0_1 = arith.constant 0 : index
    %0 = vector.load %arg1[%c0, %c0_0, %c0_1] : memref<16x28x28xf32, #tpu.memory_space<vmem>>, vector<16x28x28xf32>
    %1 = vector.extract_strided_slice %0 {offsets = [0, 0, 0], sizes = [16, 24, 28], strides = [1, 1, 1]} : vector<16x28x28xf32> to vector<16x24x28xf32>
    %2 = vector.extract_strided_slice %0 {offsets = [0, 1, 0], sizes = [16, 24, 28], strides = [1, 1, 1]} : vector<16x28x28xf32> to vector<16x24x28xf32>
    %3 = vector.extract_strided_slice %0 {offsets = [0, 2, 0], sizes = [16, 24, 28], strides = [1, 1, 1]} : vector<16x28x28xf32> to vector<16x24x28xf32>
    %4 = vector.extract_strided_slice %0 {offsets = [0, 3, 0], sizes = [16, 24, 28], strides = [1, 1, 1]} : vector<16x28x28xf32> to vector<16x24x28xf32>
    %5 = vector.extract_strided_slice %0 {offsets = [0, 4, 0], sizes = [16, 24, 28], strides = [1, 1, 1]} : vector<16x28x28xf32> to vector<16x24x28xf32>
    %6 = tpu.concatenate %1, %2, %3, %4, %5 in 2 : vector<16x24x28xf32>, vector<16x24x28xf32>, vector<16x24x28xf32>, vector<16x24x28xf32>, vector<16x24x28xf32> -> vector<16x24x140xf32>
    %7 = vector.shape_cast %6 : vector<16x24x140xf32> to vector<384x140xf32>
    %8 = arith.truncf %7 : vector<384x140xf32> to vector<384x140xbf16>
    %c0_2 = arith.constant 0 : index
    %c0_3 = arith.constant 0 : index
    %9 = vector.load %arg2[%c0_2, %c0_3] : memref<140x144xbf16, #tpu.memory_space<vmem>>, vector<140x144xbf16>
    %cst = arith.constant dense<0.000000e+00> : vector<384x144xf32>
    %10 = tpu.matmul %8, %9, %cst {dimension_numbers = #tpu.dot_dimension_numbers<[1], [0], [0], [1], [0, 0, 1, 1], [], []>} : vector<384x140xbf16>, vector<140x144xbf16>, vector<384x144xf32> -> vector<384x144xf32>
    %cst_4 = arith.constant 0.000000e+00 : f32
    %11 = vector.broadcast %cst_4 : f32 to vector<384x144xf32>
    %12 = arith.maximumf %10, %11 : vector<384x144xf32>
    %13 = vector.shape_cast %12 : vector<384x144xf32> to vector<16x12x2x144xf32>
    %cst_5 = arith.constant dense<0.000000e+00> : vector<16x12x144xf32>
    %14 = vector.multi_reduction <add>, %13, %cst_5 [2] : vector<16x12x2x144xf32> to vector<16x12x144xf32>
    %15 = vector.extract_strided_slice %14 {offsets = [0, 0, 0], sizes = [16, 8, 144], strides = [1, 1, 1]} : vector<16x12x144xf32> to vector<16x8x144xf32>
    %16 = vector.extract_strided_slice %14 {offsets = [0, 1, 0], sizes = [16, 8, 144], strides = [1, 1, 1]} : vector<16x12x144xf32> to vector<16x8x144xf32>
    %17 = vector.extract_strided_slice %14 {offsets = [0, 2, 0], sizes = [16, 8, 144], strides = [1, 1, 1]} : vector<16x12x144xf32> to vector<16x8x144xf32>
    %18 = vector.extract_strided_slice %14 {offsets = [0, 3, 0], sizes = [16, 8, 144], strides = [1, 1, 1]} : vector<16x12x144xf32> to vector<16x8x144xf32>
    %19 = vector.extract_strided_slice %14 {offsets = [0, 4, 0], sizes = [16, 8, 144], strides = [1, 1, 1]} : vector<16x12x144xf32> to vector<16x8x144xf32>
    %20 = tpu.concatenate %15, %16, %17, %18, %19 in 2 : vector<16x8x144xf32>, vector<16x8x144xf32>, vector<16x8x144xf32>, vector<16x8x144xf32>, vector<16x8x144xf32> -> vector<16x8x720xf32>
    %21 = vector.shape_cast %20 : vector<16x8x720xf32> to vector<128x720xf32>
    %22 = arith.truncf %21 : vector<128x720xf32> to vector<128x720xbf16>
    %c0_6 = arith.constant 0 : index
    %c0_7 = arith.constant 0 : index
    %23 = vector.load %arg3[%c0_6, %c0_7] : memref<720x96xbf16, #tpu.memory_space<vmem>>, vector<720x96xbf16>
    %cst_8 = arith.constant dense<0.000000e+00> : vector<128x96xf32>
    %24 = tpu.matmul %22, %23, %cst_8 {dimension_numbers = #tpu.dot_dimension_numbers<[1], [0], [0], [1], [0, 0, 1, 1], [], []>} : vector<128x720xbf16>, vector<720x96xbf16>, vector<128x96xf32> -> vector<128x96xf32>
    %cst_9 = arith.constant 0.000000e+00 : f32
    %25 = vector.broadcast %cst_9 : f32 to vector<128x96xf32>
    %26 = arith.maximumf %24, %25 : vector<128x96xf32>
    %27 = vector.shape_cast %26 : vector<128x96xf32> to vector<16x8x96xf32>
    %28 = vector.extract_strided_slice %27 {offsets = [0, 0, 0], sizes = [16, 1, 96], strides = [1, 1, 1]} : vector<16x8x96xf32> to vector<16x1x96xf32>
    %29 = vector.shape_cast %28 : vector<16x1x96xf32> to vector<16x96xf32>
    %30 = vector.extract_strided_slice %27 {offsets = [0, 1, 0], sizes = [16, 1, 96], strides = [1, 1, 1]} : vector<16x8x96xf32> to vector<16x1x96xf32>
    %31 = vector.shape_cast %30 : vector<16x1x96xf32> to vector<16x96xf32>
    %32 = vector.extract_strided_slice %27 {offsets = [0, 2, 0], sizes = [16, 1, 96], strides = [1, 1, 1]} : vector<16x8x96xf32> to vector<16x1x96xf32>
    %33 = vector.shape_cast %32 : vector<16x1x96xf32> to vector<16x96xf32>
    %34 = vector.extract_strided_slice %27 {offsets = [0, 3, 0], sizes = [16, 1, 96], strides = [1, 1, 1]} : vector<16x8x96xf32> to vector<16x1x96xf32>
    %35 = vector.shape_cast %34 : vector<16x1x96xf32> to vector<16x96xf32>
    %36 = vector.extract_strided_slice %27 {offsets = [0, 4, 0], sizes = [16, 1, 96], strides = [1, 1, 1]} : vector<16x8x96xf32> to vector<16x1x96xf32>
    %37 = vector.shape_cast %36 : vector<16x1x96xf32> to vector<16x96xf32>
    %38 = vector.extract_strided_slice %27 {offsets = [0, 5, 0], sizes = [16, 1, 96], strides = [1, 1, 1]} : vector<16x8x96xf32> to vector<16x1x96xf32>
    %39 = vector.shape_cast %38 : vector<16x1x96xf32> to vector<16x96xf32>
    %40 = vector.extract_strided_slice %27 {offsets = [0, 6, 0], sizes = [16, 1, 96], strides = [1, 1, 1]} : vector<16x8x96xf32> to vector<16x1x96xf32>
    %41 = vector.shape_cast %40 : vector<16x1x96xf32> to vector<16x96xf32>
    %42 = vector.extract_strided_slice %27 {offsets = [0, 7, 0], sizes = [16, 1, 96], strides = [1, 1, 1]} : vector<16x8x96xf32> to vector<16x1x96xf32>
    %43 = vector.shape_cast %42 : vector<16x1x96xf32> to vector<16x96xf32>
    %44 = tpu.concatenate %29, %31, %33, %35, %37, %39, %41, %43 in 1 : vector<16x96xf32>, vector<16x96xf32>, vector<16x96xf32>, vector<16x96xf32>, vector<16x96xf32>, vector<16x96xf32>, vector<16x96xf32>, vector<16x96xf32> -> vector<16x768xf32>
    %45 = arith.truncf %44 : vector<16x768xf32> to vector<16x768xbf16>
    %c0_10 = arith.constant 0 : index
    %c0_11 = arith.constant 0 : index
    %46 = vector.load %arg4[%c0_10, %c0_11] : memref<768x768xbf16, #tpu.memory_space<vmem>>, vector<768x768xbf16>
    %cst_12 = arith.constant dense<0.000000e+00> : vector<16x768xf32>
    %47 = tpu.matmul %45, %46, %cst_12 {dimension_numbers = #tpu.dot_dimension_numbers<[1], [0], [0], [1], [0, 0, 1, 1], [], []>} : vector<16x768xbf16>, vector<768x768xbf16>, vector<16x768xf32> -> vector<16x768xf32>
    %cst_13 = arith.constant 0.000000e+00 : f32
    %48 = vector.broadcast %cst_13 : f32 to vector<16x768xf32>
    %49 = arith.maximumf %47, %48 : vector<16x768xf32>
    %50 = arith.truncf %49 : vector<16x768xf32> to vector<16x768xbf16>
    %c0_14 = arith.constant 0 : index
    %c0_15 = arith.constant 0 : index
    %51 = vector.load %arg5[%c0_14, %c0_15] : memref<768x128xbf16, #tpu.memory_space<vmem>>, vector<768x128xbf16>
    %cst_16 = arith.constant dense<0.000000e+00> : vector<16x128xf32>
    %52 = tpu.matmul %50, %51, %cst_16 {dimension_numbers = #tpu.dot_dimension_numbers<[1], [0], [0], [1], [0, 0, 1, 1], [], []>} : vector<16x768xbf16>, vector<768x128xbf16>, vector<16x128xf32> -> vector<16x128xf32>
    %53 = tpu.iota {dimensions = array<i32: 1>} : vector<16x128xi32>
    %c10_i32 = arith.constant 10 : i32
    %54 = vector.broadcast %c10_i32 : i32 to vector<16x128xi32>
    %55 = arith.cmpi slt, %53, %54 : vector<16x128xi32>
    %cst_17 = arith.constant -1.000000e+30 : f32
    %56 = vector.broadcast %cst_17 : f32 to vector<16x128xf32>
    %57 = arith.select %55, %52, %56 : vector<16x128xi1>, vector<16x128xf32>
    %cst_18 = arith.constant dense<0xFF800000> : vector<16xf32>
    %58 = vector.multi_reduction <maximumf>, %57, %cst_18 [1] : vector<16x128xf32> to vector<16xf32>
    %59 = vector.shape_cast %58 : vector<16xf32> to vector<16x1xf32>
    %60 = vector.broadcast %59 : vector<16x1xf32> to vector<16x128xf32>
    %61 = arith.subf %57, %60 : vector<16x128xf32>
    %62 = math.exp %61 : vector<16x128xf32>
    %cst_19 = arith.constant dense<0.000000e+00> : vector<16xf32>
    %63 = vector.multi_reduction <add>, %62, %cst_19 [1] : vector<16x128xf32> to vector<16xf32>
    %64 = vector.shape_cast %63 : vector<16xf32> to vector<16x1xf32>
    %65 = vector.broadcast %64 : vector<16x1xf32> to vector<16x128xf32>
    %66 = arith.divf %62, %65 : vector<16x128xf32>
    %c0_20 = arith.constant 0 : index
    %c0_21 = arith.constant 0 : index
    %67 = vector.load %arg6[%c0_20, %c0_21] : memref<16x128xf32, #tpu.memory_space<vmem>>, vector<16x128xf32>
    tpu.vector_store %arg6[%c0_20, %c0_21], %66 {strides = array<i32>} : memref<16x128xf32, #tpu.memory_space<vmem>>, vector<16x128xf32>,
    return
  }
  func.func @transform_0(%arg0: i32) -> (i32, i32, i32) {
    %c0_i32 = arith.constant 0 : i32
    %c0_i32_0 = arith.constant 0 : i32
    %c0_i32_1 = arith.constant 0 : i32
    return %arg0, %c0_i32, %c0_i32_0 : i32, i32, i32
  }
  func.func @transform_1(%arg0: i32) -> (i32, i32) {
    %c0_i32 = arith.constant 0 : i32
    %c0_i32_0 = arith.constant 0 : i32
    %c0_i32_1 = arith.constant 0 : i32
    return %c0_i32, %c0_i32_0 : i32, i32
  }
  func.func @transform_2(%arg0: i32) -> (i32, i32) {
    %c0_i32 = arith.constant 0 : i32
    %c0_i32_0 = arith.constant 0 : i32
    %c0_i32_1 = arith.constant 0 : i32
    return %c0_i32, %c0_i32_0 : i32, i32
  }
  func.func @transform_3(%arg0: i32) -> (i32, i32) {
    %c0_i32 = arith.constant 0 : i32
    %c0_i32_0 = arith.constant 0 : i32
    %c0_i32_1 = arith.constant 0 : i32
    return %c0_i32, %c0_i32_0 : i32, i32
  }
  func.func @transform_4(%arg0: i32) -> (i32, i32) {
    %c0_i32 = arith.constant 0 : i32
    %c0_i32_0 = arith.constant 0 : i32
    %c0_i32_1 = arith.constant 0 : i32
    return %c0_i32, %c0_i32_0 : i32, i32
  }
  func.func @transform_5(%arg0: i32) -> (i32, i32) {
    %c0_i32 = arith.constant 0 : i32
    %c0_i32_0 = arith.constant 0 : i32
    return %arg0, %c0_i32 : i32, i32
  }
}

</mosaic_0001>

<llo_original>
// kernel: forward.1
$region0: #{forward.1}
  #allocation0 [shape = 'u32[]', space=smem, size = 0x4, offset = 0x4, fixed_abs, tag = 'smem constant byte address 0x4 - core index']
  #allocation1 [shape = 'u32[72,128]{1,0:T(1,128)}', space=vmem, size = 0x9000, scoped, tag = 'internal scratch']
  %s0 = inlined_call_operand.vmem [shape: f32[32,28,28], index: 0, kind: input, shape index: {}]
  %s1 = inlined_call_operand.vmem [shape: bf16[140,144], index: 1, kind: input, shape index: {}]
  %s2 = inlined_call_operand.vmem [shape: bf16[720,96], index: 2, kind: input, shape index: {}]
  %s3 = inlined_call_operand.vmem [shape: bf16[768,768], index: 3, kind: input, shape index: {}]
  %s4 = inlined_call_operand.hbm [shape: bf16[768,128], index: 4, kind: input, shape index: {}]
  %s5 = inlined_call_operand.vmem [shape: f32[32,128], index: 5, kind: output, shape index: {}]
  %s6 = sld [smem:[#allocation0]]
  $region57: #{forward.1} parent=0
    _
  %s8 = ssub.s32 1, %s6
  %s9 = scalar_select 0, %s8, %s6
  $region1: #{forward.1} parent=0
    #allocation2 [shape = 'u8[196608]{0}', space=vmem, size = 0x30000, scoped, tag = 'input window, operand 4, single buffered']
    #allocation3 [shape = 's32[2]{0}', space=sflag, size = 0x8, scoped, tag = 'scoped memory for forward.1']
    %10 = vsyncpa [#allocation3], 0
    loop: start=0, step=1, limit=4
    $region2: #{forward.1} parent=1 // loop_pre_header
      _
    $region3: #{forward.1} parent=1 // loop_header
      %s12 = sphi 0, %s16
      %p13 = scmp.ge.s32.totalorder %s12, 4
      %s22 = sphi 0, %s24
      %s25 = sphi 0, %s22
      %s26 = sphi 0, %s25
      %s42 = sphi 0, %s26
      %s46 = sphi 0, %s46
      %s48 = sphi 0, %s46
      %s49 = sphi 0, %s48
      %s63 = sphi 0, %s49
      %s67 = sphi 0, %s67
      %s69 = sphi 0, %s67
      %s70 = sphi 0, %s69
      %s84 = sphi 0, %s70
      %s88 = sphi 0, %s88
      %s90 = sphi 0, %s88
      %s91 = sphi 0, %s90
      %s105 = sphi 0, %s91
      %s109 = sphi 0, %s109
      %s111 = sphi 0, %s109
      %s112 = sphi 0, %s111
      %s126 = sphi 0, %s112
      %s132 = sphi 0, %s134
      %s135 = sphi 0, %s132
      %s136 = sphi 0, %s135
      %s152 = sphi 0, %s136
    $region4: #{forward.1} parent=1 // loop_header_branch
      %15 = sbr.rel (%p13) target = $region8
    $region5: #{forward.1} parent=1 // loop_body
      %s17 = ssub.s32 %s12, 1
      %s18 = ssub.s32 %s12, 2
      %s19 = sadd.s32 %s12, 1
      %s20 = ssub.s32 %s12, %s19
      %p21 = scmp.eq.s32.totalorder %s20, 0
      %s23 = sadd.s32 %s22, 1
      %s24 = scalar_select %p21, %s22, %s23
      %p27 = pneg %p21
      %p28 = scmp.eq.s32.totalorder %s12, 1
      %p29 = por %p27, %p28
      %p30 = scmp.ne.s32.totalorder %s22, %s25
      %p31 = scmp.eq.s32.totalorder %s12, 0
      %p32 = por %p30, %p31
      %p33 = scmp.ne.s32.totalorder %s22, %s25
      %p34 = scmp.eq.s32.totalorder %s17, 1
      %p35 = por %p33, %p34
      %p36 = scmp.ne.s32.totalorder %s25, %s26
      %p37 = scmp.eq.s32.totalorder %s17, 0
      %p38 = por %p36, %p37
      %p39 = scmp.ne.s32.totalorder %s25, %s26
      %p40 = scmp.eq.s32.totalorder %s18, 1
      %p41 = por %p39, %p40
      %p43 = scmp.ne.s32.totalorder %s26, %s42
      %p44 = scmp.eq.s32.totalorder %s18, 0
      %p45 = por %p43, %p44
      %s47 = sadd.s32 %s46, 1
      %p50 = scmp.eq.s32.totalorder %s12, 1
      %p51 = scmp.ne.s32.totalorder %s46, %s48
      %p52 = scmp.eq.s32.totalorder %s12, 0
      %p53 = por %p51, %p52
      %p54 = scmp.ne.s32.totalorder %s46, %s48
      %p55 = scmp.eq.s32.totalorder %s17, 1
      %p56 = por %p54, %p55
      %p57 = scmp.ne.s32.totalorder %s48, %s49
      %p58 = scmp.eq.s32.totalorder %s17, 0
      %p59 = por %p57, %p58
      %p60 = scmp.ne.s32.totalorder %s48, %s49
      %p61 = scmp.eq.s32.totalorder %s18, 1
      %p62 = por %p60, %p61
      %p64 = scmp.ne.s32.totalorder %s49, %s63
      %p65 = scmp.eq.s32.totalorder %s18, 0
      %p66 = por %p64, %p65
      %s68 = sadd.s32 %s67, 1
      %p71 = scmp.eq.s32.totalorder %s12, 1
      %p72 = scmp.ne.s32.totalorder %s67, %s69
      %p73 = scmp.eq.s32.totalorder %s12, 0
      %p74 = por %p72, %p73
      %p75 = scmp.ne.s32.totalorder %s67, %s69
      %p76 = scmp.eq.s32.totalorder %s17, 1
      %p77 = por %p75, %p76
      %p78 = scmp.ne.s32.totalorder %s69, %s70
      %p79 = scmp.eq.s32.totalorder %s17, 0
      %p80 = por %p78, %p79
      %p81 = scmp.ne.s32.totalorder %s69, %s70
      %p82 = scmp.eq.s32.totalorder %s18, 1
      %p83 = por %p81, %p82
      %p85 = scmp.ne.s32.totalorder %s70, %s84
      %p86 = scmp.eq.s32.totalorder %s18, 0
      %p87 = por %p85, %p86
      %s89 = sadd.s32 %s88, 1
      %p92 = scmp.eq.s32.totalorder %s12, 1
      %p93 = scmp.ne.s32.totalorder %s88, %s90
      %p94 = scmp.eq.s32.totalorder %s12, 0
      %p95 = por %p93, %p94
      %p96 = scmp.ne.s32.totalorder %s88, %s90
      %p97 = scmp.eq.s32.totalorder %s17, 1
      %p98 = por %p96, %p97
      %p99 = scmp.ne.s32.totalorder %s90, %s91
      %p100 = scmp.eq.s32.totalorder %s17, 0
      %p101 = por %p99, %p100
      %p102 = scmp.ne.s32.totalorder %s90, %s91
      %p103 = scmp.eq.s32.totalorder %s18, 1
      %p104 = por %p102, %p103
      %p106 = scmp.ne.s32.totalorder %s91, %s105
      %p107 = scmp.eq.s32.totalorder %s18, 0
      %p108 = por %p106, %p107
      %s110 = sadd.s32 %s109, 1
      %p113 = scmp.eq.s32.totalorder %s12, 1
      %p114 = scmp.ne.s32.totalorder %s109, %s111
      %p115 = scmp.eq.s32.totalorder %s12, 0
      %p116 = por %p114, %p115
      %p117 = scmp.ne.s32.totalorder %s109, %s111
      %p118 = scmp.eq.s32.totalorder %s17, 1
      %p119 = por %p117, %p118
      %p120 = scmp.ne.s32.totalorder %s111, %s112
      %p121 = scmp.eq.s32.totalorder %s17, 0
      %p122 = por %p120, %p121
      %p123 = scmp.ne.s32.totalorder %s111, %s112
      %p124 = scmp.eq.s32.totalorder %s18, 1
      %p125 = por %p123, %p124
      %p127 = scmp.ne.s32.totalorder %s112, %s126
      %p128 = scmp.eq.s32.totalorder %s18, 0
      %p129 = por %p127, %p128
      %s130 = ssub.s32 %s12, %s19
      %p131 = scmp.eq.s32.totalorder %s130, 0
      %s133 = sadd.s32 %s132, 1
      %s134 = scalar_select %p131, %s132, %s133
      %p137 = pneg %p131
      %p138 = scmp.eq.s32.totalorder %s12, 1
      %p139 = por %p137, %p138
      %p140 = scmp.ne.s32.totalorder %s132, %s135
      %p141 = scmp.eq.s32.totalorder %s12, 0
      %p142 = por %p140, %p141
      %p143 = scmp.ne.s32.totalorder %s132, %s135
      %p144 = scmp.eq.s32.totalorder %s17, 1
      %p145 = por %p143, %p144
      %p146 = scmp.ne.s32.totalorder %s135, %s136
      %p147 = scmp.eq.s32.totalorder %s17, 0
      %p148 = por %p146, %p147
      %p149 = scmp.ne.s32.totalorder %s135, %s136
      %p150 = scmp.eq.s32.totalorder %s18, 1
      %p151 = por %p149, %p150
      %p153 = scmp.ne.s32.totalorder %s136, %s152
      %p154 = scmp.eq.s32.totalorder %s18, 0
      %p155 = por %p153, %p154
      %p156 = scmp.le.s32.totalorder 1, %s12
      %p157 = scmp.lt.s32.totalorder %s12, 3
      %p158 = pnand %p156, %p157
      %p159 = pneg %p158
      // Predicated region
      $region9: #{forward.1} parent=5 // pred_check
        _
      $region10: #{forward.1} parent=5 // pred_check_branch
        %161 = sbr.rel (%p158) target = $region12
      $region11: #{forward.1} parent=5 // pred_region
        %s162 = ssub.s32 %s12, 1
        // Predicated region
        $region13: #{forward.1} parent=11 // pred_check
          %p163 = pneg %p59
        $region14: #{forward.1} parent=11 // pred_check_branch
          %165 = sbr.rel (%p163) target = $region16
        $region15: #{forward.1} parent=11 // pred_region
          _
        $region16: #{forward.1} parent=11 // pred_fallthru
          _
        // Predicated region
        $region17: #{forward.1} parent=11 // pred_check
          %p166 = pneg %p80
        $region18: #{forward.1} parent=11 // pred_check_branch
          %168 = sbr.rel (%p166) target = $region20
        $region19: #{forward.1} parent=11 // pred_region
          _
        $region20: #{forward.1} parent=11 // pred_fallthru
          _
        // Predicated region
        $region21: #{forward.1} parent=11 // pred_check
          %p169 = pneg %p101
        $region22: #{forward.1} parent=11 // pred_check_branch
          %171 = sbr.rel (%p169) target = $region24
        $region23: #{forward.1} parent=11 // pred_region
          _
        $region24: #{forward.1} parent=11 // pred_fallthru
          _
        // Predicated region
        $region25: #{forward.1} parent=11 // pred_check
          %p172 = pneg %p122
        $region26: #{forward.1} parent=11 // pred_check_branch
          %174 = sbr.rel (%p172) target = $region28
        $region27: #{forward.1} parent=11 // pred_region
          %176 = vsyncadd [#allocation3], 0
          %s177 = sshll.u32 %s4, 4
          %s178 = int_to_ptr.hbm [resolvable:$true] %s177
          %s179 = sshll.u32 [#allocation2], 4
          %s180 = int_to_ptr.vmem [resolvable:$true] %s179
          %185 = dma.hbm_to_vmem [thread:$0]  %s178, 6144, %s180, [#allocation3], 64, 64, 4
        $region28: #{forward.1} parent=11 // pred_fallthru
          _
      $region12: #{forward.1} parent=5 // pred_fallthru
        _
      %p186 = scmp.lt.s32.totalorder %s12, 2
      // Predicated region
      $region29: #{forward.1} parent=5 // pred_check
        %p187 = pneg %p186
      $region30: #{forward.1} parent=5 // pred_check_branch
        %189 = sbr.rel (%p187) target = $region32
      $region31: #{forward.1} parent=5 // pred_region
        // Predicated region
        $region33: #{forward.1} parent=31 // pred_check
          %p190 = pneg %p32
        $region34: #{forward.1} parent=31 // pred_check_branch
          %192 = sbr.rel (%p190) target = $region36
        $region35: #{forward.1} parent=31 // pred_region
          %s193 = smul.u32 16, %s12
          %p194 = scmp.lt.s32.totalorder %s193, 31
          %s195 = scalar_select %p194, %s193, 31
          %s196 = smul.addr %s195, 4
          %s197 = smul.addr %s196, 8
          %s198 = scalar_lea.vmem %s0, %s197
          %s199 = smul.u32 16, %s12
        $region36: #{forward.1} parent=31 // pred_fallthru
          _
      $region32: #{forward.1} parent=5 // pred_fallthru
        _
      %p200 = scmp.le.s32.totalorder 1, %s12
      %p201 = scmp.lt.s32.totalorder %s12, 3
      %p202 = pnand %p200, %p201
      %p203 = pneg %p202
      // Predicated region
      $region37: #{forward.1} parent=5 // pred_check
        _
      $region38: #{forward.1} parent=5 // pred_check_branch
        %205 = sbr.rel (%p202) target = $region40
      $region39: #{forward.1} parent=5 // pred_region
        %s206 = ssub.s32 %s12, 1
        // Predicated region
        $region41: #{forward.1} parent=39 // pred_check
          %p207 = pneg %p122
        $region42: #{forward.1} parent=39 // pred_check_branch
          %209 = sbr.rel (%p207) target = $region44
        $region43: #{forward.1} parent=39 // pred_region
          %211 = dma.done [#allocation3], 6144
        $region44: #{forward.1} parent=39 // pred_fallthru
          _
        %s212 = smul.u32 16, %s17
        %p213 = scmp.lt.s32.totalorder %s212, 31
        %s214 = scalar_select %p213, %s212, 31
        %s215 = smul.addr %s214, 4
        %s216 = smul.addr %s215, 8
        %s217 = scalar_lea.vmem %s0, %s216
        %p218 = pneg %p38
        %p219 = pneg %p35
        %p220 = pneg %p59
        %p221 = pneg %p56
        %p222 = pneg %p80
        %p223 = pneg %p77
        %p224 = pneg %p101
        %p225 = pneg %p98
        %p226 = pneg %p122
        %p227 = pneg %p119
        %p228 = pneg %p148
        %p229 = pneg %p145
        %s230 = smul.u32 2, %s17
        %p231 = scmp.lt.s32.totalorder %s230, 3
        %s232 = scalar_select %p231, %s230, 3
        %s233 = smul.addr %s232, 8
        %s234 = scalar_lea.vmem %s5, %s233
        %s235 = smul.u32 16, %s17
        %p236 = scmp.lt.s32.totalorder %s235, 31
        %s237 = scalar_select %p236, %s235, 31
        %s238 = smul.addr %s237, 4
        %s239 = smul.addr %s238, 8
        %s240 = scalar_lea.vmem %s0, %s239
        %s241 = smul.u32 16, %s17
        %s242 = smul.u32 2, %s17
        %p243 = scmp.lt.s32.totalorder %s242, 3
        %s244 = scalar_select %p243, %s242, 3
        %s245 = smul.addr %s244, 8
        %s246 = scalar_lea.vmem %s5, %s245
        %s247 = smul.u32 2, %s17
        %v249 = vld [vmem:[%s240] sm:$0xff]
        %v250 = vld [vmem:[%s240 + $0x8] sm:$0xff]
        %v251 = vld [vmem:[%s240 + $0x10] sm:$0xff]
        %v252 = vld [vmem:[%s240 + $0x18] sm:$0xf]
        %v253 = vld [vmem:[%s240 + $0x20] sm:$0xff]
        %v254 = vld [vmem:[%s240 + $0x28] sm:$0xff]
        %v255 = vld [vmem:[%s240 + $0x30] sm:$0xff]
        %v256 = vld [vmem:[%s240 + $0x38] sm:$0xf]
        %v257 = vld [vmem:[%s240 + $0x40] sm:$0xff]
        %v258 = vld [vmem:[%s240 + $0x48] sm:$0xff]
        %v259 = vld [vmem:[%s240 + $0x50] sm:$0xff]
        %v260 = vld [vmem:[%s240 + $0x58] sm:$0xf]
        %v261 = vld [vmem:[%s240 + $0x60] sm:$0xff]
        %v262 = vld [vmem:[%s240 + $0x68] sm:$0xff]
        %v263 = vld [vmem:[%s240 + $0x70] sm:$0xff]
        %v264 = vld [vmem:[%s240 + $0x78] sm:$0xf]
        %v265 = vld [vmem:[%s240 + $0x80] sm:$0xff]
        %v266 = vld [vmem:[%s240 + $0x88] sm:$0xff]
        %v267 = vld [vmem:[%s240 + $0x90] sm:$0xff]
        %v268 = vld [vmem:[%s240 + $0x98] sm:$0xf]
        %v269 = vld [vmem:[%s240 + $0xa0] sm:$0xff]
        %v270 = vld [vmem:[%s240 + $0xa8] sm:$0xff]
        %v271 = vld [vmem:[%s240 + $0xb0] sm:$0xff]
        %v272 = vld [vmem:[%s240 + $0xb8] sm:$0xf]
        %v273 = vld [vmem:[%s240 + $0xc0] sm:$0xff]
        %v274 = vld [vmem:[%s240 + $0xc8] sm:$0xff]
        %v275 = vld [vmem:[%s240 + $0xd0] sm:$0xff]
        %v276 = vld [vmem:[%s240 + $0xd8] sm:$0xf]
        %v277 = vld [vmem:[%s240 + $0xe0] sm:$0xff]
        %v278 = vld [vmem:[%s240 + $0xe8] sm:$0xff]
        %v279 = vld [vmem:[%s240 + $0xf0] sm:$0xff]
        %v280 = vld [vmem:[%s240 + $0xf8] sm:$0xf]
        %v281 = vld [vmem:[%s240 + $0x100] sm:$0xff]
        %v282 = vld [vmem:[%s240 + $0x108] sm:$0xff]
        %v283 = vld [vmem:[%s240 + $0x110] sm:$0xff]
        %v284 = vld [vmem:[%s240 + $0x118] sm:$0xf]
        %v285 = vld [vmem:[%s240 + $0x120] sm:$0xff]
        %v286 = vld [vmem:[%s240 + $0x128] sm:$0xff]
        %v287 = vld [vmem:[%s240 + $0x130] sm:$0xff]
        %v288 = vld [vmem:[%s240 + $0x138] sm:$0xf]
        %v289 = vld [vmem:[%s240 + $0x140] sm:$0xff]
        %v290 = vld [vmem:[%s240 + $0x148] sm:$0xff]
        %v291 = vld [vmem:[%s240 + $0x150] sm:$0xff]
        %v292 = vld [vmem:[%s240 + $0x158] sm:$0xf]
        %v293 = vld [vmem:[%s240 + $0x160] sm:$0xff]
        %v294 = vld [vmem:[%s240 + $0x168] sm:$0xff]
        %v295 = vld [vmem:[%s240 + $0x170] sm:$0xff]
        %v296 = vld [vmem:[%s240 + $0x178] sm:$0xf]
        %v297 = vld [vmem:[%s240 + $0x180] sm:$0xff]
        %v298 = vld [vmem:[%s240 + $0x188] sm:$0xff]
        %v299 = vld [vmem:[%s240 + $0x190] sm:$0xff]
        %v300 = vld [vmem:[%s240 + $0x198] sm:$0xf]
        %v301 = vld [vmem:[%s240 + $0x1a0] sm:$0xff]
        %v302 = vld [vmem:[%s240 + $0x1a8] sm:$0xff]
        %v303 = vld [vmem:[%s240 + $0x1b0] sm:$0xff]
        %v304 = vld [vmem:[%s240 + $0x1b8] sm:$0xf]
        %v305 = vld [vmem:[%s240 + $0x1c0] sm:$0xff]
        %v306 = vld [vmem:[%s240 + $0x1c8] sm:$0xff]
        %v307 = vld [vmem:[%s240 + $0x1d0] sm:$0xff]
        %v308 = vld [vmem:[%s240 + $0x1d8] sm:$0xf]
        %v309 = vld [vmem:[%s240 + $0x1e0] sm:$0xff]
        %v310 = vld [vmem:[%s240 + $0x1e8] sm:$0xff]
        %v311 = vld [vmem:[%s240 + $0x1f0] sm:$0xff]
        %v312 = vld [vmem:[%s240 + $0x1f8] sm:$0xf]
        %vm377 = vcmask 1046528
        %v378 = vrot.slane %v249, 1
        %v379 = vrot.slane %v250, 1
        %v380 = vsel %vm377, %v378, %v379
        %v381 = vrot.slane %v251, 1
        %v382 = vsel %vm377, %v379, %v381
        %v383 = vrot.slane %v252, 1
        %v384 = vsel %vm377, %v381, %v383
        %v385 = vrot.slane %v253, 1
        %v386 = vrot.slane %v254, 1
        %v387 = vsel %vm377, %v385, %v386
        %v388 = vrot.slane %v255, 1
        %v389 = vsel %vm377, %v386, %v388
        %v390 = vrot.slane %v256, 1
        %v391 = vsel %vm377, %v388, %v390
        %v392 = vrot.slane %v257, 1
        %v393 = vrot.slane %v258, 1
        %v394 = vsel %vm377, %v392, %v393
        %v395 = vrot.slane %v259, 1
        %v396 = vsel %vm377, %v393, %v395
        %v397 = vrot.slane %v260, 1
        %v398 = vsel %vm377, %v395, %v397
        %v399 = vrot.slane %v261, 1
        %v400 = vrot.slane %v262, 1
        %v401 = vsel %vm377, %v399, %v400
        %v402 = vrot.slane %v263, 1
        %v403 = vsel %vm377, %v400, %v402
        %v404 = vrot.slane %v264, 1
        %v405 = vsel %vm377, %v402, %v404
        %v406 = vrot.slane %v265, 1
        %v407 = vrot.slane %v266, 1
        %v408 = vsel %vm377, %v406, %v407
        %v409 = vrot.slane %v267, 1
        %v410 = vsel %vm377, %v407, %v409
        %v411 = vrot.slane %v268, 1
        %v412 = vsel %vm377, %v409, %v411
        %v413 = vrot.slane %v269, 1
        %v414 = vrot.slane %v270, 1
        %v415 = vsel %vm377, %v413, %v414
        %v416 = vrot.slane %v271, 1
        %v417 = vsel %vm377, %v414, %v416
        %v418 = vrot.slane %v272, 1
        %v419 = vsel %vm377, %v416, %v418
        %v420 = vrot.slane %v273, 1
        %v421 = vrot.slane %v274, 1
        %v422 = vsel %vm377, %v420, %v421
        %v423 = vrot.slane %v275, 1
        %v424 = vsel %vm377, %v421, %v423
        %v425 = vrot.slane %v276, 1
        %v426 = vsel %vm377, %v423, %v425
        %v427 = vrot.slane %v277, 1
        %v428 = vrot.slane %v278, 1
        %v429 = vsel %vm377, %v427, %v428
        %v430 = vrot.slane %v279, 1
        %v431 = vsel %vm377, %v428, %v430
        %v432 = vrot.slane %v280, 1
        %v433 = vsel %vm377, %v430, %v432
        %v434 = vrot.slane %v281, 1
        %v435 = vrot.slane %v282, 1
        %v436 = vsel %vm377, %v434, %v435
        %v437 = vrot.slane %v283, 1
        %v438 = vsel %vm377, %v435, %v437
        %v439 = vrot.slane %v284, 1
        %v440 = vsel %vm377, %v437, %v439
        %v441 = vrot.slane %v285, 1
        %v442 = vrot.slane %v286, 1
        %v443 = vsel %vm377, %v441, %v442
        %v444 = vrot.slane %v287, 1
        %v445 = vsel %vm377, %v442, %v444
        %v446 = vrot.slane %v288, 1
        %v447 = vsel %vm377, %v444, %v446
        %v448 = vrot.slane %v289, 1
        %v449 = vrot.slane %v290, 1
        %v450 = vsel %vm377, %v448, %v449
        %v451 = vrot.slane %v291, 1
        %v452 = vsel %vm377, %v449, %v451
        %v453 = vrot.slane %v292, 1
        %v454 = vsel %vm377, %v451, %v453
        %v455 = vrot.slane %v293, 1
        %v456 = vrot.slane %v294, 1
        %v457 = vsel %vm377, %v455, %v456
        %v458 = vrot.slane %v295, 1
        %v459 = vsel %vm377, %v456, %v458
        %v460 = vrot.slane %v296, 1
        %v461 = vsel %vm377, %v458, %v460
        %v462 = vrot.slane %v297, 1
        %v463 = vrot.slane %v298, 1
        %v464 = vsel %vm377, %v462, %v463
        %v465 = vrot.slane %v299, 1
        %v466 = vsel %vm377, %v463, %v465
        %v467 = vrot.slane %v300, 1
        %v468 = vsel %vm377, %v465, %v467
        %v469 = vrot.slane %v301, 1
        %v470 = vrot.slane %v302, 1
        %v471 = vsel %vm377, %v469, %v470
        %v472 = vrot.slane %v303, 1
        %v473 = vsel %vm377, %v470, %v472
        %v474 = vrot.slane %v304, 1
        %v475 = vsel %vm377, %v472, %v474
        %v476 = vrot.slane %v305, 1
        %v477 = vrot.slane %v306, 1
        %v478 = vsel %vm377, %v476, %v477
        %v479 = vrot.slane %v307, 1
        %v480 = vsel %vm377, %v477, %v479
        %v481 = vrot.slane %v308, 1
        %v482 = vsel %vm377, %v479, %v481
        %v483 = vrot.slane %v309, 1
        %v484 = vrot.slane %v310, 1
        %v485 = vsel %vm377, %v483, %v484
        %v486 = vrot.slane %v311, 1
        %v487 = vsel %vm377, %v484, %v486
        %v488 = vrot.slane %v312, 1
        %v489 = vsel %vm377, %v486, %v488
        %490 = vrot.lane.b32.xlu0 %v380, 28
        %v491 = vpop.permute.xlu0 %490
        %492 = vrot.lane.b32.xlu0 %v382, 28
        %v493 = vpop.permute.xlu0 %492
        %494 = vrot.lane.b32.xlu0 %v384, 28
        %v495 = vpop.permute.xlu0 %494
        %496 = vrot.lane.b32.xlu0 %v387, 28
        %v497 = vpop.permute.xlu0 %496
        %498 = vrot.lane.b32.xlu0 %v389, 28
        %v499 = vpop.permute.xlu0 %498
        %500 = vrot.lane.b32.xlu0 %v391, 28
        %v501 = vpop.permute.xlu0 %500
        %502 = vrot.lane.b32.xlu0 %v394, 28
        %v503 = vpop.permute.xlu0 %502
        %504 = vrot.lane.b32.xlu0 %v396, 28
        %v505 = vpop.permute.xlu0 %504
        %506 = vrot.lane.b32.xlu0 %v398, 28
        %v507 = vpop.permute.xlu0 %506
        %508 = vrot.lane.b32.xlu0 %v401, 28
        %v509 = vpop.permute.xlu0 %508
        %510 = vrot.lane.b32.xlu0 %v403, 28
        %v511 = vpop.permute.xlu0 %510
        %512 = vrot.lane.b32.xlu0 %v405, 28
        %v513 = vpop.permute.xlu0 %512
        %514 = vrot.lane.b32.xlu0 %v408, 28
        %v515 = vpop.permute.xlu0 %514
        %516 = vrot.lane.b32.xlu0 %v410, 28
        %v517 = vpop.permute.xlu0 %516
        %518 = vrot.lane.b32.xlu0 %v412, 28
        %v519 = vpop.permute.xlu0 %518
        %520 = vrot.lane.b32.xlu0 %v415, 28
        %v521 = vpop.permute.xlu0 %520
        %522 = vrot.lane.b32.xlu0 %v417, 28
        %v523 = vpop.permute.xlu0 %522
        %524 = vrot.lane.b32.xlu0 %v419, 28
        %v525 = vpop.permute.xlu0 %524
        %526 = vrot.lane.b32.xlu0 %v422, 28
        %v527 = vpop.permute.xlu0 %526
        %528 = vrot.lane.b32.xlu0 %v424, 28
        %v529 = vpop.permute.xlu0 %528
        %530 = vrot.lane.b32.xlu0 %v426, 28
        %v531 = vpop.permute.xlu0 %530
        %532 = vrot.lane.b32.xlu0 %v429, 28
        %v533 = vpop.permute.xlu0 %532
        %534 = vrot.lane.b32.xlu0 %v431, 28
        %v535 = vpop.permute.xlu0 %534
        %536 = vrot.lane.b32.xlu0 %v433, 28
        %v537 = vpop.permute.xlu0 %536
        %538 = vrot.lane.b32.xlu0 %v436, 28
        %v539 = vpop.permute.xlu0 %538
        %540 = vrot.lane.b32.xlu0 %v438, 28
        %v541 = vpop.permute.xlu0 %540
        %542 = vrot.lane.b32.xlu0 %v440, 28
        %v543 = vpop.permute.xlu0 %542
        %544 = vrot.lane.b32.xlu0 %v443, 28
        %v545 = vpop.permute.xlu0 %544
        %546 = vrot.lane.b32.xlu0 %v445, 28
        %v547 = vpop.permute.xlu0 %546
        %548 = vrot.lane.b32.xlu0 %v447, 28
        %v549 = vpop.permute.xlu0 %548
        %550 = vrot.lane.b32.xlu0 %v450, 28
        %v551 = vpop.permute.xlu0 %550
        %552 = vrot.lane.b32.xlu0 %v452, 28
        %v553 = vpop.permute.xlu0 %552
        %554 = vrot.lane.b32.xlu0 %v454, 28
        %v555 = vpop.permute.xlu0 %554
        %556 = vrot.lane.b32.xlu0 %v457, 28
        %v557 = vpop.permute.xlu0 %556
        %558 = vrot.lane.b32.xlu0 %v459, 28
        %v559 = vpop.permute.xlu0 %558
        %560 = vrot.lane.b32.xlu0 %v461, 28
        %v561 = vpop.permute.xlu0 %560
        %562 = vrot.lane.b32.xlu0 %v464, 28
        %v563 = vpop.permute.xlu0 %562
        %564 = vrot.lane.b32.xlu0 %v466, 28
        %v565 = vpop.permute.xlu0 %564
        %566 = vrot.lane.b32.xlu0 %v468, 28
        %v567 = vpop.permute.xlu0 %566
        %568 = vrot.lane.b32.xlu0 %v471, 28
        %v569 = vpop.permute.xlu0 %568
        %570 = vrot.lane.b32.xlu0 %v473, 28
        %v571 = vpop.permute.xlu0 %570
        %572 = vrot.lane.b32.xlu0 %v475, 28
        %v573 = vpop.permute.xlu0 %572
        %574 = vrot.lane.b32.xlu0 %v478, 28
        %v575 = vpop.permute.xlu0 %574
        %576 = vrot.lane.b32.xlu0 %v480, 28
        %v577 = vpop.permute.xlu0 %576
        %578 = vrot.lane.b32.xlu0 %v482, 28
        %v579 = vpop.permute.xlu0 %578
        %580 = vrot.lane.b32.xlu0 %v485, 28
        %v581 = vpop.permute.xlu0 %580
        %582 = vrot.lane.b32.xlu0 %v487, 28
        %v583 = vpop.permute.xlu0 %582
        %584 = vrot.lane.b32.xlu0 %v489, 28
        %v585 = vpop.permute.xlu0 %584
        %vm634 = vcmask 1045504
        %v635 = vrot.slane %v249, 2
        %v636 = vrot.slane %v250, 2
        %v637 = vsel %vm634, %v635, %v636
        %v638 = vrot.slane %v251, 2
        %v639 = vsel %vm634, %v636, %v638
        %v640 = vrot.slane %v252, 2
        %v641 = vsel %vm634, %v638, %v640
        %v642 = vrot.slane %v253, 2
        %v643 = vrot.slane %v254, 2
        %v644 = vsel %vm634, %v642, %v643
        %v645 = vrot.slane %v255, 2
        %v646 = vsel %vm634, %v643, %v645
        %v647 = vrot.slane %v256, 2
        %v648 = vsel %vm634, %v645, %v647
        %v649 = vrot.slane %v257, 2
        %v650 = vrot.slane %v258, 2
        %v651 = vsel %vm634, %v649, %v650
        %v652 = vrot.slane %v259, 2
        %v653 = vsel %vm634, %v650, %v652
        %v654 = vrot.slane %v260, 2
        %v655 = vsel %vm634, %v652, %v654
        %v656 = vrot.slane %v261, 2
        %v657 = vrot.slane %v262, 2
        %v658 = vsel %vm634, %v656, %v657
        %v659 = vrot.slane %v263, 2
        %v660 = vsel %vm634, %v657, %v659
        %v661 = vrot.slane %v264, 2
        %v662 = vsel %vm634, %v659, %v661
        %v663 = vrot.slane %v265, 2
        %v664 = vrot.slane %v266, 2
        %v665 = vsel %vm634, %v663, %v664
        %v666 = vrot.slane %v267, 2
        %v667 = vsel %vm634, %v664, %v666
        %v668 = vrot.slane %v268, 2
        %v669 = vsel %vm634, %v666, %v668
        %v670 = vrot.slane %v269, 2
        %v671 = vrot.slane %v270, 2
        %v672 = vsel %vm634, %v670, %v671
        %v673 = vrot.slane %v271, 2
        %v674 = vsel %vm634, %v671, %v673
        %v675 = vrot.slane %v272, 2
        %v676 = vsel %vm634, %v673, %v675
        %v677 = vrot.slane %v273, 2
        %v678 = vrot.slane %v274, 2
        %v679 = vsel %vm634, %v677, %v678
        %v680 = vrot.slane %v275, 2
        %v681 = vsel %vm634, %v678, %v680
        %v682 = vrot.slane %v276, 2
        %v683 = vsel %vm634, %v680, %v682
        %v684 = vrot.slane %v277, 2
        %v685 = vrot.slane %v278, 2
        %v686 = vsel %vm634, %v684, %v685
        %v687 = vrot.slane %v279, 2
        %v688 = vsel %vm634, %v685, %v687
        %v689 = vrot.slane %v280, 2
        %v690 = vsel %vm634, %v687, %v689
        %v691 = vrot.slane %v281, 2
        %v692 = vrot.slane %v282, 2
        %v693 = vsel %vm634, %v691, %v692
        %v694 = vrot.slane %v283, 2
        %v695 = vsel %vm634, %v692, %v694
        %v696 = vrot.slane %v284, 2
        %v697 = vsel %vm634, %v694, %v696
        %v698 = vrot.slane %v285, 2
        %v699 = vrot.slane %v286, 2
        %v700 = vsel %vm634, %v698, %v699
        %v701 = vrot.slane %v287, 2
        %v702 = vsel %vm634, %v699, %v701
        %v703 = vrot.slane %v288, 2
        %v704 = vsel %vm634, %v701, %v703
        %v705 = vrot.slane %v289, 2
        %v706 = vrot.slane %v290, 2
        %v707 = vsel %vm634, %v705, %v706
        %v708 = vrot.slane %v291, 2
        %v709 = vsel %vm634, %v706, %v708
        %v710 = vrot.slane %v292, 2
        %v711 = vsel %vm634, %v708, %v710
        %v712 = vrot.slane %v293, 2
        %v713 = vrot.slane %v294, 2
        %v714 = vsel %vm634, %v712, %v713
        %v715 = vrot.slane %v295, 2
        %v716 = vsel %vm634, %v713, %v715
        %v717 = vrot.slane %v296, 2
        %v718 = vsel %vm634, %v715, %v717
        %v719 = vrot.slane %v297, 2
        %v720 = vrot.slane %v298, 2
        %v721 = vsel %vm634, %v719, %v720
        %v722 = vrot.slane %v299, 2
        %v723 = vsel %vm634, %v720, %v722
        %v724 = vrot.slane %v300, 2
        %v725 = vsel %vm634, %v722, %v724
        %v726 = vrot.slane %v301, 2
        %v727 = vrot.slane %v302, 2
        %v728 = vsel %vm634, %v726, %v727
        %v729 = vrot.slane %v303, 2
        %v730 = vsel %vm634, %v727, %v729
        %v731 = vrot.slane %v304, 2
        %v732 = vsel %vm634, %v729, %v731
        %v733 = vrot.slane %v305, 2
        %v734 = vrot.slane %v306, 2
        %v735 = vsel %vm634, %v733, %v734
        %v736 = vrot.slane %v307, 2
        %v737 = vsel %vm634, %v734, %v736
        %v738 = vrot.slane %v308, 2
        %v739 = vsel %vm634, %v736, %v738
        %v740 = vrot.slane %v309, 2
        %v741 = vrot.slane %v310, 2
        %v742 = vsel %vm634, %v740, %v741
        %v743 = vrot.slane %v311, 2
        %v744 = vsel %vm634, %v741, %v743
        %v745 = vrot.slane %v312, 2
        %v746 = vsel %vm634, %v743, %v745
        %747 = vrot.lane.b32.xlu0 %v637, 56
        %v748 = vpop.permute.xlu0 %747
        %749 = vrot.lane.b32.xlu0 %v639, 56
        %v750 = vpop.permute.xlu0 %749
        %751 = vrot.lane.b32.xlu0 %v641, 56
        %v752 = vpop.permute.xlu0 %751
        %753 = vrot.lane.b32.xlu0 %v644, 56
        %v754 = vpop.permute.xlu0 %753
        %755 = vrot.lane.b32.xlu0 %v646, 56
        %v756 = vpop.permute.xlu0 %755
        %757 = vrot.lane.b32.xlu0 %v648, 56
        %v758 = vpop.permute.xlu0 %757
        %759 = vrot.lane.b32.xlu0 %v651, 56
        %v760 = vpop.permute.xlu0 %759
        %761 = vrot.lane.b32.xlu0 %v653, 56
        %v762 = vpop.permute.xlu0 %761
        %763 = vrot.lane.b32.xlu0 %v655, 56
        %v764 = vpop.permute.xlu0 %763
        %765 = vrot.lane.b32.xlu0 %v658, 56
        %v766 = vpop.permute.xlu0 %765
        %767 = vrot.lane.b32.xlu0 %v660, 56
        %v768 = vpop.permute.xlu0 %767
        %769 = vrot.lane.b32.xlu0 %v662, 56
        %v770 = vpop.permute.xlu0 %769
        %771 = vrot.lane.b32.xlu0 %v665, 56
        %v772 = vpop.permute.xlu0 %771
        %773 = vrot.lane.b32.xlu0 %v667, 56
        %v774 = vpop.permute.xlu0 %773
        %775 = vrot.lane.b32.xlu0 %v669, 56
        %v776 = vpop.permute.xlu0 %775
        %777 = vrot.lane.b32.xlu0 %v672, 56
        %v778 = vpop.permute.xlu0 %777
        %779 = vrot.lane.b32.xlu0 %v674, 56
        %v780 = vpop.permute.xlu0 %779
        %781 = vrot.lane.b32.xlu0 %v676, 56
        %v782 = vpop.permute.xlu0 %781
        %783 = vrot.lane.b32.xlu0 %v679, 56
        %v784 = vpop.permute.xlu0 %783
        %785 = vrot.lane.b32.xlu0 %v681, 56
        %v786 = vpop.permute.xlu0 %785
        %787 = vrot.lane.b32.xlu0 %v683, 56
        %v788 = vpop.permute.xlu0 %787
        %789 = vrot.lane.b32.xlu0 %v686, 56
        %v790 = vpop.permute.xlu0 %789
        %791 = vrot.lane.b32.xlu0 %v688, 56
        %v792 = vpop.permute.xlu0 %791
        %793 = vrot.lane.b32.xlu0 %v690, 56
        %v794 = vpop.permute.xlu0 %793
        %795 = vrot.lane.b32.xlu0 %v693, 56
        %v796 = vpop.permute.xlu0 %795
        %797 = vrot.lane.b32.xlu0 %v695, 56
        %v798 = vpop.permute.xlu0 %797
        %799 = vrot.lane.b32.xlu0 %v697, 56
        %v800 = vpop.permute.xlu0 %799
        %801 = vrot.lane.b32.xlu0 %v700, 56
        %v802 = vpop.permute.xlu0 %801
        %803 = vrot.lane.b32.xlu0 %v702, 56
        %v804 = vpop.permute.xlu0 %803
        %805 = vrot.lane.b32.xlu0 %v704, 56
        %v806 = vpop.permute.xlu0 %805
        %807 = vrot.lane.b32.xlu0 %v707, 56
        %v808 = vpop.permute.xlu0 %807
        %809 = vrot.lane.b32.xlu0 %v709, 56
        %v810 = vpop.permute.xlu0 %809
        %811 = vrot.lane.b32.xlu0 %v711, 56
        %v812 = vpop.permute.xlu0 %811
        %813 = vrot.lane.b32.xlu0 %v714, 56
        %v814 = vpop.permute.xlu0 %813
        %815 = vrot.lane.b32.xlu0 %v716, 56
        %v816 = vpop.permute.xlu0 %815
        %817 = vrot.lane.b32.xlu0 %v718, 56
        %v818 = vpop.permute.xlu0 %817
        %819 = vrot.lane.b32.xlu0 %v721, 56
        %v820 = vpop.permute.xlu0 %819
        %821 = vrot.lane.b32.xlu0 %v723, 56
        %v822 = vpop.permute.xlu0 %821
        %823 = vrot.lane.b32.xlu0 %v725, 56
        %v824 = vpop.permute.xlu0 %823
        %825 = vrot.lane.b32.xlu0 %v728, 56
        %v826 = vpop.permute.xlu0 %825
        %827 = vrot.lane.b32.xlu0 %v730, 56
        %v828 = vpop.permute.xlu0 %827
        %829 = vrot.lane.b32.xlu0 %v732, 56
        %v830 = vpop.permute.xlu0 %829
        %831 = vrot.lane.b32.xlu0 %v735, 56
        %v832 = vpop.permute.xlu0 %831
        %833 = vrot.lane.b32.xlu0 %v737, 56
        %v834 = vpop.permute.xlu0 %833
        %835 = vrot.lane.b32.xlu0 %v739, 56
        %v836 = vpop.permute.xlu0 %835
        %837 = vrot.lane.b32.xlu0 %v742, 56
        %v838 = vpop.permute.xlu0 %837
        %839 = vrot.lane.b32.xlu0 %v744, 56
        %v840 = vpop.permute.xlu0 %839
        %841 = vrot.lane.b32.xlu0 %v746, 56
        %v842 = vpop.permute.xlu0 %841
        %vm891 = vcmask 1044480
        %v892 = vrot.slane %v249, 3
        %v893 = vrot.slane %v250, 3
        %v894 = vsel %vm891, %v892, %v893
        %v895 = vrot.slane %v251, 3
        %v896 = vsel %vm891, %v893, %v895
        %v897 = vrot.slane %v252, 3
        %v898 = vsel %vm891, %v895, %v897
        %v899 = vrot.slane %v253, 3
        %v900 = vrot.slane %v254, 3
        %v901 = vsel %vm891, %v899, %v900
        %v902 = vrot.slane %v255, 3
        %v903 = vsel %vm891, %v900, %v902
        %v904 = vrot.slane %v256, 3
        %v905 = vsel %vm891, %v902, %v904
        %v906 = vrot.slane %v257, 3
        %v907 = vrot.slane %v258, 3
        %v908 = vsel %vm891, %v906, %v907
        %v909 = vrot.slane %v259, 3
        %v910 = vsel %vm891, %v907, %v909
        %v911 = vrot.slane %v260, 3
        %v912 = vsel %vm891, %v909, %v911
        %v913 = vrot.slane %v261, 3
        %v914 = vrot.slane %v262, 3
        %v915 = vsel %vm891, %v913, %v914
        %v916 = vrot.slane %v263, 3
        %v917 = vsel %vm891, %v914, %v916
        %v918 = vrot.slane %v264, 3
        %v919 = vsel %vm891, %v916, %v918
        %v920 = vrot.slane %v265, 3
        %v921 = vrot.slane %v266, 3
        %v922 = vsel %vm891, %v920, %v921
        %v923 = vrot.slane %v267, 3
        %v924 = vsel %vm891, %v921, %v923
        %v925 = vrot.slane %v268, 3
        %v926 = vsel %vm891, %v923, %v925
        %v927 = vrot.slane %v269, 3
        %v928 = vrot.slane %v270, 3
        %v929 = vsel %vm891, %v927, %v928
        %v930 = vrot.slane %v271, 3
        %v931 = vsel %vm891, %v928, %v930
        %v932 = vrot.slane %v272, 3
        %v933 = vsel %vm891, %v930, %v932
        %v934 = vrot.slane %v273, 3
        %v935 = vrot.slane %v274, 3
        %v936 = vsel %vm891, %v934, %v935
        %v937 = vrot.slane %v275, 3
        %v938 = vsel %vm891, %v935, %v937
        %v939 = vrot.slane %v276, 3
        %v940 = vsel %vm891, %v937, %v939
        %v941 = vrot.slane %v277, 3
        %v942 = vrot.slane %v278, 3
        %v943 = vsel %vm891, %v941, %v942
        %v944 = vrot.slane %v279, 3
        %v945 = vsel %vm891, %v942, %v944
        %v946 = vrot.slane %v280, 3
        %v947 = vsel %vm891, %v944, %v946
        %v948 = vrot.slane %v281, 3
        %v949 = vrot.slane %v282, 3
        %v950 = vsel %vm891, %v948, %v949
        %v951 = vrot.slane %v283, 3
        %v952 = vsel %vm891, %v949, %v951
        %v953 = vrot.slane %v284, 3
        %v954 = vsel %vm891, %v951, %v953
        %v955 = vrot.slane %v285, 3
        %v956 = vrot.slane %v286, 3
        %v957 = vsel %vm891, %v955, %v956
        %v958 = vrot.slane %v287, 3
        %v959 = vsel %vm891, %v956, %v958
        %v960 = vrot.slane %v288, 3
        %v961 = vsel %vm891, %v958, %v960
        %v962 = vrot.slane %v289, 3
        %v963 = vrot.slane %v290, 3
        %v964 = vsel %vm891, %v962, %v963
        %v965 = vrot.slane %v291, 3
        %v966 = vsel %vm891, %v963, %v965
        %v967 = vrot.slane %v292, 3
        %v968 = vsel %vm891, %v965, %v967
        %v969 = vrot.slane %v293, 3
        %v970 = vrot.slane %v294, 3
        %v971 = vsel %vm891, %v969, %v970
        %v972 = vrot.slane %v295, 3
        %v973 = vsel %vm891, %v970, %v972
        %v974 = vrot.slane %v296, 3
        %v975 = vsel %vm891, %v972, %v974
        %v976 = vrot.slane %v297, 3
        %v977 = vrot.slane %v298, 3
        %v978 = vsel %vm891, %v976, %v977
        %v979 = vrot.slane %v299, 3
        %v980 = vsel %vm891, %v977, %v979
        %v981 = vrot.slane %v300, 3
        %v982 = vsel %vm891, %v979, %v981
        %v983 = vrot.slane %v301, 3
        %v984 = vrot.slane %v302, 3
        %v985 = vsel %vm891, %v983, %v984
        %v986 = vrot.slane %v303, 3
        %v987 = vsel %vm891, %v984, %v986
        %v988 = vrot.slane %v304, 3
        %v989 = vsel %vm891, %v986, %v988
        %v990 = vrot.slane %v305, 3
        %v991 = vrot.slane %v306, 3
        %v992 = vsel %vm891, %v990, %v991
        %v993 = vrot.slane %v307, 3
        %v994 = vsel %vm891, %v991, %v993
        %v995 = vrot.slane %v308, 3
        %v996 = vsel %vm891, %v993, %v995
        %v997 = vrot.slane %v309, 3
        %v998 = vrot.slane %v310, 3
        %v999 = vsel %vm891, %v997, %v998
        %v1000 = vrot.slane %v311, 3
        %v1001 = vsel %vm891, %v998, %v1000
        %v1002 = vrot.slane %v312, 3
        %v1003 = vsel %vm891, %v1000, %v1002
        %1004 = vrot.lane.b32.xlu0 %v894, 84
        %v1005 = vpop.permute.xlu0 %1004
        %1006 = vrot.lane.b32.xlu0 %v896, 84
        %v1007 = vpop.permute.xlu0 %1006
        %1008 = vrot.lane.b32.xlu0 %v898, 84
        %v1009 = vpop.permute.xlu0 %1008
        %1010 = vrot.lane.b32.xlu0 %v901, 84
        %v1011 = vpop.permute.xlu0 %1010
        %1012 = vrot.lane.b32.xlu0 %v903, 84
        %v1013 = vpop.permute.xlu0 %1012
        %1014 = vrot.lane.b32.xlu0 %v905, 84
        %v1015 = vpop.permute.xlu0 %1014
        %1016 = vrot.lane.b32.xlu0 %v908, 84
        %v1017 = vpop.permute.xlu0 %1016
        %1018 = vrot.lane.b32.xlu0 %v910, 84
        %v1019 = vpop.permute.xlu0 %1018
        %1020 = vrot.lane.b32.xlu0 %v912, 84
        %v1021 = vpop.permute.xlu0 %1020
        %1022 = vrot.lane.b32.xlu0 %v915, 84
        %v1023 = vpop.permute.xlu0 %1022
        %1024 = vrot.lane.b32.xlu0 %v917, 84
        %v1025 = vpop.permute.xlu0 %1024
        %1026 = vrot.lane.b32.xlu0 %v919, 84
        %v1027 = vpop.permute.xlu0 %1026
        %1028 = vrot.lane.b32.xlu0 %v922, 84
        %v1029 = vpop.permute.xlu0 %1028
        %1030 = vrot.lane.b32.xlu0 %v924, 84
        %v1031 = vpop.permute.xlu0 %1030
        %1032 = vrot.lane.b32.xlu0 %v926, 84
        %v1033 = vpop.permute.xlu0 %1032
        %1034 = vrot.lane.b32.xlu0 %v929, 84
        %v1035 = vpop.permute.xlu0 %1034
        %1036 = vrot.lane.b32.xlu0 %v931, 84
        %v1037 = vpop.permute.xlu0 %1036
        %1038 = vrot.lane.b32.xlu0 %v933, 84
        %v1039 = vpop.permute.xlu0 %1038
        %1040 = vrot.lane.b32.xlu0 %v936, 84
        %v1041 = vpop.permute.xlu0 %1040
        %1042 = vrot.lane.b32.xlu0 %v938, 84
        %v1043 = vpop.permute.xlu0 %1042
        %1044 = vrot.lane.b32.xlu0 %v940, 84
        %v1045 = vpop.permute.xlu0 %1044
        %1046 = vrot.lane.b32.xlu0 %v943, 84
        %v1047 = vpop.permute.xlu0 %1046
        %1048 = vrot.lane.b32.xlu0 %v945, 84
        %v1049 = vpop.permute.xlu0 %1048
        %1050 = vrot.lane.b32.xlu0 %v947, 84
        %v1051 = vpop.permute.xlu0 %1050
        %1052 = vrot.lane.b32.xlu0 %v950, 84
        %v1053 = vpop.permute.xlu0 %1052
        %1054 = vrot.lane.b32.xlu0 %v952, 84
        %v1055 = vpop.permute.xlu0 %1054
        %1056 = vrot.lane.b32.xlu0 %v954, 84
        %v1057 = vpop.permute.xlu0 %1056
        %1058 = vrot.lane.b32.xlu0 %v957, 84
        %v1059 = vpop.permute.xlu0 %1058
        %1060 = vrot.lane.b32.xlu0 %v959, 84
        %v1061 = vpop.permute.xlu0 %1060
        %1062 = vrot.lane.b32.xlu0 %v961, 84
        %v1063 = vpop.permute.xlu0 %1062
        %1064 = vrot.lane.b32.xlu0 %v964, 84
        %v1065 = vpop.permute.xlu0 %1064
        %1066 = vrot.lane.b32.xlu0 %v966, 84
        %v1067 = vpop.permute.xlu0 %1066
        %1068 = vrot.lane.b32.xlu0 %v968, 84
        %v1069 = vpop.permute.xlu0 %1068
        %1070 = vrot.lane.b32.xlu0 %v971, 84
        %v1071 = vpop.permute.xlu0 %1070
        %1072 = vrot.lane.b32.xlu0 %v973, 84
        %v1073 = vpop.permute.xlu0 %1072
        %1074 = vrot.lane.b32.xlu0 %v975, 84
        %v1075 = vpop.permute.xlu0 %1074
        %1076 = vrot.lane.b32.xlu0 %v978, 84
        %v1077 = vpop.permute.xlu0 %1076
        %1078 = vrot.lane.b32.xlu0 %v980, 84
        %v1079 = vpop.permute.xlu0 %1078
        %1080 = vrot.lane.b32.xlu0 %v982, 84
        %v1081 = vpop.permute.xlu0 %1080
        %1082 = vrot.lane.b32.xlu0 %v985, 84
        %v1083 = vpop.permute.xlu0 %1082
        %1084 = vrot.lane.b32.xlu0 %v987, 84
        %v1085 = vpop.permute.xlu0 %1084
        %1086 = vrot.lane.b32.xlu0 %v989, 84
        %v1087 = vpop.permute.xlu0 %1086
        %1088 = vrot.lane.b32.xlu0 %v992, 84
        %v1089 = vpop.permute.xlu0 %1088
        %1090 = vrot.lane.b32.xlu0 %v994, 84
        %v1091 = vpop.permute.xlu0 %1090
        %1092 = vrot.lane.b32.xlu0 %v996, 84
        %v1093 = vpop.permute.xlu0 %1092
        %1094 = vrot.lane.b32.xlu0 %v999, 84
        %v1095 = vpop.permute.xlu0 %1094
        %1096 = vrot.lane.b32.xlu0 %v1001, 84
        %v1097 = vpop.permute.xlu0 %1096
        %1098 = vrot.lane.b32.xlu0 %v1003, 84
        %v1099 = vpop.permute.xlu0 %1098
        %vm1148 = vcmask 1043456
        %v1149 = vrot.slane %v249, 4
        %v1150 = vrot.slane %v250, 4
        %v1151 = vsel %vm1148, %v1149, %v1150
        %v1152 = vrot.slane %v251, 4
        %v1153 = vsel %vm1148, %v1150, %v1152
        %v1154 = vrot.slane %v252, 4
        %v1155 = vsel %vm1148, %v1152, %v1154
        %v1156 = vrot.slane %v253, 4
        %v1157 = vrot.slane %v254, 4
        %v1158 = vsel %vm1148, %v1156, %v1157
        %v1159 = vrot.slane %v255, 4
        %v1160 = vsel %vm1148, %v1157, %v1159
        %v1161 = vrot.slane %v256, 4
        %v1162 = vsel %vm1148, %v1159, %v1161
        %v1163 = vrot.slane %v257, 4
        %v1164 = vrot.slane %v258, 4
        %v1165 = vsel %vm1148, %v1163, %v1164
        %v1166 = vrot.slane %v259, 4
        %v1167 = vsel %vm1148, %v1164, %v1166
        %v1168 = vrot.slane %v260, 4
        %v1169 = vsel %vm1148, %v1166, %v1168
        %v1170 = vrot.slane %v261, 4
        %v1171 = vrot.slane %v262, 4
        %v1172 = vsel %vm1148, %v1170, %v1171
        %v1173 = vrot.slane %v263, 4
        %v1174 = vsel %vm1148, %v1171, %v1173
        %v1175 = vrot.slane %v264, 4
        %v1176 = vsel %vm1148, %v1173, %v1175
        %v1177 = vrot.slane %v265, 4
        %v1178 = vrot.slane %v266, 4
        %v1179 = vsel %vm1148, %v1177, %v1178
        %v1180 = vrot.slane %v267, 4
        %v1181 = vsel %vm1148, %v1178, %v1180
        %v1182 = vrot.slane %v268, 4
        %v1183 = vsel %vm1148, %v1180, %v1182
        %v1184 = vrot.slane %v269, 4
        %v1185 = vrot.slane %v270, 4
        %v1186 = vsel %vm1148, %v1184, %v1185
        %v1187 = vrot.slane %v271, 4
        %v1188 = vsel %vm1148, %v1185, %v1187
        %v1189 = vrot.slane %v272, 4
        %v1190 = vsel %vm1148, %v1187, %v1189
        %v1191 = vrot.slane %v273, 4
        %v1192 = vrot.slane %v274, 4
        %v1193 = vsel %vm1148, %v1191, %v1192
        %v1194 = vrot.slane %v275, 4
        %v1195 = vsel %vm1148, %v1192, %v1194
        %v1196 = vrot.slane %v276, 4
        %v1197 = vsel %vm1148, %v1194, %v1196
        %v1198 = vrot.slane %v277, 4
        %v1199 = vrot.slane %v278, 4
        %v1200 = vsel %vm1148, %v1198, %v1199
        %v1201 = vrot.slane %v279, 4
        %v1202 = vsel %vm1148, %v1199, %v1201
        %v1203 = vrot.slane %v280, 4
        %v1204 = vsel %vm1148, %v1201, %v1203
        %v1205 = vrot.slane %v281, 4
        %v1206 = vrot.slane %v282, 4
        %v1207 = vsel %vm1148, %v1205, %v1206
        %v1208 = vrot.slane %v283, 4
        %v1209 = vsel %vm1148, %v1206, %v1208
        %v1210 = vrot.slane %v284, 4
        %v1211 = vsel %vm1148, %v1208, %v1210
        %v1212 = vrot.slane %v285, 4
        %v1213 = vrot.slane %v286, 4
        %v1214 = vsel %vm1148, %v1212, %v1213
        %v1215 = vrot.slane %v287, 4
        %v1216 = vsel %vm1148, %v1213, %v1215
        %v1217 = vrot.slane %v288, 4
        %v1218 = vsel %vm1148, %v1215, %v1217
        %v1219 = vrot.slane %v289, 4
        %v1220 = vrot.slane %v290, 4
        %v1221 = vsel %vm1148, %v1219, %v1220
        %v1222 = vrot.slane %v291, 4
        %v1223 = vsel %vm1148, %v1220, %v1222
        %v1224 = vrot.slane %v292, 4
        %v1225 = vsel %vm1148, %v1222, %v1224
        %v1226 = vrot.slane %v293, 4
        %v1227 = vrot.slane %v294, 4
        %v1228 = vsel %vm1148, %v1226, %v1227
        %v1229 = vrot.slane %v295, 4
        %v1230 = vsel %vm1148, %v1227, %v1229
        %v1231 = vrot.slane %v296, 4
        %v1232 = vsel %vm1148, %v1229, %v1231
        %v1233 = vrot.slane %v297, 4
        %v1234 = vrot.slane %v298, 4
        %v1235 = vsel %vm1148, %v1233, %v1234
        %v1236 = vrot.slane %v299, 4
        %v1237 = vsel %vm1148, %v1234, %v1236
        %v1238 = vrot.slane %v300, 4
        %v1239 = vsel %vm1148, %v1236, %v1238
        %v1240 = vrot.slane %v301, 4
        %v1241 = vrot.slane %v302, 4
        %v1242 = vsel %vm1148, %v1240, %v1241
        %v1243 = vrot.slane %v303, 4
        %v1244 = vsel %vm1148, %v1241, %v1243
        %v1245 = vrot.slane %v304, 4
        %v1246 = vsel %vm1148, %v1243, %v1245
        %v1247 = vrot.slane %v305, 4
        %v1248 = vrot.slane %v306, 4
        %v1249 = vsel %vm1148, %v1247, %v1248
        %v1250 = vrot.slane %v307, 4
        %v1251 = vsel %vm1148, %v1248, %v1250
        %v1252 = vrot.slane %v308, 4
        %v1253 = vsel %vm1148, %v1250, %v1252
        %v1254 = vrot.slane %v309, 4
        %v1255 = vrot.slane %v310, 4
        %v1256 = vsel %vm1148, %v1254, %v1255
        %v1257 = vrot.slane %v311, 4
        %v1258 = vsel %vm1148, %v1255, %v1257
        %v1259 = vrot.slane %v312, 4
        %v1260 = vsel %vm1148, %v1257, %v1259
        %1261 = vrot.lane.b32.xlu0 %v1151, 112
        %v1262 = vpop.permute.xlu0 %1261
        %1263 = vrot.lane.b32.xlu0 %v1153, 112
        %v1264 = vpop.permute.xlu0 %1263
        %1265 = vrot.lane.b32.xlu0 %v1155, 112
        %v1266 = vpop.permute.xlu0 %1265
        %1267 = vrot.lane.b32.xlu0 %v1158, 112
        %v1268 = vpop.permute.xlu0 %1267
        %1269 = vrot.lane.b32.xlu0 %v1160, 112
        %v1270 = vpop.permute.xlu0 %1269
        %1271 = vrot.lane.b32.xlu0 %v1162, 112
        %v1272 = vpop.permute.xlu0 %1271
        %1273 = vrot.lane.b32.xlu0 %v1165, 112
        %v1274 = vpop.permute.xlu0 %1273
        %1275 = vrot.lane.b32.xlu0 %v1167, 112
        %v1276 = vpop.permute.xlu0 %1275
        %1277 = vrot.lane.b32.xlu0 %v1169, 112
        %v1278 = vpop.permute.xlu0 %1277
        %1279 = vrot.lane.b32.xlu0 %v1172, 112
        %v1280 = vpop.permute.xlu0 %1279
        %1281 = vrot.lane.b32.xlu0 %v1174, 112
        %v1282 = vpop.permute.xlu0 %1281
        %1283 = vrot.lane.b32.xlu0 %v1176, 112
        %v1284 = vpop.permute.xlu0 %1283
        %1285 = vrot.lane.b32.xlu0 %v1179, 112
        %v1286 = vpop.permute.xlu0 %1285
        %1287 = vrot.lane.b32.xlu0 %v1181, 112
        %v1288 = vpop.permute.xlu0 %1287
        %1289 = vrot.lane.b32.xlu0 %v1183, 112
        %v1290 = vpop.permute.xlu0 %1289
        %1291 = vrot.lane.b32.xlu0 %v1186, 112
        %v1292 = vpop.permute.xlu0 %1291
        %1293 = vrot.lane.b32.xlu0 %v1188, 112
        %v1294 = vpop.permute.xlu0 %1293
        %1295 = vrot.lane.b32.xlu0 %v1190, 112
        %v1296 = vpop.permute.xlu0 %1295
        %1297 = vrot.lane.b32.xlu0 %v1193, 112
        %v1298 = vpop.permute.xlu0 %1297
        %1299 = vrot.lane.b32.xlu0 %v1195, 112
        %v1300 = vpop.permute.xlu0 %1299
        %1301 = vrot.lane.b32.xlu0 %v1197, 112
        %v1302 = vpop.permute.xlu0 %1301
        %1303 = vrot.lane.b32.xlu0 %v1200, 112
        %v1304 = vpop.permute.xlu0 %1303
        %1305 = vrot.lane.b32.xlu0 %v1202, 112
        %v1306 = vpop.permute.xlu0 %1305
        %1307 = vrot.lane.b32.xlu0 %v1204, 112
        %v1308 = vpop.permute.xlu0 %1307
        %1309 = vrot.lane.b32.xlu0 %v1207, 112
        %v1310 = vpop.permute.xlu0 %1309
        %1311 = vrot.lane.b32.xlu0 %v1209, 112
        %v1312 = vpop.permute.xlu0 %1311
        %1313 = vrot.lane.b32.xlu0 %v1211, 112
        %v1314 = vpop.permute.xlu0 %1313
        %1315 = vrot.lane.b32.xlu0 %v1214, 112
        %v1316 = vpop.permute.xlu0 %1315
        %1317 = vrot.lane.b32.xlu0 %v1216, 112
        %v1318 = vpop.permute.xlu0 %1317
        %1319 = vrot.lane.b32.xlu0 %v1218, 112
        %v1320 = vpop.permute.xlu0 %1319
        %1321 = vrot.lane.b32.xlu0 %v1221, 112
        %v1322 = vpop.permute.xlu0 %1321
        %1323 = vrot.lane.b32.xlu0 %v1223, 112
        %v1324 = vpop.permute.xlu0 %1323
        %1325 = vrot.lane.b32.xlu0 %v1225, 112
        %v1326 = vpop.permute.xlu0 %1325
        %1327 = vrot.lane.b32.xlu0 %v1228, 112
        %v1328 = vpop.permute.xlu0 %1327
        %1329 = vrot.lane.b32.xlu0 %v1230, 112
        %v1330 = vpop.permute.xlu0 %1329
        %1331 = vrot.lane.b32.xlu0 %v1232, 112
        %v1332 = vpop.permute.xlu0 %1331
        %1333 = vrot.lane.b32.xlu0 %v1235, 112
        %v1334 = vpop.permute.xlu0 %1333
        %1335 = vrot.lane.b32.xlu0 %v1237, 112
        %v1336 = vpop.permute.xlu0 %1335
        %1337 = vrot.lane.b32.xlu0 %v1239, 112
        %v1338 = vpop.permute.xlu0 %1337
        %1339 = vrot.lane.b32.xlu0 %v1242, 112
        %v1340 = vpop.permute.xlu0 %1339
        %1341 = vrot.lane.b32.xlu0 %v1244, 112
        %v1342 = vpop.permute.xlu0 %1341
        %1343 = vrot.lane.b32.xlu0 %v1246, 112
        %v1344 = vpop.permute.xlu0 %1343
        %1345 = vrot.lane.b32.xlu0 %v1249, 112
        %v1346 = vpop.permute.xlu0 %1345
        %1347 = vrot.lane.b32.xlu0 %v1251, 112
        %v1348 = vpop.permute.xlu0 %1347
        %1349 = vrot.lane.b32.xlu0 %v1253, 112
        %v1350 = vpop.permute.xlu0 %1349
        %1351 = vrot.lane.b32.xlu0 %v1256, 112
        %v1352 = vpop.permute.xlu0 %1351
        %1353 = vrot.lane.b32.xlu0 %v1258, 112
        %v1354 = vpop.permute.xlu0 %1353
        %1355 = vrot.lane.b32.xlu0 %v1260, 112
        %v1356 = vpop.permute.xlu0 %1355
        %vm1405 = vcmask 228352
        %v1406 = vsel %vm1405, %v249, %v491
        %v1407 = vsel %vm1405, %v250, %v493
        %v1408 = vsel %vm1405, %v251, %v495
        %v1409 = vsel %vm1405, %v253, %v497
        %v1410 = vsel %vm1405, %v254, %v499
        %v1411 = vsel %vm1405, %v255, %v501
        %v1412 = vsel %vm1405, %v257, %v503
        %v1413 = vsel %vm1405, %v258, %v505
        %v1414 = vsel %vm1405, %v259, %v507
        %v1415 = vsel %vm1405, %v261, %v509
        %v1416 = vsel %vm1405, %v262, %v511
        %v1417 = vsel %vm1405, %v263, %v513
        %v1418 = vsel %vm1405, %v265, %v515
        %v1419 = vsel %vm1405, %v266, %v517
        %v1420 = vsel %vm1405, %v267, %v519
        %v1421 = vsel %vm1405, %v269, %v521
        %v1422 = vsel %vm1405, %v270, %v523
        %v1423 = vsel %vm1405, %v271, %v525
        %v1424 = vsel %vm1405, %v273, %v527
        %v1425 = vsel %vm1405, %v274, %v529
        %v1426 = vsel %vm1405, %v275, %v531
        %v1427 = vsel %vm1405, %v277, %v533
        %v1428 = vsel %vm1405, %v278, %v535
        %v1429 = vsel %vm1405, %v279, %v537
        %v1430 = vsel %vm1405, %v281, %v539
        %v1431 = vsel %vm1405, %v282, %v541
        %v1432 = vsel %vm1405, %v283, %v543
        %v1433 = vsel %vm1405, %v285, %v545
        %v1434 = vsel %vm1405, %v286, %v547
        %v1435 = vsel %vm1405, %v287, %v549
        %v1436 = vsel %vm1405, %v289, %v551
        %v1437 = vsel %vm1405, %v290, %v553
        %v1438 = vsel %vm1405, %v291, %v555
        %v1439 = vsel %vm1405, %v293, %v557
        %v1440 = vsel %vm1405, %v294, %v559
        %v1441 = vsel %vm1405, %v295, %v561
        %v1442 = vsel %vm1405, %v297, %v563
        %v1443 = vsel %vm1405, %v298, %v565
        %v1444 = vsel %vm1405, %v299, %v567
        %v1445 = vsel %vm1405, %v301, %v569
        %v1446 = vsel %vm1405, %v302, %v571
        %v1447 = vsel %vm1405, %v303, %v573
        %v1448 = vsel %vm1405, %v305, %v575
        %v1449 = vsel %vm1405, %v306, %v577
        %v1450 = vsel %vm1405, %v307, %v579
        %v1451 = vsel %vm1405, %v309, %v581
        %v1452 = vsel %vm1405, %v310, %v583
        %v1453 = vsel %vm1405, %v311, %v585
        %vm1454 = vcmask 457728
        %v1455 = vsel %vm1454, %v1406, %v748
        %v1456 = vsel %vm1454, %v1407, %v750
        %v1457 = vsel %vm1454, %v1408, %v752
        %v1458 = vsel %vm1454, %v1409, %v754
        %v1459 = vsel %vm1454, %v1410, %v756
        %v1460 = vsel %vm1454, %v1411, %v758
        %v1461 = vsel %vm1454, %v1412, %v760
        %v1462 = vsel %vm1454, %v1413, %v762
        %v1463 = vsel %vm1454, %v1414, %v764
        %v1464 = vsel %vm1454, %v1415, %v766
        %v1465 = vsel %vm1454, %v1416, %v768
        %v1466 = vsel %vm1454, %v1417, %v770
        %v1467 = vsel %vm1454, %v1418, %v772
        %v1468 = vsel %vm1454, %v1419, %v774
        %v1469 = vsel %vm1454, %v1420, %v776
        %v1470 = vsel %vm1454, %v1421, %v778
        %v1471 = vsel %vm1454, %v1422, %v780
        %v1472 = vsel %vm1454, %v1423, %v782
        %v1473 = vsel %vm1454, %v1424, %v784
        %v1474 = vsel %vm1454, %v1425, %v786
        %v1475 = vsel %vm1454, %v1426, %v788
        %v1476 = vsel %vm1454, %v1427, %v790
        %v1477 = vsel %vm1454, %v1428, %v792
        %v1478 = vsel %vm1454, %v1429, %v794
        %v1479 = vsel %vm1454, %v1430, %v796
        %v1480 = vsel %vm1454, %v1431, %v798
        %v1481 = vsel %vm1454, %v1432, %v800
        %v1482 = vsel %vm1454, %v1433, %v802
        %v1483 = vsel %vm1454, %v1434, %v804
        %v1484 = vsel %vm1454, %v1435, %v806
        %v1485 = vsel %vm1454, %v1436, %v808
        %v1486 = vsel %vm1454, %v1437, %v810
        %v1487 = vsel %vm1454, %v1438, %v812
        %v1488 = vsel %vm1454, %v1439, %v814
        %v1489 = vsel %vm1454, %v1440, %v816
        %v1490 = vsel %vm1454, %v1441, %v818
        %v1491 = vsel %vm1454, %v1442, %v820
        %v1492 = vsel %vm1454, %v1443, %v822
        %v1493 = vsel %vm1454, %v1444, %v824
        %v1494 = vsel %vm1454, %v1445, %v826
        %v1495 = vsel %vm1454, %v1446, %v828
        %v1496 = vsel %vm1454, %v1447, %v830
        %v1497 = vsel %vm1454, %v1448, %v832
        %v1498 = vsel %vm1454, %v1449, %v834
        %v1499 = vsel %vm1454, %v1450, %v836
        %v1500 = vsel %vm1454, %v1451, %v838
        %v1501 = vsel %vm1454, %v1452, %v840
        %v1502 = vsel %vm1454, %v1453, %v842
        %vm1503 = vcmask 687104
        %v1504 = vsel %vm1503, %v1455, %v1005
        %v1505 = vsel %vm1503, %v1456, %v1007
        %v1506 = vsel %vm1503, %v1457, %v1009
        %v1507 = vsel %vm1503, %v1458, %v1011
        %v1508 = vsel %vm1503, %v1459, %v1013
        %v1509 = vsel %vm1503, %v1460, %v1015
        %v1510 = vsel %vm1503, %v1461, %v1017
        %v1511 = vsel %vm1503, %v1462, %v1019
        %v1512 = vsel %vm1503, %v1463, %v1021
        %v1513 = vsel %vm1503, %v1464, %v1023
        %v1514 = vsel %vm1503, %v1465, %v1025
        %v1515 = vsel %vm1503, %v1466, %v1027
        %v1516 = vsel %vm1503, %v1467, %v1029
        %v1517 = vsel %vm1503, %v1468, %v1031
        %v1518 = vsel %vm1503, %v1469, %v1033
        %v1519 = vsel %vm1503, %v1470, %v1035
        %v1520 = vsel %vm1503, %v1471, %v1037
        %v1521 = vsel %vm1503, %v1472, %v1039
        %v1522 = vsel %vm1503, %v1473, %v1041
        %v1523 = vsel %vm1503, %v1474, %v1043
        %v1524 = vsel %vm1503, %v1475, %v1045
        %v1525 = vsel %vm1503, %v1476, %v1047
        %v1526 = vsel %vm1503, %v1477, %v1049
        %v1527 = vsel %vm1503, %v1478, %v1051
        %v1528 = vsel %vm1503, %v1479, %v1053
        %v1529 = vsel %vm1503, %v1480, %v1055
        %v1530 = vsel %vm1503, %v1481, %v1057
        %v1531 = vsel %vm1503, %v1482, %v1059
        %v1532 = vsel %vm1503, %v1483, %v1061
        %v1533 = vsel %vm1503, %v1484, %v1063
        %v1534 = vsel %vm1503, %v1485, %v1065
        %v1535 = vsel %vm1503, %v1486, %v1067
        %v1536 = vsel %vm1503, %v1487, %v1069
        %v1537 = vsel %vm1503, %v1488, %v1071
        %v1538 = vsel %vm1503, %v1489, %v1073
        %v1539 = vsel %vm1503, %v1490, %v1075
        %v1540 = vsel %vm1503, %v1491, %v1077
        %v1541 = vsel %vm1503, %v1492, %v1079
        %v1542 = vsel %vm1503, %v1493, %v1081
        %v1543 = vsel %vm1503, %v1494, %v1083
        %v1544 = vsel %vm1503, %v1495, %v1085
        %v1545 = vsel %vm1503, %v1496, %v1087
        %v1546 = vsel %vm1503, %v1497, %v1089
        %v1547 = vsel %vm1503, %v1498, %v1091
        %v1548 = vsel %vm1503, %v1499, %v1093
        %v1549 = vsel %vm1503, %v1500, %v1095
        %v1550 = vsel %vm1503, %v1501, %v1097
        %v1551 = vsel %vm1503, %v1502, %v1099
        %vm1552 = vcmask 916480
        %v1553 = vsel %vm1552, %v1504, %v1262
        %v1554 = vsel %vm1552, %v1505, %v1264
        %v1555 = vsel %vm1552, %v1506, %v1266
        %v1556 = vsel %vm1552, %v1507, %v1268
        %v1557 = vsel %vm1552, %v1508, %v1270
        %v1558 = vsel %vm1552, %v1509, %v1272
        %v1559 = vsel %vm1552, %v1510, %v1274
        %v1560 = vsel %vm1552, %v1511, %v1276
        %v1561 = vsel %vm1552, %v1512, %v1278
        %v1562 = vsel %vm1552, %v1513, %v1280
        %v1563 = vsel %vm1552, %v1514, %v1282
        %v1564 = vsel %vm1552, %v1515, %v1284
        %v1565 = vsel %vm1552, %v1516, %v1286
        %v1566 = vsel %vm1552, %v1517, %v1288
        %v1567 = vsel %vm1552, %v1518, %v1290
        %v1568 = vsel %vm1552, %v1519, %v1292
        %v1569 = vsel %vm1552, %v1520, %v1294
        %v1570 = vsel %vm1552, %v1521, %v1296
        %v1571 = vsel %vm1552, %v1522, %v1298
        %v1572 = vsel %vm1552, %v1523, %v1300
        %v1573 = vsel %vm1552, %v1524, %v1302
        %v1574 = vsel %vm1552, %v1525, %v1304
        %v1575 = vsel %vm1552, %v1526, %v1306
        %v1576 = vsel %vm1552, %v1527, %v1308
        %v1577 = vsel %vm1552, %v1528, %v1310
        %v1578 = vsel %vm1552, %v1529, %v1312
        %v1579 = vsel %vm1552, %v1530, %v1314
        %v1580 = vsel %vm1552, %v1531, %v1316
        %v1581 = vsel %vm1552, %v1532, %v1318
        %v1582 = vsel %vm1552, %v1533, %v1320
        %v1583 = vsel %vm1552, %v1534, %v1322
        %v1584 = vsel %vm1552, %v1535, %v1324
        %v1585 = vsel %vm1552, %v1536, %v1326
        %v1586 = vsel %vm1552, %v1537, %v1328
        %v1587 = vsel %vm1552, %v1538, %v1330
        %v1588 = vsel %vm1552, %v1539, %v1332
        %v1589 = vsel %vm1552, %v1540, %v1334
        %v1590 = vsel %vm1552, %v1541, %v1336
        %v1591 = vsel %vm1552, %v1542, %v1338
        %v1592 = vsel %vm1552, %v1543, %v1340
        %v1593 = vsel %vm1552, %v1544, %v1342
        %v1594 = vsel %vm1552, %v1545, %v1344
        %v1595 = vsel %vm1552, %v1546, %v1346
        %v1596 = vsel %vm1552, %v1547, %v1348
        %v1597 = vsel %vm1552, %v1548, %v1350
        %v1598 = vsel %vm1552, %v1549, %v1352
        %v1599 = vsel %vm1552, %v1550, %v1354
        %v1600 = vsel %vm1552, %v1551, %v1356
        %v1601 = vpack.c.bf16 %v1554, %v1553
        %v1602 = vpack.c.bf16 %v1264, %v1262
        %v1603 = vpack.c.bf16 %v1556, %v1555
        %v1604 = vpack.c.bf16 %v1268, %v1266
        %v1605 = vpack.c.bf16 %v1558, %v1557
        %v1606 = vpack.c.bf16 %v1272, %v1270
        %v1607 = vpack.c.bf16 %v1560, %v1559
        %v1608 = vpack.c.bf16 %v1276, %v1274
        %v1609 = vpack.c.bf16 %v1562, %v1561
        %v1610 = vpack.c.bf16 %v1280, %v1278
        %v1611 = vpack.c.bf16 %v1564, %v1563
        %v1612 = vpack.c.bf16 %v1284, %v1282
        %v1613 = vpack.c.bf16 %v1566, %v1565
        %v1614 = vpack.c.bf16 %v1288, %v1286
        %v1615 = vpack.c.bf16 %v1568, %v1567
        %v1616 = vpack.c.bf16 %v1292, %v1290
        %v1617 = vpack.c.bf16 %v1570, %v1569
        %v1618 = vpack.c.bf16 %v1296, %v1294
        %v1619 = vpack.c.bf16 %v1572, %v1571
        %v1620 = vpack.c.bf16 %v1300, %v1298
        %v1621 = vpack.c.bf16 %v1574, %v1573
        %v1622 = vpack.c.bf16 %v1304, %v1302
        %v1623 = vpack.c.bf16 %v1576, %v1575
        %v1624 = vpack.c.bf16 %v1308, %v1306
        %v1625 = vpack.c.bf16 %v1578, %v1577
        %v1626 = vpack.c.bf16 %v1312, %v1310
        %v1627 = vpack.c.bf16 %v1580, %v1579
        %v1628 = vpack.c.bf16 %v1316, %v1314
        %v1629 = vpack.c.bf16 %v1582, %v1581
        %v1630 = vpack.c.bf16 %v1320, %v1318
        %v1631 = vpack.c.bf16 %v1584, %v1583
        %v1632 = vpack.c.bf16 %v1324, %v1322
        %v1633 = vpack.c.bf16 %v1586, %v1585
        %v1634 = vpack.c.bf16 %v1328, %v1326
        %v1635 = vpack.c.bf16 %v1588, %v1587
        %v1636 = vpack.c.bf16 %v1332, %v1330
        %v1637 = vpack.c.bf16 %v1590, %v1589
        %v1638 = vpack.c.bf16 %v1336, %v1334
        %v1639 = vpack.c.bf16 %v1592, %v1591
        %v1640 = vpack.c.bf16 %v1340, %v1338
        %v1641 = vpack.c.bf16 %v1594, %v1593
        %v1642 = vpack.c.bf16 %v1344, %v1342
        %v1643 = vpack.c.bf16 %v1596, %v1595
        %v1644 = vpack.c.bf16 %v1348, %v1346
        %v1645 = vpack.c.bf16 %v1598, %v1597
        %v1646 = vpack.c.bf16 %v1352, %v1350
        %v1647 = vpack.c.bf16 %v1600, %v1599
        %v1648 = vpack.c.bf16 %v1356, %v1354
        %v1649 = vld [vmem:[%s1] sm:$0xff]
        %v1650 = vld [vmem:[%s1 + $0x8] sm:$0xff]
        %v1651 = vld [vmem:[%s1 + $0x10] sm:$0xff]
        %v1652 = vld [vmem:[%s1 + $0x18] sm:$0xff]
        %v1653 = vld [vmem:[%s1 + $0x20] sm:$0xff]
        %v1654 = vld [vmem:[%s1 + $0x28] sm:$0xff]
        %v1655 = vld [vmem:[%s1 + $0x30] sm:$0xff]
        %v1656 = vld [vmem:[%s1 + $0x38] sm:$0xff]
        %v1657 = vld [vmem:[%s1 + $0x40] sm:$0xff]
        %v1658 = vld [vmem:[%s1 + $0x48] sm:$0xff]
        %v1659 = vld [vmem:[%s1 + $0x50] sm:$0xff]
        %v1660 = vld [vmem:[%s1 + $0x58] sm:$0xff]
        %v1661 = vld [vmem:[%s1 + $0x60] sm:$0xff]
        %v1662 = vld [vmem:[%s1 + $0x68] sm:$0xff]
        %v1663 = vld [vmem:[%s1 + $0x70] sm:$0xff]
        %v1664 = vld [vmem:[%s1 + $0x78] sm:$0xff]
        %v1665 = vld [vmem:[%s1 + $0x80] sm:$0xff]
        %v1666 = vld [vmem:[%s1 + $0x88] sm:$0x33]
        %v1685 = vunpack.c.l.b16 %v1649
        %v1686 = vunpack.c.h.b16 %v1649
        %v1687 = vunpack.c.l.b16 %v1650
        %v1688 = vunpack.c.h.b16 %v1650
        %v1689 = vunpack.c.l.b16 %v1651
        %v1690 = vunpack.c.h.b16 %v1651
        %v1691 = vunpack.c.l.b16 %v1652
        %v1692 = vunpack.c.h.b16 %v1652
        %v1693 = vunpack.c.l.b16 %v1653
        %v1694 = vunpack.c.h.b16 %v1653
        %v1695 = vunpack.c.l.b16 %v1654
        %v1696 = vunpack.c.h.b16 %v1654
        %v1697 = vunpack.c.l.b16 %v1655
        %v1698 = vunpack.c.h.b16 %v1655
        %v1699 = vunpack.c.l.b16 %v1656
        %v1700 = vunpack.c.h.b16 %v1656
        %v1701 = vunpack.c.l.b16 %v1657
        %v1702 = vunpack.c.h.b16 %v1657
        %v1703 = vunpack.c.l.b16 %v1658
        %v1704 = vunpack.c.h.b16 %v1658
        %v1705 = vunpack.c.l.b16 %v1659
        %v1706 = vunpack.c.h.b16 %v1659
        %v1707 = vunpack.c.l.b16 %v1660
        %v1708 = vunpack.c.h.b16 %v1660
        %v1709 = vunpack.c.l.b16 %v1661
        %v1710 = vunpack.c.h.b16 %v1661
        %v1711 = vunpack.c.l.b16 %v1662
        %v1712 = vunpack.c.h.b16 %v1662
        %v1713 = vunpack.c.l.b16 %v1663
        %v1714 = vunpack.c.h.b16 %v1663
        %v1715 = vunpack.c.l.b16 %v1664
        %v1716 = vunpack.c.h.b16 %v1664
        %v1717 = vunpack.c.l.b16 %v1665
        %v1718 = vunpack.c.h.b16 %v1665
        %v1719 = vunpack.c.l.b16 %v1666
        %v1720 = vunpack.c.h.b16 %v1666
        %v1721 = vpack.c.b16 %v1687, %v1685
        %v1722 = vpack.c.b16 %v1688, %v1686
        %v1723 = vpack.c.b16 %v1691, %v1689
        %v1724 = vpack.c.b16 %v1692, %v1690
        %v1725 = vpack.c.b16 %v1695, %v1693
        %v1726 = vpack.c.b16 %v1696, %v1694
        %v1727 = vpack.c.b16 %v1699, %v1697
        %v1728 = vpack.c.b16 %v1700, %v1698
        %v1729 = vpack.c.b16 %v1703, %v1701
        %v1730 = vpack.c.b16 %v1704, %v1702
        %v1731 = vpack.c.b16 %v1707, %v1705
        %v1732 = vpack.c.b16 %v1708, %v1706
        %v1733 = vpack.c.b16 %v1711, %v1709
        %v1734 = vpack.c.b16 %v1712, %v1710
        %v1735 = vpack.c.b16 %v1715, %v1713
        %v1736 = vpack.c.b16 %v1716, %v1714
        %v1737 = vpack.c.b16 %v1719, %v1717
        %v1738 = vpack.c.b16 %v1720, %v1718
        %vm1755 = vcmask 97280
        %v1757 = vsel %vm1755, %v1602, 0
        %v1760 = vsel %vm1755, %v1604, 0
        %v1763 = vsel %vm1755, %v1606, 0
        %v1766 = vsel %vm1755, %v1608, 0
        %v1769 = vsel %vm1755, %v1610, 0
        %v1772 = vsel %vm1755, %v1612, 0
        %v1775 = vsel %vm1755, %v1614, 0
        %v1778 = vsel %vm1755, %v1616, 0
        %v1781 = vsel %vm1755, %v1618, 0
        %v1784 = vsel %vm1755, %v1620, 0
        %v1787 = vsel %vm1755, %v1622, 0
        %v1790 = vsel %vm1755, %v1624, 0
        %v1793 = vsel %vm1755, %v1626, 0
        %v1796 = vsel %vm1755, %v1628, 0
        %v1799 = vsel %vm1755, %v1630, 0
        %v1802 = vsel %vm1755, %v1632, 0
        %v1805 = vsel %vm1755, %v1634, 0
        %v1808 = vsel %vm1755, %v1636, 0
        %v1811 = vsel %vm1755, %v1638, 0
        %v1814 = vsel %vm1755, %v1640, 0
        %v1817 = vsel %vm1755, %v1642, 0
        %v1820 = vsel %vm1755, %v1644, 0
        %v1823 = vsel %vm1755, %v1646, 0
        %v1826 = vsel %vm1755, %v1648, 0
        %v1829 = vsel %vm634, %v1737, 0
        %v1832 = vsel %vm634, %v1738, 0
        %1834 = vmatpush.bf16.msra.mxu0 %v1735
        %1835 = vmatpush.bf16.msra.mxu0 %v1733
        %1836 = vmatpush.bf16.msra.mxu0 %v1731
        %1837 = vmatpush.bf16.msra.mxu0 %v1729
        %1838 = vmatpush.bf16.msra.mxu0 %v1727
        %1839 = vmatpush.bf16.msra.mxu0 %v1725
        %1840 = vmatpush.bf16.msra.mxu0 %v1723
        %1841 = vmatpush.bf16.msra.mxu0 %v1721
        %1842 = vmatmul.bf16.gmra.mxu0 %v1601
        %v1843 = vpop.f32.mrf.mxu0
        %v1844 = vadd.f32 0.0, %v1843
        %v1845 = vpop.f32.mrf.mxu0
        %v1846 = vadd.f32 0.0, %v1845
        %1847 = vmatmul.bf16.gmra.mxu0 %v1603
        %v1848 = vpop.f32.mrf.mxu0
        %v1849 = vadd.f32 0.0, %v1848
        %v1850 = vpop.f32.mrf.mxu0
        %v1851 = vadd.f32 0.0, %v1850
        %1852 = vmatmul.bf16.gmra.mxu0 %v1605
        %v1853 = vpop.f32.mrf.mxu0
        %v1854 = vadd.f32 0.0, %v1853
        %v1855 = vpop.f32.mrf.mxu0
        %v1856 = vadd.f32 0.0, %v1855
        %1857 = vmatmul.bf16.gmra.mxu0 %v1607
        %v1858 = vpop.f32.mrf.mxu0
        %v1859 = vadd.f32 0.0, %v1858
        %v1860 = vpop.f32.mrf.mxu0
        %v1861 = vadd.f32 0.0, %v1860
        %1862 = vmatmul.bf16.gmra.mxu0 %v1609
        %v1863 = vpop.f32.mrf.mxu0
        %v1864 = vadd.f32 0.0, %v1863
        %v1865 = vpop.f32.mrf.mxu0
        %v1866 = vadd.f32 0.0, %v1865
        %1867 = vmatmul.bf16.gmra.mxu0 %v1611
        %v1868 = vpop.f32.mrf.mxu0
        %v1869 = vadd.f32 0.0, %v1868
        %v1870 = vpop.f32.mrf.mxu0
        %v1871 = vadd.f32 0.0, %v1870
        %1872 = vmatmul.bf16.gmra.mxu0 %v1613
        %v1873 = vpop.f32.mrf.mxu0
        %v1874 = vadd.f32 0.0, %v1873
        %v1875 = vpop.f32.mrf.mxu0
        %v1876 = vadd.f32 0.0, %v1875
        %1877 = vmatmul.bf16.gmra.mxu0 %v1615
        %v1878 = vpop.f32.mrf.mxu0
        %v1879 = vadd.f32 0.0, %v1878
        %v1880 = vpop.f32.mrf.mxu0
        %v1881 = vadd.f32 0.0, %v1880
        %1882 = vmatmul.bf16.gmra.mxu0 %v1617
        %v1883 = vpop.f32.mrf.mxu0
        %v1884 = vadd.f32 0.0, %v1883
        %v1885 = vpop.f32.mrf.mxu0
        %v1886 = vadd.f32 0.0, %v1885
        %1887 = vmatmul.bf16.gmra.mxu0 %v1619
        %v1888 = vpop.f32.mrf.mxu0
        %v1889 = vadd.f32 0.0, %v1888
        %v1890 = vpop.f32.mrf.mxu0
        %v1891 = vadd.f32 0.0, %v1890
        %1892 = vmatmul.bf16.gmra.mxu0 %v1621
        %v1893 = vpop.f32.mrf.mxu0
        %v1894 = vadd.f32 0.0, %v1893
        %v1895 = vpop.f32.mrf.mxu0
        %v1896 = vadd.f32 0.0, %v1895
        %1897 = vmatmul.bf16.gmra.mxu0 %v1623
        %v1898 = vpop.f32.mrf.mxu0
        %v1899 = vadd.f32 0.0, %v1898
        %v1900 = vpop.f32.mrf.mxu0
        %v1901 = vadd.f32 0.0, %v1900
        %1902 = vmatmul.bf16.gmra.mxu0 %v1625
        %v1903 = vpop.f32.mrf.mxu0
        %v1904 = vadd.f32 0.0, %v1903
        %v1905 = vpop.f32.mrf.mxu0
        %v1906 = vadd.f32 0.0, %v1905
        %1907 = vmatmul.bf16.gmra.mxu0 %v1627
        %v1908 = vpop.f32.mrf.mxu0
        %v1909 = vadd.f32 0.0, %v1908
        %v1910 = vpop.f32.mrf.mxu0
        %v1911 = vadd.f32 0.0, %v1910
        %1912 = vmatmul.bf16.gmra.mxu0 %v1629
        %v1913 = vpop.f32.mrf.mxu0
        %v1914 = vadd.f32 0.0, %v1913
        %v1915 = vpop.f32.mrf.mxu0
        %v1916 = vadd.f32 0.0, %v1915
        %1917 = vmatmul.bf16.gmra.mxu0 %v1631
        %v1918 = vpop.f32.mrf.mxu0
        %v1919 = vadd.f32 0.0, %v1918
        %v1920 = vpop.f32.mrf.mxu0
        %v1921 = vadd.f32 0.0, %v1920
        %1922 = vmatmul.bf16.gmra.mxu0 %v1633
        %v1923 = vpop.f32.mrf.mxu0
        %v1924 = vadd.f32 0.0, %v1923
        %v1925 = vpop.f32.mrf.mxu0
        %v1926 = vadd.f32 0.0, %v1925
        %1927 = vmatmul.bf16.gmra.mxu0 %v1635
        %v1928 = vpop.f32.mrf.mxu0
        %v1929 = vadd.f32 0.0, %v1928
        %v1930 = vpop.f32.mrf.mxu0
        %v1931 = vadd.f32 0.0, %v1930
        %1932 = vmatmul.bf16.gmra.mxu0 %v1637
        %v1933 = vpop.f32.mrf.mxu0
        %v1934 = vadd.f32 0.0, %v1933
        %v1935 = vpop.f32.mrf.mxu0
        %v1936 = vadd.f32 0.0, %v1935
        %1937 = vmatmul.bf16.gmra.mxu0 %v1639
        %v1938 = vpop.f32.mrf.mxu0
        %v1939 = vadd.f32 0.0, %v1938
        %v1940 = vpop.f32.mrf.mxu0
        %v1941 = vadd.f32 0.0, %v1940
        %1942 = vmatmul.bf16.gmra.mxu0 %v1641
        %v1943 = vpop.f32.mrf.mxu0
        %v1944 = vadd.f32 0.0, %v1943
        %v1945 = vpop.f32.mrf.mxu0
        %v1946 = vadd.f32 0.0, %v1945
        %1947 = vmatmul.bf16.gmra.mxu0 %v1643
        %v1948 = vpop.f32.mrf.mxu0
        %v1949 = vadd.f32 0.0, %v1948
        %v1950 = vpop.f32.mrf.mxu0
        %v1951 = vadd.f32 0.0, %v1950
        %1952 = vmatmul.bf16.gmra.mxu0 %v1645
        %v1953 = vpop.f32.mrf.mxu0
        %v1954 = vadd.f32 0.0, %v1953
        %v1955 = vpop.f32.mrf.mxu0
        %v1956 = vadd.f32 0.0, %v1955
        %1957 = vmatmul.bf16.gmra.mxu0 %v1647
        %v1958 = vpop.f32.mrf.mxu0
        %v1959 = vadd.f32 0.0, %v1958
        %v1960 = vpop.f32.mrf.mxu0
        %v1961 = vadd.f32 0.0, %v1960
        %1962 = vdwg.mxu0
        %1963 = vmatpush.bf16.msra.mxu0 0
        %1964 = vmatpush.bf16.msra.mxu0 0
        %1965 = vmatpush.bf16.msra.mxu0 0
        %1966 = vmatpush.bf16.msra.mxu0 0
        %1967 = vmatpush.bf16.msra.mxu0 0
        %1968 = vmatpush.bf16.msra.mxu0 0
        %1969 = vmatpush.bf16.msra.mxu0 0
        %1970 = vmatpush.bf16.msra.mxu0 %v1829
        %1971 = vmatmul.bf16.gmra.mxu0 %v1757
        %v1972 = vpop.f32.mrf.mxu0
        %v1973 = vadd.f32 %v1844, %v1972
        %v1974 = vpop.f32.mrf.mxu0
        %v1975 = vadd.f32 %v1846, %v1974
        %1976 = vmatmul.bf16.gmra.mxu0 %v1760
        %v1977 = vpop.f32.mrf.mxu0
        %v1978 = vadd.f32 %v1849, %v1977
        %v1979 = vpop.f32.mrf.mxu0
        %v1980 = vadd.f32 %v1851, %v1979
        %1981 = vmatmul.bf16.gmra.mxu0 %v1763
        %v1982 = vpop.f32.mrf.mxu0
        %v1983 = vadd.f32 %v1854, %v1982
        %v1984 = vpop.f32.mrf.mxu0
        %v1985 = vadd.f32 %v1856, %v1984
        %1986 = vmatmul.bf16.gmra.mxu0 %v1766
        %v1987 = vpop.f32.mrf.mxu0
        %v1988 = vadd.f32 %v1859, %v1987
        %v1989 = vpop.f32.mrf.mxu0
        %v1990 = vadd.f32 %v1861, %v1989
        %1991 = vmatmul.bf16.gmra.mxu0 %v1769
        %v1992 = vpop.f32.mrf.mxu0
        %v1993 = vadd.f32 %v1864, %v1992
        %v1994 = vpop.f32.mrf.mxu0
        %v1995 = vadd.f32 %v1866, %v1994
        %1996 = vmatmul.bf16.gmra.mxu0 %v1772
        %v1997 = vpop.f32.mrf.mxu0
        %v1998 = vadd.f32 %v1869, %v1997
        %v1999 = vpop.f32.mrf.mxu0
        %v2000 = vadd.f32 %v1871, %v1999
        %2001 = vmatmul.bf16.gmra.mxu0 %v1775
        %v2002 = vpop.f32.mrf.mxu0
        %v2003 = vadd.f32 %v1874, %v2002
        %v2004 = vpop.f32.mrf.mxu0
        %v2005 = vadd.f32 %v1876, %v2004
        %2006 = vmatmul.bf16.gmra.mxu0 %v1778
        %v2007 = vpop.f32.mrf.mxu0
        %v2008 = vadd.f32 %v1879, %v2007
        %v2009 = vpop.f32.mrf.mxu0
        %v2010 = vadd.f32 %v1881, %v2009
        %2011 = vmatmul.bf16.gmra.mxu0 %v1781
        %v2012 = vpop.f32.mrf.mxu0
        %v2013 = vadd.f32 %v1884, %v2012
        %v2014 = vpop.f32.mrf.mxu0
        %v2015 = vadd.f32 %v1886, %v2014
        %2016 = vmatmul.bf16.gmra.mxu0 %v1784
        %v2017 = vpop.f32.mrf.mxu0
        %v2018 = vadd.f32 %v1889, %v2017
        %v2019 = vpop.f32.mrf.mxu0
        %v2020 = vadd.f32 %v1891, %v2019
        %2021 = vmatmul.bf16.gmra.mxu0 %v1787
        %v2022 = vpop.f32.mrf.mxu0
        %v2023 = vadd.f32 %v1894, %v2022
        %v2024 = vpop.f32.mrf.mxu0
        %v2025 = vadd.f32 %v1896, %v2024
        %2026 = vmatmul.bf16.gmra.mxu0 %v1790
        %v2027 = vpop.f32.mrf.mxu0
        %v2028 = vadd.f32 %v1899, %v2027
        %v2029 = vpop.f32.mrf.mxu0
        %v2030 = vadd.f32 %v1901, %v2029
        %2031 = vmatmul.bf16.gmra.mxu0 %v1793
        %v2032 = vpop.f32.mrf.mxu0
        %v2033 = vadd.f32 %v1904, %v2032
        %v2034 = vpop.f32.mrf.mxu0
        %v2035 = vadd.f32 %v1906, %v2034
        %2036 = vmatmul.bf16.gmra.mxu0 %v1796
        %v2037 = vpop.f32.mrf.mxu0
        %v2038 = vadd.f32 %v1909, %v2037
        %v2039 = vpop.f32.mrf.mxu0
        %v2040 = vadd.f32 %v1911, %v2039
        %2041 = vmatmul.bf16.gmra.mxu0 %v1799
        %v2042 = vpop.f32.mrf.mxu0
        %v2043 = vadd.f32 %v1914, %v2042
        %v2044 = vpop.f32.mrf.mxu0
        %v2045 = vadd.f32 %v1916, %v2044
        %2046 = vmatmul.bf16.gmra.mxu0 %v1802
        %v2047 = vpop.f32.mrf.mxu0
        %v2048 = vadd.f32 %v1919, %v2047
        %v2049 = vpop.f32.mrf.mxu0
        %v2050 = vadd.f32 %v1921, %v2049
        %2051 = vmatmul.bf16.gmra.mxu0 %v1805
        %v2052 = vpop.f32.mrf.mxu0
        %v2053 = vadd.f32 %v1924, %v2052
        %v2054 = vpop.f32.mrf.mxu0
        %v2055 = vadd.f32 %v1926, %v2054
        %2056 = vmatmul.bf16.gmra.mxu0 %v1808
        %v2057 = vpop.f32.mrf.mxu0
        %v2058 = vadd.f32 %v1929, %v2057
        %v2059 = vpop.f32.mrf.mxu0
        %v2060 = vadd.f32 %v1931, %v2059
        %2061 = vmatmul.bf16.gmra.mxu0 %v1811
        %v2062 = vpop.f32.mrf.mxu0
        %v2063 = vadd.f32 %v1934, %v2062
        %v2064 = vpop.f32.mrf.mxu0
        %v2065 = vadd.f32 %v1936, %v2064
        %2066 = vmatmul.bf16.gmra.mxu0 %v1814
        %v2067 = vpop.f32.mrf.mxu0
        %v2068 = vadd.f32 %v1939, %v2067
        %v2069 = vpop.f32.mrf.mxu0
        %v2070 = vadd.f32 %v1941, %v2069
        %2071 = vmatmul.bf16.gmra.mxu0 %v1817
        %v2072 = vpop.f32.mrf.mxu0
        %v2073 = vadd.f32 %v1944, %v2072
        %v2074 = vpop.f32.mrf.mxu0
        %v2075 = vadd.f32 %v1946, %v2074
        %2076 = vmatmul.bf16.gmra.mxu0 %v1820
        %v2077 = vpop.f32.mrf.mxu0
        %v2078 = vadd.f32 %v1949, %v2077
        %v2079 = vpop.f32.mrf.mxu0
        %v2080 = vadd.f32 %v1951, %v2079
        %2081 = vmatmul.bf16.gmra.mxu0 %v1823
        %v2082 = vpop.f32.mrf.mxu0
        %v2083 = vadd.f32 %v1954, %v2082
        %v2084 = vpop.f32.mrf.mxu0
        %v2085 = vadd.f32 %v1956, %v2084
        %2086 = vmatmul.bf16.gmra.mxu0 %v1826
        %v2087 = vpop.f32.mrf.mxu0
        %v2088 = vadd.f32 %v1959, %v2087
        %v2089 = vpop.f32.mrf.mxu0
        %v2090 = vadd.f32 %v1961, %v2089
        %2091 = vdwg.mxu0
        %2092 = vmatpush.bf16.msra.mxu0 %v1736
        %2093 = vmatpush.bf16.msra.mxu0 %v1734
        %2094 = vmatpush.bf16.msra.mxu0 %v1732
        %2095 = vmatpush.bf16.msra.mxu0 %v1730
        %2096 = vmatpush.bf16.msra.mxu0 %v1728
        %2097 = vmatpush.bf16.msra.mxu0 %v1726
        %2098 = vmatpush.bf16.msra.mxu0 %v1724
        %2099 = vmatpush.bf16.msra.mxu0 %v1722
        %2100 = vmatmul.bf16.gmra.mxu0 %v1601
        %v2101 = vpop.f32.mrf.mxu0
        %v2102 = vadd.f32 0.0, %v2101
        %v2103 = vpop.f32.mrf.mxu0
        %v2104 = vadd.f32 0.0, %v2103
        %2105 = vmatmul.bf16.gmra.mxu0 %v1603
        %v2106 = vpop.f32.mrf.mxu0
        %v2107 = vadd.f32 0.0, %v2106
        %v2108 = vpop.f32.mrf.mxu0
        %v2109 = vadd.f32 0.0, %v2108
        %2110 = vmatmul.bf16.gmra.mxu0 %v1605
        %v2111 = vpop.f32.mrf.mxu0
        %v2112 = vadd.f32 0.0, %v2111
        %v2113 = vpop.f32.mrf.mxu0
        %v2114 = vadd.f32 0.0, %v2113
        %2115 = vmatmul.bf16.gmra.mxu0 %v1607
        %v2116 = vpop.f32.mrf.mxu0
        %v2117 = vadd.f32 0.0, %v2116
        %v2118 = vpop.f32.mrf.mxu0
        %v2119 = vadd.f32 0.0, %v2118
        %2120 = vmatmul.bf16.gmra.mxu0 %v1609
        %v2121 = vpop.f32.mrf.mxu0
        %v2122 = vadd.f32 0.0, %v2121
        %v2123 = vpop.f32.mrf.mxu0
        %v2124 = vadd.f32 0.0, %v2123
        %2125 = vmatmul.bf16.gmra.mxu0 %v1611
        %v2126 = vpop.f32.mrf.mxu0
        %v2127 = vadd.f32 0.0, %v2126
        %v2128 = vpop.f32.mrf.mxu0
        %v2129 = vadd.f32 0.0, %v2128
        %2130 = vmatmul.bf16.gmra.mxu0 %v1613
        %v2131 = vpop.f32.mrf.mxu0
        %v2132 = vadd.f32 0.0, %v2131
        %v2133 = vpop.f32.mrf.mxu0
        %v2134 = vadd.f32 0.0, %v2133
        %2135 = vmatmul.bf16.gmra.mxu0 %v1615
        %v2136 = vpop.f32.mrf.mxu0
        %v2137 = vadd.f32 0.0, %v2136
        %v2138 = vpop.f32.mrf.mxu0
        %v2139 = vadd.f32 0.0, %v2138
        %2140 = vmatmul.bf16.gmra.mxu0 %v1617
        %v2141 = vpop.f32.mrf.mxu0
        %v2142 = vadd.f32 0.0, %v2141
        %v2143 = vpop.f32.mrf.mxu0
        %v2144 = vadd.f32 0.0, %v2143
        %2145 = vmatmul.bf16.gmra.mxu0 %v1619
        %v2146 = vpop.f32.mrf.mxu0
        %v2147 = vadd.f32 0.0, %v2146
        %v2148 = vpop.f32.mrf.mxu0
        %v2149 = vadd.f32 0.0, %v2148
        %2150 = vmatmul.bf16.gmra.mxu0 %v1621
        %v2151 = vpop.f32.mrf.mxu0
        %v2152 = vadd.f32 0.0, %v2151
        %v2153 = vpop.f32.mrf.mxu0
        %v2154 = vadd.f32 0.0, %v2153
        %2155 = vmatmul.bf16.gmra.mxu0 %v1623
        %v2156 = vpop.f32.mrf.mxu0
        %v2157 = vadd.f32 0.0, %v2156
        %v2158 = vpop.f32.mrf.mxu0
        %v2159 = vadd.f32 0.0, %v2158
        %2160 = vmatmul.bf16.gmra.mxu0 %v1625
        %v2161 = vpop.f32.mrf.mxu0
        %v2162 = vadd.f32 0.0, %v2161
        %v2163 = vpop.f32.mrf.mxu0
        %v2164 = vadd.f32 0.0, %v2163
        %2165 = vmatmul.bf16.gmra.mxu0 %v1627
        %v2166 = vpop.f32.mrf.mxu0
        %v2167 = vadd.f32 0.0, %v2166
        %v2168 = vpop.f32.mrf.mxu0
        %v2169 = vadd.f32 0.0, %v2168
        %2170 = vmatmul.bf16.gmra.mxu0 %v1629
        %v2171 = vpop.f32.mrf.mxu0
        %v2172 = vadd.f32 0.0, %v2171
        %v2173 = vpop.f32.mrf.mxu0
        %v2174 = vadd.f32 0.0, %v2173
        %2175 = vmatmul.bf16.gmra.mxu0 %v1631
        %v2176 = vpop.f32.mrf.mxu0
        %v2177 = vadd.f32 0.0, %v2176
        %v2178 = vpop.f32.mrf.mxu0
        %v2179 = vadd.f32 0.0, %v2178
        %2180 = vmatmul.bf16.gmra.mxu0 %v1633
        %v2181 = vpop.f32.mrf.mxu0
        %v2182 = vadd.f32 0.0, %v2181
        %v2183 = vpop.f32.mrf.mxu0
        %v2184 = vadd.f32 0.0, %v2183
        %2185 = vmatmul.bf16.gmra.mxu0 %v1635
        %v2186 = vpop.f32.mrf.mxu0
        %v2187 = vadd.f32 0.0, %v2186
        %v2188 = vpop.f32.mrf.mxu0
        %v2189 = vadd.f32 0.0, %v2188
        %2190 = vmatmul.bf16.gmra.mxu0 %v1637
        %v2191 = vpop.f32.mrf.mxu0
        %v2192 = vadd.f32 0.0, %v2191
        %v2193 = vpop.f32.mrf.mxu0
        %v2194 = vadd.f32 0.0, %v2193
        %2195 = vmatmul.bf16.gmra.mxu0 %v1639
        %v2196 = vpop.f32.mrf.mxu0
        %v2197 = vadd.f32 0.0, %v2196
        %v2198 = vpop.f32.mrf.mxu0
        %v2199 = vadd.f32 0.0, %v2198
        %2200 = vmatmul.bf16.gmra.mxu0 %v1641
        %v2201 = vpop.f32.mrf.mxu0
        %v2202 = vadd.f32 0.0, %v2201
        %v2203 = vpop.f32.mrf.mxu0
        %v2204 = vadd.f32 0.0, %v2203
        %2205 = vmatmul.bf16.gmra.mxu0 %v1643
        %v2206 = vpop.f32.mrf.mxu0
        %v2207 = vadd.f32 0.0, %v2206
        %v2208 = vpop.f32.mrf.mxu0
        %v2209 = vadd.f32 0.0, %v2208
        %2210 = vmatmul.bf16.gmra.mxu0 %v1645
        %v2211 = vpop.f32.mrf.mxu0
        %v2212 = vadd.f32 0.0, %v2211
        %v2213 = vpop.f32.mrf.mxu0
        %v2214 = vadd.f32 0.0, %v2213
        %2215 = vmatmul.bf16.gmra.mxu0 %v1647
        %v2216 = vpop.f32.mrf.mxu0
        %v2217 = vadd.f32 0.0, %v2216
        %v2218 = vpop.f32.mrf.mxu0
        %v2219 = vadd.f32 0.0, %v2218
        %2220 = vdwg.mxu0
        %2221 = vmatpush.bf16.msra.mxu0 0
        %2222 = vmatpush.bf16.msra.mxu0 0
        %2223 = vmatpush.bf16.msra.mxu0 0
        %2224 = vmatpush.bf16.msra.mxu0 0
        %2225 = vmatpush.bf16.msra.mxu0 0
        %2226 = vmatpush.bf16.msra.mxu0 0
        %2227 = vmatpush.bf16.msra.mxu0 0
        %2228 = vmatpush.bf16.msra.mxu0 %v1832
        %2229 = vmatmul.bf16.gmra.mxu0 %v1757
        %v2230 = vpop.f32.mrf.mxu0
        %v2231 = vadd.f32 %v2102, %v2230
        %v2232 = vpop.f32.mrf.mxu0
        %v2233 = vadd.f32 %v2104, %v2232
        %2234 = vmatmul.bf16.gmra.mxu0 %v1760
        %v2235 = vpop.f32.mrf.mxu0
        %v2236 = vadd.f32 %v2107, %v2235
        %v2237 = vpop.f32.mrf.mxu0
        %v2238 = vadd.f32 %v2109, %v2237
        %2239 = vmatmul.bf16.gmra.mxu0 %v1763
        %v2240 = vpop.f32.mrf.mxu0
        %v2241 = vadd.f32 %v2112, %v2240
        %v2242 = vpop.f32.mrf.mxu0
        %v2243 = vadd.f32 %v2114, %v2242
        %2244 = vmatmul.bf16.gmra.mxu0 %v1766
        %v2245 = vpop.f32.mrf.mxu0
        %v2246 = vadd.f32 %v2117, %v2245
        %v2247 = vpop.f32.mrf.mxu0
        %v2248 = vadd.f32 %v2119, %v2247
        %2249 = vmatmul.bf16.gmra.mxu0 %v1769
        %v2250 = vpop.f32.mrf.mxu0
        %v2251 = vadd.f32 %v2122, %v2250
        %v2252 = vpop.f32.mrf.mxu0
        %v2253 = vadd.f32 %v2124, %v2252
        %2254 = vmatmul.bf16.gmra.mxu0 %v1772
        %v2255 = vpop.f32.mrf.mxu0
        %v2256 = vadd.f32 %v2127, %v2255
        %v2257 = vpop.f32.mrf.mxu0
        %v2258 = vadd.f32 %v2129, %v2257
        %2259 = vmatmul.bf16.gmra.mxu0 %v1775
        %v2260 = vpop.f32.mrf.mxu0
        %v2261 = vadd.f32 %v2132, %v2260
        %v2262 = vpop.f32.mrf.mxu0
        %v2263 = vadd.f32 %v2134, %v2262
        %2264 = vmatmul.bf16.gmra.mxu0 %v1778
        %v2265 = vpop.f32.mrf.mxu0
        %v2266 = vadd.f32 %v2137, %v2265
        %v2267 = vpop.f32.mrf.mxu0
        %v2268 = vadd.f32 %v2139, %v2267
        %2269 = vmatmul.bf16.gmra.mxu0 %v1781
        %v2270 = vpop.f32.mrf.mxu0
        %v2271 = vadd.f32 %v2142, %v2270
        %v2272 = vpop.f32.mrf.mxu0
        %v2273 = vadd.f32 %v2144, %v2272
        %2274 = vmatmul.bf16.gmra.mxu0 %v1784
        %v2275 = vpop.f32.mrf.mxu0
        %v2276 = vadd.f32 %v2147, %v2275
        %v2277 = vpop.f32.mrf.mxu0
        %v2278 = vadd.f32 %v2149, %v2277
        %2279 = vmatmul.bf16.gmra.mxu0 %v1787
        %v2280 = vpop.f32.mrf.mxu0
        %v2281 = vadd.f32 %v2152, %v2280
        %v2282 = vpop.f32.mrf.mxu0
        %v2283 = vadd.f32 %v2154, %v2282
        %2284 = vmatmul.bf16.gmra.mxu0 %v1790
        %v2285 = vpop.f32.mrf.mxu0
        %v2286 = vadd.f32 %v2157, %v2285
        %v2287 = vpop.f32.mrf.mxu0
        %v2288 = vadd.f32 %v2159, %v2287
        %2289 = vmatmul.bf16.gmra.mxu0 %v1793
        %v2290 = vpop.f32.mrf.mxu0
        %v2291 = vadd.f32 %v2162, %v2290
        %v2292 = vpop.f32.mrf.mxu0
        %v2293 = vadd.f32 %v2164, %v2292
        %2294 = vmatmul.bf16.gmra.mxu0 %v1796
        %v2295 = vpop.f32.mrf.mxu0
        %v2296 = vadd.f32 %v2167, %v2295
        %v2297 = vpop.f32.mrf.mxu0
        %v2298 = vadd.f32 %v2169, %v2297
        %2299 = vmatmul.bf16.gmra.mxu0 %v1799
        %v2300 = vpop.f32.mrf.mxu0
        %v2301 = vadd.f32 %v2172, %v2300
        %v2302 = vpop.f32.mrf.mxu0
        %v2303 = vadd.f32 %v2174, %v2302
        %2304 = vmatmul.bf16.gmra.mxu0 %v1802
        %v2305 = vpop.f32.mrf.mxu0
        %v2306 = vadd.f32 %v2177, %v2305
        %v2307 = vpop.f32.mrf.mxu0
        %v2308 = vadd.f32 %v2179, %v2307
        %2309 = vmatmul.bf16.gmra.mxu0 %v1805
        %v2310 = vpop.f32.mrf.mxu0
        %v2311 = vadd.f32 %v2182, %v2310
        %v2312 = vpop.f32.mrf.mxu0
        %v2313 = vadd.f32 %v2184, %v2312
        %2314 = vmatmul.bf16.gmra.mxu0 %v1808
        %v2315 = vpop.f32.mrf.mxu0
        %v2316 = vadd.f32 %v2187, %v2315
        %v2317 = vpop.f32.mrf.mxu0
        %v2318 = vadd.f32 %v2189, %v2317
        %2319 = vmatmul.bf16.gmra.mxu0 %v1811
        %v2320 = vpop.f32.mrf.mxu0
        %v2321 = vadd.f32 %v2192, %v2320
        %v2322 = vpop.f32.mrf.mxu0
        %v2323 = vadd.f32 %v2194, %v2322
        %2324 = vmatmul.bf16.gmra.mxu0 %v1814
        %v2325 = vpop.f32.mrf.mxu0
        %v2326 = vadd.f32 %v2197, %v2325
        %v2327 = vpop.f32.mrf.mxu0
        %v2328 = vadd.f32 %v2199, %v2327
        %2329 = vmatmul.bf16.gmra.mxu0 %v1817
        %v2330 = vpop.f32.mrf.mxu0
        %v2331 = vadd.f32 %v2202, %v2330
        %v2332 = vpop.f32.mrf.mxu0
        %v2333 = vadd.f32 %v2204, %v2332
        %2334 = vmatmul.bf16.gmra.mxu0 %v1820
        %v2335 = vpop.f32.mrf.mxu0
        %v2336 = vadd.f32 %v2207, %v2335
        %v2337 = vpop.f32.mrf.mxu0
        %v2338 = vadd.f32 %v2209, %v2337
        %2339 = vmatmul.bf16.gmra.mxu0 %v1823
        %v2340 = vpop.f32.mrf.mxu0
        %v2341 = vadd.f32 %v2212, %v2340
        %v2342 = vpop.f32.mrf.mxu0
        %v2343 = vadd.f32 %v2214, %v2342
        %2344 = vmatmul.bf16.gmra.mxu0 %v1826
        %v2345 = vpop.f32.mrf.mxu0
        %v2346 = vadd.f32 %v2217, %v2345
        %v2347 = vpop.f32.mrf.mxu0
        %v2348 = vadd.f32 %v2219, %v2347
        %2349 = vdwg.mxu0
        %v2350 = vmax.f32 %v1973, 0.0
        %v2351 = vmax.f32 %v2231, 0.0
        %v2352 = vmax.f32 %v1975, 0.0
        %v2353 = vmax.f32 %v2233, 0.0
        %v2354 = vmax.f32 %v1978, 0.0
        %v2355 = vmax.f32 %v2236, 0.0
        %v2356 = vmax.f32 %v1980, 0.0
        %v2357 = vmax.f32 %v2238, 0.0
        %v2358 = vmax.f32 %v1983, 0.0
        %v2359 = vmax.f32 %v2241, 0.0
        %v2360 = vmax.f32 %v1985, 0.0
        %v2361 = vmax.f32 %v2243, 0.0
        %v2362 = vmax.f32 %v1988, 0.0
        %v2363 = vmax.f32 %v2246, 0.0
        %v2364 = vmax.f32 %v1990, 0.0
        %v2365 = vmax.f32 %v2248, 0.0
        %v2366 = vmax.f32 %v1993, 0.0
        %v2367 = vmax.f32 %v2251, 0.0
        %v2368 = vmax.f32 %v1995, 0.0
        %v2369 = vmax.f32 %v2253, 0.0
        %v2370 = vmax.f32 %v1998, 0.0
        %v2371 = vmax.f32 %v2256, 0.0
        %v2372 = vmax.f32 %v2000, 0.0
        %v2373 = vmax.f32 %v2258, 0.0
        %v2374 = vmax.f32 %v2003, 0.0
        %v2375 = vmax.f32 %v2261, 0.0
        %v2376 = vmax.f32 %v2005, 0.0
        %v2377 = vmax.f32 %v2263, 0.0
        %v2378 = vmax.f32 %v2008, 0.0
        %v2379 = vmax.f32 %v2266, 0.0
        %v2380 = vmax.f32 %v2010, 0.0
        %v2381 = vmax.f32 %v2268, 0.0
        %v2382 = vmax.f32 %v2013, 0.0
        %v2383 = vmax.f32 %v2271, 0.0
        %v2384 = vmax.f32 %v2015, 0.0
        %v2385 = vmax.f32 %v2273, 0.0
        %v2386 = vmax.f32 %v2018, 0.0
        %v2387 = vmax.f32 %v2276, 0.0
        %v2388 = vmax.f32 %v2020, 0.0
        %v2389 = vmax.f32 %v2278, 0.0
        %v2390 = vmax.f32 %v2023, 0.0
        %v2391 = vmax.f32 %v2281, 0.0
        %v2392 = vmax.f32 %v2025, 0.0
        %v2393 = vmax.f32 %v2283, 0.0
        %v2394 = vmax.f32 %v2028, 0.0
        %v2395 = vmax.f32 %v2286, 0.0
        %v2396 = vmax.f32 %v2030, 0.0
        %v2397 = vmax.f32 %v2288, 0.0
        %v2398 = vmax.f32 %v2033, 0.0
        %v2399 = vmax.f32 %v2291, 0.0
        %v2400 = vmax.f32 %v2035, 0.0
        %v2401 = vmax.f32 %v2293, 0.0
        %v2402 = vmax.f32 %v2038, 0.0
        %v2403 = vmax.f32 %v2296, 0.0
        %v2404 = vmax.f32 %v2040, 0.0
        %v2405 = vmax.f32 %v2298, 0.0
        %v2406 = vmax.f32 %v2043, 0.0
        %v2407 = vmax.f32 %v2301, 0.0
        %v2408 = vmax.f32 %v2045, 0.0
        %v2409 = vmax.f32 %v2303, 0.0
        %v2410 = vmax.f32 %v2048, 0.0
        %v2411 = vmax.f32 %v2306, 0.0
        %v2412 = vmax.f32 %v2050, 0.0
        %v2413 = vmax.f32 %v2308, 0.0
        %v2414 = vmax.f32 %v2053, 0.0
        %v2415 = vmax.f32 %v2311, 0.0
        %v2416 = vmax.f32 %v2055, 0.0
        %v2417 = vmax.f32 %v2313, 0.0
        %v2418 = vmax.f32 %v2058, 0.0
        %v2419 = vmax.f32 %v2316, 0.0
        %v2420 = vmax.f32 %v2060, 0.0
        %v2421 = vmax.f32 %v2318, 0.0
        %v2422 = vmax.f32 %v2063, 0.0
        %v2423 = vmax.f32 %v2321, 0.0
        %v2424 = vmax.f32 %v2065, 0.0
        %v2425 = vmax.f32 %v2323, 0.0
        %v2426 = vmax.f32 %v2068, 0.0
        %v2427 = vmax.f32 %v2326, 0.0
        %v2428 = vmax.f32 %v2070, 0.0
        %v2429 = vmax.f32 %v2328, 0.0
        %v2430 = vmax.f32 %v2073, 0.0
        %v2431 = vmax.f32 %v2331, 0.0
        %v2432 = vmax.f32 %v2075, 0.0
        %v2433 = vmax.f32 %v2333, 0.0
        %v2434 = vmax.f32 %v2078, 0.0
        %v2435 = vmax.f32 %v2336, 0.0
        %v2436 = vmax.f32 %v2080, 0.0
        %v2437 = vmax.f32 %v2338, 0.0
        %v2438 = vmax.f32 %v2083, 0.0
        %v2439 = vmax.f32 %v2341, 0.0
        %v2440 = vmax.f32 %v2085, 0.0
        %v2441 = vmax.f32 %v2343, 0.0
        %v2442 = vmax.f32 %v2088, 0.0
        %v2443 = vmax.f32 %v2346, 0.0
        %v2444 = vmax.f32 %v2090, 0.0
        %v2445 = vmax.f32 %v2348, 0.0
        %v2542 = vrot.slane %v2351, 6
        %v2543 = vrot.slane %v2353, 6
        %v2544 = vrot.slane %v2355, 6
        %v2545 = vrot.slane %v2357, 6
        %v2546 = vrot.slane %v2359, 6
        %v2547 = vrot.slane %v2361, 6
        %v2548 = vrot.slane %v2363, 6
        %v2549 = vrot.slane %v2365, 6
        %v2550 = vrot.slane %v2367, 6
        %v2551 = vrot.slane %v2369, 6
        %v2552 = vrot.slane %v2371, 6
        %v2553 = vrot.slane %v2373, 6
        %v2554 = vrot.slane %v2375, 6
        %v2555 = vrot.slane %v2377, 6
        %v2556 = vrot.slane %v2379, 6
        %v2557 = vrot.slane %v2381, 6
        %v2558 = vrot.slane %v2383, 6
        %v2559 = vrot.slane %v2385, 6
        %v2560 = vrot.slane %v2387, 6
        %v2561 = vrot.slane %v2389, 6
        %v2562 = vrot.slane %v2391, 6
        %v2563 = vrot.slane %v2393, 6
        %v2564 = vrot.slane %v2395, 6
        %v2565 = vrot.slane %v2397, 6
        %v2566 = vrot.slane %v2399, 6
        %v2567 = vrot.slane %v2401, 6
        %v2568 = vrot.slane %v2403, 6
        %v2569 = vrot.slane %v2405, 6
        %v2570 = vrot.slane %v2407, 6
        %v2571 = vrot.slane %v2409, 6
        %v2572 = vrot.slane %v2411, 6
        %v2573 = vrot.slane %v2413, 6
        %v2574 = vrot.slane %v2415, 6
        %v2575 = vrot.slane %v2417, 6
        %v2576 = vrot.slane %v2419, 6
        %v2577 = vrot.slane %v2421, 6
        %v2578 = vrot.slane %v2423, 6
        %v2579 = vrot.slane %v2425, 6
        %v2580 = vrot.slane %v2427, 6
        %v2581 = vrot.slane %v2429, 6
        %v2582 = vrot.slane %v2431, 6
        %v2583 = vrot.slane %v2433, 6
        %v2584 = vrot.slane %v2435, 6
        %v2585 = vrot.slane %v2437, 6
        %v2586 = vrot.slane %v2439, 6
        %v2587 = vrot.slane %v2441, 6
        %v2588 = vrot.slane %v2443, 6
        %v2589 = vrot.slane %v2445, 6
        %vm2590 = vcmask 1041408
        %v2591 = vsel %vm2590, %v2350, %v2542
        %vm2592 = vcmask 1043458
        %v2593 = vsel %vm2592, %v2350, %v2542
        %v2594 = vrot.slane %v2593, 2
        %vm2595 = vcmask 1045508
        %v2596 = vsel %vm2595, %v2350, %v2542
        %v2597 = vrot.slane %v2596, 4
        %v2598 = vsel %vm634, %v2542, %v2350
        %v2599 = vrot.slane %v2598, 6
        %v2600 = vsel %vm2590, %v2352, %v2543
        %v2601 = vsel %vm2592, %v2352, %v2543
        %v2602 = vrot.slane %v2601, 2
        %v2603 = vsel %vm2595, %v2352, %v2543
        %v2604 = vrot.slane %v2603, 4
        %v2605 = vsel %vm634, %v2543, %v2352
        %v2606 = vrot.slane %v2605, 6
        %v2607 = vsel %vm2590, %v2354, %v2544
        %v2608 = vsel %vm2592, %v2354, %v2544
        %v2609 = vrot.slane %v2608, 2
        %v2610 = vsel %vm2595, %v2354, %v2544
        %v2611 = vrot.slane %v2610, 4
        %v2612 = vsel %vm634, %v2544, %v2354
        %v2613 = vrot.slane %v2612, 6
        %v2614 = vsel %vm2590, %v2356, %v2545
        %v2615 = vsel %vm2592, %v2356, %v2545
        %v2616 = vrot.slane %v2615, 2
        %v2617 = vsel %vm2595, %v2356, %v2545
        %v2618 = vrot.slane %v2617, 4
        %v2619 = vsel %vm634, %v2545, %v2356
        %v2620 = vrot.slane %v2619, 6
        %v2621 = vsel %vm2590, %v2358, %v2546
        %v2622 = vsel %vm2592, %v2358, %v2546
        %v2623 = vrot.slane %v2622, 2
        %v2624 = vsel %vm2595, %v2358, %v2546
        %v2625 = vrot.slane %v2624, 4
        %v2626 = vsel %vm634, %v2546, %v2358
        %v2627 = vrot.slane %v2626, 6
        %v2628 = vsel %vm2590, %v2360, %v2547
        %v2629 = vsel %vm2592, %v2360, %v2547
        %v2630 = vrot.slane %v2629, 2
        %v2631 = vsel %vm2595, %v2360, %v2547
        %v2632 = vrot.slane %v2631, 4
        %v2633 = vsel %vm634, %v2547, %v2360
        %v2634 = vrot.slane %v2633, 6
        %v2635 = vsel %vm2590, %v2362, %v2548
        %v2636 = vsel %vm2592, %v2362, %v2548
        %v2637 = vrot.slane %v2636, 2
        %v2638 = vsel %vm2595, %v2362, %v2548
        %v2639 = vrot.slane %v2638, 4
        %v2640 = vsel %vm634, %v2548, %v2362
        %v2641 = vrot.slane %v2640, 6
        %v2642 = vsel %vm2590, %v2364, %v2549
        %v2643 = vsel %vm2592, %v2364, %v2549
        %v2644 = vrot.slane %v2643, 2
        %v2645 = vsel %vm2595, %v2364, %v2549
        %v2646 = vrot.slane %v2645, 4
        %v2647 = vsel %vm634, %v2549, %v2364
        %v2648 = vrot.slane %v2647, 6
        %v2649 = vsel %vm2590, %v2366, %v2550
        %v2650 = vsel %vm2592, %v2366, %v2550
        %v2651 = vrot.slane %v2650, 2
        %v2652 = vsel %vm2595, %v2366, %v2550
        %v2653 = vrot.slane %v2652, 4
        %v2654 = vsel %vm634, %v2550, %v2366
        %v2655 = vrot.slane %v2654, 6
        %v2656 = vsel %vm2590, %v2368, %v2551
        %v2657 = vsel %vm2592, %v2368, %v2551
        %v2658 = vrot.slane %v2657, 2
        %v2659 = vsel %vm2595, %v2368, %v2551
        %v2660 = vrot.slane %v2659, 4
        %v2661 = vsel %vm634, %v2551, %v2368
        %v2662 = vrot.slane %v2661, 6
        %v2663 = vsel %vm2590, %v2370, %v2552
        %v2664 = vsel %vm2592, %v2370, %v2552
        %v2665 = vrot.slane %v2664, 2
        %v2666 = vsel %vm2595, %v2370, %v2552
        %v2667 = vrot.slane %v2666, 4
        %v2668 = vsel %vm634, %v2552, %v2370
        %v2669 = vrot.slane %v2668, 6
        %v2670 = vsel %vm2590, %v2372, %v2553
        %v2671 = vsel %vm2592, %v2372, %v2553
        %v2672 = vrot.slane %v2671, 2
        %v2673 = vsel %vm2595, %v2372, %v2553
        %v2674 = vrot.slane %v2673, 4
        %v2675 = vsel %vm634, %v2553, %v2372
        %v2676 = vrot.slane %v2675, 6
        %v2677 = vsel %vm2590, %v2374, %v2554
        %v2678 = vsel %vm2592, %v2374, %v2554
        %v2679 = vrot.slane %v2678, 2
        %v2680 = vsel %vm2595, %v2374, %v2554
        %v2681 = vrot.slane %v2680, 4
        %v2682 = vsel %vm634, %v2554, %v2374
        %v2683 = vrot.slane %v2682, 6
        %v2684 = vsel %vm2590, %v2376, %v2555
        %v2685 = vsel %vm2592, %v2376, %v2555
        %v2686 = vrot.slane %v2685, 2
        %v2687 = vsel %vm2595, %v2376, %v2555
        %v2688 = vrot.slane %v2687, 4
        %v2689 = vsel %vm634, %v2555, %v2376
        %v2690 = vrot.slane %v2689, 6
        %v2691 = vsel %vm2590, %v2378, %v2556
        %v2692 = vsel %vm2592, %v2378, %v2556
        %v2693 = vrot.slane %v2692, 2
        %v2694 = vsel %vm2595, %v2378, %v2556
        %v2695 = vrot.slane %v2694, 4
        %v2696 = vsel %vm634, %v2556, %v2378
        %v2697 = vrot.slane %v2696, 6
        %v2698 = vsel %vm2590, %v2380, %v2557
        %v2699 = vsel %vm2592, %v2380, %v2557
        %v2700 = vrot.slane %v2699, 2
        %v2701 = vsel %vm2595, %v2380, %v2557
        %v2702 = vrot.slane %v2701, 4
        %v2703 = vsel %vm634, %v2557, %v2380
        %v2704 = vrot.slane %v2703, 6
        %v2705 = vsel %vm2590, %v2382, %v2558
        %v2706 = vsel %vm2592, %v2382, %v2558
        %v2707 = vrot.slane %v2706, 2
        %v2708 = vsel %vm2595, %v2382, %v2558
        %v2709 = vrot.slane %v2708, 4
        %v2710 = vsel %vm634, %v2558, %v2382
        %v2711 = vrot.slane %v2710, 6
        %v2712 = vsel %vm2590, %v2384, %v2559
        %v2713 = vsel %vm2592, %v2384, %v2559
        %v2714 = vrot.slane %v2713, 2
        %v2715 = vsel %vm2595, %v2384, %v2559
        %v2716 = vrot.slane %v2715, 4
        %v2717 = vsel %vm634, %v2559, %v2384
        %v2718 = vrot.slane %v2717, 6
        %v2719 = vsel %vm2590, %v2386, %v2560
        %v2720 = vsel %vm2592, %v2386, %v2560
        %v2721 = vrot.slane %v2720, 2
        %v2722 = vsel %vm2595, %v2386, %v2560
        %v2723 = vrot.slane %v2722, 4
        %v2724 = vsel %vm634, %v2560, %v2386
        %v2725 = vrot.slane %v2724, 6
        %v2726 = vsel %vm2590, %v2388, %v2561
        %v2727 = vsel %vm2592, %v2388, %v2561
        %v2728 = vrot.slane %v2727, 2
        %v2729 = vsel %vm2595, %v2388, %v2561
        %v2730 = vrot.slane %v2729, 4
        %v2731 = vsel %vm634, %v2561, %v2388
        %v2732 = vrot.slane %v2731, 6
        %v2733 = vsel %vm2590, %v2390, %v2562
        %v2734 = vsel %vm2592, %v2390, %v2562
        %v2735 = vrot.slane %v2734, 2
        %v2736 = vsel %vm2595, %v2390, %v2562
        %v2737 = vrot.slane %v2736, 4
        %v2738 = vsel %vm634, %v2562, %v2390
        %v2739 = vrot.slane %v2738, 6
        %v2740 = vsel %vm2590, %v2392, %v2563
        %v2741 = vsel %vm2592, %v2392, %v2563
        %v2742 = vrot.slane %v2741, 2
        %v2743 = vsel %vm2595, %v2392, %v2563
        %v2744 = vrot.slane %v2743, 4
        %v2745 = vsel %vm634, %v2563, %v2392
        %v2746 = vrot.slane %v2745, 6
        %v2747 = vsel %vm2590, %v2394, %v2564
        %v2748 = vsel %vm2592, %v2394, %v2564
        %v2749 = vrot.slane %v2748, 2
        %v2750 = vsel %vm2595, %v2394, %v2564
        %v2751 = vrot.slane %v2750, 4
        %v2752 = vsel %vm634, %v2564, %v2394
        %v2753 = vrot.slane %v2752, 6
        %v2754 = vsel %vm2590, %v2396, %v2565
        %v2755 = vsel %vm2592, %v2396, %v2565
        %v2756 = vrot.slane %v2755, 2
        %v2757 = vsel %vm2595, %v2396, %v2565
        %v2758 = vrot.slane %v2757, 4
        %v2759 = vsel %vm634, %v2565, %v2396
        %v2760 = vrot.slane %v2759, 6
        %v2761 = vsel %vm2590, %v2398, %v2566
        %v2762 = vsel %vm2592, %v2398, %v2566
        %v2763 = vrot.slane %v2762, 2
        %v2764 = vsel %vm2595, %v2398, %v2566
        %v2765 = vrot.slane %v2764, 4
        %v2766 = vsel %vm634, %v2566, %v2398
        %v2767 = vrot.slane %v2766, 6
        %v2768 = vsel %vm2590, %v2400, %v2567
        %v2769 = vsel %vm2592, %v2400, %v2567
        %v2770 = vrot.slane %v2769, 2
        %v2771 = vsel %vm2595, %v2400, %v2567
        %v2772 = vrot.slane %v2771, 4
        %v2773 = vsel %vm634, %v2567, %v2400
        %v2774 = vrot.slane %v2773, 6
        %v2775 = vsel %vm2590, %v2402, %v2568
        %v2776 = vsel %vm2592, %v2402, %v2568
        %v2777 = vrot.slane %v2776, 2
        %v2778 = vsel %vm2595, %v2402, %v2568
        %v2779 = vrot.slane %v2778, 4
        %v2780 = vsel %vm634, %v2568, %v2402
        %v2781 = vrot.slane %v2780, 6
        %v2782 = vsel %vm2590, %v2404, %v2569
        %v2783 = vsel %vm2592, %v2404, %v2569
        %v2784 = vrot.slane %v2783, 2
        %v2785 = vsel %vm2595, %v2404, %v2569
        %v2786 = vrot.slane %v2785, 4
        %v2787 = vsel %vm634, %v2569, %v2404
        %v2788 = vrot.slane %v2787, 6
        %v2789 = vsel %vm2590, %v2406, %v2570
        %v2790 = vsel %vm2592, %v2406, %v2570
        %v2791 = vrot.slane %v2790, 2
        %v2792 = vsel %vm2595, %v2406, %v2570
        %v2793 = vrot.slane %v2792, 4
        %v2794 = vsel %vm634, %v2570, %v2406
        %v2795 = vrot.slane %v2794, 6
        %v2796 = vsel %vm2590, %v2408, %v2571
        %v2797 = vsel %vm2592, %v2408, %v2571
        %v2798 = vrot.slane %v2797, 2
        %v2799 = vsel %vm2595, %v2408, %v2571
        %v2800 = vrot.slane %v2799, 4
        %v2801 = vsel %vm634, %v2571, %v2408
        %v2802 = vrot.slane %v2801, 6
        %v2803 = vsel %vm2590, %v2410, %v2572
        %v2804 = vsel %vm2592, %v2410, %v2572
        %v2805 = vrot.slane %v2804, 2
        %v2806 = vsel %vm2595, %v2410, %v2572
        %v2807 = vrot.slane %v2806, 4
        %v2808 = vsel %vm634, %v2572, %v2410
        %v2809 = vrot.slane %v2808, 6
        %v2810 = vsel %vm2590, %v2412, %v2573
        %v2811 = vsel %vm2592, %v2412, %v2573
        %v2812 = vrot.slane %v2811, 2
        %v2813 = vsel %vm2595, %v2412, %v2573
        %v2814 = vrot.slane %v2813, 4
        %v2815 = vsel %vm634, %v2573, %v2412
        %v2816 = vrot.slane %v2815, 6
        %v2817 = vsel %vm2590, %v2414, %v2574
        %v2818 = vsel %vm2592, %v2414, %v2574
        %v2819 = vrot.slane %v2818, 2
        %v2820 = vsel %vm2595, %v2414, %v2574
        %v2821 = vrot.slane %v2820, 4
        %v2822 = vsel %vm634, %v2574, %v2414
        %v2823 = vrot.slane %v2822, 6
        %v2824 = vsel %vm2590, %v2416, %v2575
        %v2825 = vsel %vm2592, %v2416, %v2575
        %v2826 = vrot.slane %v2825, 2
        %v2827 = vsel %vm2595, %v2416, %v2575
        %v2828 = vrot.slane %v2827, 4
        %v2829 = vsel %vm634, %v2575, %v2416
        %v2830 = vrot.slane %v2829, 6
        %v2831 = vsel %vm2590, %v2418, %v2576
        %v2832 = vsel %vm2592, %v2418, %v2576
        %v2833 = vrot.slane %v2832, 2
        %v2834 = vsel %vm2595, %v2418, %v2576
        %v2835 = vrot.slane %v2834, 4
        %v2836 = vsel %vm634, %v2576, %v2418
        %v2837 = vrot.slane %v2836, 6
        %v2838 = vsel %vm2590, %v2420, %v2577
        %v2839 = vsel %vm2592, %v2420, %v2577
        %v2840 = vrot.slane %v2839, 2
        %v2841 = vsel %vm2595, %v2420, %v2577
        %v2842 = vrot.slane %v2841, 4
        %v2843 = vsel %vm634, %v2577, %v2420
        %v2844 = vrot.slane %v2843, 6
        %v2845 = vsel %vm2590, %v2422, %v2578
        %v2846 = vsel %vm2592, %v2422, %v2578
        %v2847 = vrot.slane %v2846, 2
        %v2848 = vsel %vm2595, %v2422, %v2578
        %v2849 = vrot.slane %v2848, 4
        %v2850 = vsel %vm634, %v2578, %v2422
        %v2851 = vrot.slane %v2850, 6
        %v2852 = vsel %vm2590, %v2424, %v2579
        %v2853 = vsel %vm2592, %v2424, %v2579
        %v2854 = vrot.slane %v2853, 2
        %v2855 = vsel %vm2595, %v2424, %v2579
        %v2856 = vrot.slane %v2855, 4
        %v2857 = vsel %vm634, %v2579, %v2424
        %v2858 = vrot.slane %v2857, 6
        %v2859 = vsel %vm2590, %v2426, %v2580
        %v2860 = vsel %vm2592, %v2426, %v2580
        %v2861 = vrot.slane %v2860, 2
        %v2862 = vsel %vm2595, %v2426, %v2580
        %v2863 = vrot.slane %v2862, 4
        %v2864 = vsel %vm634, %v2580, %v2426
        %v2865 = vrot.slane %v2864, 6
        %v2866 = vsel %vm2590, %v2428, %v2581
        %v2867 = vsel %vm2592, %v2428, %v2581
        %v2868 = vrot.slane %v2867, 2
        %v2869 = vsel %vm2595, %v2428, %v2581
        %v2870 = vrot.slane %v2869, 4
        %v2871 = vsel %vm634, %v2581, %v2428
        %v2872 = vrot.slane %v2871, 6
        %v2873 = vsel %vm2590, %v2430, %v2582
        %v2874 = vsel %vm2592, %v2430, %v2582
        %v2875 = vrot.slane %v2874, 2
        %v2876 = vsel %vm2595, %v2430, %v2582
        %v2877 = vrot.slane %v2876, 4
        %v2878 = vsel %vm634, %v2582, %v2430
        %v2879 = vrot.slane %v2878, 6
        %v2880 = vsel %vm2590, %v2432, %v2583
        %v2881 = vsel %vm2592, %v2432, %v2583
        %v2882 = vrot.slane %v2881, 2
        %v2883 = vsel %vm2595, %v2432, %v2583
        %v2884 = vrot.slane %v2883, 4
        %v2885 = vsel %vm634, %v2583, %v2432
        %v2886 = vrot.slane %v2885, 6
        %v2887 = vsel %vm2590, %v2434, %v2584
        %v2888 = vsel %vm2592, %v2434, %v2584
        %v2889 = vrot.slane %v2888, 2
        %v2890 = vsel %vm2595, %v2434, %v2584
        %v2891 = vrot.slane %v2890, 4
        %v2892 = vsel %vm634, %v2584, %v2434
        %v2893 = vrot.slane %v2892, 6
        %v2894 = vsel %vm2590, %v2436, %v2585
        %v2895 = vsel %vm2592, %v2436, %v2585
        %v2896 = vrot.slane %v2895, 2
        %v2897 = vsel %vm2595, %v2436, %v2585
        %v2898 = vrot.slane %v2897, 4
        %v2899 = vsel %vm634, %v2585, %v2436
        %v2900 = vrot.slane %v2899, 6
        %v2901 = vsel %vm2590, %v2438, %v2586
        %v2902 = vsel %vm2592, %v2438, %v2586
        %v2903 = vrot.slane %v2902, 2
        %v2904 = vsel %vm2595, %v2438, %v2586
        %v2905 = vrot.slane %v2904, 4
        %v2906 = vsel %vm634, %v2586, %v2438
        %v2907 = vrot.slane %v2906, 6
        %v2908 = vsel %vm2590, %v2440, %v2587
        %v2909 = vsel %vm2592, %v2440, %v2587
        %v2910 = vrot.slane %v2909, 2
        %v2911 = vsel %vm2595, %v2440, %v2587
        %v2912 = vrot.slane %v2911, 4
        %v2913 = vsel %vm634, %v2587, %v2440
        %v2914 = vrot.slane %v2913, 6
        %v2915 = vsel %vm2590, %v2442, %v2588
        %v2916 = vsel %vm2592, %v2442, %v2588
        %v2917 = vrot.slane %v2916, 2
        %v2918 = vsel %vm2595, %v2442, %v2588
        %v2919 = vrot.slane %v2918, 4
        %v2920 = vsel %vm634, %v2588, %v2442
        %v2921 = vrot.slane %v2920, 6
        %v2922 = vsel %vm2590, %v2444, %v2589
        %v2923 = vsel %vm2592, %v2444, %v2589
        %v2924 = vrot.slane %v2923, 2
        %v2925 = vsel %vm2595, %v2444, %v2589
        %v2926 = vrot.slane %v2925, 4
        %v2927 = vsel %vm634, %v2589, %v2444
        %v2928 = vrot.slane %v2927, 6
        %2929 = vst [vmem:[#allocation1] ss:$4 sm:$0xff] %v2591
        %v2930 = vld.sshfl [vmem:[#allocation1] sm:$0xff pattern:$0x73625140]
        %v2931 = vld.sshfl [vmem:[#allocation1 + $0x8] sm:$0xff pattern:$0x73625140]
        %s2932 = scalar_lea.vmem [#allocation1], 32
        %2933 = vst [vmem:[%s2932] ss:$4 sm:$0xff] %v2594
        %v2934 = vld.sshfl [vmem:[#allocation1 + $0x20] sm:$0xff pattern:$0x73625140]
        %v2935 = vld.sshfl [vmem:[#allocation1 + $0x28] sm:$0xff pattern:$0x73625140]
        %2936 = vst [vmem:[#allocation1] ss:$4 sm:$0xff] %v2597
        %v2937 = vld.sshfl [vmem:[#allocation1] sm:$0xff pattern:$0x73625140]
        %v2938 = vld.sshfl [vmem:[#allocation1 + $0x8] sm:$0xff pattern:$0x73625140]
        %2939 = vst [vmem:[%s2932] ss:$4 sm:$0xff] %v2599
        %v2940 = vld.sshfl [vmem:[#allocation1 + $0x20] sm:$0xff pattern:$0x73625140]
        %v2941 = vld.sshfl [vmem:[#allocation1 + $0x28] sm:$0xff pattern:$0x73625140]
        %2942 = vst [vmem:[#allocation1] ss:$4 sm:$0xff] %v2600
        %v2943 = vld.sshfl [vmem:[#allocation1] sm:$0xff pattern:$0x73625140]
        %v2944 = vld.sshfl [vmem:[#allocation1 + $0x8] sm:$0xff pattern:$0x73625140]
        %2945 = vst [vmem:[%s2932] ss:$4 sm:$0xff] %v2602
        %v2946 = vld.sshfl [vmem:[#allocation1 + $0x20] sm:$0xff pattern:$0x73625140]
        %v2947 = vld.sshfl [vmem:[#allocation1 + $0x28] sm:$0xff pattern:$0x73625140]
        %2948 = vst [vmem:[#allocation1] ss:$4 sm:$0xff] %v2604
        %v2949 = vld.sshfl [vmem:[#allocation1] sm:$0xff pattern:$0x73625140]
        %v2950 = vld.sshfl [vmem:[#allocation1 + $0x8] sm:$0xff pattern:$0x73625140]
        %2951 = vst [vmem:[%s2932] ss:$4 sm:$0xff] %v2606
        %v2952 = vld.sshfl [vmem:[#allocation1 + $0x20] sm:$0xff pattern:$0x73625140]
        %v2953 = vld.sshfl [vmem:[#allocation1 + $0x28] sm:$0xff pattern:$0x73625140]
        %2954 = vst [vmem:[#allocation1] ss:$4 sm:$0xff] %v2607
        %v2955 = vld.sshfl [vmem:[#allocation1] sm:$0xff pattern:$0x73625140]
        %v2956 = vld.sshfl [vmem:[#allocation1 + $0x8] sm:$0xff pattern:$0x73625140]
        %2957 = vst [vmem:[%s2932] ss:$4 sm:$0xff] %v2609
        %v2958 = vld.sshfl [vmem:[#allocation1 + $0x20] sm:$0xff pattern:$0x73625140]
        %v2959 = vld.sshfl [vmem:[#allocation1 + $0x28] sm:$0xff pattern:$0x73625140]
        %2960 = vst [vmem:[#allocation1] ss:$4 sm:$0xff] %v2611
        %v2961 = vld.sshfl [vmem:[#allocation1] sm:$0xff pattern:$0x73625140]
        %v2962 = vld.sshfl [vmem:[#allocation1 + $0x8] sm:$0xff pattern:$0x73625140]
        %2963 = vst [vmem:[%s2932] ss:$4 sm:$0xff] %v2613
        %v2964 = vld.sshfl [vmem:[#allocation1 + $0x20] sm:$0xff pattern:$0x73625140]
        %v2965 = vld.sshfl [vmem:[#allocation1 + $0x28] sm:$0xff pattern:$0x73625140]
        %2966 = vst [vmem:[#allocation1] ss:$4 sm:$0xff] %v2614
        %v2967 = vld.sshfl [vmem:[#allocation1] sm:$0xff pattern:$0x73625140]
        %v2968 = vld.sshfl [vmem:[#allocation1 + $0x8] sm:$0xff pattern:$0x73625140]
        %2969 = vst [vmem:[%s2932] ss:$4 sm:$0xff] %v2616
        %v2970 = vld.sshfl [vmem:[#allocation1 + $0x20] sm:$0xff pattern:$0x73625140]
        %v2971 = vld.sshfl [vmem:[#allocation1 + $0x28] sm:$0xff pattern:$0x73625140]
        %2972 = vst [vmem:[#allocation1] ss:$4 sm:$0xff] %v2618
        %v2973 = vld.sshfl [vmem:[#allocation1] sm:$0xff pattern:$0x73625140]
        %v2974 = vld.sshfl [vmem:[#allocation1 + $0x8] sm:$0xff pattern:$0x73625140]
        %2975 = vst [vmem:[%s2932] ss:$4 sm:$0xff] %v2620
        %v2976 = vld.sshfl [vmem:[#allocation1 + $0x20] sm:$0xff pattern:$0x73625140]
        %v2977 = vld.sshfl [vmem:[#allocation1 + $0x28] sm:$0xff pattern:$0x73625140]
        %2978 = vst [vmem:[#allocation1] ss:$4 sm:$0xff] %v2621
        %v2979 = vld.sshfl [vmem:[#allocation1] sm:$0xff pattern:$0x73625140]
        %v2980 = vld.sshfl [vmem:[#allocation1 + $0x8] sm:$0xff pattern:$0x73625140]
        %2981 = vst [vmem:[%s2932] ss:$4 sm:$0xff] %v2623
        %v2982 = vld.sshfl [vmem:[#allocation1 + $0x20] sm:$0xff pattern:$0x73625140]
        %v2983 = vld.sshfl [vmem:[#allocation1 + $0x28] sm:$0xff pattern:$0x73625140]
        %2984 = vst [vmem:[#allocation1] ss:$4 sm:$0xff] %v2625
        %v2985 = vld.sshfl [vmem:[#allocation1] sm:$0xff pattern:$0x73625140]
        %v2986 = vld.sshfl [vmem:[#allocation1 + $0x8] sm:$0xff pattern:$0x73625140]
        %2987 = vst [vmem:[%s2932] ss:$4 sm:$0xff] %v2627
        %v2988 = vld.sshfl [vmem:[#allocation1 + $0x20] sm:$0xff pattern:$0x73625140]
        %v2989 = vld.sshfl [vmem:[#allocation1 + $0x28] sm:$0xff pattern:$0x73625140]
        %2990 = vst [vmem:[#allocation1] ss:$4 sm:$0xff] %v2628
        %v2991 = vld.sshfl [vmem:[#allocation1] sm:$0xff pattern:$0x73625140]
        %v2992 = vld.sshfl [vmem:[#allocation1 + $0x8] sm:$0xff pattern:$0x73625140]
        %2993 = vst [vmem:[%s2932] ss:$4 sm:$0xff] %v2630
        %v2994 = vld.sshfl [vmem:[#allocation1 + $0x20] sm:$0xff pattern:$0x73625140]
        %v2995 = vld.sshfl [vmem:[#allocation1 + $0x28] sm:$0xff pattern:$0x73625140]
        %2996 = vst [vmem:[#allocation1] ss:$4 sm:$0xff] %v2632
        %v2997 = vld.sshfl [vmem:[#allocation1] sm:$0xff pattern:$0x73625140]
        %v2998 = vld.sshfl [vmem:[#allocation1 + $0x8] sm:$0xff pattern:$0x73625140]
        %2999 = vst [vmem:[%s2932] ss:$4 sm:$0xff] %v2634
        %v3000 = vld.sshfl [vmem:[#allocation1 + $0x20] sm:$0xff pattern:$0x73625140]
        %v3001 = vld.sshfl [vmem:[#allocation1 + $0x28] sm:$0xff pattern:$0x73625140]
        %3002 = vst [vmem:[#allocation1] ss:$4 sm:$0xff] %v2635
        %v3003 = vld.sshfl [vmem:[#allocation1] sm:$0xff pattern:$0x73625140]
        %v3004 = vld.sshfl [vmem:[#allocation1 + $0x8] sm:$0xff pattern:$0x73625140]
        %3005 = vst [vmem:[%s2932] ss:$4 sm:$0xff] %v2637
        %v3006 = vld.sshfl [vmem:[#allocation1 + $0x20] sm:$0xff pattern:$0x73625140]
        %v3007 = vld.sshfl [vmem:[#allocation1 + $0x28] sm:$0xff pattern:$0x73625140]
        %3008 = vst [vmem:[#allocation1] ss:$4 sm:$0xff] %v2639
        %v3009 = vld.sshfl [vmem:[#allocation1] sm:$0xff pattern:$0x73625140]
        %v3010 = vld.sshfl [vmem:[#allocation1 + $0x8] sm:$0xff pattern:$0x73625140]
        %3011 = vst [vmem:[%s2932] ss:$4 sm:$0xff] %v2641
        %v3012 = vld.sshfl [vmem:[#allocation1 + $0x20] sm:$0xff pattern:$0x73625140]
        %v3013 = vld.sshfl [vmem:[#allocation1 + $0x28] sm:$0xff pattern:$0x73625140]
        %3014 = vst [vmem:[#allocation1] ss:$4 sm:$0xff] %v2642
        %v3015 = vld.sshfl [vmem:[#allocation1] sm:$0xff pattern:$0x73625140]
        %v3016 = vld.sshfl [vmem:[#allocation1 + $0x8] sm:$0xff pattern:$0x73625140]
        %3017 = vst [vmem:[%s2932] ss:$4 sm:$0xff] %v2644
        %v3018 = vld.sshfl [vmem:[#allocation1 + $0x20] sm:$0xff pattern:$0x73625140]
        %v3019 = vld.sshfl [vmem:[#allocation1 + $0x28] sm:$0xff pattern:$0x73625140]
        %3020 = vst [vmem:[#allocation1] ss:$4 sm:$0xff] %v2646
        %v3021 = vld.sshfl [vmem:[#allocation1] sm:$0xff pattern:$0x73625140]
        %v3022 = vld.sshfl [vmem:[#allocation1 + $0x8] sm:$0xff pattern:$0x73625140]
        %3023 = vst [vmem:[%s2932] ss:$4 sm:$0xff] %v2648
        %v3024 = vld.sshfl [vmem:[#allocation1 + $0x20] sm:$0xff pattern:$0x73625140]
        %v3025 = vld.sshfl [vmem:[#allocation1 + $0x28] sm:$0xff pattern:$0x73625140]
        %3026 = vst [vmem:[#allocation1] ss:$4 sm:$0xff] %v2649
        %v3027 = vld.sshfl [vmem:[#allocation1] sm:$0xff pattern:$0x73625140]
        %v3028 = vld.sshfl [vmem:[#allocation1 + $0x8] sm:$0xff pattern:$0x73625140]
        %3029 = vst [vmem:[%s2932] ss:$4 sm:$0xff] %v2651
        %v3030 = vld.sshfl [vmem:[#allocation1 + $0x20] sm:$0xff pattern:$0x73625140]
        %v3031 = vld.sshfl [vmem:[#allocation1 + $0x28] sm:$0xff pattern:$0x73625140]
        %3032 = vst [vmem:[#allocation1] ss:$4 sm:$0xff] %v2653
        %v3033 = vld.sshfl [vmem:[#allocation1] sm:$0xff pattern:$0x73625140]
        %v3034 = vld.sshfl [vmem:[#allocation1 + $0x8] sm:$0xff pattern:$0x73625140]
        %3035 = vst [vmem:[%s2932] ss:$4 sm:$0xff] %v2655
        %v3036 = vld.sshfl [vmem:[#allocation1 + $0x20] sm:$0xff pattern:$0x73625140]
        %v3037 = vld.sshfl [vmem:[#allocation1 + $0x28] sm:$0xff pattern:$0x73625140]
        %3038 = vst [vmem:[#allocation1] ss:$4 sm:$0xff] %v2656
        %v3039 = vld.sshfl [vmem:[#allocation1] sm:$0xff pattern:$0x73625140]
        %v3040 = vld.sshfl [vmem:[#allocation1 + $0x8] sm:$0xff pattern:$0x73625140]
        %3041 = vst [vmem:[%s2932] ss:$4 sm:$0xff] %v2658
        %v3042 = vld.sshfl [vmem:[#allocation1 + $0x20] sm:$0xff pattern:$0x73625140]
        %v3043 = vld.sshfl [vmem:[#allocation1 + $0x28] sm:$0xff pattern:$0x73625140]
        %3044 = vst [vmem:[#allocation1] ss:$4 sm:$0xff] %v2660
        %v3045 = vld.sshfl [vmem:[#allocation1] sm:$0xff pattern:$0x73625140]
        %v3046 = vld.sshfl [vmem:[#allocation1 + $0x8] sm:$0xff pattern:$0x73625140]
        %3047 = vst [vmem:[%s2932] ss:$4 sm:$0xff] %v2662
        %v3048 = vld.sshfl [vmem:[#allocation1 + $0x20] sm:$0xff pattern:$0x73625140]
        %v3049 = vld.sshfl [vmem:[#allocation1 + $0x28] sm:$0xff pattern:$0x73625140]
        %3050 = vst [vmem:[#allocation1] ss:$4 sm:$0xff] %v2663
        %v3051 = vld.sshfl [vmem:[#allocation1] sm:$0xff pattern:$0x73625140]
        %v3052 = vld.sshfl [vmem:[#allocation1 + $0x8] sm:$0xff pattern:$0x73625140]
        %3053 = vst [vmem:[%s2932] ss:$4 sm:$0xff] %v2665
        %v3054 = vld.sshfl [vmem:[#allocation1 + $0x20] sm:$0xff pattern:$0x73625140]
        %v3055 = vld.sshfl [vmem:[#allocation1 + $0x28] sm:$0xff pattern:$0x73625140]
        %3056 = vst [vmem:[#allocation1] ss:$4 sm:$0xff] %v2667
        %v3057 = vld.sshfl [vmem:[#allocation1] sm:$0xff pattern:$0x73625140]
        %v3058 = vld.sshfl [vmem:[#allocation1 + $0x8] sm:$0xff pattern:$0x73625140]
        %3059 = vst [vmem:[%s2932] ss:$4 sm:$0xff] %v2669
        %v3060 = vld.sshfl [vmem:[#allocation1 + $0x20] sm:$0xff pattern:$0x73625140]
        %v3061 = vld.sshfl [vmem:[#allocation1 + $0x28] sm:$0xff pattern:$0x73625140]
        %3062 = vst [vmem:[#allocation1] ss:$4 sm:$0xff] %v2670
        %v3063 = vld.sshfl [vmem:[#allocation1] sm:$0xff pattern:$0x73625140]
        %v3064 = vld.sshfl [vmem:[#allocation1 + $0x8] sm:$0xff pattern:$0x73625140]
        %3065 = vst [vmem:[%s2932] ss:$4 sm:$0xff] %v2672
        %v3066 = vld.sshfl [vmem:[#allocation1 + $0x20] sm:$0xff pattern:$0x73625140]
        %v3067 = vld.sshfl [vmem:[#allocation1 + $0x28] sm:$0xff pattern:$0x73625140]
        %3068 = vst [vmem:[#allocation1] ss:$4 sm:$0xff] %v2674
        %v3069 = vld.sshfl [vmem:[#allocation1] sm:$0xff pattern:$0x73625140]
        %v3070 = vld.sshfl [vmem:[#allocation1 + $0x8] sm:$0xff pattern:$0x73625140]
        %3071 = vst [vmem:[%s2932] ss:$4 sm:$0xff] %v2676
        %v3072 = vld.sshfl [vmem:[#allocation1 + $0x20] sm:$0xff pattern:$0x73625140]
        %v3073 = vld.sshfl [vmem:[#allocation1 + $0x28] sm:$0xff pattern:$0x73625140]
        %3074 = vst [vmem:[#allocation1] ss:$4 sm:$0xff] %v2677
        %v3075 = vld.sshfl [vmem:[#allocation1] sm:$0xff pattern:$0x73625140]
        %v3076 = vld.sshfl [vmem:[#allocation1 + $0x8] sm:$0xff pattern:$0x73625140]
        %3077 = vst [vmem:[%s2932] ss:$4 sm:$0xff] %v2679
        %v3078 = vld.sshfl [vmem:[#allocation1 + $0x20] sm:$0xff pattern:$0x73625140]
        %v3079 = vld.sshfl [vmem:[#allocation1 + $0x28] sm:$0xff pattern:$0x73625140]
        %3080 = vst [vmem:[#allocation1] ss:$4 sm:$0xff] %v2681
        %v3081 = vld.sshfl [vmem:[#allocation1] sm:$0xff pattern:$0x73625140]
        %v3082 = vld.sshfl [vmem:[#allocation1 + $0x8] sm:$0xff pattern:$0x73625140]
        %3083 = vst [vmem:[%s2932] ss:$4 sm:$0xff] %v2683
        %v3084 = vld.sshfl [vmem:[#allocation1 + $0x20] sm:$0xff pattern:$0x73625140]
        %v3085 = vld.sshfl [vmem:[#allocation1 + $0x28] sm:$0xff pattern:$0x73625140]
        %3086 = vst [vmem:[#allocation1] ss:$4 sm:$0xff] %v2684
        %v3087 = vld.sshfl [vmem:[#allocation1] sm:$0xff pattern:$0x73625140]
        %v3088 = vld.sshfl [vmem:[#allocation1 + $0x8] sm:$0xff pattern:$0x73625140]
        %3089 = vst [vmem:[%s2932] ss:$4 sm:$0xff] %v2686
        %v3090 = vld.sshfl [vmem:[#allocation1 + $0x20] sm:$0xff pattern:$0x73625140]
        %v3091 = vld.sshfl [vmem:[#allocation1 + $0x28] sm:$0xff pattern:$0x73625140]
        %3092 = vst [vmem:[#allocation1] ss:$4 sm:$0xff] %v2688
        %v3093 = vld.sshfl [vmem:[#allocation1] sm:$0xff pattern:$0x73625140]
        %v3094 = vld.sshfl [vmem:[#allocation1 + $0x8] sm:$0xff pattern:$0x73625140]
        %3095 = vst [vmem:[%s2932] ss:$4 sm:$0xff] %v2690
        %v3096 = vld.sshfl [vmem:[#allocation1 + $0x20] sm:$0xff pattern:$0x73625140]
        %v3097 = vld.sshfl [vmem:[#allocation1 + $0x28] sm:$0xff pattern:$0x73625140]
        %3098 = vst [vmem:[#allocation1] ss:$4 sm:$0xff] %v2691
        %v3099 = vld.sshfl [vmem:[#allocation1] sm:$0xff pattern:$0x73625140]
        %v3100 = vld.sshfl [vmem:[#allocation1 + $0x8] sm:$0xff pattern:$0x73625140]
        %3101 = vst [vmem:[%s2932] ss:$4 sm:$0xff] %v2693
        %v3102 = vld.sshfl [vmem:[#allocation1 + $0x20] sm:$0xff pattern:$0x73625140]
        %v3103 = vld.sshfl [vmem:[#allocation1 + $0x28] sm:$0xff pattern:$0x73625140]
        %3104 = vst [vmem:[#allocation1] ss:$4 sm:$0xff] %v2695
        %v3105 = vld.sshfl [vmem:[#allocation1] sm:$0xff pattern:$0x73625140]
        %v3106 = vld.sshfl [vmem:[#allocation1 + $0x8] sm:$0xff pattern:$0x73625140]
        %3107 = vst [vmem:[%s2932] ss:$4 sm:$0xff] %v2697
        %v3108 = vld.sshfl [vmem:[#allocation1 + $0x20] sm:$0xff pattern:$0x73625140]
        %v3109 = vld.sshfl [vmem:[#allocation1 + $0x28] sm:$0xff pattern:$0x73625140]
        %3110 = vst [vmem:[#allocation1] ss:$4 sm:$0xff] %v2698
        %v3111 = vld.sshfl [vmem:[#allocation1] sm:$0xff pattern:$0x73625140]
        %v3112 = vld.sshfl [vmem:[#allocation1 + $0x8] sm:$0xff pattern:$0x73625140]
        %3113 = vst [vmem:[%s2932] ss:$4 sm:$0xff] %v2700
        %v3114 = vld.sshfl [vmem:[#allocation1 + $0x20] sm:$0xff pattern:$0x73625140]
        %v3115 = vld.sshfl [vmem:[#allocation1 + $0x28] sm:$0xff pattern:$0x73625140]
        %3116 = vst [vmem:[#allocation1] ss:$4 sm:$0xff] %v2702
        %v3117 = vld.sshfl [vmem:[#allocation1] sm:$0xff pattern:$0x73625140]
        %v3118 = vld.sshfl [vmem:[#allocation1 + $0x8] sm:$0xff pattern:$0x73625140]
        %3119 = vst [vmem:[%s2932] ss:$4 sm:$0xff] %v2704
        %v3120 = vld.sshfl [vmem:[#allocation1 + $0x20] sm:$0xff pattern:$0x73625140]
        %v3121 = vld.sshfl [vmem:[#allocation1 + $0x28] sm:$0xff pattern:$0x73625140]
        %3122 = vst [vmem:[#allocation1] ss:$4 sm:$0xff] %v2705
        %v3123 = vld.sshfl [vmem:[#allocation1] sm:$0xff pattern:$0x73625140]
        %v3124 = vld.sshfl [vmem:[#allocation1 + $0x8] sm:$0xff pattern:$0x73625140]
        %3125 = vst [vmem:[%s2932] ss:$4 sm:$0xff] %v2707
        %v3126 = vld.sshfl [vmem:[#allocation1 + $0x20] sm:$0xff pattern:$0x73625140]
        %v3127 = vld.sshfl [vmem:[#allocation1 + $0x28] sm:$0xff pattern:$0x73625140]
        %3128 = vst [vmem:[#allocation1] ss:$4 sm:$0xff] %v2709
        %v3129 = vld.sshfl [vmem:[#allocation1] sm:$0xff pattern:$0x73625140]
        %v3130 = vld.sshfl [vmem:[#allocation1 + $0x8] sm:$0xff pattern:$0x73625140]
        %3131 = vst [vmem:[%s2932] ss:$4 sm:$0xff] %v2711
        %v3132 = vld.sshfl [vmem:[#allocation1 + $0x20] sm:$0xff pattern:$0x73625140]
        %v3133 = vld.sshfl [vmem:[#allocation1 + $0x28] sm:$0xff pattern:$0x73625140]
        %3134 = vst [vmem:[#allocation1] ss:$4 sm:$0xff] %v2712
        %v3135 = vld.sshfl [vmem:[#allocation1] sm:$0xff pattern:$0x73625140]
        %v3136 = vld.sshfl [vmem:[#allocation1 + $0x8] sm:$0xff pattern:$0x73625140]
        %3137 = vst [vmem:[%s2932] ss:$4 sm:$0xff] %v2714
        %v3138 = vld.sshfl [vmem:[#allocation1 + $0x20] sm:$0xff pattern:$0x73625140]
        %v3139 = vld.sshfl [vmem:[#allocation1 + $0x28] sm:$0xff pattern:$0x73625140]
        %3140 = vst [vmem:[#allocation1] ss:$4 sm:$0xff] %v2716
        %v3141 = vld.sshfl [vmem:[#allocation1] sm:$0xff pattern:$0x73625140]
        %v3142 = vld.sshfl [vmem:[#allocation1 + $0x8] sm:$0xff pattern:$0x73625140]
        %3143 = vst [vmem:[%s2932] ss:$4 sm:$0xff] %v2718
        %v3144 = vld.sshfl [vmem:[#allocation1 + $0x20] sm:$0xff pattern:$0x73625140]
        %v3145 = vld.sshfl [vmem:[#allocation1 + $0x28] sm:$0xff pattern:$0x73625140]
        %3146 = vst [vmem:[#allocation1] ss:$4 sm:$0xff] %v2719
        %v3147 = vld.sshfl [vmem:[#allocation1] sm:$0xff pattern:$0x73625140]
        %v3148 = vld.sshfl [vmem:[#allocation1 + $0x8] sm:$0xff pattern:$0x73625140]
        %3149 = vst [vmem:[%s2932] ss:$4 sm:$0xff] %v2721
        %v3150 = vld.sshfl [vmem:[#allocation1 + $0x20] sm:$0xff pattern:$0x73625140]
        %v3151 = vld.sshfl [vmem:[#allocation1 + $0x28] sm:$0xff pattern:$0x73625140]
        %3152 = vst [vmem:[#allocation1] ss:$4 sm:$0xff] %v2723
        %v3153 = vld.sshfl [vmem:[#allocation1] sm:$0xff pattern:$0x73625140]
        %v3154 = vld.sshfl [vmem:[#allocation1 + $0x8] sm:$0xff pattern:$0x73625140]
        %3155 = vst [vmem:[%s2932] ss:$4 sm:$0xff] %v2725
        %v3156 = vld.sshfl [vmem:[#allocation1 + $0x20] sm:$0xff pattern:$0x73625140]
        %v3157 = vld.sshfl [vmem:[#allocation1 + $0x28] sm:$0xff pattern:$0x73625140]
        %3158 = vst [vmem:[#allocation1] ss:$4 sm:$0xff] %v2726
        %v3159 = vld.sshfl [vmem:[#allocation1] sm:$0xff pattern:$0x73625140]
        %v3160 = vld.sshfl [vmem:[#allocation1 + $0x8] sm:$0xff pattern:$0x73625140]
        %3161 = vst [vmem:[%s2932] ss:$4 sm:$0xff] %v2728
        %v3162 = vld.sshfl [vmem:[#allocation1 + $0x20] sm:$0xff pattern:$0x73625140]
        %v3163 = vld.sshfl [vmem:[#allocation1 + $0x28] sm:$0xff pattern:$0x73625140]
        %3164 = vst [vmem:[#allocation1] ss:$4 sm:$0xff] %v2730
        %v3165 = vld.sshfl [vmem:[#allocation1] sm:$0xff pattern:$0x73625140]
        %v3166 = vld.sshfl [vmem:[#allocation1 + $0x8] sm:$0xff pattern:$0x73625140]
        %3167 = vst [vmem:[%s2932] ss:$4 sm:$0xff] %v2732
        %v3168 = vld.sshfl [vmem:[#allocation1 + $0x20] sm:$0xff pattern:$0x73625140]
        %v3169 = vld.sshfl [vmem:[#allocation1 + $0x28] sm:$0xff pattern:$0x73625140]
        %3170 = vst [vmem:[#allocation1] ss:$4 sm:$0xff] %v2733
        %v3171 = vld.sshfl [vmem:[#allocation1] sm:$0xff pattern:$0x73625140]
        %v3172 = vld.sshfl [vmem:[#allocation1 + $0x8] sm:$0xff pattern:$0x73625140]
        %3173 = vst [vmem:[%s2932] ss:$4 sm:$0xff] %v2735
        %v3174 = vld.sshfl [vmem:[#allocation1 + $0x20] sm:$0xff pattern:$0x73625140]
        %v3175 = vld.sshfl [vmem:[#allocation1 + $0x28] sm:$0xff pattern:$0x73625140]
        %3176 = vst [vmem:[#allocation1] ss:$4 sm:$0xff] %v2737
        %v3177 = vld.sshfl [vmem:[#allocation1] sm:$0xff pattern:$0x73625140]
        %v3178 = vld.sshfl [vmem:[#allocation1 + $0x8] sm:$0xff pattern:$0x73625140]
        %3179 = vst [vmem:[%s2932] ss:$4 sm:$0xff] %v2739
        %v3180 = vld.sshfl [vmem:[#allocation1 + $0x20] sm:$0xff pattern:$0x73625140]
        %v3181 = vld.sshfl [vmem:[#allocation1 + $0x28] sm:$0xff pattern:$0x73625140]
        %3182 = vst [vmem:[#allocation1] ss:$4 sm:$0xff] %v2740
        %v3183 = vld.sshfl [vmem:[#allocation1] sm:$0xff pattern:$0x73625140]
        %v3184 = vld.sshfl [vmem:[#allocation1 + $0x8] sm:$0xff pattern:$0x73625140]
        %3185 = vst [vmem:[%s2932] ss:$4 sm:$0xff] %v2742
        %v3186 = vld.sshfl [vmem:[#allocation1 + $0x20] sm:$0xff pattern:$0x73625140]
        %v3187 = vld.sshfl [vmem:[#allocation1 + $0x28] sm:$0xff pattern:$0x73625140]
        %3188 = vst [vmem:[#allocation1] ss:$4 sm:$0xff] %v2744
        %v3189 = vld.sshfl [vmem:[#allocation1] sm:$0xff pattern:$0x73625140]
        %v3190 = vld.sshfl [vmem:[#allocation1 + $0x8] sm:$0xff pattern:$0x73625140]
        %3191 = vst [vmem:[%s2932] ss:$4 sm:$0xff] %v2746
        %v3192 = vld.sshfl [vmem:[#allocation1 + $0x20] sm:$0xff pattern:$0x73625140]
        %v3193 = vld.sshfl [vmem:[#allocation1 + $0x28] sm:$0xff pattern:$0x73625140]
        %3194 = vst [vmem:[#allocation1] ss:$4 sm:$0xff] %v2747
        %v3195 = vld.sshfl [vmem:[#allocation1] sm:$0xff pattern:$0x73625140]
        %v3196 = vld.sshfl [vmem:[#allocation1 + $0x8] sm:$0xff pattern:$0x73625140]
        %3197 = vst [vmem:[%s2932] ss:$4 sm:$0xff] %v2749
        %v3198 = vld.sshfl [vmem:[#allocation1 + $0x20] sm:$0xff pattern:$0x73625140]
        %v3199 = vld.sshfl [vmem:[#allocation1 + $0x28] sm:$0xff pattern:$0x73625140]
        %3200 = vst [vmem:[#allocation1] ss:$4 sm:$0xff] %v2751
        %v3201 = vld.sshfl [vmem:[#allocation1] sm:$0xff pattern:$0x73625140]
        %v3202 = vld.sshfl [vmem:[#allocation1 + $0x8] sm:$0xff pattern:$0x73625140]
        %3203 = vst [vmem:[%s2932] ss:$4 sm:$0xff] %v2753
        %v3204 = vld.sshfl [vmem:[#allocation1 + $0x20] sm:$0xff pattern:$0x73625140]
        %v3205 = vld.sshfl [vmem:[#allocation1 + $0x28] sm:$0xff pattern:$0x73625140]
        %3206 = vst [vmem:[#allocation1] ss:$4 sm:$0xff] %v2754
        %v3207 = vld.sshfl [vmem:[#allocation1] sm:$0xff pattern:$0x73625140]
        %v3208 = vld.sshfl [vmem:[#allocation1 + $0x8] sm:$0xff pattern:$0x73625140]
        %3209 = vst [vmem:[%s2932] ss:$4 sm:$0xff] %v2756
        %v3210 = vld.sshfl [vmem:[#allocation1 + $0x20] sm:$0xff pattern:$0x73625140]
        %v3211 = vld.sshfl [vmem:[#allocation1 + $0x28] sm:$0xff pattern:$0x73625140]
        %3212 = vst [vmem:[#allocation1] ss:$4 sm:$0xff] %v2758
        %v3213 = vld.sshfl [vmem:[#allocation1] sm:$0xff pattern:$0x73625140]
        %v3214 = vld.sshfl [vmem:[#allocation1 + $0x8] sm:$0xff pattern:$0x73625140]
        %3215 = vst [vmem:[%s2932] ss:$4 sm:$0xff] %v2760
        %v3216 = vld.sshfl [vmem:[#allocation1 + $0x20] sm:$0xff pattern:$0x73625140]
        %v3217 = vld.sshfl [vmem:[#allocation1 + $0x28] sm:$0xff pattern:$0x73625140]
        %3218 = vst [vmem:[#allocation1] ss:$4 sm:$0xff] %v2761
        %v3219 = vld.sshfl [vmem:[#allocation1] sm:$0xff pattern:$0x73625140]
        %v3220 = vld.sshfl [vmem:[#allocation1 + $0x8] sm:$0xff pattern:$0x73625140]
        %3221 = vst [vmem:[%s2932] ss:$4 sm:$0xff] %v2763
        %v3222 = vld.sshfl [vmem:[#allocation1 + $0x20] sm:$0xff pattern:$0x73625140]
        %v3223 = vld.sshfl [vmem:[#allocation1 + $0x28] sm:$0xff pattern:$0x73625140]
        %3224 = vst [vmem:[#allocation1] ss:$4 sm:$0xff] %v2765
        %v3225 = vld.sshfl [vmem:[#allocation1] sm:$0xff pattern:$0x73625140]
        %v3226 = vld.sshfl [vmem:[#allocation1 + $0x8] sm:$0xff pattern:$0x73625140]
        %3227 = vst [vmem:[%s2932] ss:$4 sm:$0xff] %v2767
        %v3228 = vld.sshfl [vmem:[#allocation1 + $0x20] sm:$0xff pattern:$0x73625140]
        %v3229 = vld.sshfl [vmem:[#allocation1 + $0x28] sm:$0xff pattern:$0x73625140]
        %3230 = vst [vmem:[#allocation1] ss:$4 sm:$0xff] %v2768
        %v3231 = vld.sshfl [vmem:[#allocation1] sm:$0xff pattern:$0x73625140]
        %v3232 = vld.sshfl [vmem:[#allocation1 + $0x8] sm:$0xff pattern:$0x73625140]
        %3233 = vst [vmem:[%s2932] ss:$4 sm:$0xff] %v2770
        %v3234 = vld.sshfl [vmem:[#allocation1 + $0x20] sm:$0xff pattern:$0x73625140]
        %v3235 = vld.sshfl [vmem:[#allocation1 + $0x28] sm:$0xff pattern:$0x73625140]
        %3236 = vst [vmem:[#allocation1] ss:$4 sm:$0xff] %v2772
        %v3237 = vld.sshfl [vmem:[#allocation1] sm:$0xff pattern:$0x73625140]
        %v3238 = vld.sshfl [vmem:[#allocation1 + $0x8] sm:$0xff pattern:$0x73625140]
        %3239 = vst [vmem:[%s2932] ss:$4 sm:$0xff] %v2774
        %v3240 = vld.sshfl [vmem:[#allocation1 + $0x20] sm:$0xff pattern:$0x73625140]
        %v3241 = vld.sshfl [vmem:[#allocation1 + $0x28] sm:$0xff pattern:$0x73625140]
        %3242 = vst [vmem:[#allocation1] ss:$4 sm:$0xff] %v2775
        %v3243 = vld.sshfl [vmem:[#allocation1] sm:$0xff pattern:$0x73625140]
        %v3244 = vld.sshfl [vmem:[#allocation1 + $0x8] sm:$0xff pattern:$0x73625140]
        %3245 = vst [vmem:[%s2932] ss:$4 sm:$0xff] %v2777
        %v3246 = vld.sshfl [vmem:[#allocation1 + $0x20] sm:$0xff pattern:$0x73625140]
        %v3247 = vld.sshfl [vmem:[#allocation1 + $0x28] sm:$0xff pattern:$0x73625140]
        %3248 = vst [vmem:[#allocation1] ss:$4 sm:$0xff] %v2779
        %v3249 = vld.sshfl [vmem:[#allocation1] sm:$0xff pattern:$0x73625140]
        %v3250 = vld.sshfl [vmem:[#allocation1 + $0x8] sm:$0xff pattern:$0x73625140]
        %3251 = vst [vmem:[%s2932] ss:$4 sm:$0xff] %v2781
        %v3252 = vld.sshfl [vmem:[#allocation1 + $0x20] sm:$0xff pattern:$0x73625140]
        %v3253 = vld.sshfl [vmem:[#allocation1 + $0x28] sm:$0xff pattern:$0x73625140]
        %3254 = vst [vmem:[#allocation1] ss:$4 sm:$0xff] %v2782
        %v3255 = vld.sshfl [vmem:[#allocation1] sm:$0xff pattern:$0x73625140]
        %v3256 = vld.sshfl [vmem:[#allocation1 + $0x8] sm:$0xff pattern:$0x73625140]
        %3257 = vst [vmem:[%s2932] ss:$4 sm:$0xff] %v2784
        %v3258 = vld.sshfl [vmem:[#allocation1 + $0x20] sm:$0xff pattern:$0x73625140]
        %v3259 = vld.sshfl [vmem:[#allocation1 + $0x28] sm:$0xff pattern:$0x73625140]
        %3260 = vst [vmem:[#allocation1] ss:$4 sm:$0xff] %v2786
        %v3261 = vld.sshfl [vmem:[#allocation1] sm:$0xff pattern:$0x73625140]
        %v3262 = vld.sshfl [vmem:[#allocation1 + $0x8] sm:$0xff pattern:$0x73625140]
        %3263 = vst [vmem:[%s2932] ss:$4 sm:$0xff] %v2788
        %v3264 = vld.sshfl [vmem:[#allocation1 + $0x20] sm:$0xff pattern:$0x73625140]
        %v3265 = vld.sshfl [vmem:[#allocation1 + $0x28] sm:$0xff pattern:$0x73625140]
        %3266 = vst [vmem:[#allocation1] ss:$4 sm:$0xff] %v2789
        %v3267 = vld.sshfl [vmem:[#allocation1] sm:$0xff pattern:$0x73625140]
        %v3268 = vld.sshfl [vmem:[#allocation1 + $0x8] sm:$0xff pattern:$0x73625140]
        %3269 = vst [vmem:[%s2932] ss:$4 sm:$0xff] %v2791
        %v3270 = vld.sshfl [vmem:[#allocation1 + $0x20] sm:$0xff pattern:$0x73625140]
        %v3271 = vld.sshfl [vmem:[#allocation1 + $0x28] sm:$0xff pattern:$0x73625140]
        %3272 = vst [vmem:[#allocation1] ss:$4 sm:$0xff] %v2793
        %v3273 = vld.sshfl [vmem:[#allocation1] sm:$0xff pattern:$0x73625140]
        %v3274 = vld.sshfl [vmem:[#allocation1 + $0x8] sm:$0xff pattern:$0x73625140]
        %3275 = vst [vmem:[%s2932] ss:$4 sm:$0xff] %v2795
        %v3276 = vld.sshfl [vmem:[#allocation1 + $0x20] sm:$0xff pattern:$0x73625140]
        %v3277 = vld.sshfl [vmem:[#allocation1 + $0x28] sm:$0xff pattern:$0x73625140]
        %3278 = vst [vmem:[#allocation1] ss:$4 sm:$0xff] %v2796
        %v3279 = vld.sshfl [vmem:[#allocation1] sm:$0xff pattern:$0x73625140]
        %v3280 = vld.sshfl [vmem:[#allocation1 + $0x8] sm:$0xff pattern:$0x73625140]
        %3281 = vst [vmem:[%s2932] ss:$4 sm:$0xff] %v2798
        %v3282 = vld.sshfl [vmem:[#allocation1 + $0x20] sm:$0xff pattern:$0x73625140]
        %v3283 = vld.sshfl [vmem:[#allocation1 + $0x28] sm:$0xff pattern:$0x73625140]
        %3284 = vst [vmem:[#allocation1] ss:$4 sm:$0xff] %v2800
        %v3285 = vld.sshfl [vmem:[#allocation1] sm:$0xff pattern:$0x73625140]
        %v3286 = vld.sshfl [vmem:[#allocation1 + $0x8] sm:$0xff pattern:$0x73625140]
        %3287 = vst [vmem:[%s2932] ss:$4 sm:$0xff] %v2802
        %v3288 = vld.sshfl [vmem:[#allocation1 + $0x20] sm:$0xff pattern:$0x73625140]
        %v3289 = vld.sshfl [vmem:[#allocation1 + $0x28] sm:$0xff pattern:$0x73625140]
        %3290 = vst [vmem:[#allocation1] ss:$4 sm:$0xff] %v2803
        %v3291 = vld.sshfl [vmem:[#allocation1] sm:$0xff pattern:$0x73625140]
        %v3292 = vld.sshfl [vmem:[#allocation1 + $0x8] sm:$0xff pattern:$0x73625140]
        %3293 = vst [vmem:[%s2932] ss:$4 sm:$0xff] %v2805
        %v3294 = vld.sshfl [vmem:[#allocation1 + $0x20] sm:$0xff pattern:$0x73625140]
        %v3295 = vld.sshfl [vmem:[#allocation1 + $0x28] sm:$0xff pattern:$0x73625140]
        %3296 = vst [vmem:[#allocation1] ss:$4 sm:$0xff] %v2807
        %v3297 = vld.sshfl [vmem:[#allocation1] sm:$0xff pattern:$0x73625140]
        %v3298 = vld.sshfl [vmem:[#allocation1 + $0x8] sm:$0xff pattern:$0x73625140]
        %3299 = vst [vmem:[%s2932] ss:$4 sm:$0xff] %v2809
        %v3300 = vld.sshfl [vmem:[#allocation1 + $0x20] sm:$0xff pattern:$0x73625140]
        %v3301 = vld.sshfl [vmem:[#allocation1 + $0x28] sm:$0xff pattern:$0x73625140]
        %3302 = vst [vmem:[#allocation1] ss:$4 sm:$0xff] %v2810
        %v3303 = vld.sshfl [vmem:[#allocation1] sm:$0xff pattern:$0x73625140]
        %v3304 = vld.sshfl [vmem:[#allocation1 + $0x8] sm:$0xff pattern:$0x73625140]
        %3305 = vst [vmem:[%s2932] ss:$4 sm:$0xff] %v2812
        %v3306 = vld.sshfl [vmem:[#allocation1 + $0x20] sm:$0xff pattern:$0x73625140]
        %v3307 = vld.sshfl [vmem:[#allocation1 + $0x28] sm:$0xff pattern:$0x73625140]
        %3308 = vst [vmem:[#allocation1] ss:$4 sm:$0xff] %v2814
        %v3309 = vld.sshfl [vmem:[#allocation1] sm:$0xff pattern:$0x73625140]
        %v3310 = vld.sshfl [vmem:[#allocation1 + $0x8] sm:$0xff pattern:$0x73625140]
        %3311 = vst [vmem:[%s2932] ss:$4 sm:$0xff] %v2816
        %v3312 = vld.sshfl [vmem:[#allocation1 + $0x20] sm:$0xff pattern:$0x73625140]
        %v3313 = vld.sshfl [vmem:[#allocation1 + $0x28] sm:$0xff pattern:$0x73625140]
        %3314 = vst [vmem:[#allocation1] ss:$4 sm:$0xff] %v2817
        %v3315 = vld.sshfl [vmem:[#allocation1] sm:$0xff pattern:$0x73625140]
        %v3316 = vld.sshfl [vmem:[#allocation1 + $0x8] sm:$0xff pattern:$0x73625140]
        %3317 = vst [vmem:[%s2932] ss:$4 sm:$0xff] %v2819
        %v3318 = vld.sshfl [vmem:[#allocation1 + $0x20] sm:$0xff pattern:$0x73625140]
        %v3319 = vld.sshfl [vmem:[#allocation1 + $0x28] sm:$0xff pattern:$0x73625140]
        %3320 = vst [vmem:[#allocation1] ss:$4 sm:$0xff] %v2821
        %v3321 = vld.sshfl [vmem:[#allocation1] sm:$0xff pattern:$0x73625140]
        %v3322 = vld.sshfl [vmem:[#allocation1 + $0x8] sm:$0xff pattern:$0x73625140]
        %3323 = vst [vmem:[%s2932] ss:$4 sm:$0xff] %v2823
        %v3324 = vld.sshfl [vmem:[#allocation1 + $0x20] sm:$0xff pattern:$0x73625140]
        %v3325 = vld.sshfl [vmem:[#allocation1 + $0x28] sm:$0xff pattern:$0x73625140]
        %3326 = vst [vmem:[#allocation1] ss:$4 sm:$0xff] %v2824
        %v3327 = vld.sshfl [vmem:[#allocation1] sm:$0xff pattern:$0x73625140]
        %v3328 = vld.sshfl [vmem:[#allocation1 + $0x8] sm:$0xff pattern:$0x73625140]
        %3329 = vst [vmem:[%s2932] ss:$4 sm:$0xff] %v2826
        %v3330 = vld.sshfl [vmem:[#allocation1 + $0x20] sm:$0xff pattern:$0x73625140]
        %v3331 = vld.sshfl [vmem:[#allocation1 + $0x28] sm:$0xff pattern:$0x73625140]
        %3332 = vst [vmem:[#allocation1] ss:$4 sm:$0xff] %v2828
        %v3333 = vld.sshfl [vmem:[#allocation1] sm:$0xff pattern:$0x73625140]
        %v3334 = vld.sshfl [vmem:[#allocation1 + $0x8] sm:$0xff pattern:$0x73625140]
        %3335 = vst [vmem:[%s2932] ss:$4 sm:$0xff] %v2830
        %v3336 = vld.sshfl [vmem:[#allocation1 + $0x20] sm:$0xff pattern:$0x73625140]
        %v3337 = vld.sshfl [vmem:[#allocation1 + $0x28] sm:$0xff pattern:$0x73625140]
        %3338 = vst [vmem:[#allocation1] ss:$4 sm:$0xff] %v2831
        %v3339 = vld.sshfl [vmem:[#allocation1] sm:$0xff pattern:$0x73625140]
        %v3340 = vld.sshfl [vmem:[#allocation1 + $0x8] sm:$0xff pattern:$0x73625140]
        %3341 = vst [vmem:[%s2932] ss:$4 sm:$0xff] %v2833
        %v3342 = vld.sshfl [vmem:[#allocation1 + $0x20] sm:$0xff pattern:$0x73625140]
        %v3343 = vld.sshfl [vmem:[#allocation1 + $0x28] sm:$0xff pattern:$0x73625140]
        %3344 = vst [vmem:[#allocation1] ss:$4 sm:$0xff] %v2835
        %v3345 = vld.sshfl [vmem:[#allocation1] sm:$0xff pattern:$0x73625140]
        %v3346 = vld.sshfl [vmem:[#allocation1 + $0x8] sm:$0xff pattern:$0x73625140]
        %3347 = vst [vmem:[%s2932] ss:$4 sm:$0xff] %v2837
        %v3348 = vld.sshfl [vmem:[#allocation1 + $0x20] sm:$0xff pattern:$0x73625140]
        %v3349 = vld.sshfl [vmem:[#allocation1 + $0x28] sm:$0xff pattern:$0x73625140]
        %3350 = vst [vmem:[#allocation1] ss:$4 sm:$0xff] %v2838
        %v3351 = vld.sshfl [vmem:[#allocation1] sm:$0xff pattern:$0x73625140]
        %v3352 = vld.sshfl [vmem:[#allocation1 + $0x8] sm:$0xff pattern:$0x73625140]
        %3353 = vst [vmem:[%s2932] ss:$4 sm:$0xff] %v2840
        %v3354 = vld.sshfl [vmem:[#allocation1 + $0x20] sm:$0xff pattern:$0x73625140]
        %v3355 = vld.sshfl [vmem:[#allocation1 + $0x28] sm:$0xff pattern:$0x73625140]
        %3356 = vst [vmem:[#allocation1] ss:$4 sm:$0xff] %v2842
        %v3357 = vld.sshfl [vmem:[#allocation1] sm:$0xff pattern:$0x73625140]
        %v3358 = vld.sshfl [vmem:[#allocation1 + $0x8] sm:$0xff pattern:$0x73625140]
        %3359 = vst [vmem:[%s2932] ss:$4 sm:$0xff] %v2844
        %v3360 = vld.sshfl [vmem:[#allocation1 + $0x20] sm:$0xff pattern:$0x73625140]
        %v3361 = vld.sshfl [vmem:[#allocation1 + $0x28] sm:$0xff pattern:$0x73625140]
        %3362 = vst [vmem:[#allocation1] ss:$4 sm:$0xff] %v2845
        %v3363 = vld.sshfl [vmem:[#allocation1] sm:$0xff pattern:$0x73625140]
        %v3364 = vld.sshfl [vmem:[#allocation1 + $0x8] sm:$0xff pattern:$0x73625140]
        %3365 = vst [vmem:[%s2932] ss:$4 sm:$0xff] %v2847
        %v3366 = vld.sshfl [vmem:[#allocation1 + $0x20] sm:$0xff pattern:$0x73625140]
        %v3367 = vld.sshfl [vmem:[#allocation1 + $0x28] sm:$0xff pattern:$0x73625140]
        %3368 = vst [vmem:[#allocation1] ss:$4 sm:$0xff] %v2849
        %v3369 = vld.sshfl [vmem:[#allocation1] sm:$0xff pattern:$0x73625140]
        %v3370 = vld.sshfl [vmem:[#allocation1 + $0x8] sm:$0xff pattern:$0x73625140]
        %3371 = vst [vmem:[%s2932] ss:$4 sm:$0xff] %v2851
        %v3372 = vld.sshfl [vmem:[#allocation1 + $0x20] sm:$0xff pattern:$0x73625140]
        %v3373 = vld.sshfl [vmem:[#allocation1 + $0x28] sm:$0xff pattern:$0x73625140]
        %3374 = vst [vmem:[#allocation1] ss:$4 sm:$0xff] %v2852
        %v3375 = vld.sshfl [vmem:[#allocation1] sm:$0xff pattern:$0x73625140]
        %v3376 = vld.sshfl [vmem:[#allocation1 + $0x8] sm:$0xff pattern:$0x73625140]
        %3377 = vst [vmem:[%s2932] ss:$4 sm:$0xff] %v2854
        %v3378 = vld.sshfl [vmem:[#allocation1 + $0x20] sm:$0xff pattern:$0x73625140]
        %v3379 = vld.sshfl [vmem:[#allocation1 + $0x28] sm:$0xff pattern:$0x73625140]
        %3380 = vst [vmem:[#allocation1] ss:$4 sm:$0xff] %v2856
        %v3381 = vld.sshfl [vmem:[#allocation1] sm:$0xff pattern:$0x73625140]
        %v3382 = vld.sshfl [vmem:[#allocation1 + $0x8] sm:$0xff pattern:$0x73625140]
        %3383 = vst [vmem:[%s2932] ss:$4 sm:$0xff] %v2858
        %v3384 = vld.sshfl [vmem:[#allocation1 + $0x20] sm:$0xff pattern:$0x73625140]
        %v3385 = vld.sshfl [vmem:[#allocation1 + $0x28] sm:$0xff pattern:$0x73625140]
        %3386 = vst [vmem:[#allocation1] ss:$4 sm:$0xff] %v2859
        %v3387 = vld.sshfl [vmem:[#allocation1] sm:$0xff pattern:$0x73625140]
        %v3388 = vld.sshfl [vmem:[#allocation1 + $0x8] sm:$0xff pattern:$0x73625140]
        %3389 = vst [vmem:[%s2932] ss:$4 sm:$0xff] %v2861
        %v3390 = vld.sshfl [vmem:[#allocation1 + $0x20] sm:$0xff pattern:$0x73625140]
        %v3391 = vld.sshfl [vmem:[#allocation1 + $0x28] sm:$0xff pattern:$0x73625140]
        %3392 = vst [vmem:[#allocation1] ss:$4 sm:$0xff] %v2863
        %v3393 = vld.sshfl [vmem:[#allocation1] sm:$0xff pattern:$0x73625140]
        %v3394 = vld.sshfl [vmem:[#allocation1 + $0x8] sm:$0xff pattern:$0x73625140]
        %3395 = vst [vmem:[%s2932] ss:$4 sm:$0xff] %v2865
        %v3396 = vld.sshfl [vmem:[#allocation1 + $0x20] sm:$0xff pattern:$0x73625140]
        %v3397 = vld.sshfl [vmem:[#allocation1 + $0x28] sm:$0xff pattern:$0x73625140]
        %3398 = vst [vmem:[#allocation1] ss:$4 sm:$0xff] %v2866
        %v3399 = vld.sshfl [vmem:[#allocation1] sm:$0xff pattern:$0x73625140]
        %v3400 = vld.sshfl [vmem:[#allocation1 + $0x8] sm:$0xff pattern:$0x73625140]
        %3401 = vst [vmem:[%s2932] ss:$4 sm:$0xff] %v2868
        %v3402 = vld.sshfl [vmem:[#allocation1 + $0x20] sm:$0xff pattern:$0x73625140]
        %v3403 = vld.sshfl [vmem:[#allocation1 + $0x28] sm:$0xff pattern:$0x73625140]
        %3404 = vst [vmem:[#allocation1] ss:$4 sm:$0xff] %v2870
        %v3405 = vld.sshfl [vmem:[#allocation1] sm:$0xff pattern:$0x73625140]
        %v3406 = vld.sshfl [vmem:[#allocation1 + $0x8] sm:$0xff pattern:$0x73625140]
        %3407 = vst [vmem:[%s2932] ss:$4 sm:$0xff] %v2872
        %v3408 = vld.sshfl [vmem:[#allocation1 + $0x20] sm:$0xff pattern:$0x73625140]
        %v3409 = vld.sshfl [vmem:[#allocation1 + $0x28] sm:$0xff pattern:$0x73625140]
        %3410 = vst [vmem:[#allocation1] ss:$4 sm:$0xff] %v2873
        %v3411 = vld.sshfl [vmem:[#allocation1] sm:$0xff pattern:$0x73625140]
        %v3412 = vld.sshfl [vmem:[#allocation1 + $0x8] sm:$0xff pattern:$0x73625140]
        %3413 = vst [vmem:[%s2932] ss:$4 sm:$0xff] %v2875
        %v3414 = vld.sshfl [vmem:[#allocation1 + $0x20] sm:$0xff pattern:$0x73625140]
        %v3415 = vld.sshfl [vmem:[#allocation1 + $0x28] sm:$0xff pattern:$0x73625140]
        %3416 = vst [vmem:[#allocation1] ss:$4 sm:$0xff] %v2877
        %v3417 = vld.sshfl [vmem:[#allocation1] sm:$0xff pattern:$0x73625140]
        %v3418 = vld.sshfl [vmem:[#allocation1 + $0x8] sm:$0xff pattern:$0x73625140]
        %3419 = vst [vmem:[%s2932] ss:$4 sm:$0xff] %v2879
        %v3420 = vld.sshfl [vmem:[#allocation1 + $0x20] sm:$0xff pattern:$0x73625140]
        %v3421 = vld.sshfl [vmem:[#allocation1 + $0x28] sm:$0xff pattern:$0x73625140]
        %3422 = vst [vmem:[#allocation1] ss:$4 sm:$0xff] %v2880
        %v3423 = vld.sshfl [vmem:[#allocation1] sm:$0xff pattern:$0x73625140]
        %v3424 = vld.sshfl [vmem:[#allocation1 + $0x8] sm:$0xff pattern:$0x73625140]
        %3425 = vst [vmem:[%s2932] ss:$4 sm:$0xff] %v2882
        %v3426 = vld.sshfl [vmem:[#allocation1 + $0x20] sm:$0xff pattern:$0x73625140]
        %v3427 = vld.sshfl [vmem:[#allocation1 + $0x28] sm:$0xff pattern:$0x73625140]
        %3428 = vst [vmem:[#allocation1] ss:$4 sm:$0xff] %v2884
        %v3429 = vld.sshfl [vmem:[#allocation1] sm:$0xff pattern:$0x73625140]
        %v3430 = vld.sshfl [vmem:[#allocation1 + $0x8] sm:$0xff pattern:$0x73625140]
        %3431 = vst [vmem:[%s2932] ss:$4 sm:$0xff] %v2886
        %v3432 = vld.sshfl [vmem:[#allocation1 + $0x20] sm:$0xff pattern:$0x73625140]
        %v3433 = vld.sshfl [vmem:[#allocation1 + $0x28] sm:$0xff pattern:$0x73625140]
        %3434 = vst [vmem:[#allocation1] ss:$4 sm:$0xff] %v2887
        %v3435 = vld.sshfl [vmem:[#allocation1] sm:$0xff pattern:$0x73625140]
        %v3436 = vld.sshfl [vmem:[#allocation1 + $0x8] sm:$0xff pattern:$0x73625140]
        %3437 = vst [vmem:[%s2932] ss:$4 sm:$0xff] %v2889
        %v3438 = vld.sshfl [vmem:[#allocation1 + $0x20] sm:$0xff pattern:$0x73625140]
        %v3439 = vld.sshfl [vmem:[#allocation1 + $0x28] sm:$0xff pattern:$0x73625140]
        %3440 = vst [vmem:[#allocation1] ss:$4 sm:$0xff] %v2891
        %v3441 = vld.sshfl [vmem:[#allocation1] sm:$0xff pattern:$0x73625140]
        %v3442 = vld.sshfl [vmem:[#allocation1 + $0x8] sm:$0xff pattern:$0x73625140]
        %3443 = vst [vmem:[%s2932] ss:$4 sm:$0xff] %v2893
        %v3444 = vld.sshfl [vmem:[#allocation1 + $0x20] sm:$0xff pattern:$0x73625140]
        %v3445 = vld.sshfl [vmem:[#allocation1 + $0x28] sm:$0xff pattern:$0x73625140]
        %3446 = vst [vmem:[#allocation1] ss:$4 sm:$0xff] %v2894
        %v3447 = vld.sshfl [vmem:[#allocation1] sm:$0xff pattern:$0x73625140]
        %v3448 = vld.sshfl [vmem:[#allocation1 + $0x8] sm:$0xff pattern:$0x73625140]
        %3449 = vst [vmem:[%s2932] ss:$4 sm:$0xff] %v2896
        %v3450 = vld.sshfl [vmem:[#allocation1 + $0x20] sm:$0xff pattern:$0x73625140]
        %v3451 = vld.sshfl [vmem:[#allocation1 + $0x28] sm:$0xff pattern:$0x73625140]
        %3452 = vst [vmem:[#allocation1] ss:$4 sm:$0xff] %v2898
        %v3453 = vld.sshfl [vmem:[#allocation1] sm:$0xff pattern:$0x73625140]
        %v3454 = vld.sshfl [vmem:[#allocation1 + $0x8] sm:$0xff pattern:$0x73625140]
        %3455 = vst [vmem:[%s2932] ss:$4 sm:$0xff] %v2900
        %v3456 = vld.sshfl [vmem:[#allocation1 + $0x20] sm:$0xff pattern:$0x73625140]
        %v3457 = vld.sshfl [vmem:[#allocation1 + $0x28] sm:$0xff pattern:$0x73625140]
        %3458 = vst [vmem:[#allocation1] ss:$4 sm:$0xff] %v2901
        %v3459 = vld.sshfl [vmem:[#allocation1] sm:$0xff pattern:$0x73625140]
        %v3460 = vld.sshfl [vmem:[#allocation1 + $0x8] sm:$0xff pattern:$0x73625140]
        %3461 = vst [vmem:[%s2932] ss:$4 sm:$0xff] %v2903
        %v3462 = vld.sshfl [vmem:[#allocation1 + $0x20] sm:$0xff pattern:$0x73625140]
        %v3463 = vld.sshfl [vmem:[#allocation1 + $0x28] sm:$0xff pattern:$0x73625140]
        %3464 = vst [vmem:[#allocation1] ss:$4 sm:$0xff] %v2905
        %v3465 = vld.sshfl [vmem:[#allocation1] sm:$0xff pattern:$0x73625140]
        %v3466 = vld.sshfl [vmem:[#allocation1 + $0x8] sm:$0xff pattern:$0x73625140]
        %3467 = vst [vmem:[%s2932] ss:$4 sm:$0xff] %v2907
        %v3468 = vld.sshfl [vmem:[#allocation1 + $0x20] sm:$0xff pattern:$0x73625140]
        %v3469 = vld.sshfl [vmem:[#allocation1 + $0x28] sm:$0xff pattern:$0x73625140]
        %3470 = vst [vmem:[#allocation1] ss:$4 sm:$0xff] %v2908
        %v3471 = vld.sshfl [vmem:[#allocation1] sm:$0xff pattern:$0x73625140]
        %v3472 = vld.sshfl [vmem:[#allocation1 + $0x8] sm:$0xff pattern:$0x73625140]
        %3473 = vst [vmem:[%s2932] ss:$4 sm:$0xff] %v2910
        %v3474 = vld.sshfl [vmem:[#allocation1 + $0x20] sm:$0xff pattern:$0x73625140]
        %v3475 = vld.sshfl [vmem:[#allocation1 + $0x28] sm:$0xff pattern:$0x73625140]
        %3476 = vst [vmem:[#allocation1] ss:$4 sm:$0xff] %v2912
        %v3477 = vld.sshfl [vmem:[#allocation1] sm:$0xff pattern:$0x73625140]
        %v3478 = vld.sshfl [vmem:[#allocation1 + $0x8] sm:$0xff pattern:$0x73625140]
        %3479 = vst [vmem:[%s2932] ss:$4 sm:$0xff] %v2914
        %v3480 = vld.sshfl [vmem:[#allocation1 + $0x20] sm:$0xff pattern:$0x73625140]
        %v3481 = vld.sshfl [vmem:[#allocation1 + $0x28] sm:$0xff pattern:$0x73625140]
        %3482 = vst [vmem:[#allocation1] ss:$4 sm:$0xff] %v2915
        %v3483 = vld.sshfl [vmem:[#allocation1] sm:$0xff pattern:$0x73625140]
        %v3484 = vld.sshfl [vmem:[#allocation1 + $0x8] sm:$0xff pattern:$0x73625140]
        %3485 = vst [vmem:[%s2932] ss:$4 sm:$0xff] %v2917
        %v3486 = vld.sshfl [vmem:[#allocation1 + $0x20] sm:$0xff pattern:$0x73625140]
        %v3487 = vld.sshfl [vmem:[#allocation1 + $0x28] sm:$0xff pattern:$0x73625140]
        %3488 = vst [vmem:[#allocation1] ss:$4 sm:$0xff] %v2919
        %v3489 = vld.sshfl [vmem:[#allocation1] sm:$0xff pattern:$0x73625140]
        %v3490 = vld.sshfl [vmem:[#allocation1 + $0x8] sm:$0xff pattern:$0x73625140]
        %3491 = vst [vmem:[%s2932] ss:$4 sm:$0xff] %v2921
        %v3492 = vld.sshfl [vmem:[#allocation1 + $0x20] sm:$0xff pattern:$0x73625140]
        %v3493 = vld.sshfl [vmem:[#allocation1 + $0x28] sm:$0xff pattern:$0x73625140]
        %3494 = vst [vmem:[#allocation1] ss:$4 sm:$0xff] %v2922
        %v3495 = vld.sshfl [vmem:[#allocation1] sm:$0xff pattern:$0x73625140]
        %v3496 = vld.sshfl [vmem:[#allocation1 + $0x8] sm:$0xff pattern:$0x73625140]
        %3497 = vst [vmem:[%s2932] ss:$4 sm:$0xff] %v2924
        %v3498 = vld.sshfl [vmem:[#allocation1 + $0x20] sm:$0xff pattern:$0x73625140]
        %v3499 = vld.sshfl [vmem:[#allocation1 + $0x28] sm:$0xff pattern:$0x73625140]
        %3500 = vst [vmem:[#allocation1] ss:$4 sm:$0xff] %v2926
        %v3501 = vld.sshfl [vmem:[#allocation1] sm:$0xff pattern:$0x73625140]
        %v3502 = vld.sshfl [vmem:[#allocation1 + $0x8] sm:$0xff pattern:$0x73625140]
        %3503 = vst [vmem:[%s2932] ss:$4 sm:$0xff] %v2928
        %v3504 = vld.sshfl [vmem:[#allocation1 + $0x20] sm:$0xff pattern:$0x73625140]
        %v3505 = vld.sshfl [vmem:[#allocation1 + $0x28] sm:$0xff pattern:$0x73625140]
        %v3890 = vsel %vm2590, %v2930, 0.0
        %v3891 = vrot.slane %v3890, 4
        %v3892 = vadd.f32 %v3890, %v3891
        %v3893 = vrot.slane %v3892, 2
        %v3894 = vadd.f32 %v3892, %v3893
        %v3895 = vrot.slane %v3894, 1
        %v3896 = vadd.f32 %v3894, %v3895
        %vm3897 = vcmask 123904
        %v3898 = vsel %vm3897, %v2931, 0.0
        %v3899 = vrot.slane %v3898, 4
        %v3900 = vadd.f32 %v3898, %v3899
        %v3901 = vrot.slane %v3900, 2
        %v3902 = vadd.f32 %v3900, %v3901
        %v3903 = vrot.slane %v3902, 1
        %v3904 = vadd.f32 %v3902, %v3903
        %v3905 = vsel %vm2590, %v2934, 0.0
        %v3906 = vrot.slane %v3905, 4
        %v3907 = vadd.f32 %v3905, %v3906
        %v3908 = vrot.slane %v3907, 2
        %v3909 = vadd.f32 %v3907, %v3908
        %v3910 = vrot.slane %v3909, 1
        %v3911 = vadd.f32 %v3909, %v3910
        %v3912 = vsel %vm3897, %v2935, 0.0
        %v3913 = vrot.slane %v3912, 4
        %v3914 = vadd.f32 %v3912, %v3913
        %v3915 = vrot.slane %v3914, 2
        %v3916 = vadd.f32 %v3914, %v3915
        %v3917 = vrot.slane %v3916, 1
        %v3918 = vadd.f32 %v3916, %v3917
        %v3919 = vsel %vm2590, %v2937, 0.0
        %v3920 = vrot.slane %v3919, 4
        %v3921 = vadd.f32 %v3919, %v3920
        %v3922 = vrot.slane %v3921, 2
        %v3923 = vadd.f32 %v3921, %v3922
        %v3924 = vrot.slane %v3923, 1
        %v3925 = vadd.f32 %v3923, %v3924
        %v3926 = vsel %vm3897, %v2938, 0.0
        %v3927 = vrot.slane %v3926, 4
        %v3928 = vadd.f32 %v3926, %v3927
        %v3929 = vrot.slane %v3928, 2
        %v3930 = vadd.f32 %v3928, %v3929
        %v3931 = vrot.slane %v3930, 1
        %v3932 = vadd.f32 %v3930, %v3931
        %v3933 = vsel %vm2590, %v2940, 0.0
        %v3934 = vrot.slane %v3933, 4
        %v3935 = vadd.f32 %v3933, %v3934
        %v3936 = vrot.slane %v3935, 2
        %v3937 = vadd.f32 %v3935, %v3936
        %v3938 = vrot.slane %v3937, 1
        %v3939 = vadd.f32 %v3937, %v3938
        %v3940 = vsel %vm3897, %v2941, 0.0
        %v3941 = vrot.slane %v3940, 4
        %v3942 = vadd.f32 %v3940, %v3941
        %v3943 = vrot.slane %v3942, 2
        %v3944 = vadd.f32 %v3942, %v3943
        %v3945 = vrot.slane %v3944, 1
        %v3946 = vadd.f32 %v3944, %v3945
        %v3947 = vsel %vm2590, %v2943, 0.0
        %v3948 = vrot.slane %v3947, 4
        %v3949 = vadd.f32 %v3947, %v3948
        %v3950 = vrot.slane %v3949, 2
        %v3951 = vadd.f32 %v3949, %v3950
        %v3952 = vrot.slane %v3951, 1
        %v3953 = vadd.f32 %v3951, %v3952
        %v3954 = vsel %vm3897, %v2944, 0.0
        %v3955 = vrot.slane %v3954, 4
        %v3956 = vadd.f32 %v3954, %v3955
        %v3957 = vrot.slane %v3956, 2
        %v3958 = vadd.f32 %v3956, %v3957
        %v3959 = vrot.slane %v3958, 1
        %v3960 = vadd.f32 %v3958, %v3959
        %v3961 = vsel %vm2590, %v2946, 0.0
        %v3962 = vrot.slane %v3961, 4
        %v3963 = vadd.f32 %v3961, %v3962
        %v3964 = vrot.slane %v3963, 2
        %v3965 = vadd.f32 %v3963, %v3964
        %v3966 = vrot.slane %v3965, 1
        %v3967 = vadd.f32 %v3965, %v3966
        %v3968 = vsel %vm3897, %v2947, 0.0
        %v3969 = vrot.slane %v3968, 4
        %v3970 = vadd.f32 %v3968, %v3969
        %v3971 = vrot.slane %v3970, 2
        %v3972 = vadd.f32 %v3970, %v3971
        %v3973 = vrot.slane %v3972, 1
        %v3974 = vadd.f32 %v3972, %v3973
        %v3975 = vsel %vm2590, %v2949, 0.0
        %v3976 = vrot.slane %v3975, 4
        %v3977 = vadd.f32 %v3975, %v3976
        %v3978 = vrot.slane %v3977, 2
        %v3979 = vadd.f32 %v3977, %v3978
        %v3980 = vrot.slane %v3979, 1
        %v3981 = vadd.f32 %v3979, %v3980
        %v3982 = vsel %vm3897, %v2950, 0.0
        %v3983 = vrot.slane %v3982, 4
        %v3984 = vadd.f32 %v3982, %v3983
        %v3985 = vrot.slane %v3984, 2
        %v3986 = vadd.f32 %v3984, %v3985
        %v3987 = vrot.slane %v3986, 1
        %v3988 = vadd.f32 %v3986, %v3987
        %v3989 = vsel %vm2590, %v2952, 0.0
        %v3990 = vrot.slane %v3989, 4
        %v3991 = vadd.f32 %v3989, %v3990
        %v3992 = vrot.slane %v3991, 2
        %v3993 = vadd.f32 %v3991, %v3992
        %v3994 = vrot.slane %v3993, 1
        %v3995 = vadd.f32 %v3993, %v3994
        %v3996 = vsel %vm3897, %v2953, 0.0
        %v3997 = vrot.slane %v3996, 4
        %v3998 = vadd.f32 %v3996, %v3997
        %v3999 = vrot.slane %v3998, 2
        %v4000 = vadd.f32 %v3998, %v3999
        %v4001 = vrot.slane %v4000, 1
        %v4002 = vadd.f32 %v4000, %v4001
        %v4003 = vsel %vm2590, %v2955, 0.0
        %v4004 = vrot.slane %v4003, 4
        %v4005 = vadd.f32 %v4003, %v4004
        %v4006 = vrot.slane %v4005, 2
        %v4007 = vadd.f32 %v4005, %v4006
        %v4008 = vrot.slane %v4007, 1
        %v4009 = vadd.f32 %v4007, %v4008
        %v4010 = vsel %vm3897, %v2956, 0.0
        %v4011 = vrot.slane %v4010, 4
        %v4012 = vadd.f32 %v4010, %v4011
        %v4013 = vrot.slane %v4012, 2
        %v4014 = vadd.f32 %v4012, %v4013
        %v4015 = vrot.slane %v4014, 1
        %v4016 = vadd.f32 %v4014, %v4015
        %v4017 = vsel %vm2590, %v2958, 0.0
        %v4018 = vrot.slane %v4017, 4
        %v4019 = vadd.f32 %v4017, %v4018
        %v4020 = vrot.slane %v4019, 2
        %v4021 = vadd.f32 %v4019, %v4020
        %v4022 = vrot.slane %v4021, 1
        %v4023 = vadd.f32 %v4021, %v4022
        %v4024 = vsel %vm3897, %v2959, 0.0
        %v4025 = vrot.slane %v4024, 4
        %v4026 = vadd.f32 %v4024, %v4025
        %v4027 = vrot.slane %v4026, 2
        %v4028 = vadd.f32 %v4026, %v4027
        %v4029 = vrot.slane %v4028, 1
        %v4030 = vadd.f32 %v4028, %v4029
        %v4031 = vsel %vm2590, %v2961, 0.0
        %v4032 = vrot.slane %v4031, 4
        %v4033 = vadd.f32 %v4031, %v4032
        %v4034 = vrot.slane %v4033, 2
        %v4035 = vadd.f32 %v4033, %v4034
        %v4036 = vrot.slane %v4035, 1
        %v4037 = vadd.f32 %v4035, %v4036
        %v4038 = vsel %vm3897, %v2962, 0.0
        %v4039 = vrot.slane %v4038, 4
        %v4040 = vadd.f32 %v4038, %v4039
        %v4041 = vrot.slane %v4040, 2
        %v4042 = vadd.f32 %v4040, %v4041
        %v4043 = vrot.slane %v4042, 1
        %v4044 = vadd.f32 %v4042, %v4043
        %v4045 = vsel %vm2590, %v2964, 0.0
        %v4046 = vrot.slane %v4045, 4
        %v4047 = vadd.f32 %v4045, %v4046
        %v4048 = vrot.slane %v4047, 2
        %v4049 = vadd.f32 %v4047, %v4048
        %v4050 = vrot.slane %v4049, 1
        %v4051 = vadd.f32 %v4049, %v4050
        %v4052 = vsel %vm3897, %v2965, 0.0
        %v4053 = vrot.slane %v4052, 4
        %v4054 = vadd.f32 %v4052, %v4053
        %v4055 = vrot.slane %v4054, 2
        %v4056 = vadd.f32 %v4054, %v4055
        %v4057 = vrot.slane %v4056, 1
        %v4058 = vadd.f32 %v4056, %v4057
        %v4059 = vsel %vm2590, %v2967, 0.0
        %v4060 = vrot.slane %v4059, 4
        %v4061 = vadd.f32 %v4059, %v4060
        %v4062 = vrot.slane %v4061, 2
        %v4063 = vadd.f32 %v4061, %v4062
        %v4064 = vrot.slane %v4063, 1
        %v4065 = vadd.f32 %v4063, %v4064
        %v4066 = vsel %vm3897, %v2968, 0.0
        %v4067 = vrot.slane %v4066, 4
        %v4068 = vadd.f32 %v4066, %v4067
        %v4069 = vrot.slane %v4068, 2
        %v4070 = vadd.f32 %v4068, %v4069
        %v4071 = vrot.slane %v4070, 1
        %v4072 = vadd.f32 %v4070, %v4071
        %v4073 = vsel %vm2590, %v2970, 0.0
        %v4074 = vrot.slane %v4073, 4
        %v4075 = vadd.f32 %v4073, %v4074
        %v4076 = vrot.slane %v4075, 2
        %v4077 = vadd.f32 %v4075, %v4076
        %v4078 = vrot.slane %v4077, 1
        %v4079 = vadd.f32 %v4077, %v4078
        %v4080 = vsel %vm3897, %v2971, 0.0
        %v4081 = vrot.slane %v4080, 4
        %v4082 = vadd.f32 %v4080, %v4081
        %v4083 = vrot.slane %v4082, 2
        %v4084 = vadd.f32 %v4082, %v4083
        %v4085 = vrot.slane %v4084, 1
        %v4086 = vadd.f32 %v4084, %v4085
        %v4087 = vsel %vm2590, %v2973, 0.0
        %v4088 = vrot.slane %v4087, 4
        %v4089 = vadd.f32 %v4087, %v4088
        %v4090 = vrot.slane %v4089, 2
        %v4091 = vadd.f32 %v4089, %v4090
        %v4092 = vrot.slane %v4091, 1
        %v4093 = vadd.f32 %v4091, %v4092
        %v4094 = vsel %vm3897, %v2974, 0.0
        %v4095 = vrot.slane %v4094, 4
        %v4096 = vadd.f32 %v4094, %v4095
        %v4097 = vrot.slane %v4096, 2
        %v4098 = vadd.f32 %v4096, %v4097
        %v4099 = vrot.slane %v4098, 1
        %v4100 = vadd.f32 %v4098, %v4099
        %v4101 = vsel %vm2590, %v2976, 0.0
        %v4102 = vrot.slane %v4101, 4
        %v4103 = vadd.f32 %v4101, %v4102
        %v4104 = vrot.slane %v4103, 2
        %v4105 = vadd.f32 %v4103, %v4104
        %v4106 = vrot.slane %v4105, 1
        %v4107 = vadd.f32 %v4105, %v4106
        %v4108 = vsel %vm3897, %v2977, 0.0
        %v4109 = vrot.slane %v4108, 4
        %v4110 = vadd.f32 %v4108, %v4109
        %v4111 = vrot.slane %v4110, 2
        %v4112 = vadd.f32 %v4110, %v4111
        %v4113 = vrot.slane %v4112, 1
        %v4114 = vadd.f32 %v4112, %v4113
        %v4115 = vsel %vm2590, %v2979, 0.0
        %v4116 = vrot.slane %v4115, 4
        %v4117 = vadd.f32 %v4115, %v4116
        %v4118 = vrot.slane %v4117, 2
        %v4119 = vadd.f32 %v4117, %v4118
        %v4120 = vrot.slane %v4119, 1
        %v4121 = vadd.f32 %v4119, %v4120
        %v4122 = vsel %vm3897, %v2980, 0.0
        %v4123 = vrot.slane %v4122, 4
        %v4124 = vadd.f32 %v4122, %v4123
        %v4125 = vrot.slane %v4124, 2
        %v4126 = vadd.f32 %v4124, %v4125
        %v4127 = vrot.slane %v4126, 1
        %v4128 = vadd.f32 %v4126, %v4127
        %v4129 = vsel %vm2590, %v2982, 0.0
        %v4130 = vrot.slane %v4129, 4
        %v4131 = vadd.f32 %v4129, %v4130
        %v4132 = vrot.slane %v4131, 2
        %v4133 = vadd.f32 %v4131, %v4132
        %v4134 = vrot.slane %v4133, 1
        %v4135 = vadd.f32 %v4133, %v4134
        %v4136 = vsel %vm3897, %v2983, 0.0
        %v4137 = vrot.slane %v4136, 4
        %v4138 = vadd.f32 %v4136, %v4137
        %v4139 = vrot.slane %v4138, 2
        %v4140 = vadd.f32 %v4138, %v4139
        %v4141 = vrot.slane %v4140, 1
        %v4142 = vadd.f32 %v4140, %v4141
        %v4143 = vsel %vm2590, %v2985, 0.0
        %v4144 = vrot.slane %v4143, 4
        %v4145 = vadd.f32 %v4143, %v4144
        %v4146 = vrot.slane %v4145, 2
        %v4147 = vadd.f32 %v4145, %v4146
        %v4148 = vrot.slane %v4147, 1
        %v4149 = vadd.f32 %v4147, %v4148
        %v4150 = vsel %vm3897, %v2986, 0.0
        %v4151 = vrot.slane %v4150, 4
        %v4152 = vadd.f32 %v4150, %v4151
        %v4153 = vrot.slane %v4152, 2
        %v4154 = vadd.f32 %v4152, %v4153
        %v4155 = vrot.slane %v4154, 1
        %v4156 = vadd.f32 %v4154, %v4155
        %v4157 = vsel %vm2590, %v2988, 0.0
        %v4158 = vrot.slane %v4157, 4
        %v4159 = vadd.f32 %v4157, %v4158
        %v4160 = vrot.slane %v4159, 2
        %v4161 = vadd.f32 %v4159, %v4160
        %v4162 = vrot.slane %v4161, 1
        %v4163 = vadd.f32 %v4161, %v4162
        %v4164 = vsel %vm3897, %v2989, 0.0
        %v4165 = vrot.slane %v4164, 4
        %v4166 = vadd.f32 %v4164, %v4165
        %v4167 = vrot.slane %v4166, 2
        %v4168 = vadd.f32 %v4166, %v4167
        %v4169 = vrot.slane %v4168, 1
        %v4170 = vadd.f32 %v4168, %v4169
        %v4171 = vsel %vm2590, %v2991, 0.0
        %v4172 = vrot.slane %v4171, 4
        %v4173 = vadd.f32 %v4171, %v4172
        %v4174 = vrot.slane %v4173, 2
        %v4175 = vadd.f32 %v4173, %v4174
        %v4176 = vrot.slane %v4175, 1
        %v4177 = vadd.f32 %v4175, %v4176
        %v4178 = vsel %vm3897, %v2992, 0.0
        %v4179 = vrot.slane %v4178, 4
        %v4180 = vadd.f32 %v4178, %v4179
        %v4181 = vrot.slane %v4180, 2
        %v4182 = vadd.f32 %v4180, %v4181
        %v4183 = vrot.slane %v4182, 1
        %v4184 = vadd.f32 %v4182, %v4183
        %v4185 = vsel %vm2590, %v2994, 0.0
        %v4186 = vrot.slane %v4185, 4
        %v4187 = vadd.f32 %v4185, %v4186
        %v4188 = vrot.slane %v4187, 2
        %v4189 = vadd.f32 %v4187, %v4188
        %v4190 = vrot.slane %v4189, 1
        %v4191 = vadd.f32 %v4189, %v4190
        %v4192 = vsel %vm3897, %v2995, 0.0
        %v4193 = vrot.slane %v4192, 4
        %v4194 = vadd.f32 %v4192, %v4193
        %v4195 = vrot.slane %v4194, 2
        %v4196 = vadd.f32 %v4194, %v4195
        %v4197 = vrot.slane %v4196, 1
        %v4198 = vadd.f32 %v4196, %v4197
        %v4199 = vsel %vm2590, %v2997, 0.0
        %v4200 = vrot.slane %v4199, 4
        %v4201 = vadd.f32 %v4199, %v4200
        %v4202 = vrot.slane %v4201, 2
        %v4203 = vadd.f32 %v4201, %v4202
        %v4204 = vrot.slane %v4203, 1
        %v4205 = vadd.f32 %v4203, %v4204
        %v4206 = vsel %vm3897, %v2998, 0.0
        %v4207 = vrot.slane %v4206, 4
        %v4208 = vadd.f32 %v4206, %v4207
        %v4209 = vrot.slane %v4208, 2
        %v4210 = vadd.f32 %v4208, %v4209
        %v4211 = vrot.slane %v4210, 1
        %v4212 = vadd.f32 %v4210, %v4211
        %v4213 = vsel %vm2590, %v3000, 0.0
        %v4214 = vrot.slane %v4213, 4
        %v4215 = vadd.f32 %v4213, %v4214
        %v4216 = vrot.slane %v4215, 2
        %v4217 = vadd.f32 %v4215, %v4216
        %v4218 = vrot.slane %v4217, 1
        %v4219 = vadd.f32 %v4217, %v4218
        %v4220 = vsel %vm3897, %v3001, 0.0
        %v4221 = vrot.slane %v4220, 4
        %v4222 = vadd.f32 %v4220, %v4221
        %v4223 = vrot.slane %v4222, 2
        %v4224 = vadd.f32 %v4222, %v4223
        %v4225 = vrot.slane %v4224, 1
        %v4226 = vadd.f32 %v4224, %v4225
        %v4227 = vsel %vm2590, %v3003, 0.0
        %v4228 = vrot.slane %v4227, 4
        %v4229 = vadd.f32 %v4227, %v4228
        %v4230 = vrot.slane %v4229, 2
        %v4231 = vadd.f32 %v4229, %v4230
        %v4232 = vrot.slane %v4231, 1
        %v4233 = vadd.f32 %v4231, %v4232
        %v4234 = vsel %vm3897, %v3004, 0.0
        %v4235 = vrot.slane %v4234, 4
        %v4236 = vadd.f32 %v4234, %v4235
        %v4237 = vrot.slane %v4236, 2
        %v4238 = vadd.f32 %v4236, %v4237
        %v4239 = vrot.slane %v4238, 1
        %v4240 = vadd.f32 %v4238, %v4239
        %v4241 = vsel %vm2590, %v3006, 0.0
        %v4242 = vrot.slane %v4241, 4
        %v4243 = vadd.f32 %v4241, %v4242
        %v4244 = vrot.slane %v4243, 2
        %v4245 = vadd.f32 %v4243, %v4244
        %v4246 = vrot.slane %v4245, 1
        %v4247 = vadd.f32 %v4245, %v4246
        %v4248 = vsel %vm3897, %v3007, 0.0
        %v4249 = vrot.slane %v4248, 4
        %v4250 = vadd.f32 %v4248, %v4249
        %v4251 = vrot.slane %v4250, 2
        %v4252 = vadd.f32 %v4250, %v4251
        %v4253 = vrot.slane %v4252, 1
        %v4254 = vadd.f32 %v4252, %v4253
        %v4255 = vsel %vm2590, %v3009, 0.0
        %v4256 = vrot.slane %v4255, 4
        %v4257 = vadd.f32 %v4255, %v4256
        %v4258 = vrot.slane %v4257, 2
        %v4259 = vadd.f32 %v4257, %v4258
        %v4260 = vrot.slane %v4259, 1
        %v4261 = vadd.f32 %v4259, %v4260
        %v4262 = vsel %vm3897, %v3010, 0.0
        %v4263 = vrot.slane %v4262, 4
        %v4264 = vadd.f32 %v4262, %v4263
        %v4265 = vrot.slane %v4264, 2
        %v4266 = vadd.f32 %v4264, %v4265
        %v4267 = vrot.slane %v4266, 1
        %v4268 = vadd.f32 %v4266, %v4267
        %v4269 = vsel %vm2590, %v3012, 0.0
        %v4270 = vrot.slane %v4269, 4
        %v4271 = vadd.f32 %v4269, %v4270
        %v4272 = vrot.slane %v4271, 2
        %v4273 = vadd.f32 %v4271, %v4272
        %v4274 = vrot.slane %v4273, 1
        %v4275 = vadd.f32 %v4273, %v4274
        %v4276 = vsel %vm3897, %v3013, 0.0
        %v4277 = vrot.slane %v4276, 4
        %v4278 = vadd.f32 %v4276, %v4277
        %v4279 = vrot.slane %v4278, 2
        %v4280 = vadd.f32 %v4278, %v4279
        %v4281 = vrot.slane %v4280, 1
        %v4282 = vadd.f32 %v4280, %v4281
        %v4283 = vsel %vm2590, %v3015, 0.0
        %v4284 = vrot.slane %v4283, 4
        %v4285 = vadd.f32 %v4283, %v4284
        %v4286 = vrot.slane %v4285, 2
        %v4287 = vadd.f32 %v4285, %v4286
        %v4288 = vrot.slane %v4287, 1
        %v4289 = vadd.f32 %v4287, %v4288
        %v4290 = vsel %vm3897, %v3016, 0.0
        %v4291 = vrot.slane %v4290, 4
        %v4292 = vadd.f32 %v4290, %v4291
        %v4293 = vrot.slane %v4292, 2
        %v4294 = vadd.f32 %v4292, %v4293
        %v4295 = vrot.slane %v4294, 1
        %v4296 = vadd.f32 %v4294, %v4295
        %v4297 = vsel %vm2590, %v3018, 0.0
        %v4298 = vrot.slane %v4297, 4
        %v4299 = vadd.f32 %v4297, %v4298
        %v4300 = vrot.slane %v4299, 2
        %v4301 = vadd.f32 %v4299, %v4300
        %v4302 = vrot.slane %v4301, 1
        %v4303 = vadd.f32 %v4301, %v4302
        %v4304 = vsel %vm3897, %v3019, 0.0
        %v4305 = vrot.slane %v4304, 4
        %v4306 = vadd.f32 %v4304, %v4305
        %v4307 = vrot.slane %v4306, 2
        %v4308 = vadd.f32 %v4306, %v4307
        %v4309 = vrot.slane %v4308, 1
        %v4310 = vadd.f32 %v4308, %v4309
        %v4311 = vsel %vm2590, %v3021, 0.0
        %v4312 = vrot.slane %v4311, 4
        %v4313 = vadd.f32 %v4311, %v4312
        %v4314 = vrot.slane %v4313, 2
        %v4315 = vadd.f32 %v4313, %v4314
        %v4316 = vrot.slane %v4315, 1
        %v4317 = vadd.f32 %v4315, %v4316
        %v4318 = vsel %vm3897, %v3022, 0.0
        %v4319 = vrot.slane %v4318, 4
        %v4320 = vadd.f32 %v4318, %v4319
        %v4321 = vrot.slane %v4320, 2
        %v4322 = vadd.f32 %v4320, %v4321
        %v4323 = vrot.slane %v4322, 1
        %v4324 = vadd.f32 %v4322, %v4323
        %v4325 = vsel %vm2590, %v3024, 0.0
        %v4326 = vrot.slane %v4325, 4
        %v4327 = vadd.f32 %v4325, %v4326
        %v4328 = vrot.slane %v4327, 2
        %v4329 = vadd.f32 %v4327, %v4328
        %v4330 = vrot.slane %v4329, 1
        %v4331 = vadd.f32 %v4329, %v4330
        %v4332 = vsel %vm3897, %v3025, 0.0
        %v4333 = vrot.slane %v4332, 4
        %v4334 = vadd.f32 %v4332, %v4333
        %v4335 = vrot.slane %v4334, 2
        %v4336 = vadd.f32 %v4334, %v4335
        %v4337 = vrot.slane %v4336, 1
        %v4338 = vadd.f32 %v4336, %v4337
        %v4339 = vsel %vm2590, %v3027, 0.0
        %v4340 = vrot.slane %v4339, 4
        %v4341 = vadd.f32 %v4339, %v4340
        %v4342 = vrot.slane %v4341, 2
        %v4343 = vadd.f32 %v4341, %v4342
        %v4344 = vrot.slane %v4343, 1
        %v4345 = vadd.f32 %v4343, %v4344
        %v4346 = vsel %vm3897, %v3028, 0.0
        %v4347 = vrot.slane %v4346, 4
        %v4348 = vadd.f32 %v4346, %v4347
        %v4349 = vrot.slane %v4348, 2
        %v4350 = vadd.f32 %v4348, %v4349
        %v4351 = vrot.slane %v4350, 1
        %v4352 = vadd.f32 %v4350, %v4351
        %v4353 = vsel %vm2590, %v3030, 0.0
        %v4354 = vrot.slane %v4353, 4
        %v4355 = vadd.f32 %v4353, %v4354
        %v4356 = vrot.slane %v4355, 2
        %v4357 = vadd.f32 %v4355, %v4356
        %v4358 = vrot.slane %v4357, 1
        %v4359 = vadd.f32 %v4357, %v4358
        %v4360 = vsel %vm3897, %v3031, 0.0
        %v4361 = vrot.slane %v4360, 4
        %v4362 = vadd.f32 %v4360, %v4361
        %v4363 = vrot.slane %v4362, 2
        %v4364 = vadd.f32 %v4362, %v4363
        %v4365 = vrot.slane %v4364, 1
        %v4366 = vadd.f32 %v4364, %v4365
        %v4367 = vsel %vm2590, %v3033, 0.0
        %v4368 = vrot.slane %v4367, 4
        %v4369 = vadd.f32 %v4367, %v4368
        %v4370 = vrot.slane %v4369, 2
        %v4371 = vadd.f32 %v4369, %v4370
        %v4372 = vrot.slane %v4371, 1
        %v4373 = vadd.f32 %v4371, %v4372
        %v4374 = vsel %vm3897, %v3034, 0.0
        %v4375 = vrot.slane %v4374, 4
        %v4376 = vadd.f32 %v4374, %v4375
        %v4377 = vrot.slane %v4376, 2
        %v4378 = vadd.f32 %v4376, %v4377
        %v4379 = vrot.slane %v4378, 1
        %v4380 = vadd.f32 %v4378, %v4379
        %v4381 = vsel %vm2590, %v3036, 0.0
        %v4382 = vrot.slane %v4381, 4
        %v4383 = vadd.f32 %v4381, %v4382
        %v4384 = vrot.slane %v4383, 2
        %v4385 = vadd.f32 %v4383, %v4384
        %v4386 = vrot.slane %v4385, 1
        %v4387 = vadd.f32 %v4385, %v4386
        %v4388 = vsel %vm3897, %v3037, 0.0
        %v4389 = vrot.slane %v4388, 4
        %v4390 = vadd.f32 %v4388, %v4389
        %v4391 = vrot.slane %v4390, 2
        %v4392 = vadd.f32 %v4390, %v4391
        %v4393 = vrot.slane %v4392, 1
        %v4394 = vadd.f32 %v4392, %v4393
        %v4395 = vsel %vm2590, %v3039, 0.0
        %v4396 = vrot.slane %v4395, 4
        %v4397 = vadd.f32 %v4395, %v4396
        %v4398 = vrot.slane %v4397, 2
        %v4399 = vadd.f32 %v4397, %v4398
        %v4400 = vrot.slane %v4399, 1
        %v4401 = vadd.f32 %v4399, %v4400
        %v4402 = vsel %vm3897, %v3040, 0.0
        %v4403 = vrot.slane %v4402, 4
        %v4404 = vadd.f32 %v4402, %v4403
        %v4405 = vrot.slane %v4404, 2
        %v4406 = vadd.f32 %v4404, %v4405
        %v4407 = vrot.slane %v4406, 1
        %v4408 = vadd.f32 %v4406, %v4407
        %v4409 = vsel %vm2590, %v3042, 0.0
        %v4410 = vrot.slane %v4409, 4
        %v4411 = vadd.f32 %v4409, %v4410
        %v4412 = vrot.slane %v4411, 2
        %v4413 = vadd.f32 %v4411, %v4412
        %v4414 = vrot.slane %v4413, 1
        %v4415 = vadd.f32 %v4413, %v4414
        %v4416 = vsel %vm3897, %v3043, 0.0
        %v4417 = vrot.slane %v4416, 4
        %v4418 = vadd.f32 %v4416, %v4417
        %v4419 = vrot.slane %v4418, 2
        %v4420 = vadd.f32 %v4418, %v4419
        %v4421 = vrot.slane %v4420, 1
        %v4422 = vadd.f32 %v4420, %v4421
        %v4423 = vsel %vm2590, %v3045, 0.0
        %v4424 = vrot.slane %v4423, 4
        %v4425 = vadd.f32 %v4423, %v4424
        %v4426 = vrot.slane %v4425, 2
        %v4427 = vadd.f32 %v4425, %v4426
        %v4428 = vrot.slane %v4427, 1
        %v4429 = vadd.f32 %v4427, %v4428
        %v4430 = vsel %vm3897, %v3046, 0.0
        %v4431 = vrot.slane %v4430, 4
        %v4432 = vadd.f32 %v4430, %v4431
        %v4433 = vrot.slane %v4432, 2
        %v4434 = vadd.f32 %v4432, %v4433
        %v4435 = vrot.slane %v4434, 1
        %v4436 = vadd.f32 %v4434, %v4435
        %v4437 = vsel %vm2590, %v3048, 0.0
        %v4438 = vrot.slane %v4437, 4
        %v4439 = vadd.f32 %v4437, %v4438
        %v4440 = vrot.slane %v4439, 2
        %v4441 = vadd.f32 %v4439, %v4440
        %v4442 = vrot.slane %v4441, 1
        %v4443 = vadd.f32 %v4441, %v4442
        %v4444 = vsel %vm3897, %v3049, 0.0
        %v4445 = vrot.slane %v4444, 4
        %v4446 = vadd.f32 %v4444, %v4445
        %v4447 = vrot.slane %v4446, 2
        %v4448 = vadd.f32 %v4446, %v4447
        %v4449 = vrot.slane %v4448, 1
        %v4450 = vadd.f32 %v4448, %v4449
        %v4451 = vsel %vm2590, %v3051, 0.0
        %v4452 = vrot.slane %v4451, 4
        %v4453 = vadd.f32 %v4451, %v4452
        %v4454 = vrot.slane %v4453, 2
        %v4455 = vadd.f32 %v4453, %v4454
        %v4456 = vrot.slane %v4455, 1
        %v4457 = vadd.f32 %v4455, %v4456
        %v4458 = vsel %vm3897, %v3052, 0.0
        %v4459 = vrot.slane %v4458, 4
        %v4460 = vadd.f32 %v4458, %v4459
        %v4461 = vrot.slane %v4460, 2
        %v4462 = vadd.f32 %v4460, %v4461
        %v4463 = vrot.slane %v4462, 1
        %v4464 = vadd.f32 %v4462, %v4463
        %v4465 = vsel %vm2590, %v3054, 0.0
        %v4466 = vrot.slane %v4465, 4
        %v4467 = vadd.f32 %v4465, %v4466
        %v4468 = vrot.slane %v4467, 2
        %v4469 = vadd.f32 %v4467, %v4468
        %v4470 = vrot.slane %v4469, 1
        %v4471 = vadd.f32 %v4469, %v4470
        %v4472 = vsel %vm3897, %v3055, 0.0
        %v4473 = vrot.slane %v4472, 4
        %v4474 = vadd.f32 %v4472, %v4473
        %v4475 = vrot.slane %v4474, 2
        %v4476 = vadd.f32 %v4474, %v4475
        %v4477 = vrot.slane %v4476, 1
        %v4478 = vadd.f32 %v4476, %v4477
        %v4479 = vsel %vm2590, %v3057, 0.0
        %v4480 = vrot.slane %v4479, 4
        %v4481 = vadd.f32 %v4479, %v4480
        %v4482 = vrot.slane %v4481, 2
        %v4483 = vadd.f32 %v4481, %v4482
        %v4484 = vrot.slane %v4483, 1
        %v4485 = vadd.f32 %v4483, %v4484
        %v4486 = vsel %vm3897, %v3058, 0.0
        %v4487 = vrot.slane %v4486, 4
        %v4488 = vadd.f32 %v4486, %v4487
        %v4489 = vrot.slane %v4488, 2
        %v4490 = vadd.f32 %v4488, %v4489
        %v4491 = vrot.slane %v4490, 1
        %v4492 = vadd.f32 %v4490, %v4491
        %v4493 = vsel %vm2590, %v3060, 0.0
        %v4494 = vrot.slane %v4493, 4
        %v4495 = vadd.f32 %v4493, %v4494
        %v4496 = vrot.slane %v4495, 2
        %v4497 = vadd.f32 %v4495, %v4496
        %v4498 = vrot.slane %v4497, 1
        %v4499 = vadd.f32 %v4497, %v4498
        %v4500 = vsel %vm3897, %v3061, 0.0
        %v4501 = vrot.slane %v4500, 4
        %v4502 = vadd.f32 %v4500, %v4501
        %v4503 = vrot.slane %v4502, 2
        %v4504 = vadd.f32 %v4502, %v4503
        %v4505 = vrot.slane %v4504, 1
        %v4506 = vadd.f32 %v4504, %v4505
        %v4507 = vsel %vm2590, %v3063, 0.0
        %v4508 = vrot.slane %v4507, 4
        %v4509 = vadd.f32 %v4507, %v4508
        %v4510 = vrot.slane %v4509, 2
        %v4511 = vadd.f32 %v4509, %v4510
        %v4512 = vrot.slane %v4511, 1
        %v4513 = vadd.f32 %v4511, %v4512
        %v4514 = vsel %vm3897, %v3064, 0.0
        %v4515 = vrot.slane %v4514, 4
        %v4516 = vadd.f32 %v4514, %v4515
        %v4517 = vrot.slane %v4516, 2
        %v4518 = vadd.f32 %v4516, %v4517
        %v4519 = vrot.slane %v4518, 1
        %v4520 = vadd.f32 %v4518, %v4519
        %v4521 = vsel %vm2590, %v3066, 0.0
        %v4522 = vrot.slane %v4521, 4
        %v4523 = vadd.f32 %v4521, %v4522
        %v4524 = vrot.slane %v4523, 2
        %v4525 = vadd.f32 %v4523, %v4524
        %v4526 = vrot.slane %v4525, 1
        %v4527 = vadd.f32 %v4525, %v4526
        %v4528 = vsel %vm3897, %v3067, 0.0
        %v4529 = vrot.slane %v4528, 4
        %v4530 = vadd.f32 %v4528, %v4529
        %v4531 = vrot.slane %v4530, 2
        %v4532 = vadd.f32 %v4530, %v4531
        %v4533 = vrot.slane %v4532, 1
        %v4534 = vadd.f32 %v4532, %v4533
        %v4535 = vsel %vm2590, %v3069, 0.0
        %v4536 = vrot.slane %v4535, 4
        %v4537 = vadd.f32 %v4535, %v4536
        %v4538 = vrot.slane %v4537, 2
        %v4539 = vadd.f32 %v4537, %v4538
        %v4540 = vrot.slane %v4539, 1
        %v4541 = vadd.f32 %v4539, %v4540
        %v4542 = vsel %vm3897, %v3070, 0.0
        %v4543 = vrot.slane %v4542, 4
        %v4544 = vadd.f32 %v4542, %v4543
        %v4545 = vrot.slane %v4544, 2
        %v4546 = vadd.f32 %v4544, %v4545
        %v4547 = vrot.slane %v4546, 1
        %v4548 = vadd.f32 %v4546, %v4547
        %v4549 = vsel %vm2590, %v3072, 0.0
        %v4550 = vrot.slane %v4549, 4
        %v4551 = vadd.f32 %v4549, %v4550
        %v4552 = vrot.slane %v4551, 2
        %v4553 = vadd.f32 %v4551, %v4552
        %v4554 = vrot.slane %v4553, 1
        %v4555 = vadd.f32 %v4553, %v4554
        %v4556 = vsel %vm3897, %v3073, 0.0
        %v4557 = vrot.slane %v4556, 4
        %v4558 = vadd.f32 %v4556, %v4557
        %v4559 = vrot.slane %v4558, 2
        %v4560 = vadd.f32 %v4558, %v4559
        %v4561 = vrot.slane %v4560, 1
        %v4562 = vadd.f32 %v4560, %v4561
        %v4563 = vsel %vm2590, %v3075, 0.0
        %v4564 = vrot.slane %v4563, 4
        %v4565 = vadd.f32 %v4563, %v4564
        %v4566 = vrot.slane %v4565, 2
        %v4567 = vadd.f32 %v4565, %v4566
        %v4568 = vrot.slane %v4567, 1
        %v4569 = vadd.f32 %v4567, %v4568
        %v4570 = vsel %vm3897, %v3076, 0.0
        %v4571 = vrot.slane %v4570, 4
        %v4572 = vadd.f32 %v4570, %v4571
        %v4573 = vrot.slane %v4572, 2
        %v4574 = vadd.f32 %v4572, %v4573
        %v4575 = vrot.slane %v4574, 1
        %v4576 = vadd.f32 %v4574, %v4575
        %v4577 = vsel %vm2590, %v3078, 0.0
        %v4578 = vrot.slane %v4577, 4
        %v4579 = vadd.f32 %v4577, %v4578
        %v4580 = vrot.slane %v4579, 2
        %v4581 = vadd.f32 %v4579, %v4580
        %v4582 = vrot.slane %v4581, 1
        %v4583 = vadd.f32 %v4581, %v4582
        %v4584 = vsel %vm3897, %v3079, 0.0
        %v4585 = vrot.slane %v4584, 4
        %v4586 = vadd.f32 %v4584, %v4585
        %v4587 = vrot.slane %v4586, 2
        %v4588 = vadd.f32 %v4586, %v4587
        %v4589 = vrot.slane %v4588, 1
        %v4590 = vadd.f32 %v4588, %v4589
        %v4591 = vsel %vm2590, %v3081, 0.0
        %v4592 = vrot.slane %v4591, 4
        %v4593 = vadd.f32 %v4591, %v4592
        %v4594 = vrot.slane %v4593, 2
        %v4595 = vadd.f32 %v4593, %v4594
        %v4596 = vrot.slane %v4595, 1
        %v4597 = vadd.f32 %v4595, %v4596
        %v4598 = vsel %vm3897, %v3082, 0.0
        %v4599 = vrot.slane %v4598, 4
        %v4600 = vadd.f32 %v4598, %v4599
        %v4601 = vrot.slane %v4600, 2
        %v4602 = vadd.f32 %v4600, %v4601
        %v4603 = vrot.slane %v4602, 1
        %v4604 = vadd.f32 %v4602, %v4603
        %v4605 = vsel %vm2590, %v3084, 0.0
        %v4606 = vrot.slane %v4605, 4
        %v4607 = vadd.f32 %v4605, %v4606
        %v4608 = vrot.slane %v4607, 2
        %v4609 = vadd.f32 %v4607, %v4608
        %v4610 = vrot.slane %v4609, 1
        %v4611 = vadd.f32 %v4609, %v4610
        %v4612 = vsel %vm3897, %v3085, 0.0
        %v4613 = vrot.slane %v4612, 4
        %v4614 = vadd.f32 %v4612, %v4613
        %v4615 = vrot.slane %v4614, 2
        %v4616 = vadd.f32 %v4614, %v4615
        %v4617 = vrot.slane %v4616, 1
        %v4618 = vadd.f32 %v4616, %v4617
        %v4619 = vsel %vm2590, %v3087, 0.0
        %v4620 = vrot.slane %v4619, 4
        %v4621 = vadd.f32 %v4619, %v4620
        %v4622 = vrot.slane %v4621, 2
        %v4623 = vadd.f32 %v4621, %v4622
        %v4624 = vrot.slane %v4623, 1
        %v4625 = vadd.f32 %v4623, %v4624
        %v4626 = vsel %vm3897, %v3088, 0.0
        %v4627 = vrot.slane %v4626, 4
        %v4628 = vadd.f32 %v4626, %v4627
        %v4629 = vrot.slane %v4628, 2
        %v4630 = vadd.f32 %v4628, %v4629
        %v4631 = vrot.slane %v4630, 1
        %v4632 = vadd.f32 %v4630, %v4631
        %v4633 = vsel %vm2590, %v3090, 0.0
        %v4634 = vrot.slane %v4633, 4
        %v4635 = vadd.f32 %v4633, %v4634
        %v4636 = vrot.slane %v4635, 2
        %v4637 = vadd.f32 %v4635, %v4636
        %v4638 = vrot.slane %v4637, 1
        %v4639 = vadd.f32 %v4637, %v4638
        %v4640 = vsel %vm3897, %v3091, 0.0
        %v4641 = vrot.slane %v4640, 4
        %v4642 = vadd.f32 %v4640, %v4641
        %v4643 = vrot.slane %v4642, 2
        %v4644 = vadd.f32 %v4642, %v4643
        %v4645 = vrot.slane %v4644, 1
        %v4646 = vadd.f32 %v4644, %v4645
        %v4647 = vsel %vm2590, %v3093, 0.0
        %v4648 = vrot.slane %v4647, 4
        %v4649 = vadd.f32 %v4647, %v4648
        %v4650 = vrot.slane %v4649, 2
        %v4651 = vadd.f32 %v4649, %v4650
        %v4652 = vrot.slane %v4651, 1
        %v4653 = vadd.f32 %v4651, %v4652
        %v4654 = vsel %vm3897, %v3094, 0.0
        %v4655 = vrot.slane %v4654, 4
        %v4656 = vadd.f32 %v4654, %v4655
        %v4657 = vrot.slane %v4656, 2
        %v4658 = vadd.f32 %v4656, %v4657
        %v4659 = vrot.slane %v4658, 1
        %v4660 = vadd.f32 %v4658, %v4659
        %v4661 = vsel %vm2590, %v3096, 0.0
        %v4662 = vrot.slane %v4661, 4
        %v4663 = vadd.f32 %v4661, %v4662
        %v4664 = vrot.slane %v4663, 2
        %v4665 = vadd.f32 %v4663, %v4664
        %v4666 = vrot.slane %v4665, 1
        %v4667 = vadd.f32 %v4665, %v4666
        %v4668 = vsel %vm3897, %v3097, 0.0
        %v4669 = vrot.slane %v4668, 4
        %v4670 = vadd.f32 %v4668, %v4669
        %v4671 = vrot.slane %v4670, 2
        %v4672 = vadd.f32 %v4670, %v4671
        %v4673 = vrot.slane %v4672, 1
        %v4674 = vadd.f32 %v4672, %v4673
        %v4675 = vsel %vm2590, %v3099, 0.0
        %v4676 = vrot.slane %v4675, 4
        %v4677 = vadd.f32 %v4675, %v4676
        %v4678 = vrot.slane %v4677, 2
        %v4679 = vadd.f32 %v4677, %v4678
        %v4680 = vrot.slane %v4679, 1
        %v4681 = vadd.f32 %v4679, %v4680
        %v4682 = vsel %vm3897, %v3100, 0.0
        %v4683 = vrot.slane %v4682, 4
        %v4684 = vadd.f32 %v4682, %v4683
        %v4685 = vrot.slane %v4684, 2
        %v4686 = vadd.f32 %v4684, %v4685
        %v4687 = vrot.slane %v4686, 1
        %v4688 = vadd.f32 %v4686, %v4687
        %v4689 = vsel %vm2590, %v3102, 0.0
        %v4690 = vrot.slane %v4689, 4
        %v4691 = vadd.f32 %v4689, %v4690
        %v4692 = vrot.slane %v4691, 2
        %v4693 = vadd.f32 %v4691, %v4692
        %v4694 = vrot.slane %v4693, 1
        %v4695 = vadd.f32 %v4693, %v4694
        %v4696 = vsel %vm3897, %v3103, 0.0
        %v4697 = vrot.slane %v4696, 4
        %v4698 = vadd.f32 %v4696, %v4697
        %v4699 = vrot.slane %v4698, 2
        %v4700 = vadd.f32 %v4698, %v4699
        %v4701 = vrot.slane %v4700, 1
        %v4702 = vadd.f32 %v4700, %v4701
        %v4703 = vsel %vm2590, %v3105, 0.0
        %v4704 = vrot.slane %v4703, 4
        %v4705 = vadd.f32 %v4703, %v4704
        %v4706 = vrot.slane %v4705, 2
        %v4707 = vadd.f32 %v4705, %v4706
        %v4708 = vrot.slane %v4707, 1
        %v4709 = vadd.f32 %v4707, %v4708
        %v4710 = vsel %vm3897, %v3106, 0.0
        %v4711 = vrot.slane %v4710, 4
        %v4712 = vadd.f32 %v4710, %v4711
        %v4713 = vrot.slane %v4712, 2
        %v4714 = vadd.f32 %v4712, %v4713
        %v4715 = vrot.slane %v4714, 1
        %v4716 = vadd.f32 %v4714, %v4715
        %v4717 = vsel %vm2590, %v3108, 0.0
        %v4718 = vrot.slane %v4717, 4
        %v4719 = vadd.f32 %v4717, %v4718
        %v4720 = vrot.slane %v4719, 2
        %v4721 = vadd.f32 %v4719, %v4720
        %v4722 = vrot.slane %v4721, 1
        %v4723 = vadd.f32 %v4721, %v4722
        %v4724 = vsel %vm3897, %v3109, 0.0
        %v4725 = vrot.slane %v4724, 4
        %v4726 = vadd.f32 %v4724, %v4725
        %v4727 = vrot.slane %v4726, 2
        %v4728 = vadd.f32 %v4726, %v4727
        %v4729 = vrot.slane %v4728, 1
        %v4730 = vadd.f32 %v4728, %v4729
        %v4731 = vsel %vm2590, %v3111, 0.0
        %v4732 = vrot.slane %v4731, 4
        %v4733 = vadd.f32 %v4731, %v4732
        %v4734 = vrot.slane %v4733, 2
        %v4735 = vadd.f32 %v4733, %v4734
        %v4736 = vrot.slane %v4735, 1
        %v4737 = vadd.f32 %v4735, %v4736
        %v4738 = vsel %vm3897, %v3112, 0.0
        %v4739 = vrot.slane %v4738, 4
        %v4740 = vadd.f32 %v4738, %v4739
        %v4741 = vrot.slane %v4740, 2
        %v4742 = vadd.f32 %v4740, %v4741
        %v4743 = vrot.slane %v4742, 1
        %v4744 = vadd.f32 %v4742, %v4743
        %v4745 = vsel %vm2590, %v3114, 0.0
        %v4746 = vrot.slane %v4745, 4
        %v4747 = vadd.f32 %v4745, %v4746
        %v4748 = vrot.slane %v4747, 2
        %v4749 = vadd.f32 %v4747, %v4748
        %v4750 = vrot.slane %v4749, 1
        %v4751 = vadd.f32 %v4749, %v4750
        %v4752 = vsel %vm3897, %v3115, 0.0
        %v4753 = vrot.slane %v4752, 4
        %v4754 = vadd.f32 %v4752, %v4753
        %v4755 = vrot.slane %v4754, 2
        %v4756 = vadd.f32 %v4754, %v4755
        %v4757 = vrot.slane %v4756, 1
        %v4758 = vadd.f32 %v4756, %v4757
        %v4759 = vsel %vm2590, %v3117, 0.0
        %v4760 = vrot.slane %v4759, 4
        %v4761 = vadd.f32 %v4759, %v4760
        %v4762 = vrot.slane %v4761, 2
        %v4763 = vadd.f32 %v4761, %v4762
        %v4764 = vrot.slane %v4763, 1
        %v4765 = vadd.f32 %v4763, %v4764
        %v4766 = vsel %vm3897, %v3118, 0.0
        %v4767 = vrot.slane %v4766, 4
        %v4768 = vadd.f32 %v4766, %v4767
        %v4769 = vrot.slane %v4768, 2
        %v4770 = vadd.f32 %v4768, %v4769
        %v4771 = vrot.slane %v4770, 1
        %v4772 = vadd.f32 %v4770, %v4771
        %v4773 = vsel %vm2590, %v3120, 0.0
        %v4774 = vrot.slane %v4773, 4
        %v4775 = vadd.f32 %v4773, %v4774
        %v4776 = vrot.slane %v4775, 2
        %v4777 = vadd.f32 %v4775, %v4776
        %v4778 = vrot.slane %v4777, 1
        %v4779 = vadd.f32 %v4777, %v4778
        %v4780 = vsel %vm3897, %v3121, 0.0
        %v4781 = vrot.slane %v4780, 4
        %v4782 = vadd.f32 %v4780, %v4781
        %v4783 = vrot.slane %v4782, 2
        %v4784 = vadd.f32 %v4782, %v4783
        %v4785 = vrot.slane %v4784, 1
        %v4786 = vadd.f32 %v4784, %v4785
        %v4787 = vsel %vm2590, %v3123, 0.0
        %v4788 = vrot.slane %v4787, 4
        %v4789 = vadd.f32 %v4787, %v4788
        %v4790 = vrot.slane %v4789, 2
        %v4791 = vadd.f32 %v4789, %v4790
        %v4792 = vrot.slane %v4791, 1
        %v4793 = vadd.f32 %v4791, %v4792
        %v4794 = vsel %vm3897, %v3124, 0.0
        %v4795 = vrot.slane %v4794, 4
        %v4796 = vadd.f32 %v4794, %v4795
        %v4797 = vrot.slane %v4796, 2
        %v4798 = vadd.f32 %v4796, %v4797
        %v4799 = vrot.slane %v4798, 1
        %v4800 = vadd.f32 %v4798, %v4799
        %v4801 = vsel %vm2590, %v3126, 0.0
        %v4802 = vrot.slane %v4801, 4
        %v4803 = vadd.f32 %v4801, %v4802
        %v4804 = vrot.slane %v4803, 2
        %v4805 = vadd.f32 %v4803, %v4804
        %v4806 = vrot.slane %v4805, 1
        %v4807 = vadd.f32 %v4805, %v4806
        %v4808 = vsel %vm3897, %v3127, 0.0
        %v4809 = vrot.slane %v4808, 4
        %v4810 = vadd.f32 %v4808, %v4809
        %v4811 = vrot.slane %v4810, 2
        %v4812 = vadd.f32 %v4810, %v4811
        %v4813 = vrot.slane %v4812, 1
        %v4814 = vadd.f32 %v4812, %v4813
        %v4815 = vsel %vm2590, %v3129, 0.0
        %v4816 = vrot.slane %v4815, 4
        %v4817 = vadd.f32 %v4815, %v4816
        %v4818 = vrot.slane %v4817, 2
        %v4819 = vadd.f32 %v4817, %v4818
        %v4820 = vrot.slane %v4819, 1
        %v4821 = vadd.f32 %v4819, %v4820
        %v4822 = vsel %vm3897, %v3130, 0.0
        %v4823 = vrot.slane %v4822, 4
        %v4824 = vadd.f32 %v4822, %v4823
        %v4825 = vrot.slane %v4824, 2
        %v4826 = vadd.f32 %v4824, %v4825
        %v4827 = vrot.slane %v4826, 1
        %v4828 = vadd.f32 %v4826, %v4827
        %v4829 = vsel %vm2590, %v3132, 0.0
        %v4830 = vrot.slane %v4829, 4
        %v4831 = vadd.f32 %v4829, %v4830
        %v4832 = vrot.slane %v4831, 2
        %v4833 = vadd.f32 %v4831, %v4832
        %v4834 = vrot.slane %v4833, 1
        %v4835 = vadd.f32 %v4833, %v4834
        %v4836 = vsel %vm3897, %v3133, 0.0
        %v4837 = vrot.slane %v4836, 4
        %v4838 = vadd.f32 %v4836, %v4837
        %v4839 = vrot.slane %v4838, 2
        %v4840 = vadd.f32 %v4838, %v4839
        %v4841 = vrot.slane %v4840, 1
        %v4842 = vadd.f32 %v4840, %v4841
        %v4843 = vsel %vm2590, %v3135, 0.0
        %v4844 = vrot.slane %v4843, 4
        %v4845 = vadd.f32 %v4843, %v4844
        %v4846 = vrot.slane %v4845, 2
        %v4847 = vadd.f32 %v4845, %v4846
        %v4848 = vrot.slane %v4847, 1
        %v4849 = vadd.f32 %v4847, %v4848
        %v4850 = vsel %vm3897, %v3136, 0.0
        %v4851 = vrot.slane %v4850, 4
        %v4852 = vadd.f32 %v4850, %v4851
        %v4853 = vrot.slane %v4852, 2
        %v4854 = vadd.f32 %v4852, %v4853
        %v4855 = vrot.slane %v4854, 1
        %v4856 = vadd.f32 %v4854, %v4855
        %v4857 = vsel %vm2590, %v3138, 0.0
        %v4858 = vrot.slane %v4857, 4
        %v4859 = vadd.f32 %v4857, %v4858
        %v4860 = vrot.slane %v4859, 2
        %v4861 = vadd.f32 %v4859, %v4860
        %v4862 = vrot.slane %v4861, 1
        %v4863 = vadd.f32 %v4861, %v4862
        %v4864 = vsel %vm3897, %v3139, 0.0
        %v4865 = vrot.slane %v4864, 4
        %v4866 = vadd.f32 %v4864, %v4865
        %v4867 = vrot.slane %v4866, 2
        %v4868 = vadd.f32 %v4866, %v4867
        %v4869 = vrot.slane %v4868, 1
        %v4870 = vadd.f32 %v4868, %v4869
        %v4871 = vsel %vm2590, %v3141, 0.0
        %v4872 = vrot.slane %v4871, 4
        %v4873 = vadd.f32 %v4871, %v4872
        %v4874 = vrot.slane %v4873, 2
        %v4875 = vadd.f32 %v4873, %v4874
        %v4876 = vrot.slane %v4875, 1
        %v4877 = vadd.f32 %v4875, %v4876
        %v4878 = vsel %vm3897, %v3142, 0.0
        %v4879 = vrot.slane %v4878, 4
        %v4880 = vadd.f32 %v4878, %v4879
        %v4881 = vrot.slane %v4880, 2
        %v4882 = vadd.f32 %v4880, %v4881
        %v4883 = vrot.slane %v4882, 1
        %v4884 = vadd.f32 %v4882, %v4883
        %v4885 = vsel %vm2590, %v3144, 0.0
        %v4886 = vrot.slane %v4885, 4
        %v4887 = vadd.f32 %v4885, %v4886
        %v4888 = vrot.slane %v4887, 2
        %v4889 = vadd.f32 %v4887, %v4888
        %v4890 = vrot.slane %v4889, 1
        %v4891 = vadd.f32 %v4889, %v4890
        %v4892 = vsel %vm3897, %v3145, 0.0
        %v4893 = vrot.slane %v4892, 4
        %v4894 = vadd.f32 %v4892, %v4893
        %v4895 = vrot.slane %v4894, 2
        %v4896 = vadd.f32 %v4894, %v4895
        %v4897 = vrot.slane %v4896, 1
        %v4898 = vadd.f32 %v4896, %v4897
        %v4899 = vsel %vm2590, %v3147, 0.0
        %v4900 = vrot.slane %v4899, 4
        %v4901 = vadd.f32 %v4899, %v4900
        %v4902 = vrot.slane %v4901, 2
        %v4903 = vadd.f32 %v4901, %v4902
        %v4904 = vrot.slane %v4903, 1
        %v4905 = vadd.f32 %v4903, %v4904
        %v4906 = vsel %vm3897, %v3148, 0.0
        %v4907 = vrot.slane %v4906, 4
        %v4908 = vadd.f32 %v4906, %v4907
        %v4909 = vrot.slane %v4908, 2
        %v4910 = vadd.f32 %v4908, %v4909
        %v4911 = vrot.slane %v4910, 1
        %v4912 = vadd.f32 %v4910, %v4911
        %v4913 = vsel %vm2590, %v3150, 0.0
        %v4914 = vrot.slane %v4913, 4
        %v4915 = vadd.f32 %v4913, %v4914
        %v4916 = vrot.slane %v4915, 2
        %v4917 = vadd.f32 %v4915, %v4916
        %v4918 = vrot.slane %v4917, 1
        %v4919 = vadd.f32 %v4917, %v4918
        %v4920 = vsel %vm3897, %v3151, 0.0
        %v4921 = vrot.slane %v4920, 4
        %v4922 = vadd.f32 %v4920, %v4921
        %v4923 = vrot.slane %v4922, 2
        %v4924 = vadd.f32 %v4922, %v4923
        %v4925 = vrot.slane %v4924, 1
        %v4926 = vadd.f32 %v4924, %v4925
        %v4927 = vsel %vm2590, %v3153, 0.0
        %v4928 = vrot.slane %v4927, 4
        %v4929 = vadd.f32 %v4927, %v4928
        %v4930 = vrot.slane %v4929, 2
        %v4931 = vadd.f32 %v4929, %v4930
        %v4932 = vrot.slane %v4931, 1
        %v4933 = vadd.f32 %v4931, %v4932
        %v4934 = vsel %vm3897, %v3154, 0.0
        %v4935 = vrot.slane %v4934, 4
        %v4936 = vadd.f32 %v4934, %v4935
        %v4937 = vrot.slane %v4936, 2
        %v4938 = vadd.f32 %v4936, %v4937
        %v4939 = vrot.slane %v4938, 1
        %v4940 = vadd.f32 %v4938, %v4939
        %v4941 = vsel %vm2590, %v3156, 0.0
        %v4942 = vrot.slane %v4941, 4
        %v4943 = vadd.f32 %v4941, %v4942
        %v4944 = vrot.slane %v4943, 2
        %v4945 = vadd.f32 %v4943, %v4944
        %v4946 = vrot.slane %v4945, 1
        %v4947 = vadd.f32 %v4945, %v4946
        %v4948 = vsel %vm3897, %v3157, 0.0
        %v4949 = vrot.slane %v4948, 4
        %v4950 = vadd.f32 %v4948, %v4949
        %v4951 = vrot.slane %v4950, 2
        %v4952 = vadd.f32 %v4950, %v4951
        %v4953 = vrot.slane %v4952, 1
        %v4954 = vadd.f32 %v4952, %v4953
        %v4955 = vsel %vm2590, %v3159, 0.0
        %v4956 = vrot.slane %v4955, 4
        %v4957 = vadd.f32 %v4955, %v4956
        %v4958 = vrot.slane %v4957, 2
        %v4959 = vadd.f32 %v4957, %v4958
        %v4960 = vrot.slane %v4959, 1
        %v4961 = vadd.f32 %v4959, %v4960
        %v4962 = vsel %vm3897, %v3160, 0.0
        %v4963 = vrot.slane %v4962, 4
        %v4964 = vadd.f32 %v4962, %v4963
        %v4965 = vrot.slane %v4964, 2
        %v4966 = vadd.f32 %v4964, %v4965
        %v4967 = vrot.slane %v4966, 1
        %v4968 = vadd.f32 %v4966, %v4967
        %v4969 = vsel %vm2590, %v3162, 0.0
        %v4970 = vrot.slane %v4969, 4
        %v4971 = vadd.f32 %v4969, %v4970
        %v4972 = vrot.slane %v4971, 2
        %v4973 = vadd.f32 %v4971, %v4972
        %v4974 = vrot.slane %v4973, 1
        %v4975 = vadd.f32 %v4973, %v4974
        %v4976 = vsel %vm3897, %v3163, 0.0
        %v4977 = vrot.slane %v4976, 4
        %v4978 = vadd.f32 %v4976, %v4977
        %v4979 = vrot.slane %v4978, 2
        %v4980 = vadd.f32 %v4978, %v4979
        %v4981 = vrot.slane %v4980, 1
        %v4982 = vadd.f32 %v4980, %v4981
        %v4983 = vsel %vm2590, %v3165, 0.0
        %v4984 = vrot.slane %v4983, 4
        %v4985 = vadd.f32 %v4983, %v4984
        %v4986 = vrot.slane %v4985, 2
        %v4987 = vadd.f32 %v4985, %v4986
        %v4988 = vrot.slane %v4987, 1
        %v4989 = vadd.f32 %v4987, %v4988
        %v4990 = vsel %vm3897, %v3166, 0.0
        %v4991 = vrot.slane %v4990, 4
        %v4992 = vadd.f32 %v4990, %v4991
        %v4993 = vrot.slane %v4992, 2
        %v4994 = vadd.f32 %v4992, %v4993
        %v4995 = vrot.slane %v4994, 1
        %v4996 = vadd.f32 %v4994, %v4995
        %v4997 = vsel %vm2590, %v3168, 0.0
        %v4998 = vrot.slane %v4997, 4
        %v4999 = vadd.f32 %v4997, %v4998
        %v5000 = vrot.slane %v4999, 2
        %v5001 = vadd.f32 %v4999, %v5000
        %v5002 = vrot.slane %v5001, 1
        %v5003 = vadd.f32 %v5001, %v5002
        %v5004 = vsel %vm3897, %v3169, 0.0
        %v5005 = vrot.slane %v5004, 4
        %v5006 = vadd.f32 %v5004, %v5005
        %v5007 = vrot.slane %v5006, 2
        %v5008 = vadd.f32 %v5006, %v5007
        %v5009 = vrot.slane %v5008, 1
        %v5010 = vadd.f32 %v5008, %v5009
        %v5011 = vsel %vm2590, %v3171, 0.0
        %v5012 = vrot.slane %v5011, 4
        %v5013 = vadd.f32 %v5011, %v5012
        %v5014 = vrot.slane %v5013, 2
        %v5015 = vadd.f32 %v5013, %v5014
        %v5016 = vrot.slane %v5015, 1
        %v5017 = vadd.f32 %v5015, %v5016
        %v5018 = vsel %vm3897, %v3172, 0.0
        %v5019 = vrot.slane %v5018, 4
        %v5020 = vadd.f32 %v5018, %v5019
        %v5021 = vrot.slane %v5020, 2
        %v5022 = vadd.f32 %v5020, %v5021
        %v5023 = vrot.slane %v5022, 1
        %v5024 = vadd.f32 %v5022, %v5023
        %v5025 = vsel %vm2590, %v3174, 0.0
        %v5026 = vrot.slane %v5025, 4
        %v5027 = vadd.f32 %v5025, %v5026
        %v5028 = vrot.slane %v5027, 2
        %v5029 = vadd.f32 %v5027, %v5028
        %v5030 = vrot.slane %v5029, 1
        %v5031 = vadd.f32 %v5029, %v5030
        %v5032 = vsel %vm3897, %v3175, 0.0
        %v5033 = vrot.slane %v5032, 4
        %v5034 = vadd.f32 %v5032, %v5033
        %v5035 = vrot.slane %v5034, 2
        %v5036 = vadd.f32 %v5034, %v5035
        %v5037 = vrot.slane %v5036, 1
        %v5038 = vadd.f32 %v5036, %v5037
        %v5039 = vsel %vm2590, %v3177, 0.0
        %v5040 = vrot.slane %v5039, 4
        %v5041 = vadd.f32 %v5039, %v5040
        %v5042 = vrot.slane %v5041, 2
        %v5043 = vadd.f32 %v5041, %v5042
        %v5044 = vrot.slane %v5043, 1
        %v5045 = vadd.f32 %v5043, %v5044
        %v5046 = vsel %vm3897, %v3178, 0.0
        %v5047 = vrot.slane %v5046, 4
        %v5048 = vadd.f32 %v5046, %v5047
        %v5049 = vrot.slane %v5048, 2
        %v5050 = vadd.f32 %v5048, %v5049
        %v5051 = vrot.slane %v5050, 1
        %v5052 = vadd.f32 %v5050, %v5051
        %v5053 = vsel %vm2590, %v3180, 0.0
        %v5054 = vrot.slane %v5053, 4
        %v5055 = vadd.f32 %v5053, %v5054
        %v5056 = vrot.slane %v5055, 2
        %v5057 = vadd.f32 %v5055, %v5056
        %v5058 = vrot.slane %v5057, 1
        %v5059 = vadd.f32 %v5057, %v5058
        %v5060 = vsel %vm3897, %v3181, 0.0
        %v5061 = vrot.slane %v5060, 4
        %v5062 = vadd.f32 %v5060, %v5061
        %v5063 = vrot.slane %v5062, 2
        %v5064 = vadd.f32 %v5062, %v5063
        %v5065 = vrot.slane %v5064, 1
        %v5066 = vadd.f32 %v5064, %v5065
        %v5067 = vsel %vm2590, %v3183, 0.0
        %v5068 = vrot.slane %v5067, 4
        %v5069 = vadd.f32 %v5067, %v5068
        %v5070 = vrot.slane %v5069, 2
        %v5071 = vadd.f32 %v5069, %v5070
        %v5072 = vrot.slane %v5071, 1
        %v5073 = vadd.f32 %v5071, %v5072
        %v5074 = vsel %vm3897, %v3184, 0.0
        %v5075 = vrot.slane %v5074, 4
        %v5076 = vadd.f32 %v5074, %v5075
        %v5077 = vrot.slane %v5076, 2
        %v5078 = vadd.f32 %v5076, %v5077
        %v5079 = vrot.slane %v5078, 1
        %v5080 = vadd.f32 %v5078, %v5079
        %v5081 = vsel %vm2590, %v3186, 0.0
        %v5082 = vrot.slane %v5081, 4
        %v5083 = vadd.f32 %v5081, %v5082
        %v5084 = vrot.slane %v5083, 2
        %v5085 = vadd.f32 %v5083, %v5084
        %v5086 = vrot.slane %v5085, 1
        %v5087 = vadd.f32 %v5085, %v5086
        %v5088 = vsel %vm3897, %v3187, 0.0
        %v5089 = vrot.slane %v5088, 4
        %v5090 = vadd.f32 %v5088, %v5089
        %v5091 = vrot.slane %v5090, 2
        %v5092 = vadd.f32 %v5090, %v5091
        %v5093 = vrot.slane %v5092, 1
        %v5094 = vadd.f32 %v5092, %v5093
        %v5095 = vsel %vm2590, %v3189, 0.0
        %v5096 = vrot.slane %v5095, 4
        %v5097 = vadd.f32 %v5095, %v5096
        %v5098 = vrot.slane %v5097, 2
        %v5099 = vadd.f32 %v5097, %v5098
        %v5100 = vrot.slane %v5099, 1
        %v5101 = vadd.f32 %v5099, %v5100
        %v5102 = vsel %vm3897, %v3190, 0.0
        %v5103 = vrot.slane %v5102, 4
        %v5104 = vadd.f32 %v5102, %v5103
        %v5105 = vrot.slane %v5104, 2
        %v5106 = vadd.f32 %v5104, %v5105
        %v5107 = vrot.slane %v5106, 1
        %v5108 = vadd.f32 %v5106, %v5107
        %v5109 = vsel %vm2590, %v3192, 0.0
        %v5110 = vrot.slane %v5109, 4
        %v5111 = vadd.f32 %v5109, %v5110
        %v5112 = vrot.slane %v5111, 2
        %v5113 = vadd.f32 %v5111, %v5112
        %v5114 = vrot.slane %v5113, 1
        %v5115 = vadd.f32 %v5113, %v5114
        %v5116 = vsel %vm3897, %v3193, 0.0
        %v5117 = vrot.slane %v5116, 4
        %v5118 = vadd.f32 %v5116, %v5117
        %v5119 = vrot.slane %v5118, 2
        %v5120 = vadd.f32 %v5118, %v5119
        %v5121 = vrot.slane %v5120, 1
        %v5122 = vadd.f32 %v5120, %v5121
        %v5123 = vsel %vm2590, %v3195, 0.0
        %v5124 = vrot.slane %v5123, 4
        %v5125 = vadd.f32 %v5123, %v5124
        %v5126 = vrot.slane %v5125, 2
        %v5127 = vadd.f32 %v5125, %v5126
        %v5128 = vrot.slane %v5127, 1
        %v5129 = vadd.f32 %v5127, %v5128
        %v5130 = vsel %vm3897, %v3196, 0.0
        %v5131 = vrot.slane %v5130, 4
        %v5132 = vadd.f32 %v5130, %v5131
        %v5133 = vrot.slane %v5132, 2
        %v5134 = vadd.f32 %v5132, %v5133
        %v5135 = vrot.slane %v5134, 1
        %v5136 = vadd.f32 %v5134, %v5135
        %v5137 = vsel %vm2590, %v3198, 0.0
        %v5138 = vrot.slane %v5137, 4
        %v5139 = vadd.f32 %v5137, %v5138
        %v5140 = vrot.slane %v5139, 2
        %v5141 = vadd.f32 %v5139, %v5140
        %v5142 = vrot.slane %v5141, 1
        %v5143 = vadd.f32 %v5141, %v5142
        %v5144 = vsel %vm3897, %v3199, 0.0
        %v5145 = vrot.slane %v5144, 4
        %v5146 = vadd.f32 %v5144, %v5145
        %v5147 = vrot.slane %v5146, 2
        %v5148 = vadd.f32 %v5146, %v5147
        %v5149 = vrot.slane %v5148, 1
        %v5150 = vadd.f32 %v5148, %v5149
        %v5151 = vsel %vm2590, %v3201, 0.0
        %v5152 = vrot.slane %v5151, 4
        %v5153 = vadd.f32 %v5151, %v5152
        %v5154 = vrot.slane %v5153, 2
        %v5155 = vadd.f32 %v5153, %v5154
        %v5156 = vrot.slane %v5155, 1
        %v5157 = vadd.f32 %v5155, %v5156
        %v5158 = vsel %vm3897, %v3202, 0.0
        %v5159 = vrot.slane %v5158, 4
        %v5160 = vadd.f32 %v5158, %v5159
        %v5161 = vrot.slane %v5160, 2
        %v5162 = vadd.f32 %v5160, %v5161
        %v5163 = vrot.slane %v5162, 1
        %v5164 = vadd.f32 %v5162, %v5163
        %v5165 = vsel %vm2590, %v3204, 0.0
        %v5166 = vrot.slane %v5165, 4
        %v5167 = vadd.f32 %v5165, %v5166
        %v5168 = vrot.slane %v5167, 2
        %v5169 = vadd.f32 %v5167, %v5168
        %v5170 = vrot.slane %v5169, 1
        %v5171 = vadd.f32 %v5169, %v5170
        %v5172 = vsel %vm3897, %v3205, 0.0
        %v5173 = vrot.slane %v5172, 4
        %v5174 = vadd.f32 %v5172, %v5173
        %v5175 = vrot.slane %v5174, 2
        %v5176 = vadd.f32 %v5174, %v5175
        %v5177 = vrot.slane %v5176, 1
        %v5178 = vadd.f32 %v5176, %v5177
        %v5179 = vsel %vm2590, %v3207, 0.0
        %v5180 = vrot.slane %v5179, 4
        %v5181 = vadd.f32 %v5179, %v5180
        %v5182 = vrot.slane %v5181, 2
        %v5183 = vadd.f32 %v5181, %v5182
        %v5184 = vrot.slane %v5183, 1
        %v5185 = vadd.f32 %v5183, %v5184
        %v5186 = vsel %vm3897, %v3208, 0.0
        %v5187 = vrot.slane %v5186, 4
        %v5188 = vadd.f32 %v5186, %v5187
        %v5189 = vrot.slane %v5188, 2
        %v5190 = vadd.f32 %v5188, %v5189
        %v5191 = vrot.slane %v5190, 1
        %v5192 = vadd.f32 %v5190, %v5191
        %v5193 = vsel %vm2590, %v3210, 0.0
        %v5194 = vrot.slane %v5193, 4
        %v5195 = vadd.f32 %v5193, %v5194
        %v5196 = vrot.slane %v5195, 2
        %v5197 = vadd.f32 %v5195, %v5196
        %v5198 = vrot.slane %v5197, 1
        %v5199 = vadd.f32 %v5197, %v5198
        %v5200 = vsel %vm3897, %v3211, 0.0
        %v5201 = vrot.slane %v5200, 4
        %v5202 = vadd.f32 %v5200, %v5201
        %v5203 = vrot.slane %v5202, 2
        %v5204 = vadd.f32 %v5202, %v5203
        %v5205 = vrot.slane %v5204, 1
        %v5206 = vadd.f32 %v5204, %v5205
        %v5207 = vsel %vm2590, %v3213, 0.0
        %v5208 = vrot.slane %v5207, 4
        %v5209 = vadd.f32 %v5207, %v5208
        %v5210 = vrot.slane %v5209, 2
        %v5211 = vadd.f32 %v5209, %v5210
        %v5212 = vrot.slane %v5211, 1
        %v5213 = vadd.f32 %v5211, %v5212
        %v5214 = vsel %vm3897, %v3214, 0.0
        %v5215 = vrot.slane %v5214, 4
        %v5216 = vadd.f32 %v5214, %v5215
        %v5217 = vrot.slane %v5216, 2
        %v5218 = vadd.f32 %v5216, %v5217
        %v5219 = vrot.slane %v5218, 1
        %v5220 = vadd.f32 %v5218, %v5219
        %v5221 = vsel %vm2590, %v3216, 0.0
        %v5222 = vrot.slane %v5221, 4
        %v5223 = vadd.f32 %v5221, %v5222
        %v5224 = vrot.slane %v5223, 2
        %v5225 = vadd.f32 %v5223, %v5224
        %v5226 = vrot.slane %v5225, 1
        %v5227 = vadd.f32 %v5225, %v5226
        %v5228 = vsel %vm3897, %v3217, 0.0
        %v5229 = vrot.slane %v5228, 4
        %v5230 = vadd.f32 %v5228, %v5229
        %v5231 = vrot.slane %v5230, 2
        %v5232 = vadd.f32 %v5230, %v5231
        %v5233 = vrot.slane %v5232, 1
        %v5234 = vadd.f32 %v5232, %v5233
        %v5235 = vsel %vm2590, %v3219, 0.0
        %v5236 = vrot.slane %v5235, 4
        %v5237 = vadd.f32 %v5235, %v5236
        %v5238 = vrot.slane %v5237, 2
        %v5239 = vadd.f32 %v5237, %v5238
        %v5240 = vrot.slane %v5239, 1
        %v5241 = vadd.f32 %v5239, %v5240
        %v5242 = vsel %vm3897, %v3220, 0.0
        %v5243 = vrot.slane %v5242, 4
        %v5244 = vadd.f32 %v5242, %v5243
        %v5245 = vrot.slane %v5244, 2
        %v5246 = vadd.f32 %v5244, %v5245
        %v5247 = vrot.slane %v5246, 1
        %v5248 = vadd.f32 %v5246, %v5247
        %v5249 = vsel %vm2590, %v3222, 0.0
        %v5250 = vrot.slane %v5249, 4
        %v5251 = vadd.f32 %v5249, %v5250
        %v5252 = vrot.slane %v5251, 2
        %v5253 = vadd.f32 %v5251, %v5252
        %v5254 = vrot.slane %v5253, 1
        %v5255 = vadd.f32 %v5253, %v5254
        %v5256 = vsel %vm3897, %v3223, 0.0
        %v5257 = vrot.slane %v5256, 4
        %v5258 = vadd.f32 %v5256, %v5257
        %v5259 = vrot.slane %v5258, 2
        %v5260 = vadd.f32 %v5258, %v5259
        %v5261 = vrot.slane %v5260, 1
        %v5262 = vadd.f32 %v5260, %v5261
        %v5263 = vsel %vm2590, %v3225, 0.0
        %v5264 = vrot.slane %v5263, 4
        %v5265 = vadd.f32 %v5263, %v5264
        %v5266 = vrot.slane %v5265, 2
        %v5267 = vadd.f32 %v5265, %v5266
        %v5268 = vrot.slane %v5267, 1
        %v5269 = vadd.f32 %v5267, %v5268
        %v5270 = vsel %vm3897, %v3226, 0.0
        %v5271 = vrot.slane %v5270, 4
        %v5272 = vadd.f32 %v5270, %v5271
        %v5273 = vrot.slane %v5272, 2
        %v5274 = vadd.f32 %v5272, %v5273
        %v5275 = vrot.slane %v5274, 1
        %v5276 = vadd.f32 %v5274, %v5275
        %v5277 = vsel %vm2590, %v3228, 0.0
        %v5278 = vrot.slane %v5277, 4
        %v5279 = vadd.f32 %v5277, %v5278
        %v5280 = vrot.slane %v5279, 2
        %v5281 = vadd.f32 %v5279, %v5280
        %v5282 = vrot.slane %v5281, 1
        %v5283 = vadd.f32 %v5281, %v5282
        %v5284 = vsel %vm3897, %v3229, 0.0
        %v5285 = vrot.slane %v5284, 4
        %v5286 = vadd.f32 %v5284, %v5285
        %v5287 = vrot.slane %v5286, 2
        %v5288 = vadd.f32 %v5286, %v5287
        %v5289 = vrot.slane %v5288, 1
        %v5290 = vadd.f32 %v5288, %v5289
        %v5291 = vsel %vm2590, %v3231, 0.0
        %v5292 = vrot.slane %v5291, 4
        %v5293 = vadd.f32 %v5291, %v5292
        %v5294 = vrot.slane %v5293, 2
        %v5295 = vadd.f32 %v5293, %v5294
        %v5296 = vrot.slane %v5295, 1
        %v5297 = vadd.f32 %v5295, %v5296
        %v5298 = vsel %vm3897, %v3232, 0.0
        %v5299 = vrot.slane %v5298, 4
        %v5300 = vadd.f32 %v5298, %v5299
        %v5301 = vrot.slane %v5300, 2
        %v5302 = vadd.f32 %v5300, %v5301
        %v5303 = vrot.slane %v5302, 1
        %v5304 = vadd.f32 %v5302, %v5303
        %v5305 = vsel %vm2590, %v3234, 0.0
        %v5306 = vrot.slane %v5305, 4
        %v5307 = vadd.f32 %v5305, %v5306
        %v5308 = vrot.slane %v5307, 2
        %v5309 = vadd.f32 %v5307, %v5308
        %v5310 = vrot.slane %v5309, 1
        %v5311 = vadd.f32 %v5309, %v5310
        %v5312 = vsel %vm3897, %v3235, 0.0
        %v5313 = vrot.slane %v5312, 4
        %v5314 = vadd.f32 %v5312, %v5313
        %v5315 = vrot.slane %v5314, 2
        %v5316 = vadd.f32 %v5314, %v5315
        %v5317 = vrot.slane %v5316, 1
        %v5318 = vadd.f32 %v5316, %v5317
        %v5319 = vsel %vm2590, %v3237, 0.0
        %v5320 = vrot.slane %v5319, 4
        %v5321 = vadd.f32 %v5319, %v5320
        %v5322 = vrot.slane %v5321, 2
        %v5323 = vadd.f32 %v5321, %v5322
        %v5324 = vrot.slane %v5323, 1
        %v5325 = vadd.f32 %v5323, %v5324
        %v5326 = vsel %vm3897, %v3238, 0.0
        %v5327 = vrot.slane %v5326, 4
        %v5328 = vadd.f32 %v5326, %v5327
        %v5329 = vrot.slane %v5328, 2
        %v5330 = vadd.f32 %v5328, %v5329
        %v5331 = vrot.slane %v5330, 1
        %v5332 = vadd.f32 %v5330, %v5331
        %v5333 = vsel %vm2590, %v3240, 0.0
        %v5334 = vrot.slane %v5333, 4
        %v5335 = vadd.f32 %v5333, %v5334
        %v5336 = vrot.slane %v5335, 2
        %v5337 = vadd.f32 %v5335, %v5336
        %v5338 = vrot.slane %v5337, 1
        %v5339 = vadd.f32 %v5337, %v5338
        %v5340 = vsel %vm3897, %v3241, 0.0
        %v5341 = vrot.slane %v5340, 4
        %v5342 = vadd.f32 %v5340, %v5341
        %v5343 = vrot.slane %v5342, 2
        %v5344 = vadd.f32 %v5342, %v5343
        %v5345 = vrot.slane %v5344, 1
        %v5346 = vadd.f32 %v5344, %v5345
        %v5347 = vsel %vm2590, %v3243, 0.0
        %v5348 = vrot.slane %v5347, 4
        %v5349 = vadd.f32 %v5347, %v5348
        %v5350 = vrot.slane %v5349, 2
        %v5351 = vadd.f32 %v5349, %v5350
        %v5352 = vrot.slane %v5351, 1
        %v5353 = vadd.f32 %v5351, %v5352
        %v5354 = vsel %vm3897, %v3244, 0.0
        %v5355 = vrot.slane %v5354, 4
        %v5356 = vadd.f32 %v5354, %v5355
        %v5357 = vrot.slane %v5356, 2
        %v5358 = vadd.f32 %v5356, %v5357
        %v5359 = vrot.slane %v5358, 1
        %v5360 = vadd.f32 %v5358, %v5359
        %v5361 = vsel %vm2590, %v3246, 0.0
        %v5362 = vrot.slane %v5361, 4
        %v5363 = vadd.f32 %v5361, %v5362
        %v5364 = vrot.slane %v5363, 2
        %v5365 = vadd.f32 %v5363, %v5364
        %v5366 = vrot.slane %v5365, 1
        %v5367 = vadd.f32 %v5365, %v5366
        %v5368 = vsel %vm3897, %v3247, 0.0
        %v5369 = vrot.slane %v5368, 4
        %v5370 = vadd.f32 %v5368, %v5369
        %v5371 = vrot.slane %v5370, 2
        %v5372 = vadd.f32 %v5370, %v5371
        %v5373 = vrot.slane %v5372, 1
        %v5374 = vadd.f32 %v5372, %v5373
        %v5375 = vsel %vm2590, %v3249, 0.0
        %v5376 = vrot.slane %v5375, 4
        %v5377 = vadd.f32 %v5375, %v5376
        %v5378 = vrot.slane %v5377, 2
        %v5379 = vadd.f32 %v5377, %v5378
        %v5380 = vrot.slane %v5379, 1
        %v5381 = vadd.f32 %v5379, %v5380
        %v5382 = vsel %vm3897, %v3250, 0.0
        %v5383 = vrot.slane %v5382, 4
        %v5384 = vadd.f32 %v5382, %v5383
        %v5385 = vrot.slane %v5384, 2
        %v5386 = vadd.f32 %v5384, %v5385
        %v5387 = vrot.slane %v5386, 1
        %v5388 = vadd.f32 %v5386, %v5387
        %v5389 = vsel %vm2590, %v3252, 0.0
        %v5390 = vrot.slane %v5389, 4
        %v5391 = vadd.f32 %v5389, %v5390
        %v5392 = vrot.slane %v5391, 2
        %v5393 = vadd.f32 %v5391, %v5392
        %v5394 = vrot.slane %v5393, 1
        %v5395 = vadd.f32 %v5393, %v5394
        %v5396 = vsel %vm3897, %v3253, 0.0
        %v5397 = vrot.slane %v5396, 4
        %v5398 = vadd.f32 %v5396, %v5397
        %v5399 = vrot.slane %v5398, 2
        %v5400 = vadd.f32 %v5398, %v5399
        %v5401 = vrot.slane %v5400, 1
        %v5402 = vadd.f32 %v5400, %v5401
        %v5403 = vsel %vm2590, %v3255, 0.0
        %v5404 = vrot.slane %v5403, 4
        %v5405 = vadd.f32 %v5403, %v5404
        %v5406 = vrot.slane %v5405, 2
        %v5407 = vadd.f32 %v5405, %v5406
        %v5408 = vrot.slane %v5407, 1
        %v5409 = vadd.f32 %v5407, %v5408
        %v5410 = vsel %vm3897, %v3256, 0.0
        %v5411 = vrot.slane %v5410, 4
        %v5412 = vadd.f32 %v5410, %v5411
        %v5413 = vrot.slane %v5412, 2
        %v5414 = vadd.f32 %v5412, %v5413
        %v5415 = vrot.slane %v5414, 1
        %v5416 = vadd.f32 %v5414, %v5415
        %v5417 = vsel %vm2590, %v3258, 0.0
        %v5418 = vrot.slane %v5417, 4
        %v5419 = vadd.f32 %v5417, %v5418
        %v5420 = vrot.slane %v5419, 2
        %v5421 = vadd.f32 %v5419, %v5420
        %v5422 = vrot.slane %v5421, 1
        %v5423 = vadd.f32 %v5421, %v5422
        %v5424 = vsel %vm3897, %v3259, 0.0
        %v5425 = vrot.slane %v5424, 4
        %v5426 = vadd.f32 %v5424, %v5425
        %v5427 = vrot.slane %v5426, 2
        %v5428 = vadd.f32 %v5426, %v5427
        %v5429 = vrot.slane %v5428, 1
        %v5430 = vadd.f32 %v5428, %v5429
        %v5431 = vsel %vm2590, %v3261, 0.0
        %v5432 = vrot.slane %v5431, 4
        %v5433 = vadd.f32 %v5431, %v5432
        %v5434 = vrot.slane %v5433, 2
        %v5435 = vadd.f32 %v5433, %v5434
        %v5436 = vrot.slane %v5435, 1
        %v5437 = vadd.f32 %v5435, %v5436
        %v5438 = vsel %vm3897, %v3262, 0.0
        %v5439 = vrot.slane %v5438, 4
        %v5440 = vadd.f32 %v5438, %v5439
        %v5441 = vrot.slane %v5440, 2
        %v5442 = vadd.f32 %v5440, %v5441
        %v5443 = vrot.slane %v5442, 1
        %v5444 = vadd.f32 %v5442, %v5443
        %v5445 = vsel %vm2590, %v3264, 0.0
        %v5446 = vrot.slane %v5445, 4
        %v5447 = vadd.f32 %v5445, %v5446
        %v5448 = vrot.slane %v5447, 2
        %v5449 = vadd.f32 %v5447, %v5448
        %v5450 = vrot.slane %v5449, 1
        %v5451 = vadd.f32 %v5449, %v5450
        %v5452 = vsel %vm3897, %v3265, 0.0
        %v5453 = vrot.slane %v5452, 4
        %v5454 = vadd.f32 %v5452, %v5453
        %v5455 = vrot.slane %v5454, 2
        %v5456 = vadd.f32 %v5454, %v5455
        %v5457 = vrot.slane %v5456, 1
        %v5458 = vadd.f32 %v5456, %v5457
        %v5459 = vsel %vm2590, %v3267, 0.0
        %v5460 = vrot.slane %v5459, 4
        %v5461 = vadd.f32 %v5459, %v5460
        %v5462 = vrot.slane %v5461, 2
        %v5463 = vadd.f32 %v5461, %v5462
        %v5464 = vrot.slane %v5463, 1
        %v5465 = vadd.f32 %v5463, %v5464
        %v5466 = vsel %vm3897, %v3268, 0.0
        %v5467 = vrot.slane %v5466, 4
        %v5468 = vadd.f32 %v5466, %v5467
        %v5469 = vrot.slane %v5468, 2
        %v5470 = vadd.f32 %v5468, %v5469
        %v5471 = vrot.slane %v5470, 1
        %v5472 = vadd.f32 %v5470, %v5471
        %v5473 = vsel %vm2590, %v3270, 0.0
        %v5474 = vrot.slane %v5473, 4
        %v5475 = vadd.f32 %v5473, %v5474
        %v5476 = vrot.slane %v5475, 2
        %v5477 = vadd.f32 %v5475, %v5476
        %v5478 = vrot.slane %v5477, 1
        %v5479 = vadd.f32 %v5477, %v5478
        %v5480 = vsel %vm3897, %v3271, 0.0
        %v5481 = vrot.slane %v5480, 4
        %v5482 = vadd.f32 %v5480, %v5481
        %v5483 = vrot.slane %v5482, 2
        %v5484 = vadd.f32 %v5482, %v5483
        %v5485 = vrot.slane %v5484, 1
        %v5486 = vadd.f32 %v5484, %v5485
        %v5487 = vsel %vm2590, %v3273, 0.0
        %v5488 = vrot.slane %v5487, 4
        %v5489 = vadd.f32 %v5487, %v5488
        %v5490 = vrot.slane %v5489, 2
        %v5491 = vadd.f32 %v5489, %v5490
        %v5492 = vrot.slane %v5491, 1
        %v5493 = vadd.f32 %v5491, %v5492
        %v5494 = vsel %vm3897, %v3274, 0.0
        %v5495 = vrot.slane %v5494, 4
        %v5496 = vadd.f32 %v5494, %v5495
        %v5497 = vrot.slane %v5496, 2
        %v5498 = vadd.f32 %v5496, %v5497
        %v5499 = vrot.slane %v5498, 1
        %v5500 = vadd.f32 %v5498, %v5499
        %v5501 = vsel %vm2590, %v3276, 0.0
        %v5502 = vrot.slane %v5501, 4
        %v5503 = vadd.f32 %v5501, %v5502
        %v5504 = vrot.slane %v5503, 2
        %v5505 = vadd.f32 %v5503, %v5504
        %v5506 = vrot.slane %v5505, 1
        %v5507 = vadd.f32 %v5505, %v5506
        %v5508 = vsel %vm3897, %v3277, 0.0
        %v5509 = vrot.slane %v5508, 4
        %v5510 = vadd.f32 %v5508, %v5509
        %v5511 = vrot.slane %v5510, 2
        %v5512 = vadd.f32 %v5510, %v5511
        %v5513 = vrot.slane %v5512, 1
        %v5514 = vadd.f32 %v5512, %v5513
        %v5515 = vsel %vm2590, %v3279, 0.0
        %v5516 = vrot.slane %v5515, 4
        %v5517 = vadd.f32 %v5515, %v5516
        %v5518 = vrot.slane %v5517, 2
        %v5519 = vadd.f32 %v5517, %v5518
        %v5520 = vrot.slane %v5519, 1
        %v5521 = vadd.f32 %v5519, %v5520
        %v5522 = vsel %vm3897, %v3280, 0.0
        %v5523 = vrot.slane %v5522, 4
        %v5524 = vadd.f32 %v5522, %v5523
        %v5525 = vrot.slane %v5524, 2
        %v5526 = vadd.f32 %v5524, %v5525
        %v5527 = vrot.slane %v5526, 1
        %v5528 = vadd.f32 %v5526, %v5527
        %v5529 = vsel %vm2590, %v3282, 0.0
        %v5530 = vrot.slane %v5529, 4
        %v5531 = vadd.f32 %v5529, %v5530
        %v5532 = vrot.slane %v5531, 2
        %v5533 = vadd.f32 %v5531, %v5532
        %v5534 = vrot.slane %v5533, 1
        %v5535 = vadd.f32 %v5533, %v5534
        %v5536 = vsel %vm3897, %v3283, 0.0
        %v5537 = vrot.slane %v5536, 4
        %v5538 = vadd.f32 %v5536, %v5537
        %v5539 = vrot.slane %v5538, 2
        %v5540 = vadd.f32 %v5538, %v5539
        %v5541 = vrot.slane %v5540, 1
        %v5542 = vadd.f32 %v5540, %v5541
        %v5543 = vsel %vm2590, %v3285, 0.0
        %v5544 = vrot.slane %v5543, 4
        %v5545 = vadd.f32 %v5543, %v5544
        %v5546 = vrot.slane %v5545, 2
        %v5547 = vadd.f32 %v5545, %v5546
        %v5548 = vrot.slane %v5547, 1
        %v5549 = vadd.f32 %v5547, %v5548
        %v5550 = vsel %vm3897, %v3286, 0.0
        %v5551 = vrot.slane %v5550, 4
        %v5552 = vadd.f32 %v5550, %v5551
        %v5553 = vrot.slane %v5552, 2
        %v5554 = vadd.f32 %v5552, %v5553
        %v5555 = vrot.slane %v5554, 1
        %v5556 = vadd.f32 %v5554, %v5555
        %v5557 = vsel %vm2590, %v3288, 0.0
        %v5558 = vrot.slane %v5557, 4
        %v5559 = vadd.f32 %v5557, %v5558
        %v5560 = vrot.slane %v5559, 2
        %v5561 = vadd.f32 %v5559, %v5560
        %v5562 = vrot.slane %v5561, 1
        %v5563 = vadd.f32 %v5561, %v5562
        %v5564 = vsel %vm3897, %v3289, 0.0
        %v5565 = vrot.slane %v5564, 4
        %v5566 = vadd.f32 %v5564, %v5565
        %v5567 = vrot.slane %v5566, 2
        %v5568 = vadd.f32 %v5566, %v5567
        %v5569 = vrot.slane %v5568, 1
        %v5570 = vadd.f32 %v5568, %v5569
        %v5571 = vsel %vm2590, %v3291, 0.0
        %v5572 = vrot.slane %v5571, 4
        %v5573 = vadd.f32 %v5571, %v5572
        %v5574 = vrot.slane %v5573, 2
        %v5575 = vadd.f32 %v5573, %v5574
        %v5576 = vrot.slane %v5575, 1
        %v5577 = vadd.f32 %v5575, %v5576
        %v5578 = vsel %vm3897, %v3292, 0.0
        %v5579 = vrot.slane %v5578, 4
        %v5580 = vadd.f32 %v5578, %v5579
        %v5581 = vrot.slane %v5580, 2
        %v5582 = vadd.f32 %v5580, %v5581
        %v5583 = vrot.slane %v5582, 1
        %v5584 = vadd.f32 %v5582, %v5583
        %v5585 = vsel %vm2590, %v3294, 0.0
        %v5586 = vrot.slane %v5585, 4
        %v5587 = vadd.f32 %v5585, %v5586
        %v5588 = vrot.slane %v5587, 2
        %v5589 = vadd.f32 %v5587, %v5588
        %v5590 = vrot.slane %v5589, 1
        %v5591 = vadd.f32 %v5589, %v5590
        %v5592 = vsel %vm3897, %v3295, 0.0
        %v5593 = vrot.slane %v5592, 4
        %v5594 = vadd.f32 %v5592, %v5593
        %v5595 = vrot.slane %v5594, 2
        %v5596 = vadd.f32 %v5594, %v5595
        %v5597 = vrot.slane %v5596, 1
        %v5598 = vadd.f32 %v5596, %v5597
        %v5599 = vsel %vm2590, %v3297, 0.0
        %v5600 = vrot.slane %v5599, 4
        %v5601 = vadd.f32 %v5599, %v5600
        %v5602 = vrot.slane %v5601, 2
        %v5603 = vadd.f32 %v5601, %v5602
        %v5604 = vrot.slane %v5603, 1
        %v5605 = vadd.f32 %v5603, %v5604
        %v5606 = vsel %vm3897, %v3298, 0.0
        %v5607 = vrot.slane %v5606, 4
        %v5608 = vadd.f32 %v5606, %v5607
        %v5609 = vrot.slane %v5608, 2
        %v5610 = vadd.f32 %v5608, %v5609
        %v5611 = vrot.slane %v5610, 1
        %v5612 = vadd.f32 %v5610, %v5611
        %v5613 = vsel %vm2590, %v3300, 0.0
        %v5614 = vrot.slane %v5613, 4
        %v5615 = vadd.f32 %v5613, %v5614
        %v5616 = vrot.slane %v5615, 2
        %v5617 = vadd.f32 %v5615, %v5616
        %v5618 = vrot.slane %v5617, 1
        %v5619 = vadd.f32 %v5617, %v5618
        %v5620 = vsel %vm3897, %v3301, 0.0
        %v5621 = vrot.slane %v5620, 4
        %v5622 = vadd.f32 %v5620, %v5621
        %v5623 = vrot.slane %v5622, 2
        %v5624 = vadd.f32 %v5622, %v5623
        %v5625 = vrot.slane %v5624, 1
        %v5626 = vadd.f32 %v5624, %v5625
        %v5627 = vsel %vm2590, %v3303, 0.0
        %v5628 = vrot.slane %v5627, 4
        %v5629 = vadd.f32 %v5627, %v5628
        %v5630 = vrot.slane %v5629, 2
        %v5631 = vadd.f32 %v5629, %v5630
        %v5632 = vrot.slane %v5631, 1
        %v5633 = vadd.f32 %v5631, %v5632
        %v5634 = vsel %vm3897, %v3304, 0.0
        %v5635 = vrot.slane %v5634, 4
        %v5636 = vadd.f32 %v5634, %v5635
        %v5637 = vrot.slane %v5636, 2
        %v5638 = vadd.f32 %v5636, %v5637
        %v5639 = vrot.slane %v5638, 1
        %v5640 = vadd.f32 %v5638, %v5639
        %v5641 = vsel %vm2590, %v3306, 0.0
        %v5642 = vrot.slane %v5641, 4
        %v5643 = vadd.f32 %v5641, %v5642
        %v5644 = vrot.slane %v5643, 2
        %v5645 = vadd.f32 %v5643, %v5644
        %v5646 = vrot.slane %v5645, 1
        %v5647 = vadd.f32 %v5645, %v5646
        %v5648 = vsel %vm3897, %v3307, 0.0
        %v5649 = vrot.slane %v5648, 4
        %v5650 = vadd.f32 %v5648, %v5649
        %v5651 = vrot.slane %v5650, 2
        %v5652 = vadd.f32 %v5650, %v5651
        %v5653 = vrot.slane %v5652, 1
        %v5654 = vadd.f32 %v5652, %v5653
        %v5655 = vsel %vm2590, %v3309, 0.0
        %v5656 = vrot.slane %v5655, 4
        %v5657 = vadd.f32 %v5655, %v5656
        %v5658 = vrot.slane %v5657, 2
        %v5659 = vadd.f32 %v5657, %v5658
        %v5660 = vrot.slane %v5659, 1
        %v5661 = vadd.f32 %v5659, %v5660
        %v5662 = vsel %vm3897, %v3310, 0.0
        %v5663 = vrot.slane %v5662, 4
        %v5664 = vadd.f32 %v5662, %v5663
        %v5665 = vrot.slane %v5664, 2
        %v5666 = vadd.f32 %v5664, %v5665
        %v5667 = vrot.slane %v5666, 1
        %v5668 = vadd.f32 %v5666, %v5667
        %v5669 = vsel %vm2590, %v3312, 0.0
        %v5670 = vrot.slane %v5669, 4
        %v5671 = vadd.f32 %v5669, %v5670
        %v5672 = vrot.slane %v5671, 2
        %v5673 = vadd.f32 %v5671, %v5672
        %v5674 = vrot.slane %v5673, 1
        %v5675 = vadd.f32 %v5673, %v5674
        %v5676 = vsel %vm3897, %v3313, 0.0
        %v5677 = vrot.slane %v5676, 4
        %v5678 = vadd.f32 %v5676, %v5677
        %v5679 = vrot.slane %v5678, 2
        %v5680 = vadd.f32 %v5678, %v5679
        %v5681 = vrot.slane %v5680, 1
        %v5682 = vadd.f32 %v5680, %v5681
        %v5683 = vsel %vm2590, %v3315, 0.0
        %v5684 = vrot.slane %v5683, 4
        %v5685 = vadd.f32 %v5683, %v5684
        %v5686 = vrot.slane %v5685, 2
        %v5687 = vadd.f32 %v5685, %v5686
        %v5688 = vrot.slane %v5687, 1
        %v5689 = vadd.f32 %v5687, %v5688
        %v5690 = vsel %vm3897, %v3316, 0.0
        %v5691 = vrot.slane %v5690, 4
        %v5692 = vadd.f32 %v5690, %v5691
        %v5693 = vrot.slane %v5692, 2
        %v5694 = vadd.f32 %v5692, %v5693
        %v5695 = vrot.slane %v5694, 1
        %v5696 = vadd.f32 %v5694, %v5695
        %v5697 = vsel %vm2590, %v3318, 0.0
        %v5698 = vrot.slane %v5697, 4
        %v5699 = vadd.f32 %v5697, %v5698
        %v5700 = vrot.slane %v5699, 2
        %v5701 = vadd.f32 %v5699, %v5700
        %v5702 = vrot.slane %v5701, 1
        %v5703 = vadd.f32 %v5701, %v5702
        %v5704 = vsel %vm3897, %v3319, 0.0
        %v5705 = vrot.slane %v5704, 4
        %v5706 = vadd.f32 %v5704, %v5705
        %v5707 = vrot.slane %v5706, 2
        %v5708 = vadd.f32 %v5706, %v5707
        %v5709 = vrot.slane %v5708, 1
        %v5710 = vadd.f32 %v5708, %v5709
        %v5711 = vsel %vm2590, %v3321, 0.0
        %v5712 = vrot.slane %v5711, 4
        %v5713 = vadd.f32 %v5711, %v5712
        %v5714 = vrot.slane %v5713, 2
        %v5715 = vadd.f32 %v5713, %v5714
        %v5716 = vrot.slane %v5715, 1
        %v5717 = vadd.f32 %v5715, %v5716
        %v5718 = vsel %vm3897, %v3322, 0.0
        %v5719 = vrot.slane %v5718, 4
        %v5720 = vadd.f32 %v5718, %v5719
        %v5721 = vrot.slane %v5720, 2
        %v5722 = vadd.f32 %v5720, %v5721
        %v5723 = vrot.slane %v5722, 1
        %v5724 = vadd.f32 %v5722, %v5723
        %v5725 = vsel %vm2590, %v3324, 0.0
        %v5726 = vrot.slane %v5725, 4
        %v5727 = vadd.f32 %v5725, %v5726
        %v5728 = vrot.slane %v5727, 2
        %v5729 = vadd.f32 %v5727, %v5728
        %v5730 = vrot.slane %v5729, 1
        %v5731 = vadd.f32 %v5729, %v5730
        %v5732 = vsel %vm3897, %v3325, 0.0
        %v5733 = vrot.slane %v5732, 4
        %v5734 = vadd.f32 %v5732, %v5733
        %v5735 = vrot.slane %v5734, 2
        %v5736 = vadd.f32 %v5734, %v5735
        %v5737 = vrot.slane %v5736, 1
        %v5738 = vadd.f32 %v5736, %v5737
        %v5739 = vsel %vm2590, %v3327, 0.0
        %v5740 = vrot.slane %v5739, 4
        %v5741 = vadd.f32 %v5739, %v5740
        %v5742 = vrot.slane %v5741, 2
        %v5743 = vadd.f32 %v5741, %v5742
        %v5744 = vrot.slane %v5743, 1
        %v5745 = vadd.f32 %v5743, %v5744
        %v5746 = vsel %vm3897, %v3328, 0.0
        %v5747 = vrot.slane %v5746, 4
        %v5748 = vadd.f32 %v5746, %v5747
        %v5749 = vrot.slane %v5748, 2
        %v5750 = vadd.f32 %v5748, %v5749
        %v5751 = vrot.slane %v5750, 1
        %v5752 = vadd.f32 %v5750, %v5751
        %v5753 = vsel %vm2590, %v3330, 0.0
        %v5754 = vrot.slane %v5753, 4
        %v5755 = vadd.f32 %v5753, %v5754
        %v5756 = vrot.slane %v5755, 2
        %v5757 = vadd.f32 %v5755, %v5756
        %v5758 = vrot.slane %v5757, 1
        %v5759 = vadd.f32 %v5757, %v5758
        %v5760 = vsel %vm3897, %v3331, 0.0
        %v5761 = vrot.slane %v5760, 4
        %v5762 = vadd.f32 %v5760, %v5761
        %v5763 = vrot.slane %v5762, 2
        %v5764 = vadd.f32 %v5762, %v5763
        %v5765 = vrot.slane %v5764, 1
        %v5766 = vadd.f32 %v5764, %v5765
        %v5767 = vsel %vm2590, %v3333, 0.0
        %v5768 = vrot.slane %v5767, 4
        %v5769 = vadd.f32 %v5767, %v5768
        %v5770 = vrot.slane %v5769, 2
        %v5771 = vadd.f32 %v5769, %v5770
        %v5772 = vrot.slane %v5771, 1
        %v5773 = vadd.f32 %v5771, %v5772
        %v5774 = vsel %vm3897, %v3334, 0.0
        %v5775 = vrot.slane %v5774, 4
        %v5776 = vadd.f32 %v5774, %v5775
        %v5777 = vrot.slane %v5776, 2
        %v5778 = vadd.f32 %v5776, %v5777
        %v5779 = vrot.slane %v5778, 1
        %v5780 = vadd.f32 %v5778, %v5779
        %v5781 = vsel %vm2590, %v3336, 0.0
        %v5782 = vrot.slane %v5781, 4
        %v5783 = vadd.f32 %v5781, %v5782
        %v5784 = vrot.slane %v5783, 2
        %v5785 = vadd.f32 %v5783, %v5784
        %v5786 = vrot.slane %v5785, 1
        %v5787 = vadd.f32 %v5785, %v5786
        %v5788 = vsel %vm3897, %v3337, 0.0
        %v5789 = vrot.slane %v5788, 4
        %v5790 = vadd.f32 %v5788, %v5789
        %v5791 = vrot.slane %v5790, 2
        %v5792 = vadd.f32 %v5790, %v5791
        %v5793 = vrot.slane %v5792, 1
        %v5794 = vadd.f32 %v5792, %v5793
        %v5795 = vsel %vm2590, %v3339, 0.0
        %v5796 = vrot.slane %v5795, 4
        %v5797 = vadd.f32 %v5795, %v5796
        %v5798 = vrot.slane %v5797, 2
        %v5799 = vadd.f32 %v5797, %v5798
        %v5800 = vrot.slane %v5799, 1
        %v5801 = vadd.f32 %v5799, %v5800
        %v5802 = vsel %vm3897, %v3340, 0.0
        %v5803 = vrot.slane %v5802, 4
        %v5804 = vadd.f32 %v5802, %v5803
        %v5805 = vrot.slane %v5804, 2
        %v5806 = vadd.f32 %v5804, %v5805
        %v5807 = vrot.slane %v5806, 1
        %v5808 = vadd.f32 %v5806, %v5807
        %v5809 = vsel %vm2590, %v3342, 0.0
        %v5810 = vrot.slane %v5809, 4
        %v5811 = vadd.f32 %v5809, %v5810
        %v5812 = vrot.slane %v5811, 2
        %v5813 = vadd.f32 %v5811, %v5812
        %v5814 = vrot.slane %v5813, 1
        %v5815 = vadd.f32 %v5813, %v5814
        %v5816 = vsel %vm3897, %v3343, 0.0
        %v5817 = vrot.slane %v5816, 4
        %v5818 = vadd.f32 %v5816, %v5817
        %v5819 = vrot.slane %v5818, 2
        %v5820 = vadd.f32 %v5818, %v5819
        %v5821 = vrot.slane %v5820, 1
        %v5822 = vadd.f32 %v5820, %v5821
        %v5823 = vsel %vm2590, %v3345, 0.0
        %v5824 = vrot.slane %v5823, 4
        %v5825 = vadd.f32 %v5823, %v5824
        %v5826 = vrot.slane %v5825, 2
        %v5827 = vadd.f32 %v5825, %v5826
        %v5828 = vrot.slane %v5827, 1
        %v5829 = vadd.f32 %v5827, %v5828
        %v5830 = vsel %vm3897, %v3346, 0.0
        %v5831 = vrot.slane %v5830, 4
        %v5832 = vadd.f32 %v5830, %v5831
        %v5833 = vrot.slane %v5832, 2
        %v5834 = vadd.f32 %v5832, %v5833
        %v5835 = vrot.slane %v5834, 1
        %v5836 = vadd.f32 %v5834, %v5835
        %v5837 = vsel %vm2590, %v3348, 0.0
        %v5838 = vrot.slane %v5837, 4
        %v5839 = vadd.f32 %v5837, %v5838
        %v5840 = vrot.slane %v5839, 2
        %v5841 = vadd.f32 %v5839, %v5840
        %v5842 = vrot.slane %v5841, 1
        %v5843 = vadd.f32 %v5841, %v5842
        %v5844 = vsel %vm3897, %v3349, 0.0
        %v5845 = vrot.slane %v5844, 4
        %v5846 = vadd.f32 %v5844, %v5845
        %v5847 = vrot.slane %v5846, 2
        %v5848 = vadd.f32 %v5846, %v5847
        %v5849 = vrot.slane %v5848, 1
        %v5850 = vadd.f32 %v5848, %v5849
        %v5851 = vsel %vm2590, %v3351, 0.0
        %v5852 = vrot.slane %v5851, 4
        %v5853 = vadd.f32 %v5851, %v5852
        %v5854 = vrot.slane %v5853, 2
        %v5855 = vadd.f32 %v5853, %v5854
        %v5856 = vrot.slane %v5855, 1
        %v5857 = vadd.f32 %v5855, %v5856
        %v5858 = vsel %vm3897, %v3352, 0.0
        %v5859 = vrot.slane %v5858, 4
        %v5860 = vadd.f32 %v5858, %v5859
        %v5861 = vrot.slane %v5860, 2
        %v5862 = vadd.f32 %v5860, %v5861
        %v5863 = vrot.slane %v5862, 1
        %v5864 = vadd.f32 %v5862, %v5863
        %v5865 = vsel %vm2590, %v3354, 0.0
        %v5866 = vrot.slane %v5865, 4
        %v5867 = vadd.f32 %v5865, %v5866
        %v5868 = vrot.slane %v5867, 2
        %v5869 = vadd.f32 %v5867, %v5868
        %v5870 = vrot.slane %v5869, 1
        %v5871 = vadd.f32 %v5869, %v5870
        %v5872 = vsel %vm3897, %v3355, 0.0
        %v5873 = vrot.slane %v5872, 4
        %v5874 = vadd.f32 %v5872, %v5873
        %v5875 = vrot.slane %v5874, 2
        %v5876 = vadd.f32 %v5874, %v5875
        %v5877 = vrot.slane %v5876, 1
        %v5878 = vadd.f32 %v5876, %v5877
        %v5879 = vsel %vm2590, %v3357, 0.0
        %v5880 = vrot.slane %v5879, 4
        %v5881 = vadd.f32 %v5879, %v5880
        %v5882 = vrot.slane %v5881, 2
        %v5883 = vadd.f32 %v5881, %v5882
        %v5884 = vrot.slane %v5883, 1
        %v5885 = vadd.f32 %v5883, %v5884
        %v5886 = vsel %vm3897, %v3358, 0.0
        %v5887 = vrot.slane %v5886, 4
        %v5888 = vadd.f32 %v5886, %v5887
        %v5889 = vrot.slane %v5888, 2
        %v5890 = vadd.f32 %v5888, %v5889
        %v5891 = vrot.slane %v5890, 1
        %v5892 = vadd.f32 %v5890, %v5891
        %v5893 = vsel %vm2590, %v3360, 0.0
        %v5894 = vrot.slane %v5893, 4
        %v5895 = vadd.f32 %v5893, %v5894
        %v5896 = vrot.slane %v5895, 2
        %v5897 = vadd.f32 %v5895, %v5896
        %v5898 = vrot.slane %v5897, 1
        %v5899 = vadd.f32 %v5897, %v5898
        %v5900 = vsel %vm3897, %v3361, 0.0
        %v5901 = vrot.slane %v5900, 4
        %v5902 = vadd.f32 %v5900, %v5901
        %v5903 = vrot.slane %v5902, 2
        %v5904 = vadd.f32 %v5902, %v5903
        %v5905 = vrot.slane %v5904, 1
        %v5906 = vadd.f32 %v5904, %v5905
        %v5907 = vsel %vm2590, %v3363, 0.0
        %v5908 = vrot.slane %v5907, 4
        %v5909 = vadd.f32 %v5907, %v5908
        %v5910 = vrot.slane %v5909, 2
        %v5911 = vadd.f32 %v5909, %v5910
        %v5912 = vrot.slane %v5911, 1
        %v5913 = vadd.f32 %v5911, %v5912
        %v5914 = vsel %vm3897, %v3364, 0.0
        %v5915 = vrot.slane %v5914, 4
        %v5916 = vadd.f32 %v5914, %v5915
        %v5917 = vrot.slane %v5916, 2
        %v5918 = vadd.f32 %v5916, %v5917
        %v5919 = vrot.slane %v5918, 1
        %v5920 = vadd.f32 %v5918, %v5919
        %v5921 = vsel %vm2590, %v3366, 0.0
        %v5922 = vrot.slane %v5921, 4
        %v5923 = vadd.f32 %v5921, %v5922
        %v5924 = vrot.slane %v5923, 2
        %v5925 = vadd.f32 %v5923, %v5924
        %v5926 = vrot.slane %v5925, 1
        %v5927 = vadd.f32 %v5925, %v5926
        %v5928 = vsel %vm3897, %v3367, 0.0
        %v5929 = vrot.slane %v5928, 4
        %v5930 = vadd.f32 %v5928, %v5929
        %v5931 = vrot.slane %v5930, 2
        %v5932 = vadd.f32 %v5930, %v5931
        %v5933 = vrot.slane %v5932, 1
        %v5934 = vadd.f32 %v5932, %v5933
        %v5935 = vsel %vm2590, %v3369, 0.0
        %v5936 = vrot.slane %v5935, 4
        %v5937 = vadd.f32 %v5935, %v5936
        %v5938 = vrot.slane %v5937, 2
        %v5939 = vadd.f32 %v5937, %v5938
        %v5940 = vrot.slane %v5939, 1
        %v5941 = vadd.f32 %v5939, %v5940
        %v5942 = vsel %vm3897, %v3370, 0.0
        %v5943 = vrot.slane %v5942, 4
        %v5944 = vadd.f32 %v5942, %v5943
        %v5945 = vrot.slane %v5944, 2
        %v5946 = vadd.f32 %v5944, %v5945
        %v5947 = vrot.slane %v5946, 1
        %v5948 = vadd.f32 %v5946, %v5947
        %v5949 = vsel %vm2590, %v3372, 0.0
        %v5950 = vrot.slane %v5949, 4
        %v5951 = vadd.f32 %v5949, %v5950
        %v5952 = vrot.slane %v5951, 2
        %v5953 = vadd.f32 %v5951, %v5952
        %v5954 = vrot.slane %v5953, 1
        %v5955 = vadd.f32 %v5953, %v5954
        %v5956 = vsel %vm3897, %v3373, 0.0
        %v5957 = vrot.slane %v5956, 4
        %v5958 = vadd.f32 %v5956, %v5957
        %v5959 = vrot.slane %v5958, 2
        %v5960 = vadd.f32 %v5958, %v5959
        %v5961 = vrot.slane %v5960, 1
        %v5962 = vadd.f32 %v5960, %v5961
        %v5963 = vsel %vm2590, %v3375, 0.0
        %v5964 = vrot.slane %v5963, 4
        %v5965 = vadd.f32 %v5963, %v5964
        %v5966 = vrot.slane %v5965, 2
        %v5967 = vadd.f32 %v5965, %v5966
        %v5968 = vrot.slane %v5967, 1
        %v5969 = vadd.f32 %v5967, %v5968
        %v5970 = vsel %vm3897, %v3376, 0.0
        %v5971 = vrot.slane %v5970, 4
        %v5972 = vadd.f32 %v5970, %v5971
        %v5973 = vrot.slane %v5972, 2
        %v5974 = vadd.f32 %v5972, %v5973
        %v5975 = vrot.slane %v5974, 1
        %v5976 = vadd.f32 %v5974, %v5975
        %v5977 = vsel %vm2590, %v3378, 0.0
        %v5978 = vrot.slane %v5977, 4
        %v5979 = vadd.f32 %v5977, %v5978
        %v5980 = vrot.slane %v5979, 2
        %v5981 = vadd.f32 %v5979, %v5980
        %v5982 = vrot.slane %v5981, 1
        %v5983 = vadd.f32 %v5981, %v5982
        %v5984 = vsel %vm3897, %v3379, 0.0
        %v5985 = vrot.slane %v5984, 4
        %v5986 = vadd.f32 %v5984, %v5985
        %v5987 = vrot.slane %v5986, 2
        %v5988 = vadd.f32 %v5986, %v5987
        %v5989 = vrot.slane %v5988, 1
        %v5990 = vadd.f32 %v5988, %v5989
        %v5991 = vsel %vm2590, %v3381, 0.0
        %v5992 = vrot.slane %v5991, 4
        %v5993 = vadd.f32 %v5991, %v5992
        %v5994 = vrot.slane %v5993, 2
        %v5995 = vadd.f32 %v5993, %v5994
        %v5996 = vrot.slane %v5995, 1
        %v5997 = vadd.f32 %v5995, %v5996
        %v5998 = vsel %vm3897, %v3382, 0.0
        %v5999 = vrot.slane %v5998, 4
        %v6000 = vadd.f32 %v5998, %v5999
        %v6001 = vrot.slane %v6000, 2
        %v6002 = vadd.f32 %v6000, %v6001
        %v6003 = vrot.slane %v6002, 1
        %v6004 = vadd.f32 %v6002, %v6003
        %v6005 = vsel %vm2590, %v3384, 0.0
        %v6006 = vrot.slane %v6005, 4
        %v6007 = vadd.f32 %v6005, %v6006
        %v6008 = vrot.slane %v6007, 2
        %v6009 = vadd.f32 %v6007, %v6008
        %v6010 = vrot.slane %v6009, 1
        %v6011 = vadd.f32 %v6009, %v6010
        %v6012 = vsel %vm3897, %v3385, 0.0
        %v6013 = vrot.slane %v6012, 4
        %v6014 = vadd.f32 %v6012, %v6013
        %v6015 = vrot.slane %v6014, 2
        %v6016 = vadd.f32 %v6014, %v6015
        %v6017 = vrot.slane %v6016, 1
        %v6018 = vadd.f32 %v6016, %v6017
        %v6019 = vsel %vm2590, %v3387, 0.0
        %v6020 = vrot.slane %v6019, 4
        %v6021 = vadd.f32 %v6019, %v6020
        %v6022 = vrot.slane %v6021, 2
        %v6023 = vadd.f32 %v6021, %v6022
        %v6024 = vrot.slane %v6023, 1
        %v6025 = vadd.f32 %v6023, %v6024
        %v6026 = vsel %vm3897, %v3388, 0.0
        %v6027 = vrot.slane %v6026, 4
        %v6028 = vadd.f32 %v6026, %v6027
        %v6029 = vrot.slane %v6028, 2
        %v6030 = vadd.f32 %v6028, %v6029
        %v6031 = vrot.slane %v6030, 1
        %v6032 = vadd.f32 %v6030, %v6031
        %v6033 = vsel %vm2590, %v3390, 0.0
        %v6034 = vrot.slane %v6033, 4
        %v6035 = vadd.f32 %v6033, %v6034
        %v6036 = vrot.slane %v6035, 2
        %v6037 = vadd.f32 %v6035, %v6036
        %v6038 = vrot.slane %v6037, 1
        %v6039 = vadd.f32 %v6037, %v6038
        %v6040 = vsel %vm3897, %v3391, 0.0
        %v6041 = vrot.slane %v6040, 4
        %v6042 = vadd.f32 %v6040, %v6041
        %v6043 = vrot.slane %v6042, 2
        %v6044 = vadd.f32 %v6042, %v6043
        %v6045 = vrot.slane %v6044, 1
        %v6046 = vadd.f32 %v6044, %v6045
        %v6047 = vsel %vm2590, %v3393, 0.0
        %v6048 = vrot.slane %v6047, 4
        %v6049 = vadd.f32 %v6047, %v6048
        %v6050 = vrot.slane %v6049, 2
        %v6051 = vadd.f32 %v6049, %v6050
        %v6052 = vrot.slane %v6051, 1
        %v6053 = vadd.f32 %v6051, %v6052
        %v6054 = vsel %vm3897, %v3394, 0.0
        %v6055 = vrot.slane %v6054, 4
        %v6056 = vadd.f32 %v6054, %v6055
        %v6057 = vrot.slane %v6056, 2
        %v6058 = vadd.f32 %v6056, %v6057
        %v6059 = vrot.slane %v6058, 1
        %v6060 = vadd.f32 %v6058, %v6059
        %v6061 = vsel %vm2590, %v3396, 0.0
        %v6062 = vrot.slane %v6061, 4
        %v6063 = vadd.f32 %v6061, %v6062
        %v6064 = vrot.slane %v6063, 2
        %v6065 = vadd.f32 %v6063, %v6064
        %v6066 = vrot.slane %v6065, 1
        %v6067 = vadd.f32 %v6065, %v6066
        %v6068 = vsel %vm3897, %v3397, 0.0
        %v6069 = vrot.slane %v6068, 4
        %v6070 = vadd.f32 %v6068, %v6069
        %v6071 = vrot.slane %v6070, 2
        %v6072 = vadd.f32 %v6070, %v6071
        %v6073 = vrot.slane %v6072, 1
        %v6074 = vadd.f32 %v6072, %v6073
        %v6075 = vsel %vm2590, %v3399, 0.0
        %v6076 = vrot.slane %v6075, 4
        %v6077 = vadd.f32 %v6075, %v6076
        %v6078 = vrot.slane %v6077, 2
        %v6079 = vadd.f32 %v6077, %v6078
        %v6080 = vrot.slane %v6079, 1
        %v6081 = vadd.f32 %v6079, %v6080
        %v6082 = vsel %vm3897, %v3400, 0.0
        %v6083 = vrot.slane %v6082, 4
        %v6084 = vadd.f32 %v6082, %v6083
        %v6085 = vrot.slane %v6084, 2
        %v6086 = vadd.f32 %v6084, %v6085
        %v6087 = vrot.slane %v6086, 1
        %v6088 = vadd.f32 %v6086, %v6087
        %v6089 = vsel %vm2590, %v3402, 0.0
        %v6090 = vrot.slane %v6089, 4
        %v6091 = vadd.f32 %v6089, %v6090
        %v6092 = vrot.slane %v6091, 2
        %v6093 = vadd.f32 %v6091, %v6092
        %v6094 = vrot.slane %v6093, 1
        %v6095 = vadd.f32 %v6093, %v6094
        %v6096 = vsel %vm3897, %v3403, 0.0
        %v6097 = vrot.slane %v6096, 4
        %v6098 = vadd.f32 %v6096, %v6097
        %v6099 = vrot.slane %v6098, 2
        %v6100 = vadd.f32 %v6098, %v6099
        %v6101 = vrot.slane %v6100, 1
        %v6102 = vadd.f32 %v6100, %v6101
        %v6103 = vsel %vm2590, %v3405, 0.0
        %v6104 = vrot.slane %v6103, 4
        %v6105 = vadd.f32 %v6103, %v6104
        %v6106 = vrot.slane %v6105, 2
        %v6107 = vadd.f32 %v6105, %v6106
        %v6108 = vrot.slane %v6107, 1
        %v6109 = vadd.f32 %v6107, %v6108
        %v6110 = vsel %vm3897, %v3406, 0.0
        %v6111 = vrot.slane %v6110, 4
        %v6112 = vadd.f32 %v6110, %v6111
        %v6113 = vrot.slane %v6112, 2
        %v6114 = vadd.f32 %v6112, %v6113
        %v6115 = vrot.slane %v6114, 1
        %v6116 = vadd.f32 %v6114, %v6115
        %v6117 = vsel %vm2590, %v3408, 0.0
        %v6118 = vrot.slane %v6117, 4
        %v6119 = vadd.f32 %v6117, %v6118
        %v6120 = vrot.slane %v6119, 2
        %v6121 = vadd.f32 %v6119, %v6120
        %v6122 = vrot.slane %v6121, 1
        %v6123 = vadd.f32 %v6121, %v6122
        %v6124 = vsel %vm3897, %v3409, 0.0
        %v6125 = vrot.slane %v6124, 4
        %v6126 = vadd.f32 %v6124, %v6125
        %v6127 = vrot.slane %v6126, 2
        %v6128 = vadd.f32 %v6126, %v6127
        %v6129 = vrot.slane %v6128, 1
        %v6130 = vadd.f32 %v6128, %v6129
        %v6131 = vsel %vm2590, %v3411, 0.0
        %v6132 = vrot.slane %v6131, 4
        %v6133 = vadd.f32 %v6131, %v6132
        %v6134 = vrot.slane %v6133, 2
        %v6135 = vadd.f32 %v6133, %v6134
        %v6136 = vrot.slane %v6135, 1
        %v6137 = vadd.f32 %v6135, %v6136
        %v6138 = vsel %vm3897, %v3412, 0.0
        %v6139 = vrot.slane %v6138, 4
        %v6140 = vadd.f32 %v6138, %v6139
        %v6141 = vrot.slane %v6140, 2
        %v6142 = vadd.f32 %v6140, %v6141
        %v6143 = vrot.slane %v6142, 1
        %v6144 = vadd.f32 %v6142, %v6143
        %v6145 = vsel %vm2590, %v3414, 0.0
        %v6146 = vrot.slane %v6145, 4
        %v6147 = vadd.f32 %v6145, %v6146
        %v6148 = vrot.slane %v6147, 2
        %v6149 = vadd.f32 %v6147, %v6148
        %v6150 = vrot.slane %v6149, 1
        %v6151 = vadd.f32 %v6149, %v6150
        %v6152 = vsel %vm3897, %v3415, 0.0
        %v6153 = vrot.slane %v6152, 4
        %v6154 = vadd.f32 %v6152, %v6153
        %v6155 = vrot.slane %v6154, 2
        %v6156 = vadd.f32 %v6154, %v6155
        %v6157 = vrot.slane %v6156, 1
        %v6158 = vadd.f32 %v6156, %v6157
        %v6159 = vsel %vm2590, %v3417, 0.0
        %v6160 = vrot.slane %v6159, 4
        %v6161 = vadd.f32 %v6159, %v6160
        %v6162 = vrot.slane %v6161, 2
        %v6163 = vadd.f32 %v6161, %v6162
        %v6164 = vrot.slane %v6163, 1
        %v6165 = vadd.f32 %v6163, %v6164
        %v6166 = vsel %vm3897, %v3418, 0.0
        %v6167 = vrot.slane %v6166, 4
        %v6168 = vadd.f32 %v6166, %v6167
        %v6169 = vrot.slane %v6168, 2
        %v6170 = vadd.f32 %v6168, %v6169
        %v6171 = vrot.slane %v6170, 1
        %v6172 = vadd.f32 %v6170, %v6171
        %v6173 = vsel %vm2590, %v3420, 0.0
        %v6174 = vrot.slane %v6173, 4
        %v6175 = vadd.f32 %v6173, %v6174
        %v6176 = vrot.slane %v6175, 2
        %v6177 = vadd.f32 %v6175, %v6176
        %v6178 = vrot.slane %v6177, 1
        %v6179 = vadd.f32 %v6177, %v6178
        %v6180 = vsel %vm3897, %v3421, 0.0
        %v6181 = vrot.slane %v6180, 4
        %v6182 = vadd.f32 %v6180, %v6181
        %v6183 = vrot.slane %v6182, 2
        %v6184 = vadd.f32 %v6182, %v6183
        %v6185 = vrot.slane %v6184, 1
        %v6186 = vadd.f32 %v6184, %v6185
        %v6187 = vsel %vm2590, %v3423, 0.0
        %v6188 = vrot.slane %v6187, 4
        %v6189 = vadd.f32 %v6187, %v6188
        %v6190 = vrot.slane %v6189, 2
        %v6191 = vadd.f32 %v6189, %v6190
        %v6192 = vrot.slane %v6191, 1
        %v6193 = vadd.f32 %v6191, %v6192
        %v6194 = vsel %vm3897, %v3424, 0.0
        %v6195 = vrot.slane %v6194, 4
        %v6196 = vadd.f32 %v6194, %v6195
        %v6197 = vrot.slane %v6196, 2
        %v6198 = vadd.f32 %v6196, %v6197
        %v6199 = vrot.slane %v6198, 1
        %v6200 = vadd.f32 %v6198, %v6199
        %v6201 = vsel %vm2590, %v3426, 0.0
        %v6202 = vrot.slane %v6201, 4
        %v6203 = vadd.f32 %v6201, %v6202
        %v6204 = vrot.slane %v6203, 2
        %v6205 = vadd.f32 %v6203, %v6204
        %v6206 = vrot.slane %v6205, 1
        %v6207 = vadd.f32 %v6205, %v6206
        %v6208 = vsel %vm3897, %v3427, 0.0
        %v6209 = vrot.slane %v6208, 4
        %v6210 = vadd.f32 %v6208, %v6209
        %v6211 = vrot.slane %v6210, 2
        %v6212 = vadd.f32 %v6210, %v6211
        %v6213 = vrot.slane %v6212, 1
        %v6214 = vadd.f32 %v6212, %v6213
        %v6215 = vsel %vm2590, %v3429, 0.0
        %v6216 = vrot.slane %v6215, 4
        %v6217 = vadd.f32 %v6215, %v6216
        %v6218 = vrot.slane %v6217, 2
        %v6219 = vadd.f32 %v6217, %v6218
        %v6220 = vrot.slane %v6219, 1
        %v6221 = vadd.f32 %v6219, %v6220
        %v6222 = vsel %vm3897, %v3430, 0.0
        %v6223 = vrot.slane %v6222, 4
        %v6224 = vadd.f32 %v6222, %v6223
        %v6225 = vrot.slane %v6224, 2
        %v6226 = vadd.f32 %v6224, %v6225
        %v6227 = vrot.slane %v6226, 1
        %v6228 = vadd.f32 %v6226, %v6227
        %v6229 = vsel %vm2590, %v3432, 0.0
        %v6230 = vrot.slane %v6229, 4
        %v6231 = vadd.f32 %v6229, %v6230
        %v6232 = vrot.slane %v6231, 2
        %v6233 = vadd.f32 %v6231, %v6232
        %v6234 = vrot.slane %v6233, 1
        %v6235 = vadd.f32 %v6233, %v6234
        %v6236 = vsel %vm3897, %v3433, 0.0
        %v6237 = vrot.slane %v6236, 4
        %v6238 = vadd.f32 %v6236, %v6237
        %v6239 = vrot.slane %v6238, 2
        %v6240 = vadd.f32 %v6238, %v6239
        %v6241 = vrot.slane %v6240, 1
        %v6242 = vadd.f32 %v6240, %v6241
        %v6243 = vsel %vm2590, %v3435, 0.0
        %v6244 = vrot.slane %v6243, 4
        %v6245 = vadd.f32 %v6243, %v6244
        %v6246 = vrot.slane %v6245, 2
        %v6247 = vadd.f32 %v6245, %v6246
        %v6248 = vrot.slane %v6247, 1
        %v6249 = vadd.f32 %v6247, %v6248
        %v6250 = vsel %vm3897, %v3436, 0.0
        %v6251 = vrot.slane %v6250, 4
        %v6252 = vadd.f32 %v6250, %v6251
        %v6253 = vrot.slane %v6252, 2
        %v6254 = vadd.f32 %v6252, %v6253
        %v6255 = vrot.slane %v6254, 1
        %v6256 = vadd.f32 %v6254, %v6255
        %v6257 = vsel %vm2590, %v3438, 0.0
        %v6258 = vrot.slane %v6257, 4
        %v6259 = vadd.f32 %v6257, %v6258
        %v6260 = vrot.slane %v6259, 2
        %v6261 = vadd.f32 %v6259, %v6260
        %v6262 = vrot.slane %v6261, 1
        %v6263 = vadd.f32 %v6261, %v6262
        %v6264 = vsel %vm3897, %v3439, 0.0
        %v6265 = vrot.slane %v6264, 4
        %v6266 = vadd.f32 %v6264, %v6265
        %v6267 = vrot.slane %v6266, 2
        %v6268 = vadd.f32 %v6266, %v6267
        %v6269 = vrot.slane %v6268, 1
        %v6270 = vadd.f32 %v6268, %v6269
        %v6271 = vsel %vm2590, %v3441, 0.0
        %v6272 = vrot.slane %v6271, 4
        %v6273 = vadd.f32 %v6271, %v6272
        %v6274 = vrot.slane %v6273, 2
        %v6275 = vadd.f32 %v6273, %v6274
        %v6276 = vrot.slane %v6275, 1
        %v6277 = vadd.f32 %v6275, %v6276
        %v6278 = vsel %vm3897, %v3442, 0.0
        %v6279 = vrot.slane %v6278, 4
        %v6280 = vadd.f32 %v6278, %v6279
        %v6281 = vrot.slane %v6280, 2
        %v6282 = vadd.f32 %v6280, %v6281
        %v6283 = vrot.slane %v6282, 1
        %v6284 = vadd.f32 %v6282, %v6283
        %v6285 = vsel %vm2590, %v3444, 0.0
        %v6286 = vrot.slane %v6285, 4
        %v6287 = vadd.f32 %v6285, %v6286
        %v6288 = vrot.slane %v6287, 2
        %v6289 = vadd.f32 %v6287, %v6288
        %v6290 = vrot.slane %v6289, 1
        %v6291 = vadd.f32 %v6289, %v6290
        %v6292 = vsel %vm3897, %v3445, 0.0
        %v6293 = vrot.slane %v6292, 4
        %v6294 = vadd.f32 %v6292, %v6293
        %v6295 = vrot.slane %v6294, 2
        %v6296 = vadd.f32 %v6294, %v6295
        %v6297 = vrot.slane %v6296, 1
        %v6298 = vadd.f32 %v6296, %v6297
        %v6299 = vsel %vm2590, %v3447, 0.0
        %v6300 = vrot.slane %v6299, 4
        %v6301 = vadd.f32 %v6299, %v6300
        %v6302 = vrot.slane %v6301, 2
        %v6303 = vadd.f32 %v6301, %v6302
        %v6304 = vrot.slane %v6303, 1
        %v6305 = vadd.f32 %v6303, %v6304
        %v6306 = vsel %vm3897, %v3448, 0.0
        %v6307 = vrot.slane %v6306, 4
        %v6308 = vadd.f32 %v6306, %v6307
        %v6309 = vrot.slane %v6308, 2
        %v6310 = vadd.f32 %v6308, %v6309
        %v6311 = vrot.slane %v6310, 1
        %v6312 = vadd.f32 %v6310, %v6311
        %v6313 = vsel %vm2590, %v3450, 0.0
        %v6314 = vrot.slane %v6313, 4
        %v6315 = vadd.f32 %v6313, %v6314
        %v6316 = vrot.slane %v6315, 2
        %v6317 = vadd.f32 %v6315, %v6316
        %v6318 = vrot.slane %v6317, 1
        %v6319 = vadd.f32 %v6317, %v6318
        %v6320 = vsel %vm3897, %v3451, 0.0
        %v6321 = vrot.slane %v6320, 4
        %v6322 = vadd.f32 %v6320, %v6321
        %v6323 = vrot.slane %v6322, 2
        %v6324 = vadd.f32 %v6322, %v6323
        %v6325 = vrot.slane %v6324, 1
        %v6326 = vadd.f32 %v6324, %v6325
        %v6327 = vsel %vm2590, %v3453, 0.0
        %v6328 = vrot.slane %v6327, 4
        %v6329 = vadd.f32 %v6327, %v6328
        %v6330 = vrot.slane %v6329, 2
        %v6331 = vadd.f32 %v6329, %v6330
        %v6332 = vrot.slane %v6331, 1
        %v6333 = vadd.f32 %v6331, %v6332
        %v6334 = vsel %vm3897, %v3454, 0.0
        %v6335 = vrot.slane %v6334, 4
        %v6336 = vadd.f32 %v6334, %v6335
        %v6337 = vrot.slane %v6336, 2
        %v6338 = vadd.f32 %v6336, %v6337
        %v6339 = vrot.slane %v6338, 1
        %v6340 = vadd.f32 %v6338, %v6339
        %v6341 = vsel %vm2590, %v3456, 0.0
        %v6342 = vrot.slane %v6341, 4
        %v6343 = vadd.f32 %v6341, %v6342
        %v6344 = vrot.slane %v6343, 2
        %v6345 = vadd.f32 %v6343, %v6344
        %v6346 = vrot.slane %v6345, 1
        %v6347 = vadd.f32 %v6345, %v6346
        %v6348 = vsel %vm3897, %v3457, 0.0
        %v6349 = vrot.slane %v6348, 4
        %v6350 = vadd.f32 %v6348, %v6349
        %v6351 = vrot.slane %v6350, 2
        %v6352 = vadd.f32 %v6350, %v6351
        %v6353 = vrot.slane %v6352, 1
        %v6354 = vadd.f32 %v6352, %v6353
        %v6355 = vsel %vm2590, %v3459, 0.0
        %v6356 = vrot.slane %v6355, 4
        %v6357 = vadd.f32 %v6355, %v6356
        %v6358 = vrot.slane %v6357, 2
        %v6359 = vadd.f32 %v6357, %v6358
        %v6360 = vrot.slane %v6359, 1
        %v6361 = vadd.f32 %v6359, %v6360
        %v6362 = vsel %vm3897, %v3460, 0.0
        %v6363 = vrot.slane %v6362, 4
        %v6364 = vadd.f32 %v6362, %v6363
        %v6365 = vrot.slane %v6364, 2
        %v6366 = vadd.f32 %v6364, %v6365
        %v6367 = vrot.slane %v6366, 1
        %v6368 = vadd.f32 %v6366, %v6367
        %v6369 = vsel %vm2590, %v3462, 0.0
        %v6370 = vrot.slane %v6369, 4
        %v6371 = vadd.f32 %v6369, %v6370
        %v6372 = vrot.slane %v6371, 2
        %v6373 = vadd.f32 %v6371, %v6372
        %v6374 = vrot.slane %v6373, 1
        %v6375 = vadd.f32 %v6373, %v6374
        %v6376 = vsel %vm3897, %v3463, 0.0
        %v6377 = vrot.slane %v6376, 4
        %v6378 = vadd.f32 %v6376, %v6377
        %v6379 = vrot.slane %v6378, 2
        %v6380 = vadd.f32 %v6378, %v6379
        %v6381 = vrot.slane %v6380, 1
        %v6382 = vadd.f32 %v6380, %v6381
        %v6383 = vsel %vm2590, %v3465, 0.0
        %v6384 = vrot.slane %v6383, 4
        %v6385 = vadd.f32 %v6383, %v6384
        %v6386 = vrot.slane %v6385, 2
        %v6387 = vadd.f32 %v6385, %v6386
        %v6388 = vrot.slane %v6387, 1
        %v6389 = vadd.f32 %v6387, %v6388
        %v6390 = vsel %vm3897, %v3466, 0.0
        %v6391 = vrot.slane %v6390, 4
        %v6392 = vadd.f32 %v6390, %v6391
        %v6393 = vrot.slane %v6392, 2
        %v6394 = vadd.f32 %v6392, %v6393
        %v6395 = vrot.slane %v6394, 1
        %v6396 = vadd.f32 %v6394, %v6395
        %v6397 = vsel %vm2590, %v3468, 0.0
        %v6398 = vrot.slane %v6397, 4
        %v6399 = vadd.f32 %v6397, %v6398
        %v6400 = vrot.slane %v6399, 2
        %v6401 = vadd.f32 %v6399, %v6400
        %v6402 = vrot.slane %v6401, 1
        %v6403 = vadd.f32 %v6401, %v6402
        %v6404 = vsel %vm3897, %v3469, 0.0
        %v6405 = vrot.slane %v6404, 4
        %v6406 = vadd.f32 %v6404, %v6405
        %v6407 = vrot.slane %v6406, 2
        %v6408 = vadd.f32 %v6406, %v6407
        %v6409 = vrot.slane %v6408, 1
        %v6410 = vadd.f32 %v6408, %v6409
        %v6411 = vsel %vm2590, %v3471, 0.0
        %v6412 = vrot.slane %v6411, 4
        %v6413 = vadd.f32 %v6411, %v6412
        %v6414 = vrot.slane %v6413, 2
        %v6415 = vadd.f32 %v6413, %v6414
        %v6416 = vrot.slane %v6415, 1
        %v6417 = vadd.f32 %v6415, %v6416
        %v6418 = vsel %vm3897, %v3472, 0.0
        %v6419 = vrot.slane %v6418, 4
        %v6420 = vadd.f32 %v6418, %v6419
        %v6421 = vrot.slane %v6420, 2
        %v6422 = vadd.f32 %v6420, %v6421
        %v6423 = vrot.slane %v6422, 1
        %v6424 = vadd.f32 %v6422, %v6423
        %v6425 = vsel %vm2590, %v3474, 0.0
        %v6426 = vrot.slane %v6425, 4
        %v6427 = vadd.f32 %v6425, %v6426
        %v6428 = vrot.slane %v6427, 2
        %v6429 = vadd.f32 %v6427, %v6428
        %v6430 = vrot.slane %v6429, 1
        %v6431 = vadd.f32 %v6429, %v6430
        %v6432 = vsel %vm3897, %v3475, 0.0
        %v6433 = vrot.slane %v6432, 4
        %v6434 = vadd.f32 %v6432, %v6433
        %v6435 = vrot.slane %v6434, 2
        %v6436 = vadd.f32 %v6434, %v6435
        %v6437 = vrot.slane %v6436, 1
        %v6438 = vadd.f32 %v6436, %v6437
        %v6439 = vsel %vm2590, %v3477, 0.0
        %v6440 = vrot.slane %v6439, 4
        %v6441 = vadd.f32 %v6439, %v6440
        %v6442 = vrot.slane %v6441, 2
        %v6443 = vadd.f32 %v6441, %v6442
        %v6444 = vrot.slane %v6443, 1
        %v6445 = vadd.f32 %v6443, %v6444
        %v6446 = vsel %vm3897, %v3478, 0.0
        %v6447 = vrot.slane %v6446, 4
        %v6448 = vadd.f32 %v6446, %v6447
        %v6449 = vrot.slane %v6448, 2
        %v6450 = vadd.f32 %v6448, %v6449
        %v6451 = vrot.slane %v6450, 1
        %v6452 = vadd.f32 %v6450, %v6451
        %v6453 = vsel %vm2590, %v3480, 0.0
        %v6454 = vrot.slane %v6453, 4
        %v6455 = vadd.f32 %v6453, %v6454
        %v6456 = vrot.slane %v6455, 2
        %v6457 = vadd.f32 %v6455, %v6456
        %v6458 = vrot.slane %v6457, 1
        %v6459 = vadd.f32 %v6457, %v6458
        %v6460 = vsel %vm3897, %v3481, 0.0
        %v6461 = vrot.slane %v6460, 4
        %v6462 = vadd.f32 %v6460, %v6461
        %v6463 = vrot.slane %v6462, 2
        %v6464 = vadd.f32 %v6462, %v6463
        %v6465 = vrot.slane %v6464, 1
        %v6466 = vadd.f32 %v6464, %v6465
        %v6467 = vsel %vm2590, %v3483, 0.0
        %v6468 = vrot.slane %v6467, 4
        %v6469 = vadd.f32 %v6467, %v6468
        %v6470 = vrot.slane %v6469, 2
        %v6471 = vadd.f32 %v6469, %v6470
        %v6472 = vrot.slane %v6471, 1
        %v6473 = vadd.f32 %v6471, %v6472
        %v6474 = vsel %vm3897, %v3484, 0.0
        %v6475 = vrot.slane %v6474, 4
        %v6476 = vadd.f32 %v6474, %v6475
        %v6477 = vrot.slane %v6476, 2
        %v6478 = vadd.f32 %v6476, %v6477
        %v6479 = vrot.slane %v6478, 1
        %v6480 = vadd.f32 %v6478, %v6479
        %v6481 = vsel %vm2590, %v3486, 0.0
        %v6482 = vrot.slane %v6481, 4
        %v6483 = vadd.f32 %v6481, %v6482
        %v6484 = vrot.slane %v6483, 2
        %v6485 = vadd.f32 %v6483, %v6484
        %v6486 = vrot.slane %v6485, 1
        %v6487 = vadd.f32 %v6485, %v6486
        %v6488 = vsel %vm3897, %v3487, 0.0
        %v6489 = vrot.slane %v6488, 4
        %v6490 = vadd.f32 %v6488, %v6489
        %v6491 = vrot.slane %v6490, 2
        %v6492 = vadd.f32 %v6490, %v6491
        %v6493 = vrot.slane %v6492, 1
        %v6494 = vadd.f32 %v6492, %v6493
        %v6495 = vsel %vm2590, %v3489, 0.0
        %v6496 = vrot.slane %v6495, 4
        %v6497 = vadd.f32 %v6495, %v6496
        %v6498 = vrot.slane %v6497, 2
        %v6499 = vadd.f32 %v6497, %v6498
        %v6500 = vrot.slane %v6499, 1
        %v6501 = vadd.f32 %v6499, %v6500
        %v6502 = vsel %vm3897, %v3490, 0.0
        %v6503 = vrot.slane %v6502, 4
        %v6504 = vadd.f32 %v6502, %v6503
        %v6505 = vrot.slane %v6504, 2
        %v6506 = vadd.f32 %v6504, %v6505
        %v6507 = vrot.slane %v6506, 1
        %v6508 = vadd.f32 %v6506, %v6507
        %v6509 = vsel %vm2590, %v3492, 0.0
        %v6510 = vrot.slane %v6509, 4
        %v6511 = vadd.f32 %v6509, %v6510
        %v6512 = vrot.slane %v6511, 2
        %v6513 = vadd.f32 %v6511, %v6512
        %v6514 = vrot.slane %v6513, 1
        %v6515 = vadd.f32 %v6513, %v6514
        %v6516 = vsel %vm3897, %v3493, 0.0
        %v6517 = vrot.slane %v6516, 4
        %v6518 = vadd.f32 %v6516, %v6517
        %v6519 = vrot.slane %v6518, 2
        %v6520 = vadd.f32 %v6518, %v6519
        %v6521 = vrot.slane %v6520, 1
        %v6522 = vadd.f32 %v6520, %v6521
        %v6523 = vsel %vm2590, %v3495, 0.0
        %v6524 = vrot.slane %v6523, 4
        %v6525 = vadd.f32 %v6523, %v6524
        %v6526 = vrot.slane %v6525, 2
        %v6527 = vadd.f32 %v6525, %v6526
        %v6528 = vrot.slane %v6527, 1
        %v6529 = vadd.f32 %v6527, %v6528
        %v6530 = vsel %vm3897, %v3496, 0.0
        %v6531 = vrot.slane %v6530, 4
        %v6532 = vadd.f32 %v6530, %v6531
        %v6533 = vrot.slane %v6532, 2
        %v6534 = vadd.f32 %v6532, %v6533
        %v6535 = vrot.slane %v6534, 1
        %v6536 = vadd.f32 %v6534, %v6535
        %v6537 = vsel %vm2590, %v3498, 0.0
        %v6538 = vrot.slane %v6537, 4
        %v6539 = vadd.f32 %v6537, %v6538
        %v6540 = vrot.slane %v6539, 2
        %v6541 = vadd.f32 %v6539, %v6540
        %v6542 = vrot.slane %v6541, 1
        %v6543 = vadd.f32 %v6541, %v6542
        %v6544 = vsel %vm3897, %v3499, 0.0
        %v6545 = vrot.slane %v6544, 4
        %v6546 = vadd.f32 %v6544, %v6545
        %v6547 = vrot.slane %v6546, 2
        %v6548 = vadd.f32 %v6546, %v6547
        %v6549 = vrot.slane %v6548, 1
        %v6550 = vadd.f32 %v6548, %v6549
        %v6551 = vsel %vm2590, %v3501, 0.0
        %v6552 = vrot.slane %v6551, 4
        %v6553 = vadd.f32 %v6551, %v6552
        %v6554 = vrot.slane %v6553, 2
        %v6555 = vadd.f32 %v6553, %v6554
        %v6556 = vrot.slane %v6555, 1
        %v6557 = vadd.f32 %v6555, %v6556
        %v6558 = vsel %vm3897, %v3502, 0.0
        %v6559 = vrot.slane %v6558, 4
        %v6560 = vadd.f32 %v6558, %v6559
        %v6561 = vrot.slane %v6560, 2
        %v6562 = vadd.f32 %v6560, %v6561
        %v6563 = vrot.slane %v6562, 1
        %v6564 = vadd.f32 %v6562, %v6563
        %v6565 = vsel %vm2590, %v3504, 0.0
        %v6566 = vrot.slane %v6565, 4
        %v6567 = vadd.f32 %v6565, %v6566
        %v6568 = vrot.slane %v6567, 2
        %v6569 = vadd.f32 %v6567, %v6568
        %v6570 = vrot.slane %v6569, 1
        %v6571 = vadd.f32 %v6569, %v6570
        %v6572 = vsel %vm3897, %v3505, 0.0
        %v6573 = vrot.slane %v6572, 4
        %v6574 = vadd.f32 %v6572, %v6573
        %v6575 = vrot.slane %v6574, 2
        %v6576 = vadd.f32 %v6574, %v6575
        %v6577 = vrot.slane %v6576, 1
        %v6578 = vadd.f32 %v6576, %v6577
        %vm6835 = vcmask 1041409
        %v6836 = vsel %vm6835, %v3911, %v3896
        %vm6837 = vcmask 1042434
        %v6838 = vsel %vm6837, %v3925, %v6836
        %vm6839 = vcmask 1043459
        %v6840 = vsel %vm6839, %v3939, %v6838
        %vm6841 = vcmask 1044484
        %v6842 = vsel %vm6841, %v3953, %v6840
        %vm6843 = vcmask 1045509
        %v6844 = vsel %vm6843, %v3967, %v6842
        %vm6845 = vcmask 1046534
        %v6846 = vsel %vm6845, %v3981, %v6844
        %vm6847 = vcmask 1047559
        %v6848 = vsel %vm6847, %v3995, %v6846
        %v6849 = vsel %vm6835, %v3918, %v3904
        %v6850 = vsel %vm6837, %v3932, %v6849
        %v6851 = vsel %vm6839, %v3946, %v6850
        %v6852 = vsel %vm6841, %v3960, %v6851
        %v6853 = vsel %vm6843, %v3974, %v6852
        %v6854 = vsel %vm6845, %v3988, %v6853
        %v6855 = vsel %vm6847, %v4002, %v6854
        %v6856 = vsel %vm6835, %v4079, %v4065
        %v6857 = vsel %vm6837, %v4093, %v6856
        %v6858 = vsel %vm6839, %v4107, %v6857
        %v6859 = vsel %vm6841, %v4121, %v6858
        %v6860 = vsel %vm6843, %v4135, %v6859
        %v6861 = vsel %vm6845, %v4149, %v6860
        %v6862 = vsel %vm6847, %v4163, %v6861
        %v6863 = vsel %vm6835, %v4086, %v4072
        %v6864 = vsel %vm6837, %v4100, %v6863
        %v6865 = vsel %vm6839, %v4114, %v6864
        %v6866 = vsel %vm6841, %v4128, %v6865
        %v6867 = vsel %vm6843, %v4142, %v6866
        %v6868 = vsel %vm6845, %v4156, %v6867
        %v6869 = vsel %vm6847, %v4170, %v6868
        %v6870 = vsel %vm6835, %v4247, %v4233
        %v6871 = vsel %vm6837, %v4261, %v6870
        %v6872 = vsel %vm6839, %v4275, %v6871
        %v6873 = vsel %vm6841, %v4289, %v6872
        %v6874 = vsel %vm6843, %v4303, %v6873
        %v6875 = vsel %vm6845, %v4317, %v6874
        %v6876 = vsel %vm6847, %v4331, %v6875
        %v6877 = vsel %vm6835, %v4254, %v4240
        %v6878 = vsel %vm6837, %v4268, %v6877
        %v6879 = vsel %vm6839, %v4282, %v6878
        %v6880 = vsel %vm6841, %v4296, %v6879
        %v6881 = vsel %vm6843, %v4310, %v6880
        %v6882 = vsel %vm6845, %v4324, %v6881
        %v6883 = vsel %vm6847, %v4338, %v6882
        %v6884 = vsel %vm6835, %v4415, %v4401
        %v6885 = vsel %vm6837, %v4429, %v6884
        %v6886 = vsel %vm6839, %v4443, %v6885
        %v6887 = vsel %vm6841, %v4457, %v6886
        %v6888 = vsel %vm6843, %v4471, %v6887
        %v6889 = vsel %vm6845, %v4485, %v6888
        %v6890 = vsel %vm6847, %v4499, %v6889
        %v6891 = vsel %vm6835, %v4422, %v4408
        %v6892 = vsel %vm6837, %v4436, %v6891
        %v6893 = vsel %vm6839, %v4450, %v6892
        %v6894 = vsel %vm6841, %v4464, %v6893
        %v6895 = vsel %vm6843, %v4478, %v6894
        %v6896 = vsel %vm6845, %v4492, %v6895
        %v6897 = vsel %vm6847, %v4506, %v6896
        %v6898 = vsel %vm6835, %v4583, %v4569
        %v6899 = vsel %vm6837, %v4597, %v6898
        %v6900 = vsel %vm6839, %v4611, %v6899
        %v6901 = vsel %vm6841, %v4625, %v6900
        %v6902 = vsel %vm6843, %v4639, %v6901
        %v6903 = vsel %vm6845, %v4653, %v6902
        %v6904 = vsel %vm6847, %v4667, %v6903
        %v6905 = vsel %vm6835, %v4590, %v4576
        %v6906 = vsel %vm6837, %v4604, %v6905
        %v6907 = vsel %vm6839, %v4618, %v6906
        %v6908 = vsel %vm6841, %v4632, %v6907
        %v6909 = vsel %vm6843, %v4646, %v6908
        %v6910 = vsel %vm6845, %v4660, %v6909
        %v6911 = vsel %vm6847, %v4674, %v6910
        %v6912 = vsel %vm6835, %v4751, %v4737
        %v6913 = vsel %vm6837, %v4765, %v6912
        %v6914 = vsel %vm6839, %v4779, %v6913
        %v6915 = vsel %vm6841, %v4793, %v6914
        %v6916 = vsel %vm6843, %v4807, %v6915
        %v6917 = vsel %vm6845, %v4821, %v6916
        %v6918 = vsel %vm6847, %v4835, %v6917
        %v6919 = vsel %vm6835, %v4758, %v4744
        %v6920 = vsel %vm6837, %v4772, %v6919
        %v6921 = vsel %vm6839, %v4786, %v6920
        %v6922 = vsel %vm6841, %v4800, %v6921
        %v6923 = vsel %vm6843, %v4814, %v6922
        %v6924 = vsel %vm6845, %v4828, %v6923
        %v6925 = vsel %vm6847, %v4842, %v6924
        %v6926 = vsel %vm6835, %v4919, %v4905
        %v6927 = vsel %vm6837, %v4933, %v6926
        %v6928 = vsel %vm6839, %v4947, %v6927
        %v6929 = vsel %vm6841, %v4961, %v6928
        %v6930 = vsel %vm6843, %v4975, %v6929
        %v6931 = vsel %vm6845, %v4989, %v6930
        %v6932 = vsel %vm6847, %v5003, %v6931
        %v6933 = vsel %vm6835, %v4926, %v4912
        %v6934 = vsel %vm6837, %v4940, %v6933
        %v6935 = vsel %vm6839, %v4954, %v6934
        %v6936 = vsel %vm6841, %v4968, %v6935
        %v6937 = vsel %vm6843, %v4982, %v6936
        %v6938 = vsel %vm6845, %v4996, %v6937
        %v6939 = vsel %vm6847, %v5010, %v6938
        %v6940 = vsel %vm6835, %v5087, %v5073
        %v6941 = vsel %vm6837, %v5101, %v6940
        %v6942 = vsel %vm6839, %v5115, %v6941
        %v6943 = vsel %vm6841, %v5129, %v6942
        %v6944 = vsel %vm6843, %v5143, %v6943
        %v6945 = vsel %vm6845, %v5157, %v6944
        %v6946 = vsel %vm6847, %v5171, %v6945
        %v6947 = vsel %vm6835, %v5094, %v5080
        %v6948 = vsel %vm6837, %v5108, %v6947
        %v6949 = vsel %vm6839, %v5122, %v6948
        %v6950 = vsel %vm6841, %v5136, %v6949
        %v6951 = vsel %vm6843, %v5150, %v6950
        %v6952 = vsel %vm6845, %v5164, %v6951
        %v6953 = vsel %vm6847, %v5178, %v6952
        %v6954 = vsel %vm6835, %v5255, %v5241
        %v6955 = vsel %vm6837, %v5269, %v6954
        %v6956 = vsel %vm6839, %v5283, %v6955
        %v6957 = vsel %vm6841, %v5297, %v6956
        %v6958 = vsel %vm6843, %v5311, %v6957
        %v6959 = vsel %vm6845, %v5325, %v6958
        %v6960 = vsel %vm6847, %v5339, %v6959
        %v6961 = vsel %vm6835, %v5262, %v5248
        %v6962 = vsel %vm6837, %v5276, %v6961
        %v6963 = vsel %vm6839, %v5290, %v6962
        %v6964 = vsel %vm6841, %v5304, %v6963
        %v6965 = vsel %vm6843, %v5318, %v6964
        %v6966 = vsel %vm6845, %v5332, %v6965
        %v6967 = vsel %vm6847, %v5346, %v6966
        %v6968 = vsel %vm6835, %v5423, %v5409
        %v6969 = vsel %vm6837, %v5437, %v6968
        %v6970 = vsel %vm6839, %v5451, %v6969
        %v6971 = vsel %vm6841, %v5465, %v6970
        %v6972 = vsel %vm6843, %v5479, %v6971
        %v6973 = vsel %vm6845, %v5493, %v6972
        %v6974 = vsel %vm6847, %v5507, %v6973
        %v6975 = vsel %vm6835, %v5430, %v5416
        %v6976 = vsel %vm6837, %v5444, %v6975
        %v6977 = vsel %vm6839, %v5458, %v6976
        %v6978 = vsel %vm6841, %v5472, %v6977
        %v6979 = vsel %vm6843, %v5486, %v6978
        %v6980 = vsel %vm6845, %v5500, %v6979
        %v6981 = vsel %vm6847, %v5514, %v6980
        %v6982 = vsel %vm6835, %v5591, %v5577
        %v6983 = vsel %vm6837, %v5605, %v6982
        %v6984 = vsel %vm6839, %v5619, %v6983
        %v6985 = vsel %vm6841, %v5633, %v6984
        %v6986 = vsel %vm6843, %v5647, %v6985
        %v6987 = vsel %vm6845, %v5661, %v6986
        %v6988 = vsel %vm6847, %v5675, %v6987
        %v6989 = vsel %vm6835, %v5598, %v5584
        %v6990 = vsel %vm6837, %v5612, %v6989
        %v6991 = vsel %vm6839, %v5626, %v6990
        %v6992 = vsel %vm6841, %v5640, %v6991
        %v6993 = vsel %vm6843, %v5654, %v6992
        %v6994 = vsel %vm6845, %v5668, %v6993
        %v6995 = vsel %vm6847, %v5682, %v6994
        %v6996 = vsel %vm6835, %v5759, %v5745
        %v6997 = vsel %vm6837, %v5773, %v6996
        %v6998 = vsel %vm6839, %v5787, %v6997
        %v6999 = vsel %vm6841, %v5801, %v6998
        %v7000 = vsel %vm6843, %v5815, %v6999
        %v7001 = vsel %vm6845, %v5829, %v7000
        %v7002 = vsel %vm6847, %v5843, %v7001
        %v7003 = vsel %vm6835, %v5766, %v5752
        %v7004 = vsel %vm6837, %v5780, %v7003
        %v7005 = vsel %vm6839, %v5794, %v7004
        %v7006 = vsel %vm6841, %v5808, %v7005
        %v7007 = vsel %vm6843, %v5822, %v7006
        %v7008 = vsel %vm6845, %v5836, %v7007
        %v7009 = vsel %vm6847, %v5850, %v7008
        %v7010 = vsel %vm6835, %v5927, %v5913
        %v7011 = vsel %vm6837, %v5941, %v7010
        %v7012 = vsel %vm6839, %v5955, %v7011
        %v7013 = vsel %vm6841, %v5969, %v7012
        %v7014 = vsel %vm6843, %v5983, %v7013
        %v7015 = vsel %vm6845, %v5997, %v7014
        %v7016 = vsel %vm6847, %v6011, %v7015
        %v7017 = vsel %vm6835, %v5934, %v5920
        %v7018 = vsel %vm6837, %v5948, %v7017
        %v7019 = vsel %vm6839, %v5962, %v7018
        %v7020 = vsel %vm6841, %v5976, %v7019
        %v7021 = vsel %vm6843, %v5990, %v7020
        %v7022 = vsel %vm6845, %v6004, %v7021
        %v7023 = vsel %vm6847, %v6018, %v7022
        %v7024 = vsel %vm6835, %v6095, %v6081
        %v7025 = vsel %vm6837, %v6109, %v7024
        %v7026 = vsel %vm6839, %v6123, %v7025
        %v7027 = vsel %vm6841, %v6137, %v7026
        %v7028 = vsel %vm6843, %v6151, %v7027
        %v7029 = vsel %vm6845, %v6165, %v7028
        %v7030 = vsel %vm6847, %v6179, %v7029
        %v7031 = vsel %vm6835, %v6102, %v6088
        %v7032 = vsel %vm6837, %v6116, %v7031
        %v7033 = vsel %vm6839, %v6130, %v7032
        %v7034 = vsel %vm6841, %v6144, %v7033
        %v7035 = vsel %vm6843, %v6158, %v7034
        %v7036 = vsel %vm6845, %v6172, %v7035
        %v7037 = vsel %vm6847, %v6186, %v7036
        %v7038 = vsel %vm6835, %v6263, %v6249
        %v7039 = vsel %vm6837, %v6277, %v7038
        %v7040 = vsel %vm6839, %v6291, %v7039
        %v7041 = vsel %vm6841, %v6305, %v7040
        %v7042 = vsel %vm6843, %v6319, %v7041
        %v7043 = vsel %vm6845, %v6333, %v7042
        %v7044 = vsel %vm6847, %v6347, %v7043
        %v7045 = vsel %vm6835, %v6270, %v6256
        %v7046 = vsel %vm6837, %v6284, %v7045
        %v7047 = vsel %vm6839, %v6298, %v7046
        %v7048 = vsel %vm6841, %v6312, %v7047
        %v7049 = vsel %vm6843, %v6326, %v7048
        %v7050 = vsel %vm6845, %v6340, %v7049
        %v7051 = vsel %vm6847, %v6354, %v7050
        %v7052 = vsel %vm6835, %v6431, %v6417
        %v7053 = vsel %vm6837, %v6445, %v7052
        %v7054 = vsel %vm6839, %v6459, %v7053
        %v7055 = vsel %vm6841, %v6473, %v7054
        %v7056 = vsel %vm6843, %v6487, %v7055
        %v7057 = vsel %vm6845, %v6501, %v7056
        %v7058 = vsel %vm6847, %v6515, %v7057
        %v7059 = vsel %vm6835, %v6438, %v6424
        %v7060 = vsel %vm6837, %v6452, %v7059
        %v7061 = vsel %vm6839, %v6466, %v7060
        %v7062 = vsel %vm6841, %v6480, %v7061
        %v7063 = vsel %vm6843, %v6494, %v7062
        %v7064 = vsel %vm6845, %v6508, %v7063
        %v7065 = vsel %vm6847, %v6522, %v7064
        %v7130 = vsel %vm6835, %v3925, %v3911
        %v7131 = vsel %vm6837, %v3939, %v7130
        %v7132 = vsel %vm6839, %v3953, %v7131
        %v7133 = vsel %vm6841, %v3967, %v7132
        %v7134 = vsel %vm6843, %v3981, %v7133
        %v7135 = vsel %vm6845, %v3995, %v7134
        %v7136 = vsel %vm6847, %v4009, %v7135
        %v7137 = vsel %vm6835, %v3932, %v3918
        %v7138 = vsel %vm6837, %v3946, %v7137
        %v7139 = vsel %vm6839, %v3960, %v7138
        %v7140 = vsel %vm6841, %v3974, %v7139
        %v7141 = vsel %vm6843, %v3988, %v7140
        %v7142 = vsel %vm6845, %v4002, %v7141
        %v7143 = vsel %vm6847, %v4016, %v7142
        %v7144 = vsel %vm6835, %v4093, %v4079
        %v7145 = vsel %vm6837, %v4107, %v7144
        %v7146 = vsel %vm6839, %v4121, %v7145
        %v7147 = vsel %vm6841, %v4135, %v7146
        %v7148 = vsel %vm6843, %v4149, %v7147
        %v7149 = vsel %vm6845, %v4163, %v7148
        %v7150 = vsel %vm6847, %v4177, %v7149
        %v7151 = vsel %vm6835, %v4100, %v4086
        %v7152 = vsel %vm6837, %v4114, %v7151
        %v7153 = vsel %vm6839, %v4128, %v7152
        %v7154 = vsel %vm6841, %v4142, %v7153
        %v7155 = vsel %vm6843, %v4156, %v7154
        %v7156 = vsel %vm6845, %v4170, %v7155
        %v7157 = vsel %vm6847, %v4184, %v7156
        %v7158 = vsel %vm6835, %v4261, %v4247
        %v7159 = vsel %vm6837, %v4275, %v7158
        %v7160 = vsel %vm6839, %v4289, %v7159
        %v7161 = vsel %vm6841, %v4303, %v7160
        %v7162 = vsel %vm6843, %v4317, %v7161
        %v7163 = vsel %vm6845, %v4331, %v7162
        %v7164 = vsel %vm6847, %v4345, %v7163
        %v7165 = vsel %vm6835, %v4268, %v4254
        %v7166 = vsel %vm6837, %v4282, %v7165
        %v7167 = vsel %vm6839, %v4296, %v7166
        %v7168 = vsel %vm6841, %v4310, %v7167
        %v7169 = vsel %vm6843, %v4324, %v7168
        %v7170 = vsel %vm6845, %v4338, %v7169
        %v7171 = vsel %vm6847, %v4352, %v7170
        %v7172 = vsel %vm6835, %v4429, %v4415
        %v7173 = vsel %vm6837, %v4443, %v7172
        %v7174 = vsel %vm6839, %v4457, %v7173
        %v7175 = vsel %vm6841, %v4471, %v7174
        %v7176 = vsel %vm6843, %v4485, %v7175
        %v7177 = vsel %vm6845, %v4499, %v7176
        %v7178 = vsel %vm6847, %v4513, %v7177
        %v7179 = vsel %vm6835, %v4436, %v4422
        %v7180 = vsel %vm6837, %v4450, %v7179
        %v7181 = vsel %vm6839, %v4464, %v7180
        %v7182 = vsel %vm6841, %v4478, %v7181
        %v7183 = vsel %vm6843, %v4492, %v7182
        %v7184 = vsel %vm6845, %v4506, %v7183
        %v7185 = vsel %vm6847, %v4520, %v7184
        %v7186 = vsel %vm6835, %v4597, %v4583
        %v7187 = vsel %vm6837, %v4611, %v7186
        %v7188 = vsel %vm6839, %v4625, %v7187
        %v7189 = vsel %vm6841, %v4639, %v7188
        %v7190 = vsel %vm6843, %v4653, %v7189
        %v7191 = vsel %vm6845, %v4667, %v7190
        %v7192 = vsel %vm6847, %v4681, %v7191
        %v7193 = vsel %vm6835, %v4604, %v4590
        %v7194 = vsel %vm6837, %v4618, %v7193
        %v7195 = vsel %vm6839, %v4632, %v7194
        %v7196 = vsel %vm6841, %v4646, %v7195
        %v7197 = vsel %vm6843, %v4660, %v7196
        %v7198 = vsel %vm6845, %v4674, %v7197
        %v7199 = vsel %vm6847, %v4688, %v7198
        %v7200 = vsel %vm6835, %v4765, %v4751
        %v7201 = vsel %vm6837, %v4779, %v7200
        %v7202 = vsel %vm6839, %v4793, %v7201
        %v7203 = vsel %vm6841, %v4807, %v7202
        %v7204 = vsel %vm6843, %v4821, %v7203
        %v7205 = vsel %vm6845, %v4835, %v7204
        %v7206 = vsel %vm6847, %v4849, %v7205
        %v7207 = vsel %vm6835, %v4772, %v4758
        %v7208 = vsel %vm6837, %v4786, %v7207
        %v7209 = vsel %vm6839, %v4800, %v7208
        %v7210 = vsel %vm6841, %v4814, %v7209
        %v7211 = vsel %vm6843, %v4828, %v7210
        %v7212 = vsel %vm6845, %v4842, %v7211
        %v7213 = vsel %vm6847, %v4856, %v7212
        %v7214 = vsel %vm6835, %v4933, %v4919
        %v7215 = vsel %vm6837, %v4947, %v7214
        %v7216 = vsel %vm6839, %v4961, %v7215
        %v7217 = vsel %vm6841, %v4975, %v7216
        %v7218 = vsel %vm6843, %v4989, %v7217
        %v7219 = vsel %vm6845, %v5003, %v7218
        %v7220 = vsel %vm6847, %v5017, %v7219
        %v7221 = vsel %vm6835, %v4940, %v4926
        %v7222 = vsel %vm6837, %v4954, %v7221
        %v7223 = vsel %vm6839, %v4968, %v7222
        %v7224 = vsel %vm6841, %v4982, %v7223
        %v7225 = vsel %vm6843, %v4996, %v7224
        %v7226 = vsel %vm6845, %v5010, %v7225
        %v7227 = vsel %vm6847, %v5024, %v7226
        %v7228 = vsel %vm6835, %v5101, %v5087
        %v7229 = vsel %vm6837, %v5115, %v7228
        %v7230 = vsel %vm6839, %v5129, %v7229
        %v7231 = vsel %vm6841, %v5143, %v7230
        %v7232 = vsel %vm6843, %v5157, %v7231
        %v7233 = vsel %vm6845, %v5171, %v7232
        %v7234 = vsel %vm6847, %v5185, %v7233
        %v7235 = vsel %vm6835, %v5108, %v5094
        %v7236 = vsel %vm6837, %v5122, %v7235
        %v7237 = vsel %vm6839, %v5136, %v7236
        %v7238 = vsel %vm6841, %v5150, %v7237
        %v7239 = vsel %vm6843, %v5164, %v7238
        %v7240 = vsel %vm6845, %v5178, %v7239
        %v7241 = vsel %vm6847, %v5192, %v7240
        %v7242 = vsel %vm6835, %v5269, %v5255
        %v7243 = vsel %vm6837, %v5283, %v7242
        %v7244 = vsel %vm6839, %v5297, %v7243
        %v7245 = vsel %vm6841, %v5311, %v7244
        %v7246 = vsel %vm6843, %v5325, %v7245
        %v7247 = vsel %vm6845, %v5339, %v7246
        %v7248 = vsel %vm6847, %v5353, %v7247
        %v7249 = vsel %vm6835, %v5276, %v5262
        %v7250 = vsel %vm6837, %v5290, %v7249
        %v7251 = vsel %vm6839, %v5304, %v7250
        %v7252 = vsel %vm6841, %v5318, %v7251
        %v7253 = vsel %vm6843, %v5332, %v7252
        %v7254 = vsel %vm6845, %v5346, %v7253
        %v7255 = vsel %vm6847, %v5360, %v7254
        %v7256 = vsel %vm6835, %v5437, %v5423
        %v7257 = vsel %vm6837, %v5451, %v7256
        %v7258 = vsel %vm6839, %v5465, %v7257
        %v7259 = vsel %vm6841, %v5479, %v7258
        %v7260 = vsel %vm6843, %v5493, %v7259
        %v7261 = vsel %vm6845, %v5507, %v7260
        %v7262 = vsel %vm6847, %v5521, %v7261
        %v7263 = vsel %vm6835, %v5444, %v5430
        %v7264 = vsel %vm6837, %v5458, %v7263
        %v7265 = vsel %vm6839, %v5472, %v7264
        %v7266 = vsel %vm6841, %v5486, %v7265
        %v7267 = vsel %vm6843, %v5500, %v7266
        %v7268 = vsel %vm6845, %v5514, %v7267
        %v7269 = vsel %vm6847, %v5528, %v7268
        %v7270 = vsel %vm6835, %v5605, %v5591
        %v7271 = vsel %vm6837, %v5619, %v7270
        %v7272 = vsel %vm6839, %v5633, %v7271
        %v7273 = vsel %vm6841, %v5647, %v7272
        %v7274 = vsel %vm6843, %v5661, %v7273
        %v7275 = vsel %vm6845, %v5675, %v7274
        %v7276 = vsel %vm6847, %v5689, %v7275
        %v7277 = vsel %vm6835, %v5612, %v5598
        %v7278 = vsel %vm6837, %v5626, %v7277
        %v7279 = vsel %vm6839, %v5640, %v7278
        %v7280 = vsel %vm6841, %v5654, %v7279
        %v7281 = vsel %vm6843, %v5668, %v7280
        %v7282 = vsel %vm6845, %v5682, %v7281
        %v7283 = vsel %vm6847, %v5696, %v7282
        %v7284 = vsel %vm6835, %v5773, %v5759
        %v7285 = vsel %vm6837, %v5787, %v7284
        %v7286 = vsel %vm6839, %v5801, %v7285
        %v7287 = vsel %vm6841, %v5815, %v7286
        %v7288 = vsel %vm6843, %v5829, %v7287
        %v7289 = vsel %vm6845, %v5843, %v7288
        %v7290 = vsel %vm6847, %v5857, %v7289
        %v7291 = vsel %vm6835, %v5780, %v5766
        %v7292 = vsel %vm6837, %v5794, %v7291
        %v7293 = vsel %vm6839, %v5808, %v7292
        %v7294 = vsel %vm6841, %v5822, %v7293
        %v7295 = vsel %vm6843, %v5836, %v7294
        %v7296 = vsel %vm6845, %v5850, %v7295
        %v7297 = vsel %vm6847, %v5864, %v7296
        %v7298 = vsel %vm6835, %v5941, %v5927
        %v7299 = vsel %vm6837, %v5955, %v7298
        %v7300 = vsel %vm6839, %v5969, %v7299
        %v7301 = vsel %vm6841, %v5983, %v7300
        %v7302 = vsel %vm6843, %v5997, %v7301
        %v7303 = vsel %vm6845, %v6011, %v7302
        %v7304 = vsel %vm6847, %v6025, %v7303
        %v7305 = vsel %vm6835, %v5948, %v5934
        %v7306 = vsel %vm6837, %v5962, %v7305
        %v7307 = vsel %vm6839, %v5976, %v7306
        %v7308 = vsel %vm6841, %v5990, %v7307
        %v7309 = vsel %vm6843, %v6004, %v7308
        %v7310 = vsel %vm6845, %v6018, %v7309
        %v7311 = vsel %vm6847, %v6032, %v7310
        %v7312 = vsel %vm6835, %v6109, %v6095
        %v7313 = vsel %vm6837, %v6123, %v7312
        %v7314 = vsel %vm6839, %v6137, %v7313
        %v7315 = vsel %vm6841, %v6151, %v7314
        %v7316 = vsel %vm6843, %v6165, %v7315
        %v7317 = vsel %vm6845, %v6179, %v7316
        %v7318 = vsel %vm6847, %v6193, %v7317
        %v7319 = vsel %vm6835, %v6116, %v6102
        %v7320 = vsel %vm6837, %v6130, %v7319
        %v7321 = vsel %vm6839, %v6144, %v7320
        %v7322 = vsel %vm6841, %v6158, %v7321
        %v7323 = vsel %vm6843, %v6172, %v7322
        %v7324 = vsel %vm6845, %v6186, %v7323
        %v7325 = vsel %vm6847, %v6200, %v7324
        %v7326 = vsel %vm6835, %v6277, %v6263
        %v7327 = vsel %vm6837, %v6291, %v7326
        %v7328 = vsel %vm6839, %v6305, %v7327
        %v7329 = vsel %vm6841, %v6319, %v7328
        %v7330 = vsel %vm6843, %v6333, %v7329
        %v7331 = vsel %vm6845, %v6347, %v7330
        %v7332 = vsel %vm6847, %v6361, %v7331
        %v7333 = vsel %vm6835, %v6284, %v6270
        %v7334 = vsel %vm6837, %v6298, %v7333
        %v7335 = vsel %vm6839, %v6312, %v7334
        %v7336 = vsel %vm6841, %v6326, %v7335
        %v7337 = vsel %vm6843, %v6340, %v7336
        %v7338 = vsel %vm6845, %v6354, %v7337
        %v7339 = vsel %vm6847, %v6368, %v7338
        %v7340 = vsel %vm6835, %v6445, %v6431
        %v7341 = vsel %vm6837, %v6459, %v7340
        %v7342 = vsel %vm6839, %v6473, %v7341
        %v7343 = vsel %vm6841, %v6487, %v7342
        %v7344 = vsel %vm6843, %v6501, %v7343
        %v7345 = vsel %vm6845, %v6515, %v7344
        %v7346 = vsel %vm6847, %v6529, %v7345
        %v7347 = vsel %vm6835, %v6452, %v6438
        %v7348 = vsel %vm6837, %v6466, %v7347
        %v7349 = vsel %vm6839, %v6480, %v7348
        %v7350 = vsel %vm6841, %v6494, %v7349
        %v7351 = vsel %vm6843, %v6508, %v7350
        %v7352 = vsel %vm6845, %v6522, %v7351
        %v7353 = vsel %vm6847, %v6536, %v7352
        %7354 = vrot.lane.b32.xlu0 %v7136, 16
        %v7355 = vpop.permute.xlu0 %7354
        %7356 = vrot.lane.b32.xlu0 %v7143, 16
        %v7357 = vpop.permute.xlu0 %7356
        %7358 = vrot.lane.b32.xlu0 %v7150, 16
        %v7359 = vpop.permute.xlu0 %7358
        %7360 = vrot.lane.b32.xlu0 %v7157, 16
        %v7361 = vpop.permute.xlu0 %7360
        %7362 = vrot.lane.b32.xlu0 %v7164, 16
        %v7363 = vpop.permute.xlu0 %7362
        %7364 = vrot.lane.b32.xlu0 %v7171, 16
        %v7365 = vpop.permute.xlu0 %7364
        %7366 = vrot.lane.b32.xlu0 %v7178, 16
        %v7367 = vpop.permute.xlu0 %7366
        %7368 = vrot.lane.b32.xlu0 %v7185, 16
        %v7369 = vpop.permute.xlu0 %7368
        %7370 = vrot.lane.b32.xlu0 %v7192, 16
        %v7371 = vpop.permute.xlu0 %7370
        %7372 = vrot.lane.b32.xlu0 %v7199, 16
        %v7373 = vpop.permute.xlu0 %7372
        %7374 = vrot.lane.b32.xlu0 %v7206, 16
        %v7375 = vpop.permute.xlu0 %7374
        %7376 = vrot.lane.b32.xlu0 %v7213, 16
        %v7377 = vpop.permute.xlu0 %7376
        %7378 = vrot.lane.b32.xlu0 %v7220, 16
        %v7379 = vpop.permute.xlu0 %7378
        %7380 = vrot.lane.b32.xlu0 %v7227, 16
        %v7381 = vpop.permute.xlu0 %7380
        %7382 = vrot.lane.b32.xlu0 %v7234, 16
        %v7383 = vpop.permute.xlu0 %7382
        %7384 = vrot.lane.b32.xlu0 %v7241, 16
        %v7385 = vpop.permute.xlu0 %7384
        %7386 = vrot.lane.b32.xlu0 %v7248, 16
        %v7387 = vpop.permute.xlu0 %7386
        %7388 = vrot.lane.b32.xlu0 %v7255, 16
        %v7389 = vpop.permute.xlu0 %7388
        %7390 = vrot.lane.b32.xlu0 %v7262, 16
        %v7391 = vpop.permute.xlu0 %7390
        %7392 = vrot.lane.b32.xlu0 %v7269, 16
        %v7393 = vpop.permute.xlu0 %7392
        %7394 = vrot.lane.b32.xlu0 %v7276, 16
        %v7395 = vpop.permute.xlu0 %7394
        %7396 = vrot.lane.b32.xlu0 %v7283, 16
        %v7397 = vpop.permute.xlu0 %7396
        %7398 = vrot.lane.b32.xlu0 %v7290, 16
        %v7399 = vpop.permute.xlu0 %7398
        %7400 = vrot.lane.b32.xlu0 %v7297, 16
        %v7401 = vpop.permute.xlu0 %7400
        %7402 = vrot.lane.b32.xlu0 %v7304, 16
        %v7403 = vpop.permute.xlu0 %7402
        %7404 = vrot.lane.b32.xlu0 %v7311, 16
        %v7405 = vpop.permute.xlu0 %7404
        %7406 = vrot.lane.b32.xlu0 %v7318, 16
        %v7407 = vpop.permute.xlu0 %7406
        %7408 = vrot.lane.b32.xlu0 %v7325, 16
        %v7409 = vpop.permute.xlu0 %7408
        %7410 = vrot.lane.b32.xlu0 %v7332, 16
        %v7411 = vpop.permute.xlu0 %7410
        %7412 = vrot.lane.b32.xlu0 %v7339, 16
        %v7413 = vpop.permute.xlu0 %7412
        %7414 = vrot.lane.b32.xlu0 %v7346, 16
        %v7415 = vpop.permute.xlu0 %7414
        %7416 = vrot.lane.b32.xlu0 %v7353, 16
        %v7417 = vpop.permute.xlu0 %7416
        %vm7418 = vcmask 130048
        %v7419 = vsel %vm7418, %v7355, %v7357
        %v7420 = vsel %vm7418, %v7359, %v7361
        %v7421 = vsel %vm7418, %v7363, %v7365
        %v7422 = vsel %vm7418, %v7367, %v7369
        %v7423 = vsel %vm7418, %v7371, %v7373
        %v7424 = vsel %vm7418, %v7375, %v7377
        %v7425 = vsel %vm7418, %v7379, %v7381
        %v7426 = vsel %vm7418, %v7383, %v7385
        %v7427 = vsel %vm7418, %v7387, %v7389
        %v7428 = vsel %vm7418, %v7391, %v7393
        %v7429 = vsel %vm7418, %v7395, %v7397
        %v7430 = vsel %vm7418, %v7399, %v7401
        %v7431 = vsel %vm7418, %v7403, %v7405
        %v7432 = vsel %vm7418, %v7407, %v7409
        %v7433 = vsel %vm7418, %v7411, %v7413
        %v7434 = vsel %vm7418, %v7415, %v7417
        %v7499 = vsel %vm6835, %v3939, %v3925
        %v7500 = vsel %vm6837, %v3953, %v7499
        %v7501 = vsel %vm6839, %v3967, %v7500
        %v7502 = vsel %vm6841, %v3981, %v7501
        %v7503 = vsel %vm6843, %v3995, %v7502
        %v7504 = vsel %vm6845, %v4009, %v7503
        %v7505 = vsel %vm6847, %v4023, %v7504
        %v7506 = vsel %vm6835, %v3946, %v3932
        %v7507 = vsel %vm6837, %v3960, %v7506
        %v7508 = vsel %vm6839, %v3974, %v7507
        %v7509 = vsel %vm6841, %v3988, %v7508
        %v7510 = vsel %vm6843, %v4002, %v7509
        %v7511 = vsel %vm6845, %v4016, %v7510
        %v7512 = vsel %vm6847, %v4030, %v7511
        %v7513 = vsel %vm6835, %v4107, %v4093
        %v7514 = vsel %vm6837, %v4121, %v7513
        %v7515 = vsel %vm6839, %v4135, %v7514
        %v7516 = vsel %vm6841, %v4149, %v7515
        %v7517 = vsel %vm6843, %v4163, %v7516
        %v7518 = vsel %vm6845, %v4177, %v7517
        %v7519 = vsel %vm6847, %v4191, %v7518
        %v7520 = vsel %vm6835, %v4114, %v4100
        %v7521 = vsel %vm6837, %v4128, %v7520
        %v7522 = vsel %vm6839, %v4142, %v7521
        %v7523 = vsel %vm6841, %v4156, %v7522
        %v7524 = vsel %vm6843, %v4170, %v7523
        %v7525 = vsel %vm6845, %v4184, %v7524
        %v7526 = vsel %vm6847, %v4198, %v7525
        %v7527 = vsel %vm6835, %v4275, %v4261
        %v7528 = vsel %vm6837, %v4289, %v7527
        %v7529 = vsel %vm6839, %v4303, %v7528
        %v7530 = vsel %vm6841, %v4317, %v7529
        %v7531 = vsel %vm6843, %v4331, %v7530
        %v7532 = vsel %vm6845, %v4345, %v7531
        %v7533 = vsel %vm6847, %v4359, %v7532
        %v7534 = vsel %vm6835, %v4282, %v4268
        %v7535 = vsel %vm6837, %v4296, %v7534
        %v7536 = vsel %vm6839, %v4310, %v7535
        %v7537 = vsel %vm6841, %v4324, %v7536
        %v7538 = vsel %vm6843, %v4338, %v7537
        %v7539 = vsel %vm6845, %v4352, %v7538
        %v7540 = vsel %vm6847, %v4366, %v7539
        %v7541 = vsel %vm6835, %v4443, %v4429
        %v7542 = vsel %vm6837, %v4457, %v7541
        %v7543 = vsel %vm6839, %v4471, %v7542
        %v7544 = vsel %vm6841, %v4485, %v7543
        %v7545 = vsel %vm6843, %v4499, %v7544
        %v7546 = vsel %vm6845, %v4513, %v7545
        %v7547 = vsel %vm6847, %v4527, %v7546
        %v7548 = vsel %vm6835, %v4450, %v4436
        %v7549 = vsel %vm6837, %v4464, %v7548
        %v7550 = vsel %vm6839, %v4478, %v7549
        %v7551 = vsel %vm6841, %v4492, %v7550
        %v7552 = vsel %vm6843, %v4506, %v7551
        %v7553 = vsel %vm6845, %v4520, %v7552
        %v7554 = vsel %vm6847, %v4534, %v7553
        %v7555 = vsel %vm6835, %v4611, %v4597
        %v7556 = vsel %vm6837, %v4625, %v7555
        %v7557 = vsel %vm6839, %v4639, %v7556
        %v7558 = vsel %vm6841, %v4653, %v7557
        %v7559 = vsel %vm6843, %v4667, %v7558
        %v7560 = vsel %vm6845, %v4681, %v7559
        %v7561 = vsel %vm6847, %v4695, %v7560
        %v7562 = vsel %vm6835, %v4618, %v4604
        %v7563 = vsel %vm6837, %v4632, %v7562
        %v7564 = vsel %vm6839, %v4646, %v7563
        %v7565 = vsel %vm6841, %v4660, %v7564
        %v7566 = vsel %vm6843, %v4674, %v7565
        %v7567 = vsel %vm6845, %v4688, %v7566
        %v7568 = vsel %vm6847, %v4702, %v7567
        %v7569 = vsel %vm6835, %v4779, %v4765
        %v7570 = vsel %vm6837, %v4793, %v7569
        %v7571 = vsel %vm6839, %v4807, %v7570
        %v7572 = vsel %vm6841, %v4821, %v7571
        %v7573 = vsel %vm6843, %v4835, %v7572
        %v7574 = vsel %vm6845, %v4849, %v7573
        %v7575 = vsel %vm6847, %v4863, %v7574
        %v7576 = vsel %vm6835, %v4786, %v4772
        %v7577 = vsel %vm6837, %v4800, %v7576
        %v7578 = vsel %vm6839, %v4814, %v7577
        %v7579 = vsel %vm6841, %v4828, %v7578
        %v7580 = vsel %vm6843, %v4842, %v7579
        %v7581 = vsel %vm6845, %v4856, %v7580
        %v7582 = vsel %vm6847, %v4870, %v7581
        %v7583 = vsel %vm6835, %v4947, %v4933
        %v7584 = vsel %vm6837, %v4961, %v7583
        %v7585 = vsel %vm6839, %v4975, %v7584
        %v7586 = vsel %vm6841, %v4989, %v7585
        %v7587 = vsel %vm6843, %v5003, %v7586
        %v7588 = vsel %vm6845, %v5017, %v7587
        %v7589 = vsel %vm6847, %v5031, %v7588
        %v7590 = vsel %vm6835, %v4954, %v4940
        %v7591 = vsel %vm6837, %v4968, %v7590
        %v7592 = vsel %vm6839, %v4982, %v7591
        %v7593 = vsel %vm6841, %v4996, %v7592
        %v7594 = vsel %vm6843, %v5010, %v7593
        %v7595 = vsel %vm6845, %v5024, %v7594
        %v7596 = vsel %vm6847, %v5038, %v7595
        %v7597 = vsel %vm6835, %v5115, %v5101
        %v7598 = vsel %vm6837, %v5129, %v7597
        %v7599 = vsel %vm6839, %v5143, %v7598
        %v7600 = vsel %vm6841, %v5157, %v7599
        %v7601 = vsel %vm6843, %v5171, %v7600
        %v7602 = vsel %vm6845, %v5185, %v7601
        %v7603 = vsel %vm6847, %v5199, %v7602
        %v7604 = vsel %vm6835, %v5122, %v5108
        %v7605 = vsel %vm6837, %v5136, %v7604
        %v7606 = vsel %vm6839, %v5150, %v7605
        %v7607 = vsel %vm6841, %v5164, %v7606
        %v7608 = vsel %vm6843, %v5178, %v7607
        %v7609 = vsel %vm6845, %v5192, %v7608
        %v7610 = vsel %vm6847, %v5206, %v7609
        %v7611 = vsel %vm6835, %v5283, %v5269
        %v7612 = vsel %vm6837, %v5297, %v7611
        %v7613 = vsel %vm6839, %v5311, %v7612
        %v7614 = vsel %vm6841, %v5325, %v7613
        %v7615 = vsel %vm6843, %v5339, %v7614
        %v7616 = vsel %vm6845, %v5353, %v7615
        %v7617 = vsel %vm6847, %v5367, %v7616
        %v7618 = vsel %vm6835, %v5290, %v5276
        %v7619 = vsel %vm6837, %v5304, %v7618
        %v7620 = vsel %vm6839, %v5318, %v7619
        %v7621 = vsel %vm6841, %v5332, %v7620
        %v7622 = vsel %vm6843, %v5346, %v7621
        %v7623 = vsel %vm6845, %v5360, %v7622
        %v7624 = vsel %vm6847, %v5374, %v7623
        %v7625 = vsel %vm6835, %v5451, %v5437
        %v7626 = vsel %vm6837, %v5465, %v7625
        %v7627 = vsel %vm6839, %v5479, %v7626
        %v7628 = vsel %vm6841, %v5493, %v7627
        %v7629 = vsel %vm6843, %v5507, %v7628
        %v7630 = vsel %vm6845, %v5521, %v7629
        %v7631 = vsel %vm6847, %v5535, %v7630
        %v7632 = vsel %vm6835, %v5458, %v5444
        %v7633 = vsel %vm6837, %v5472, %v7632
        %v7634 = vsel %vm6839, %v5486, %v7633
        %v7635 = vsel %vm6841, %v5500, %v7634
        %v7636 = vsel %vm6843, %v5514, %v7635
        %v7637 = vsel %vm6845, %v5528, %v7636
        %v7638 = vsel %vm6847, %v5542, %v7637
        %v7639 = vsel %vm6835, %v5619, %v5605
        %v7640 = vsel %vm6837, %v5633, %v7639
        %v7641 = vsel %vm6839, %v5647, %v7640
        %v7642 = vsel %vm6841, %v5661, %v7641
        %v7643 = vsel %vm6843, %v5675, %v7642
        %v7644 = vsel %vm6845, %v5689, %v7643
        %v7645 = vsel %vm6847, %v5703, %v7644
        %v7646 = vsel %vm6835, %v5626, %v5612
        %v7647 = vsel %vm6837, %v5640, %v7646
        %v7648 = vsel %vm6839, %v5654, %v7647
        %v7649 = vsel %vm6841, %v5668, %v7648
        %v7650 = vsel %vm6843, %v5682, %v7649
        %v7651 = vsel %vm6845, %v5696, %v7650
        %v7652 = vsel %vm6847, %v5710, %v7651
        %v7653 = vsel %vm6835, %v5787, %v5773
        %v7654 = vsel %vm6837, %v5801, %v7653
        %v7655 = vsel %vm6839, %v5815, %v7654
        %v7656 = vsel %vm6841, %v5829, %v7655
        %v7657 = vsel %vm6843, %v5843, %v7656
        %v7658 = vsel %vm6845, %v5857, %v7657
        %v7659 = vsel %vm6847, %v5871, %v7658
        %v7660 = vsel %vm6835, %v5794, %v5780
        %v7661 = vsel %vm6837, %v5808, %v7660
        %v7662 = vsel %vm6839, %v5822, %v7661
        %v7663 = vsel %vm6841, %v5836, %v7662
        %v7664 = vsel %vm6843, %v5850, %v7663
        %v7665 = vsel %vm6845, %v5864, %v7664
        %v7666 = vsel %vm6847, %v5878, %v7665
        %v7667 = vsel %vm6835, %v5955, %v5941
        %v7668 = vsel %vm6837, %v5969, %v7667
        %v7669 = vsel %vm6839, %v5983, %v7668
        %v7670 = vsel %vm6841, %v5997, %v7669
        %v7671 = vsel %vm6843, %v6011, %v7670
        %v7672 = vsel %vm6845, %v6025, %v7671
        %v7673 = vsel %vm6847, %v6039, %v7672
        %v7674 = vsel %vm6835, %v5962, %v5948
        %v7675 = vsel %vm6837, %v5976, %v7674
        %v7676 = vsel %vm6839, %v5990, %v7675
        %v7677 = vsel %vm6841, %v6004, %v7676
        %v7678 = vsel %vm6843, %v6018, %v7677
        %v7679 = vsel %vm6845, %v6032, %v7678
        %v7680 = vsel %vm6847, %v6046, %v7679
        %v7681 = vsel %vm6835, %v6123, %v6109
        %v7682 = vsel %vm6837, %v6137, %v7681
        %v7683 = vsel %vm6839, %v6151, %v7682
        %v7684 = vsel %vm6841, %v6165, %v7683
        %v7685 = vsel %vm6843, %v6179, %v7684
        %v7686 = vsel %vm6845, %v6193, %v7685
        %v7687 = vsel %vm6847, %v6207, %v7686
        %v7688 = vsel %vm6835, %v6130, %v6116
        %v7689 = vsel %vm6837, %v6144, %v7688
        %v7690 = vsel %vm6839, %v6158, %v7689
        %v7691 = vsel %vm6841, %v6172, %v7690
        %v7692 = vsel %vm6843, %v6186, %v7691
        %v7693 = vsel %vm6845, %v6200, %v7692
        %v7694 = vsel %vm6847, %v6214, %v7693
        %v7695 = vsel %vm6835, %v6291, %v6277
        %v7696 = vsel %vm6837, %v6305, %v7695
        %v7697 = vsel %vm6839, %v6319, %v7696
        %v7698 = vsel %vm6841, %v6333, %v7697
        %v7699 = vsel %vm6843, %v6347, %v7698
        %v7700 = vsel %vm6845, %v6361, %v7699
        %v7701 = vsel %vm6847, %v6375, %v7700
        %v7702 = vsel %vm6835, %v6298, %v6284
        %v7703 = vsel %vm6837, %v6312, %v7702
        %v7704 = vsel %vm6839, %v6326, %v7703
        %v7705 = vsel %vm6841, %v6340, %v7704
        %v7706 = vsel %vm6843, %v6354, %v7705
        %v7707 = vsel %vm6845, %v6368, %v7706
        %v7708 = vsel %vm6847, %v6382, %v7707
        %v7709 = vsel %vm6835, %v6459, %v6445
        %v7710 = vsel %vm6837, %v6473, %v7709
        %v7711 = vsel %vm6839, %v6487, %v7710
        %v7712 = vsel %vm6841, %v6501, %v7711
        %v7713 = vsel %vm6843, %v6515, %v7712
        %v7714 = vsel %vm6845, %v6529, %v7713
        %v7715 = vsel %vm6847, %v6543, %v7714
        %v7716 = vsel %vm6835, %v6466, %v6452
        %v7717 = vsel %vm6837, %v6480, %v7716
        %v7718 = vsel %vm6839, %v6494, %v7717
        %v7719 = vsel %vm6841, %v6508, %v7718
        %v7720 = vsel %vm6843, %v6522, %v7719
        %v7721 = vsel %vm6845, %v6536, %v7720
        %v7722 = vsel %vm6847, %v6550, %v7721
        %7723 = vrot.lane.b32.xlu0 %v7505, 32
        %v7724 = vpop.permute.xlu0 %7723
        %7725 = vrot.lane.b32.xlu0 %v7512, 32
        %v7726 = vpop.permute.xlu0 %7725
        %7727 = vrot.lane.b32.xlu0 %v7519, 32
        %v7728 = vpop.permute.xlu0 %7727
        %7729 = vrot.lane.b32.xlu0 %v7526, 32
        %v7730 = vpop.permute.xlu0 %7729
        %7731 = vrot.lane.b32.xlu0 %v7533, 32
        %v7732 = vpop.permute.xlu0 %7731
        %7733 = vrot.lane.b32.xlu0 %v7540, 32
        %v7734 = vpop.permute.xlu0 %7733
        %7735 = vrot.lane.b32.xlu0 %v7547, 32
        %v7736 = vpop.permute.xlu0 %7735
        %7737 = vrot.lane.b32.xlu0 %v7554, 32
        %v7738 = vpop.permute.xlu0 %7737
        %7739 = vrot.lane.b32.xlu0 %v7561, 32
        %v7740 = vpop.permute.xlu0 %7739
        %7741 = vrot.lane.b32.xlu0 %v7568, 32
        %v7742 = vpop.permute.xlu0 %7741
        %7743 = vrot.lane.b32.xlu0 %v7575, 32
        %v7744 = vpop.permute.xlu0 %7743
        %7745 = vrot.lane.b32.xlu0 %v7582, 32
        %v7746 = vpop.permute.xlu0 %7745
        %7747 = vrot.lane.b32.xlu0 %v7589, 32
        %v7748 = vpop.permute.xlu0 %7747
        %7749 = vrot.lane.b32.xlu0 %v7596, 32
        %v7750 = vpop.permute.xlu0 %7749
        %7751 = vrot.lane.b32.xlu0 %v7603, 32
        %v7752 = vpop.permute.xlu0 %7751
        %7753 = vrot.lane.b32.xlu0 %v7610, 32
        %v7754 = vpop.permute.xlu0 %7753
        %7755 = vrot.lane.b32.xlu0 %v7617, 32
        %v7756 = vpop.permute.xlu0 %7755
        %7757 = vrot.lane.b32.xlu0 %v7624, 32
        %v7758 = vpop.permute.xlu0 %7757
        %7759 = vrot.lane.b32.xlu0 %v7631, 32
        %v7760 = vpop.permute.xlu0 %7759
        %7761 = vrot.lane.b32.xlu0 %v7638, 32
        %v7762 = vpop.permute.xlu0 %7761
        %7763 = vrot.lane.b32.xlu0 %v7645, 32
        %v7764 = vpop.permute.xlu0 %7763
        %7765 = vrot.lane.b32.xlu0 %v7652, 32
        %v7766 = vpop.permute.xlu0 %7765
        %7767 = vrot.lane.b32.xlu0 %v7659, 32
        %v7768 = vpop.permute.xlu0 %7767
        %7769 = vrot.lane.b32.xlu0 %v7666, 32
        %v7770 = vpop.permute.xlu0 %7769
        %7771 = vrot.lane.b32.xlu0 %v7673, 32
        %v7772 = vpop.permute.xlu0 %7771
        %7773 = vrot.lane.b32.xlu0 %v7680, 32
        %v7774 = vpop.permute.xlu0 %7773
        %7775 = vrot.lane.b32.xlu0 %v7687, 32
        %v7776 = vpop.permute.xlu0 %7775
        %7777 = vrot.lane.b32.xlu0 %v7694, 32
        %v7778 = vpop.permute.xlu0 %7777
        %7779 = vrot.lane.b32.xlu0 %v7701, 32
        %v7780 = vpop.permute.xlu0 %7779
        %7781 = vrot.lane.b32.xlu0 %v7708, 32
        %v7782 = vpop.permute.xlu0 %7781
        %7783 = vrot.lane.b32.xlu0 %v7715, 32
        %v7784 = vpop.permute.xlu0 %7783
        %7785 = vrot.lane.b32.xlu0 %v7722, 32
        %v7786 = vpop.permute.xlu0 %7785
        %vm7787 = vcmask 261120
        %v7788 = vsel %vm7787, %v7724, %v7726
        %v7789 = vsel %vm7787, %v7728, %v7730
        %v7790 = vsel %vm7787, %v7732, %v7734
        %v7791 = vsel %vm7787, %v7736, %v7738
        %v7792 = vsel %vm7787, %v7740, %v7742
        %v7793 = vsel %vm7787, %v7744, %v7746
        %v7794 = vsel %vm7787, %v7748, %v7750
        %v7795 = vsel %vm7787, %v7752, %v7754
        %v7796 = vsel %vm7787, %v7756, %v7758
        %v7797 = vsel %vm7787, %v7760, %v7762
        %v7798 = vsel %vm7787, %v7764, %v7766
        %v7799 = vsel %vm7787, %v7768, %v7770
        %v7800 = vsel %vm7787, %v7772, %v7774
        %v7801 = vsel %vm7787, %v7776, %v7778
        %v7802 = vsel %vm7787, %v7780, %v7782
        %v7803 = vsel %vm7787, %v7784, %v7786
        %v7868 = vsel %vm6835, %v3953, %v3939
        %v7869 = vsel %vm6837, %v3967, %v7868
        %v7870 = vsel %vm6839, %v3981, %v7869
        %v7871 = vsel %vm6841, %v3995, %v7870
        %v7872 = vsel %vm6843, %v4009, %v7871
        %v7873 = vsel %vm6845, %v4023, %v7872
        %v7874 = vsel %vm6847, %v4037, %v7873
        %v7875 = vsel %vm6835, %v3960, %v3946
        %v7876 = vsel %vm6837, %v3974, %v7875
        %v7877 = vsel %vm6839, %v3988, %v7876
        %v7878 = vsel %vm6841, %v4002, %v7877
        %v7879 = vsel %vm6843, %v4016, %v7878
        %v7880 = vsel %vm6845, %v4030, %v7879
        %v7881 = vsel %vm6847, %v4044, %v7880
        %v7882 = vsel %vm6835, %v4121, %v4107
        %v7883 = vsel %vm6837, %v4135, %v7882
        %v7884 = vsel %vm6839, %v4149, %v7883
        %v7885 = vsel %vm6841, %v4163, %v7884
        %v7886 = vsel %vm6843, %v4177, %v7885
        %v7887 = vsel %vm6845, %v4191, %v7886
        %v7888 = vsel %vm6847, %v4205, %v7887
        %v7889 = vsel %vm6835, %v4128, %v4114
        %v7890 = vsel %vm6837, %v4142, %v7889
        %v7891 = vsel %vm6839, %v4156, %v7890
        %v7892 = vsel %vm6841, %v4170, %v7891
        %v7893 = vsel %vm6843, %v4184, %v7892
        %v7894 = vsel %vm6845, %v4198, %v7893
        %v7895 = vsel %vm6847, %v4212, %v7894
        %v7896 = vsel %vm6835, %v4289, %v4275
        %v7897 = vsel %vm6837, %v4303, %v7896
        %v7898 = vsel %vm6839, %v4317, %v7897
        %v7899 = vsel %vm6841, %v4331, %v7898
        %v7900 = vsel %vm6843, %v4345, %v7899
        %v7901 = vsel %vm6845, %v4359, %v7900
        %v7902 = vsel %vm6847, %v4373, %v7901
        %v7903 = vsel %vm6835, %v4296, %v4282
        %v7904 = vsel %vm6837, %v4310, %v7903
        %v7905 = vsel %vm6839, %v4324, %v7904
        %v7906 = vsel %vm6841, %v4338, %v7905
        %v7907 = vsel %vm6843, %v4352, %v7906
        %v7908 = vsel %vm6845, %v4366, %v7907
        %v7909 = vsel %vm6847, %v4380, %v7908
        %v7910 = vsel %vm6835, %v4457, %v4443
        %v7911 = vsel %vm6837, %v4471, %v7910
        %v7912 = vsel %vm6839, %v4485, %v7911
        %v7913 = vsel %vm6841, %v4499, %v7912
        %v7914 = vsel %vm6843, %v4513, %v7913
        %v7915 = vsel %vm6845, %v4527, %v7914
        %v7916 = vsel %vm6847, %v4541, %v7915
        %v7917 = vsel %vm6835, %v4464, %v4450
        %v7918 = vsel %vm6837, %v4478, %v7917
        %v7919 = vsel %vm6839, %v4492, %v7918
        %v7920 = vsel %vm6841, %v4506, %v7919
        %v7921 = vsel %vm6843, %v4520, %v7920
        %v7922 = vsel %vm6845, %v4534, %v7921
        %v7923 = vsel %vm6847, %v4548, %v7922
        %v7924 = vsel %vm6835, %v4625, %v4611
        %v7925 = vsel %vm6837, %v4639, %v7924
        %v7926 = vsel %vm6839, %v4653, %v7925
        %v7927 = vsel %vm6841, %v4667, %v7926
        %v7928 = vsel %vm6843, %v4681, %v7927
        %v7929 = vsel %vm6845, %v4695, %v7928
        %v7930 = vsel %vm6847, %v4709, %v7929
        %v7931 = vsel %vm6835, %v4632, %v4618
        %v7932 = vsel %vm6837, %v4646, %v7931
        %v7933 = vsel %vm6839, %v4660, %v7932
        %v7934 = vsel %vm6841, %v4674, %v7933
        %v7935 = vsel %vm6843, %v4688, %v7934
        %v7936 = vsel %vm6845, %v4702, %v7935
        %v7937 = vsel %vm6847, %v4716, %v7936
        %v7938 = vsel %vm6835, %v4793, %v4779
        %v7939 = vsel %vm6837, %v4807, %v7938
        %v7940 = vsel %vm6839, %v4821, %v7939
        %v7941 = vsel %vm6841, %v4835, %v7940
        %v7942 = vsel %vm6843, %v4849, %v7941
        %v7943 = vsel %vm6845, %v4863, %v7942
        %v7944 = vsel %vm6847, %v4877, %v7943
        %v7945 = vsel %vm6835, %v4800, %v4786
        %v7946 = vsel %vm6837, %v4814, %v7945
        %v7947 = vsel %vm6839, %v4828, %v7946
        %v7948 = vsel %vm6841, %v4842, %v7947
        %v7949 = vsel %vm6843, %v4856, %v7948
        %v7950 = vsel %vm6845, %v4870, %v7949
        %v7951 = vsel %vm6847, %v4884, %v7950
        %v7952 = vsel %vm6835, %v4961, %v4947
        %v7953 = vsel %vm6837, %v4975, %v7952
        %v7954 = vsel %vm6839, %v4989, %v7953
        %v7955 = vsel %vm6841, %v5003, %v7954
        %v7956 = vsel %vm6843, %v5017, %v7955
        %v7957 = vsel %vm6845, %v5031, %v7956
        %v7958 = vsel %vm6847, %v5045, %v7957
        %v7959 = vsel %vm6835, %v4968, %v4954
        %v7960 = vsel %vm6837, %v4982, %v7959
        %v7961 = vsel %vm6839, %v4996, %v7960
        %v7962 = vsel %vm6841, %v5010, %v7961
        %v7963 = vsel %vm6843, %v5024, %v7962
        %v7964 = vsel %vm6845, %v5038, %v7963
        %v7965 = vsel %vm6847, %v5052, %v7964
        %v7966 = vsel %vm6835, %v5129, %v5115
        %v7967 = vsel %vm6837, %v5143, %v7966
        %v7968 = vsel %vm6839, %v5157, %v7967
        %v7969 = vsel %vm6841, %v5171, %v7968
        %v7970 = vsel %vm6843, %v5185, %v7969
        %v7971 = vsel %vm6845, %v5199, %v7970
        %v7972 = vsel %vm6847, %v5213, %v7971
        %v7973 = vsel %vm6835, %v5136, %v5122
        %v7974 = vsel %vm6837, %v5150, %v7973
        %v7975 = vsel %vm6839, %v5164, %v7974
        %v7976 = vsel %vm6841, %v5178, %v7975
        %v7977 = vsel %vm6843, %v5192, %v7976
        %v7978 = vsel %vm6845, %v5206, %v7977
        %v7979 = vsel %vm6847, %v5220, %v7978
        %v7980 = vsel %vm6835, %v5297, %v5283
        %v7981 = vsel %vm6837, %v5311, %v7980
        %v7982 = vsel %vm6839, %v5325, %v7981
        %v7983 = vsel %vm6841, %v5339, %v7982
        %v7984 = vsel %vm6843, %v5353, %v7983
        %v7985 = vsel %vm6845, %v5367, %v7984
        %v7986 = vsel %vm6847, %v5381, %v7985
        %v7987 = vsel %vm6835, %v5304, %v5290
        %v7988 = vsel %vm6837, %v5318, %v7987
        %v7989 = vsel %vm6839, %v5332, %v7988
        %v7990 = vsel %vm6841, %v5346, %v7989
        %v7991 = vsel %vm6843, %v5360, %v7990
        %v7992 = vsel %vm6845, %v5374, %v7991
        %v7993 = vsel %vm6847, %v5388, %v7992
        %v7994 = vsel %vm6835, %v5465, %v5451
        %v7995 = vsel %vm6837, %v5479, %v7994
        %v7996 = vsel %vm6839, %v5493, %v7995
        %v7997 = vsel %vm6841, %v5507, %v7996
        %v7998 = vsel %vm6843, %v5521, %v7997
        %v7999 = vsel %vm6845, %v5535, %v7998
        %v8000 = vsel %vm6847, %v5549, %v7999
        %v8001 = vsel %vm6835, %v5472, %v5458
        %v8002 = vsel %vm6837, %v5486, %v8001
        %v8003 = vsel %vm6839, %v5500, %v8002
        %v8004 = vsel %vm6841, %v5514, %v8003
        %v8005 = vsel %vm6843, %v5528, %v8004
        %v8006 = vsel %vm6845, %v5542, %v8005
        %v8007 = vsel %vm6847, %v5556, %v8006
        %v8008 = vsel %vm6835, %v5633, %v5619
        %v8009 = vsel %vm6837, %v5647, %v8008
        %v8010 = vsel %vm6839, %v5661, %v8009
        %v8011 = vsel %vm6841, %v5675, %v8010
        %v8012 = vsel %vm6843, %v5689, %v8011
        %v8013 = vsel %vm6845, %v5703, %v8012
        %v8014 = vsel %vm6847, %v5717, %v8013
        %v8015 = vsel %vm6835, %v5640, %v5626
        %v8016 = vsel %vm6837, %v5654, %v8015
        %v8017 = vsel %vm6839, %v5668, %v8016
        %v8018 = vsel %vm6841, %v5682, %v8017
        %v8019 = vsel %vm6843, %v5696, %v8018
        %v8020 = vsel %vm6845, %v5710, %v8019
        %v8021 = vsel %vm6847, %v5724, %v8020
        %v8022 = vsel %vm6835, %v5801, %v5787
        %v8023 = vsel %vm6837, %v5815, %v8022
        %v8024 = vsel %vm6839, %v5829, %v8023
        %v8025 = vsel %vm6841, %v5843, %v8024
        %v8026 = vsel %vm6843, %v5857, %v8025
        %v8027 = vsel %vm6845, %v5871, %v8026
        %v8028 = vsel %vm6847, %v5885, %v8027
        %v8029 = vsel %vm6835, %v5808, %v5794
        %v8030 = vsel %vm6837, %v5822, %v8029
        %v8031 = vsel %vm6839, %v5836, %v8030
        %v8032 = vsel %vm6841, %v5850, %v8031
        %v8033 = vsel %vm6843, %v5864, %v8032
        %v8034 = vsel %vm6845, %v5878, %v8033
        %v8035 = vsel %vm6847, %v5892, %v8034
        %v8036 = vsel %vm6835, %v5969, %v5955
        %v8037 = vsel %vm6837, %v5983, %v8036
        %v8038 = vsel %vm6839, %v5997, %v8037
        %v8039 = vsel %vm6841, %v6011, %v8038
        %v8040 = vsel %vm6843, %v6025, %v8039
        %v8041 = vsel %vm6845, %v6039, %v8040
        %v8042 = vsel %vm6847, %v6053, %v8041
        %v8043 = vsel %vm6835, %v5976, %v5962
        %v8044 = vsel %vm6837, %v5990, %v8043
        %v8045 = vsel %vm6839, %v6004, %v8044
        %v8046 = vsel %vm6841, %v6018, %v8045
        %v8047 = vsel %vm6843, %v6032, %v8046
        %v8048 = vsel %vm6845, %v6046, %v8047
        %v8049 = vsel %vm6847, %v6060, %v8048
        %v8050 = vsel %vm6835, %v6137, %v6123
        %v8051 = vsel %vm6837, %v6151, %v8050
        %v8052 = vsel %vm6839, %v6165, %v8051
        %v8053 = vsel %vm6841, %v6179, %v8052
        %v8054 = vsel %vm6843, %v6193, %v8053
        %v8055 = vsel %vm6845, %v6207, %v8054
        %v8056 = vsel %vm6847, %v6221, %v8055
        %v8057 = vsel %vm6835, %v6144, %v6130
        %v8058 = vsel %vm6837, %v6158, %v8057
        %v8059 = vsel %vm6839, %v6172, %v8058
        %v8060 = vsel %vm6841, %v6186, %v8059
        %v8061 = vsel %vm6843, %v6200, %v8060
        %v8062 = vsel %vm6845, %v6214, %v8061
        %v8063 = vsel %vm6847, %v6228, %v8062
        %v8064 = vsel %vm6835, %v6305, %v6291
        %v8065 = vsel %vm6837, %v6319, %v8064
        %v8066 = vsel %vm6839, %v6333, %v8065
        %v8067 = vsel %vm6841, %v6347, %v8066
        %v8068 = vsel %vm6843, %v6361, %v8067
        %v8069 = vsel %vm6845, %v6375, %v8068
        %v8070 = vsel %vm6847, %v6389, %v8069
        %v8071 = vsel %vm6835, %v6312, %v6298
        %v8072 = vsel %vm6837, %v6326, %v8071
        %v8073 = vsel %vm6839, %v6340, %v8072
        %v8074 = vsel %vm6841, %v6354, %v8073
        %v8075 = vsel %vm6843, %v6368, %v8074
        %v8076 = vsel %vm6845, %v6382, %v8075
        %v8077 = vsel %vm6847, %v6396, %v8076
        %v8078 = vsel %vm6835, %v6473, %v6459
        %v8079 = vsel %vm6837, %v6487, %v8078
        %v8080 = vsel %vm6839, %v6501, %v8079
        %v8081 = vsel %vm6841, %v6515, %v8080
        %v8082 = vsel %vm6843, %v6529, %v8081
        %v8083 = vsel %vm6845, %v6543, %v8082
        %v8084 = vsel %vm6847, %v6557, %v8083
        %v8085 = vsel %vm6835, %v6480, %v6466
        %v8086 = vsel %vm6837, %v6494, %v8085
        %v8087 = vsel %vm6839, %v6508, %v8086
        %v8088 = vsel %vm6841, %v6522, %v8087
        %v8089 = vsel %vm6843, %v6536, %v8088
        %v8090 = vsel %vm6845, %v6550, %v8089
        %v8091 = vsel %vm6847, %v6564, %v8090
        %8092 = vrot.lane.b32.xlu0 %v7874, 48
        %v8093 = vpop.permute.xlu0 %8092
        %8094 = vrot.lane.b32.xlu0 %v7881, 48
        %v8095 = vpop.permute.xlu0 %8094
        %8096 = vrot.lane.b32.xlu0 %v7888, 48
        %v8097 = vpop.permute.xlu0 %8096
        %8098 = vrot.lane.b32.xlu0 %v7895, 48
        %v8099 = vpop.permute.xlu0 %8098
        %8100 = vrot.lane.b32.xlu0 %v7902, 48
        %v8101 = vpop.permute.xlu0 %8100
        %8102 = vrot.lane.b32.xlu0 %v7909, 48
        %v8103 = vpop.permute.xlu0 %8102
        %8104 = vrot.lane.b32.xlu0 %v7916, 48
        %v8105 = vpop.permute.xlu0 %8104
        %8106 = vrot.lane.b32.xlu0 %v7923, 48
        %v8107 = vpop.permute.xlu0 %8106
        %8108 = vrot.lane.b32.xlu0 %v7930, 48
        %v8109 = vpop.permute.xlu0 %8108
        %8110 = vrot.lane.b32.xlu0 %v7937, 48
        %v8111 = vpop.permute.xlu0 %8110
        %8112 = vrot.lane.b32.xlu0 %v7944, 48
        %v8113 = vpop.permute.xlu0 %8112
        %8114 = vrot.lane.b32.xlu0 %v7951, 48
        %v8115 = vpop.permute.xlu0 %8114
        %8116 = vrot.lane.b32.xlu0 %v7958, 48
        %v8117 = vpop.permute.xlu0 %8116
        %8118 = vrot.lane.b32.xlu0 %v7965, 48
        %v8119 = vpop.permute.xlu0 %8118
        %8120 = vrot.lane.b32.xlu0 %v7972, 48
        %v8121 = vpop.permute.xlu0 %8120
        %8122 = vrot.lane.b32.xlu0 %v7979, 48
        %v8123 = vpop.permute.xlu0 %8122
        %8124 = vrot.lane.b32.xlu0 %v7986, 48
        %v8125 = vpop.permute.xlu0 %8124
        %8126 = vrot.lane.b32.xlu0 %v7993, 48
        %v8127 = vpop.permute.xlu0 %8126
        %8128 = vrot.lane.b32.xlu0 %v8000, 48
        %v8129 = vpop.permute.xlu0 %8128
        %8130 = vrot.lane.b32.xlu0 %v8007, 48
        %v8131 = vpop.permute.xlu0 %8130
        %8132 = vrot.lane.b32.xlu0 %v8014, 48
        %v8133 = vpop.permute.xlu0 %8132
        %8134 = vrot.lane.b32.xlu0 %v8021, 48
        %v8135 = vpop.permute.xlu0 %8134
        %8136 = vrot.lane.b32.xlu0 %v8028, 48
        %v8137 = vpop.permute.xlu0 %8136
        %8138 = vrot.lane.b32.xlu0 %v8035, 48
        %v8139 = vpop.permute.xlu0 %8138
        %8140 = vrot.lane.b32.xlu0 %v8042, 48
        %v8141 = vpop.permute.xlu0 %8140
        %8142 = vrot.lane.b32.xlu0 %v8049, 48
        %v8143 = vpop.permute.xlu0 %8142
        %8144 = vrot.lane.b32.xlu0 %v8056, 48
        %v8145 = vpop.permute.xlu0 %8144
        %8146 = vrot.lane.b32.xlu0 %v8063, 48
        %v8147 = vpop.permute.xlu0 %8146
        %8148 = vrot.lane.b32.xlu0 %v8070, 48
        %v8149 = vpop.permute.xlu0 %8148
        %8150 = vrot.lane.b32.xlu0 %v8077, 48
        %v8151 = vpop.permute.xlu0 %8150
        %8152 = vrot.lane.b32.xlu0 %v8084, 48
        %v8153 = vpop.permute.xlu0 %8152
        %8154 = vrot.lane.b32.xlu0 %v8091, 48
        %v8155 = vpop.permute.xlu0 %8154
        %vm8156 = vcmask 392192
        %v8157 = vsel %vm8156, %v8093, %v8095
        %v8158 = vsel %vm8156, %v8097, %v8099
        %v8159 = vsel %vm8156, %v8101, %v8103
        %v8160 = vsel %vm8156, %v8105, %v8107
        %v8161 = vsel %vm8156, %v8109, %v8111
        %v8162 = vsel %vm8156, %v8113, %v8115
        %v8163 = vsel %vm8156, %v8117, %v8119
        %v8164 = vsel %vm8156, %v8121, %v8123
        %v8165 = vsel %vm8156, %v8125, %v8127
        %v8166 = vsel %vm8156, %v8129, %v8131
        %v8167 = vsel %vm8156, %v8133, %v8135
        %v8168 = vsel %vm8156, %v8137, %v8139
        %v8169 = vsel %vm8156, %v8141, %v8143
        %v8170 = vsel %vm8156, %v8145, %v8147
        %v8171 = vsel %vm8156, %v8149, %v8151
        %v8172 = vsel %vm8156, %v8153, %v8155
        %v8237 = vsel %vm6835, %v3967, %v3953
        %v8238 = vsel %vm6837, %v3981, %v8237
        %v8239 = vsel %vm6839, %v3995, %v8238
        %v8240 = vsel %vm6841, %v4009, %v8239
        %v8241 = vsel %vm6843, %v4023, %v8240
        %v8242 = vsel %vm6845, %v4037, %v8241
        %v8243 = vsel %vm6847, %v4051, %v8242
        %v8244 = vsel %vm6835, %v3974, %v3960
        %v8245 = vsel %vm6837, %v3988, %v8244
        %v8246 = vsel %vm6839, %v4002, %v8245
        %v8247 = vsel %vm6841, %v4016, %v8246
        %v8248 = vsel %vm6843, %v4030, %v8247
        %v8249 = vsel %vm6845, %v4044, %v8248
        %v8250 = vsel %vm6847, %v4058, %v8249
        %v8251 = vsel %vm6835, %v4135, %v4121
        %v8252 = vsel %vm6837, %v4149, %v8251
        %v8253 = vsel %vm6839, %v4163, %v8252
        %v8254 = vsel %vm6841, %v4177, %v8253
        %v8255 = vsel %vm6843, %v4191, %v8254
        %v8256 = vsel %vm6845, %v4205, %v8255
        %v8257 = vsel %vm6847, %v4219, %v8256
        %v8258 = vsel %vm6835, %v4142, %v4128
        %v8259 = vsel %vm6837, %v4156, %v8258
        %v8260 = vsel %vm6839, %v4170, %v8259
        %v8261 = vsel %vm6841, %v4184, %v8260
        %v8262 = vsel %vm6843, %v4198, %v8261
        %v8263 = vsel %vm6845, %v4212, %v8262
        %v8264 = vsel %vm6847, %v4226, %v8263
        %v8265 = vsel %vm6835, %v4303, %v4289
        %v8266 = vsel %vm6837, %v4317, %v8265
        %v8267 = vsel %vm6839, %v4331, %v8266
        %v8268 = vsel %vm6841, %v4345, %v8267
        %v8269 = vsel %vm6843, %v4359, %v8268
        %v8270 = vsel %vm6845, %v4373, %v8269
        %v8271 = vsel %vm6847, %v4387, %v8270
        %v8272 = vsel %vm6835, %v4310, %v4296
        %v8273 = vsel %vm6837, %v4324, %v8272
        %v8274 = vsel %vm6839, %v4338, %v8273
        %v8275 = vsel %vm6841, %v4352, %v8274
        %v8276 = vsel %vm6843, %v4366, %v8275
        %v8277 = vsel %vm6845, %v4380, %v8276
        %v8278 = vsel %vm6847, %v4394, %v8277
        %v8279 = vsel %vm6835, %v4471, %v4457
        %v8280 = vsel %vm6837, %v4485, %v8279
        %v8281 = vsel %vm6839, %v4499, %v8280
        %v8282 = vsel %vm6841, %v4513, %v8281
        %v8283 = vsel %vm6843, %v4527, %v8282
        %v8284 = vsel %vm6845, %v4541, %v8283
        %v8285 = vsel %vm6847, %v4555, %v8284
        %v8286 = vsel %vm6835, %v4478, %v4464
        %v8287 = vsel %vm6837, %v4492, %v8286
        %v8288 = vsel %vm6839, %v4506, %v8287
        %v8289 = vsel %vm6841, %v4520, %v8288
        %v8290 = vsel %vm6843, %v4534, %v8289
        %v8291 = vsel %vm6845, %v4548, %v8290
        %v8292 = vsel %vm6847, %v4562, %v8291
        %v8293 = vsel %vm6835, %v4639, %v4625
        %v8294 = vsel %vm6837, %v4653, %v8293
        %v8295 = vsel %vm6839, %v4667, %v8294
        %v8296 = vsel %vm6841, %v4681, %v8295
        %v8297 = vsel %vm6843, %v4695, %v8296
        %v8298 = vsel %vm6845, %v4709, %v8297
        %v8299 = vsel %vm6847, %v4723, %v8298
        %v8300 = vsel %vm6835, %v4646, %v4632
        %v8301 = vsel %vm6837, %v4660, %v8300
        %v8302 = vsel %vm6839, %v4674, %v8301
        %v8303 = vsel %vm6841, %v4688, %v8302
        %v8304 = vsel %vm6843, %v4702, %v8303
        %v8305 = vsel %vm6845, %v4716, %v8304
        %v8306 = vsel %vm6847, %v4730, %v8305
        %v8307 = vsel %vm6835, %v4807, %v4793
        %v8308 = vsel %vm6837, %v4821, %v8307
        %v8309 = vsel %vm6839, %v4835, %v8308
        %v8310 = vsel %vm6841, %v4849, %v8309
        %v8311 = vsel %vm6843, %v4863, %v8310
        %v8312 = vsel %vm6845, %v4877, %v8311
        %v8313 = vsel %vm6847, %v4891, %v8312
        %v8314 = vsel %vm6835, %v4814, %v4800
        %v8315 = vsel %vm6837, %v4828, %v8314
        %v8316 = vsel %vm6839, %v4842, %v8315
        %v8317 = vsel %vm6841, %v4856, %v8316
        %v8318 = vsel %vm6843, %v4870, %v8317
        %v8319 = vsel %vm6845, %v4884, %v8318
        %v8320 = vsel %vm6847, %v4898, %v8319
        %v8321 = vsel %vm6835, %v4975, %v4961
        %v8322 = vsel %vm6837, %v4989, %v8321
        %v8323 = vsel %vm6839, %v5003, %v8322
        %v8324 = vsel %vm6841, %v5017, %v8323
        %v8325 = vsel %vm6843, %v5031, %v8324
        %v8326 = vsel %vm6845, %v5045, %v8325
        %v8327 = vsel %vm6847, %v5059, %v8326
        %v8328 = vsel %vm6835, %v4982, %v4968
        %v8329 = vsel %vm6837, %v4996, %v8328
        %v8330 = vsel %vm6839, %v5010, %v8329
        %v8331 = vsel %vm6841, %v5024, %v8330
        %v8332 = vsel %vm6843, %v5038, %v8331
        %v8333 = vsel %vm6845, %v5052, %v8332
        %v8334 = vsel %vm6847, %v5066, %v8333
        %v8335 = vsel %vm6835, %v5143, %v5129
        %v8336 = vsel %vm6837, %v5157, %v8335
        %v8337 = vsel %vm6839, %v5171, %v8336
        %v8338 = vsel %vm6841, %v5185, %v8337
        %v8339 = vsel %vm6843, %v5199, %v8338
        %v8340 = vsel %vm6845, %v5213, %v8339
        %v8341 = vsel %vm6847, %v5227, %v8340
        %v8342 = vsel %vm6835, %v5150, %v5136
        %v8343 = vsel %vm6837, %v5164, %v8342
        %v8344 = vsel %vm6839, %v5178, %v8343
        %v8345 = vsel %vm6841, %v5192, %v8344
        %v8346 = vsel %vm6843, %v5206, %v8345
        %v8347 = vsel %vm6845, %v5220, %v8346
        %v8348 = vsel %vm6847, %v5234, %v8347
        %v8349 = vsel %vm6835, %v5311, %v5297
        %v8350 = vsel %vm6837, %v5325, %v8349
        %v8351 = vsel %vm6839, %v5339, %v8350
        %v8352 = vsel %vm6841, %v5353, %v8351
        %v8353 = vsel %vm6843, %v5367, %v8352
        %v8354 = vsel %vm6845, %v5381, %v8353
        %v8355 = vsel %vm6847, %v5395, %v8354
        %v8356 = vsel %vm6835, %v5318, %v5304
        %v8357 = vsel %vm6837, %v5332, %v8356
        %v8358 = vsel %vm6839, %v5346, %v8357
        %v8359 = vsel %vm6841, %v5360, %v8358
        %v8360 = vsel %vm6843, %v5374, %v8359
        %v8361 = vsel %vm6845, %v5388, %v8360
        %v8362 = vsel %vm6847, %v5402, %v8361
        %v8363 = vsel %vm6835, %v5479, %v5465
        %v8364 = vsel %vm6837, %v5493, %v8363
        %v8365 = vsel %vm6839, %v5507, %v8364
        %v8366 = vsel %vm6841, %v5521, %v8365
        %v8367 = vsel %vm6843, %v5535, %v8366
        %v8368 = vsel %vm6845, %v5549, %v8367
        %v8369 = vsel %vm6847, %v5563, %v8368
        %v8370 = vsel %vm6835, %v5486, %v5472
        %v8371 = vsel %vm6837, %v5500, %v8370
        %v8372 = vsel %vm6839, %v5514, %v8371
        %v8373 = vsel %vm6841, %v5528, %v8372
        %v8374 = vsel %vm6843, %v5542, %v8373
        %v8375 = vsel %vm6845, %v5556, %v8374
        %v8376 = vsel %vm6847, %v5570, %v8375
        %v8377 = vsel %vm6835, %v5647, %v5633
        %v8378 = vsel %vm6837, %v5661, %v8377
        %v8379 = vsel %vm6839, %v5675, %v8378
        %v8380 = vsel %vm6841, %v5689, %v8379
        %v8381 = vsel %vm6843, %v5703, %v8380
        %v8382 = vsel %vm6845, %v5717, %v8381
        %v8383 = vsel %vm6847, %v5731, %v8382
        %v8384 = vsel %vm6835, %v5654, %v5640
        %v8385 = vsel %vm6837, %v5668, %v8384
        %v8386 = vsel %vm6839, %v5682, %v8385
        %v8387 = vsel %vm6841, %v5696, %v8386
        %v8388 = vsel %vm6843, %v5710, %v8387
        %v8389 = vsel %vm6845, %v5724, %v8388
        %v8390 = vsel %vm6847, %v5738, %v8389
        %v8391 = vsel %vm6835, %v5815, %v5801
        %v8392 = vsel %vm6837, %v5829, %v8391
        %v8393 = vsel %vm6839, %v5843, %v8392
        %v8394 = vsel %vm6841, %v5857, %v8393
        %v8395 = vsel %vm6843, %v5871, %v8394
        %v8396 = vsel %vm6845, %v5885, %v8395
        %v8397 = vsel %vm6847, %v5899, %v8396
        %v8398 = vsel %vm6835, %v5822, %v5808
        %v8399 = vsel %vm6837, %v5836, %v8398
        %v8400 = vsel %vm6839, %v5850, %v8399
        %v8401 = vsel %vm6841, %v5864, %v8400
        %v8402 = vsel %vm6843, %v5878, %v8401
        %v8403 = vsel %vm6845, %v5892, %v8402
        %v8404 = vsel %vm6847, %v5906, %v8403
        %v8405 = vsel %vm6835, %v5983, %v5969
        %v8406 = vsel %vm6837, %v5997, %v8405
        %v8407 = vsel %vm6839, %v6011, %v8406
        %v8408 = vsel %vm6841, %v6025, %v8407
        %v8409 = vsel %vm6843, %v6039, %v8408
        %v8410 = vsel %vm6845, %v6053, %v8409
        %v8411 = vsel %vm6847, %v6067, %v8410
        %v8412 = vsel %vm6835, %v5990, %v5976
        %v8413 = vsel %vm6837, %v6004, %v8412
        %v8414 = vsel %vm6839, %v6018, %v8413
        %v8415 = vsel %vm6841, %v6032, %v8414
        %v8416 = vsel %vm6843, %v6046, %v8415
        %v8417 = vsel %vm6845, %v6060, %v8416
        %v8418 = vsel %vm6847, %v6074, %v8417
        %v8419 = vsel %vm6835, %v6151, %v6137
        %v8420 = vsel %vm6837, %v6165, %v8419
        %v8421 = vsel %vm6839, %v6179, %v8420
        %v8422 = vsel %vm6841, %v6193, %v8421
        %v8423 = vsel %vm6843, %v6207, %v8422
        %v8424 = vsel %vm6845, %v6221, %v8423
        %v8425 = vsel %vm6847, %v6235, %v8424
        %v8426 = vsel %vm6835, %v6158, %v6144
        %v8427 = vsel %vm6837, %v6172, %v8426
        %v8428 = vsel %vm6839, %v6186, %v8427
        %v8429 = vsel %vm6841, %v6200, %v8428
        %v8430 = vsel %vm6843, %v6214, %v8429
        %v8431 = vsel %vm6845, %v6228, %v8430
        %v8432 = vsel %vm6847, %v6242, %v8431
        %v8433 = vsel %vm6835, %v6319, %v6305
        %v8434 = vsel %vm6837, %v6333, %v8433
        %v8435 = vsel %vm6839, %v6347, %v8434
        %v8436 = vsel %vm6841, %v6361, %v8435
        %v8437 = vsel %vm6843, %v6375, %v8436
        %v8438 = vsel %vm6845, %v6389, %v8437
        %v8439 = vsel %vm6847, %v6403, %v8438
        %v8440 = vsel %vm6835, %v6326, %v6312
        %v8441 = vsel %vm6837, %v6340, %v8440
        %v8442 = vsel %vm6839, %v6354, %v8441
        %v8443 = vsel %vm6841, %v6368, %v8442
        %v8444 = vsel %vm6843, %v6382, %v8443
        %v8445 = vsel %vm6845, %v6396, %v8444
        %v8446 = vsel %vm6847, %v6410, %v8445
        %v8447 = vsel %vm6835, %v6487, %v6473
        %v8448 = vsel %vm6837, %v6501, %v8447
        %v8449 = vsel %vm6839, %v6515, %v8448
        %v8450 = vsel %vm6841, %v6529, %v8449
        %v8451 = vsel %vm6843, %v6543, %v8450
        %v8452 = vsel %vm6845, %v6557, %v8451
        %v8453 = vsel %vm6847, %v6571, %v8452
        %v8454 = vsel %vm6835, %v6494, %v6480
        %v8455 = vsel %vm6837, %v6508, %v8454
        %v8456 = vsel %vm6839, %v6522, %v8455
        %v8457 = vsel %vm6841, %v6536, %v8456
        %v8458 = vsel %vm6843, %v6550, %v8457
        %v8459 = vsel %vm6845, %v6564, %v8458
        %v8460 = vsel %vm6847, %v6578, %v8459
        %8461 = vrot.lane.b32.xlu0 %v8243, 64
        %v8462 = vpop.permute.xlu0 %8461
        %8463 = vrot.lane.b32.xlu0 %v8250, 64
        %v8464 = vpop.permute.xlu0 %8463
        %8465 = vrot.lane.b32.xlu0 %v8257, 64
        %v8466 = vpop.permute.xlu0 %8465
        %8467 = vrot.lane.b32.xlu0 %v8264, 64
        %v8468 = vpop.permute.xlu0 %8467
        %8469 = vrot.lane.b32.xlu0 %v8271, 64
        %v8470 = vpop.permute.xlu0 %8469
        %8471 = vrot.lane.b32.xlu0 %v8278, 64
        %v8472 = vpop.permute.xlu0 %8471
        %8473 = vrot.lane.b32.xlu0 %v8285, 64
        %v8474 = vpop.permute.xlu0 %8473
        %8475 = vrot.lane.b32.xlu0 %v8292, 64
        %v8476 = vpop.permute.xlu0 %8475
        %8477 = vrot.lane.b32.xlu0 %v8299, 64
        %v8478 = vpop.permute.xlu0 %8477
        %8479 = vrot.lane.b32.xlu0 %v8306, 64
        %v8480 = vpop.permute.xlu0 %8479
        %8481 = vrot.lane.b32.xlu0 %v8313, 64
        %v8482 = vpop.permute.xlu0 %8481
        %8483 = vrot.lane.b32.xlu0 %v8320, 64
        %v8484 = vpop.permute.xlu0 %8483
        %8485 = vrot.lane.b32.xlu0 %v8327, 64
        %v8486 = vpop.permute.xlu0 %8485
        %8487 = vrot.lane.b32.xlu0 %v8334, 64
        %v8488 = vpop.permute.xlu0 %8487
        %8489 = vrot.lane.b32.xlu0 %v8341, 64
        %v8490 = vpop.permute.xlu0 %8489
        %8491 = vrot.lane.b32.xlu0 %v8348, 64
        %v8492 = vpop.permute.xlu0 %8491
        %8493 = vrot.lane.b32.xlu0 %v8355, 64
        %v8494 = vpop.permute.xlu0 %8493
        %8495 = vrot.lane.b32.xlu0 %v8362, 64
        %v8496 = vpop.permute.xlu0 %8495
        %8497 = vrot.lane.b32.xlu0 %v8369, 64
        %v8498 = vpop.permute.xlu0 %8497
        %8499 = vrot.lane.b32.xlu0 %v8376, 64
        %v8500 = vpop.permute.xlu0 %8499
        %8501 = vrot.lane.b32.xlu0 %v8383, 64
        %v8502 = vpop.permute.xlu0 %8501
        %8503 = vrot.lane.b32.xlu0 %v8390, 64
        %v8504 = vpop.permute.xlu0 %8503
        %8505 = vrot.lane.b32.xlu0 %v8397, 64
        %v8506 = vpop.permute.xlu0 %8505
        %8507 = vrot.lane.b32.xlu0 %v8404, 64
        %v8508 = vpop.permute.xlu0 %8507
        %8509 = vrot.lane.b32.xlu0 %v8411, 64
        %v8510 = vpop.permute.xlu0 %8509
        %8511 = vrot.lane.b32.xlu0 %v8418, 64
        %v8512 = vpop.permute.xlu0 %8511
        %8513 = vrot.lane.b32.xlu0 %v8425, 64
        %v8514 = vpop.permute.xlu0 %8513
        %8515 = vrot.lane.b32.xlu0 %v8432, 64
        %v8516 = vpop.permute.xlu0 %8515
        %8517 = vrot.lane.b32.xlu0 %v8439, 64
        %v8518 = vpop.permute.xlu0 %8517
        %8519 = vrot.lane.b32.xlu0 %v8446, 64
        %v8520 = vpop.permute.xlu0 %8519
        %8521 = vrot.lane.b32.xlu0 %v8453, 64
        %v8522 = vpop.permute.xlu0 %8521
        %8523 = vrot.lane.b32.xlu0 %v8460, 64
        %v8524 = vpop.permute.xlu0 %8523
        %vm8525 = vcmask 523264
        %v8526 = vsel %vm8525, %v8462, %v8464
        %v8527 = vsel %vm8525, %v8466, %v8468
        %v8528 = vsel %vm8525, %v8470, %v8472
        %v8529 = vsel %vm8525, %v8474, %v8476
        %v8530 = vsel %vm8525, %v8478, %v8480
        %v8531 = vsel %vm8525, %v8482, %v8484
        %v8532 = vsel %vm8525, %v8486, %v8488
        %v8533 = vsel %vm8525, %v8490, %v8492
        %v8534 = vsel %vm8525, %v8494, %v8496
        %v8535 = vsel %vm8525, %v8498, %v8500
        %v8536 = vsel %vm8525, %v8502, %v8504
        %v8537 = vsel %vm8525, %v8506, %v8508
        %v8538 = vsel %vm8525, %v8510, %v8512
        %v8539 = vsel %vm8525, %v8514, %v8516
        %v8540 = vsel %vm8525, %v8518, %v8520
        %v8541 = vsel %vm8525, %v8522, %v8524
        %v8574 = vsel %vm7418, %v6855, %v7355
        %v8575 = vsel %vm7418, %v6869, %v7359
        %v8576 = vsel %vm7418, %v6883, %v7363
        %v8577 = vsel %vm7418, %v6897, %v7367
        %v8578 = vsel %vm7418, %v6911, %v7371
        %v8579 = vsel %vm7418, %v6925, %v7375
        %v8580 = vsel %vm7418, %v6939, %v7379
        %v8581 = vsel %vm7418, %v6953, %v7383
        %v8582 = vsel %vm7418, %v6967, %v7387
        %v8583 = vsel %vm7418, %v6981, %v7391
        %v8584 = vsel %vm7418, %v6995, %v7395
        %v8585 = vsel %vm7418, %v7009, %v7399
        %v8586 = vsel %vm7418, %v7023, %v7403
        %v8587 = vsel %vm7418, %v7037, %v7407
        %v8588 = vsel %vm7418, %v7051, %v7411
        %v8589 = vsel %vm7418, %v7065, %v7415
        %v8590 = vsel %vm7787, %v7419, %v7724
        %v8591 = vsel %vm7787, %v7420, %v7728
        %v8592 = vsel %vm7787, %v7421, %v7732
        %v8593 = vsel %vm7787, %v7422, %v7736
        %v8594 = vsel %vm7787, %v7423, %v7740
        %v8595 = vsel %vm7787, %v7424, %v7744
        %v8596 = vsel %vm7787, %v7425, %v7748
        %v8597 = vsel %vm7787, %v7426, %v7752
        %v8598 = vsel %vm7787, %v7427, %v7756
        %v8599 = vsel %vm7787, %v7428, %v7760
        %v8600 = vsel %vm7787, %v7429, %v7764
        %v8601 = vsel %vm7787, %v7430, %v7768
        %v8602 = vsel %vm7787, %v7431, %v7772
        %v8603 = vsel %vm7787, %v7432, %v7776
        %v8604 = vsel %vm7787, %v7433, %v7780
        %v8605 = vsel %vm7787, %v7434, %v7784
        %v8606 = vsel %vm8156, %v7788, %v8093
        %v8607 = vsel %vm8156, %v7789, %v8097
        %v8608 = vsel %vm8156, %v7790, %v8101
        %v8609 = vsel %vm8156, %v7791, %v8105
        %v8610 = vsel %vm8156, %v7792, %v8109
        %v8611 = vsel %vm8156, %v7793, %v8113
        %v8612 = vsel %vm8156, %v7794, %v8117
        %v8613 = vsel %vm8156, %v7795, %v8121
        %v8614 = vsel %vm8156, %v7796, %v8125
        %v8615 = vsel %vm8156, %v7797, %v8129
        %v8616 = vsel %vm8156, %v7798, %v8133
        %v8617 = vsel %vm8156, %v7799, %v8137
        %v8618 = vsel %vm8156, %v7800, %v8141
        %v8619 = vsel %vm8156, %v7801, %v8145
        %v8620 = vsel %vm8156, %v7802, %v8149
        %v8621 = vsel %vm8156, %v7803, %v8153
        %v8622 = vsel %vm8525, %v8157, %v8462
        %v8623 = vsel %vm8525, %v8158, %v8466
        %v8624 = vsel %vm8525, %v8159, %v8470
        %v8625 = vsel %vm8525, %v8160, %v8474
        %v8626 = vsel %vm8525, %v8161, %v8478
        %v8627 = vsel %vm8525, %v8162, %v8482
        %v8628 = vsel %vm8525, %v8163, %v8486
        %v8629 = vsel %vm8525, %v8164, %v8490
        %v8630 = vsel %vm8525, %v8165, %v8494
        %v8631 = vsel %vm8525, %v8166, %v8498
        %v8632 = vsel %vm8525, %v8167, %v8502
        %v8633 = vsel %vm8525, %v8168, %v8506
        %v8634 = vsel %vm8525, %v8169, %v8510
        %v8635 = vsel %vm8525, %v8170, %v8514
        %v8636 = vsel %vm8525, %v8171, %v8518
        %v8637 = vsel %vm8525, %v8172, %v8522
        %v8638 = vpack.c.bf16 %v6862, %v6848
        %v8639 = vpack.c.bf16 %v8575, %v8574
        %v8640 = vpack.c.bf16 %v8591, %v8590
        %v8641 = vpack.c.bf16 %v8607, %v8606
        %v8642 = vpack.c.bf16 %v8623, %v8622
        %v8643 = vpack.c.bf16 %v8527, %v8526
        %v8644 = vpack.c.bf16 %v6890, %v6876
        %v8645 = vpack.c.bf16 %v8577, %v8576
        %v8646 = vpack.c.bf16 %v8593, %v8592
        %v8647 = vpack.c.bf16 %v8609, %v8608
        %v8648 = vpack.c.bf16 %v8625, %v8624
        %v8649 = vpack.c.bf16 %v8529, %v8528
        %v8650 = vpack.c.bf16 %v6918, %v6904
        %v8651 = vpack.c.bf16 %v8579, %v8578
        %v8652 = vpack.c.bf16 %v8595, %v8594
        %v8653 = vpack.c.bf16 %v8611, %v8610
        %v8654 = vpack.c.bf16 %v8627, %v8626
        %v8655 = vpack.c.bf16 %v8531, %v8530
        %v8656 = vpack.c.bf16 %v6946, %v6932
        %v8657 = vpack.c.bf16 %v8581, %v8580
        %v8658 = vpack.c.bf16 %v8597, %v8596
        %v8659 = vpack.c.bf16 %v8613, %v8612
        %v8660 = vpack.c.bf16 %v8629, %v8628
        %v8661 = vpack.c.bf16 %v8533, %v8532
        %v8662 = vpack.c.bf16 %v6974, %v6960
        %v8663 = vpack.c.bf16 %v8583, %v8582
        %v8664 = vpack.c.bf16 %v8599, %v8598
        %v8665 = vpack.c.bf16 %v8615, %v8614
        %v8666 = vpack.c.bf16 %v8631, %v8630
        %v8667 = vpack.c.bf16 %v8535, %v8534
        %v8668 = vpack.c.bf16 %v7002, %v6988
        %v8669 = vpack.c.bf16 %v8585, %v8584
        %v8670 = vpack.c.bf16 %v8601, %v8600
        %v8671 = vpack.c.bf16 %v8617, %v8616
        %v8672 = vpack.c.bf16 %v8633, %v8632
        %v8673 = vpack.c.bf16 %v8537, %v8536
        %v8674 = vpack.c.bf16 %v7030, %v7016
        %v8675 = vpack.c.bf16 %v8587, %v8586
        %v8676 = vpack.c.bf16 %v8603, %v8602
        %v8677 = vpack.c.bf16 %v8619, %v8618
        %v8678 = vpack.c.bf16 %v8635, %v8634
        %v8679 = vpack.c.bf16 %v8539, %v8538
        %v8680 = vpack.c.bf16 %v7058, %v7044
        %v8681 = vpack.c.bf16 %v8589, %v8588
        %v8682 = vpack.c.bf16 %v8605, %v8604
        %v8683 = vpack.c.bf16 %v8621, %v8620
        %v8684 = vpack.c.bf16 %v8637, %v8636
        %v8685 = vpack.c.bf16 %v8541, %v8540
        %v8686 = vld [vmem:[%s2] sm:$0xf]
        %v8687 = vld [vmem:[%s2 + $0x4] sm:$0xf]
        %v8688 = vld [vmem:[%s2 + $0x8] sm:$0xf]
        %v8689 = vld [vmem:[%s2 + $0xc] sm:$0xf]
        %v8690 = vld [vmem:[%s2 + $0x10] sm:$0xf]
        %v8691 = vld [vmem:[%s2 + $0x14] sm:$0xf]
        %v8692 = vld [vmem:[%s2 + $0x18] sm:$0xf]
        %v8693 = vld [vmem:[%s2 + $0x1c] sm:$0xf]
        %v8694 = vld [vmem:[%s2 + $0x20] sm:$0xf]
        %v8695 = vld [vmem:[%s2 + $0x24] sm:$0xf]
        %v8696 = vld [vmem:[%s2 + $0x28] sm:$0xf]
        %v8697 = vld [vmem:[%s2 + $0x2c] sm:$0xf]
        %v8698 = vld [vmem:[%s2 + $0x30] sm:$0xf]
        %v8699 = vld [vmem:[%s2 + $0x34] sm:$0xf]
        %v8700 = vld [vmem:[%s2 + $0x38] sm:$0xf]
        %v8701 = vld [vmem:[%s2 + $0x3c] sm:$0xf]
        %v8702 = vld [vmem:[%s2 + $0x40] sm:$0xf]
        %v8703 = vld [vmem:[%s2 + $0x44] sm:$0xf]
        %v8704 = vld [vmem:[%s2 + $0x48] sm:$0xf]
        %v8705 = vld [vmem:[%s2 + $0x4c] sm:$0xf]
        %v8706 = vld [vmem:[%s2 + $0x50] sm:$0xf]
        %v8707 = vld [vmem:[%s2 + $0x54] sm:$0xf]
        %v8708 = vld [vmem:[%s2 + $0x58] sm:$0xf]
        %v8709 = vld [vmem:[%s2 + $0x5c] sm:$0xf]
        %v8710 = vld [vmem:[%s2 + $0x60] sm:$0xf]
        %v8711 = vld [vmem:[%s2 + $0x64] sm:$0xf]
        %v8712 = vld [vmem:[%s2 + $0x68] sm:$0xf]
        %v8713 = vld [vmem:[%s2 + $0x6c] sm:$0xf]
        %v8714 = vld [vmem:[%s2 + $0x70] sm:$0xf]
        %v8715 = vld [vmem:[%s2 + $0x74] sm:$0xf]
        %v8716 = vld [vmem:[%s2 + $0x78] sm:$0xf]
        %v8717 = vld [vmem:[%s2 + $0x7c] sm:$0xf]
        %v8718 = vld [vmem:[%s2 + $0x80] sm:$0xf]
        %v8719 = vld [vmem:[%s2 + $0x84] sm:$0xf]
        %v8720 = vld [vmem:[%s2 + $0x88] sm:$0xf]
        %v8721 = vld [vmem:[%s2 + $0x8c] sm:$0xf]
        %v8722 = vld [vmem:[%s2 + $0x90] sm:$0xf]
        %v8723 = vld [vmem:[%s2 + $0x94] sm:$0xf]
        %v8724 = vld [vmem:[%s2 + $0x98] sm:$0xf]
        %v8725 = vld [vmem:[%s2 + $0x9c] sm:$0xf]
        %v8726 = vld [vmem:[%s2 + $0xa0] sm:$0xf]
        %v8727 = vld [vmem:[%s2 + $0xa4] sm:$0xf]
        %v8728 = vld [vmem:[%s2 + $0xa8] sm:$0xf]
        %v8729 = vld [vmem:[%s2 + $0xac] sm:$0xf]
        %v8730 = vld [vmem:[%s2 + $0xb0] sm:$0xf]
        %v8731 = vld [vmem:[%s2 + $0xb4] sm:$0xf]
        %v8732 = vld [vmem:[%s2 + $0xb8] sm:$0xf]
        %v8733 = vld [vmem:[%s2 + $0xbc] sm:$0xf]
        %v8734 = vld [vmem:[%s2 + $0xc0] sm:$0xf]
        %v8735 = vld [vmem:[%s2 + $0xc4] sm:$0xf]
        %v8736 = vld [vmem:[%s2 + $0xc8] sm:$0xf]
        %v8737 = vld [vmem:[%s2 + $0xcc] sm:$0xf]
        %v8738 = vld [vmem:[%s2 + $0xd0] sm:$0xf]
        %v8739 = vld [vmem:[%s2 + $0xd4] sm:$0xf]
        %v8740 = vld [vmem:[%s2 + $0xd8] sm:$0xf]
        %v8741 = vld [vmem:[%s2 + $0xdc] sm:$0xf]
        %v8742 = vld [vmem:[%s2 + $0xe0] sm:$0xf]
        %v8743 = vld [vmem:[%s2 + $0xe4] sm:$0xf]
        %v8744 = vld [vmem:[%s2 + $0xe8] sm:$0xf]
        %v8745 = vld [vmem:[%s2 + $0xec] sm:$0xf]
        %v8746 = vld [vmem:[%s2 + $0xf0] sm:$0xf]
        %v8747 = vld [vmem:[%s2 + $0xf4] sm:$0xf]
        %v8748 = vld [vmem:[%s2 + $0xf8] sm:$0xf]
        %v8749 = vld [vmem:[%s2 + $0xfc] sm:$0xf]
        %v8750 = vld [vmem:[%s2 + $0x100] sm:$0xf]
        %v8751 = vld [vmem:[%s2 + $0x104] sm:$0xf]
        %v8752 = vld [vmem:[%s2 + $0x108] sm:$0xf]
        %v8753 = vld [vmem:[%s2 + $0x10c] sm:$0xf]
        %v8754 = vld [vmem:[%s2 + $0x110] sm:$0xf]
        %v8755 = vld [vmem:[%s2 + $0x114] sm:$0xf]
        %v8756 = vld [vmem:[%s2 + $0x118] sm:$0xf]
        %v8757 = vld [vmem:[%s2 + $0x11c] sm:$0xf]
        %v8758 = vld [vmem:[%s2 + $0x120] sm:$0xf]
        %v8759 = vld [vmem:[%s2 + $0x124] sm:$0xf]
        %v8760 = vld [vmem:[%s2 + $0x128] sm:$0xf]
        %v8761 = vld [vmem:[%s2 + $0x12c] sm:$0xf]
        %v8762 = vld [vmem:[%s2 + $0x130] sm:$0xf]
        %v8763 = vld [vmem:[%s2 + $0x134] sm:$0xf]
        %v8764 = vld [vmem:[%s2 + $0x138] sm:$0xf]
        %v8765 = vld [vmem:[%s2 + $0x13c] sm:$0xf]
        %v8766 = vld [vmem:[%s2 + $0x140] sm:$0xf]
        %v8767 = vld [vmem:[%s2 + $0x144] sm:$0xf]
        %v8768 = vld [vmem:[%s2 + $0x148] sm:$0xf]
        %v8769 = vld [vmem:[%s2 + $0x14c] sm:$0xf]
        %v8770 = vld [vmem:[%s2 + $0x150] sm:$0xf]
        %v8771 = vld [vmem:[%s2 + $0x154] sm:$0xf]
        %v8772 = vld [vmem:[%s2 + $0x158] sm:$0xf]
        %v8773 = vld [vmem:[%s2 + $0x15c] sm:$0xf]
        %v8774 = vld [vmem:[%s2 + $0x160] sm:$0xf]
        %v8775 = vld [vmem:[%s2 + $0x164] sm:$0xf]
        %v8866 = vunpack.c.l.b16 %v8686
        %v8867 = vunpack.c.l.b16 %v8687
        %v8868 = vunpack.c.l.b16 %v8688
        %v8869 = vunpack.c.l.b16 %v8689
        %v8870 = vunpack.c.l.b16 %v8690
        %v8871 = vunpack.c.l.b16 %v8691
        %v8872 = vunpack.c.l.b16 %v8692
        %v8873 = vunpack.c.l.b16 %v8693
        %v8874 = vunpack.c.l.b16 %v8694
        %v8875 = vunpack.c.l.b16 %v8695
        %v8876 = vunpack.c.l.b16 %v8696
        %v8877 = vunpack.c.l.b16 %v8697
        %v8878 = vunpack.c.l.b16 %v8698
        %v8879 = vunpack.c.l.b16 %v8699
        %v8880 = vunpack.c.l.b16 %v8700
        %v8881 = vunpack.c.l.b16 %v8701
        %v8882 = vunpack.c.l.b16 %v8702
        %v8883 = vunpack.c.l.b16 %v8703
        %v8884 = vunpack.c.l.b16 %v8704
        %v8885 = vunpack.c.l.b16 %v8705
        %v8886 = vunpack.c.l.b16 %v8706
        %v8887 = vunpack.c.l.b16 %v8707
        %v8888 = vunpack.c.l.b16 %v8708
        %v8889 = vunpack.c.l.b16 %v8709
        %v8890 = vunpack.c.l.b16 %v8710
        %v8891 = vunpack.c.l.b16 %v8711
        %v8892 = vunpack.c.l.b16 %v8712
        %v8893 = vunpack.c.l.b16 %v8713
        %v8894 = vunpack.c.l.b16 %v8714
        %v8895 = vunpack.c.l.b16 %v8715
        %v8896 = vunpack.c.l.b16 %v8716
        %v8897 = vunpack.c.l.b16 %v8717
        %v8898 = vunpack.c.l.b16 %v8718
        %v8899 = vunpack.c.l.b16 %v8719
        %v8900 = vunpack.c.l.b16 %v8720
        %v8901 = vunpack.c.l.b16 %v8721
        %v8902 = vunpack.c.l.b16 %v8722
        %v8903 = vunpack.c.l.b16 %v8723
        %v8904 = vunpack.c.l.b16 %v8724
        %v8905 = vunpack.c.l.b16 %v8725
        %v8906 = vunpack.c.l.b16 %v8726
        %v8907 = vunpack.c.l.b16 %v8727
        %v8908 = vunpack.c.l.b16 %v8728
        %v8909 = vunpack.c.l.b16 %v8729
        %v8910 = vunpack.c.l.b16 %v8730
        %v8911 = vunpack.c.l.b16 %v8731
        %v8912 = vunpack.c.l.b16 %v8732
        %v8913 = vunpack.c.l.b16 %v8733
        %v8914 = vunpack.c.l.b16 %v8734
        %v8915 = vunpack.c.l.b16 %v8735
        %v8916 = vunpack.c.l.b16 %v8736
        %v8917 = vunpack.c.l.b16 %v8737
        %v8918 = vunpack.c.l.b16 %v8738
        %v8919 = vunpack.c.l.b16 %v8739
        %v8920 = vunpack.c.l.b16 %v8740
        %v8921 = vunpack.c.l.b16 %v8741
        %v8922 = vunpack.c.l.b16 %v8742
        %v8923 = vunpack.c.l.b16 %v8743
        %v8924 = vunpack.c.l.b16 %v8744
        %v8925 = vunpack.c.l.b16 %v8745
        %v8926 = vunpack.c.l.b16 %v8746
        %v8927 = vunpack.c.l.b16 %v8747
        %v8928 = vunpack.c.l.b16 %v8748
        %v8929 = vunpack.c.l.b16 %v8749
        %v8930 = vunpack.c.l.b16 %v8750
        %v8931 = vunpack.c.l.b16 %v8751
        %v8932 = vunpack.c.l.b16 %v8752
        %v8933 = vunpack.c.l.b16 %v8753
        %v8934 = vunpack.c.l.b16 %v8754
        %v8935 = vunpack.c.l.b16 %v8755
        %v8936 = vunpack.c.l.b16 %v8756
        %v8937 = vunpack.c.l.b16 %v8757
        %v8938 = vunpack.c.l.b16 %v8758
        %v8939 = vunpack.c.l.b16 %v8759
        %v8940 = vunpack.c.l.b16 %v8760
        %v8941 = vunpack.c.l.b16 %v8761
        %v8942 = vunpack.c.l.b16 %v8762
        %v8943 = vunpack.c.l.b16 %v8763
        %v8944 = vunpack.c.l.b16 %v8764
        %v8945 = vunpack.c.l.b16 %v8765
        %v8946 = vunpack.c.l.b16 %v8766
        %v8947 = vunpack.c.l.b16 %v8767
        %v8948 = vunpack.c.l.b16 %v8768
        %v8949 = vunpack.c.l.b16 %v8769
        %v8950 = vunpack.c.l.b16 %v8770
        %v8951 = vunpack.c.l.b16 %v8771
        %v8952 = vunpack.c.l.b16 %v8772
        %v8953 = vunpack.c.l.b16 %v8773
        %v8954 = vunpack.c.l.b16 %v8774
        %v8955 = vunpack.c.l.b16 %v8775
        %v8956 = vpack.c.b16 %v8867, %v8866
        %v8957 = vpack.c.b16 %v8869, %v8868
        %v8958 = vpack.c.b16 %v8871, %v8870
        %v8959 = vpack.c.b16 %v8873, %v8872
        %v8960 = vpack.c.b16 %v8875, %v8874
        %v8961 = vpack.c.b16 %v8877, %v8876
        %v8962 = vpack.c.b16 %v8879, %v8878
        %v8963 = vpack.c.b16 %v8881, %v8880
        %v8964 = vpack.c.b16 %v8883, %v8882
        %v8965 = vpack.c.b16 %v8885, %v8884
        %v8966 = vpack.c.b16 %v8887, %v8886
        %v8967 = vpack.c.b16 %v8889, %v8888
        %v8968 = vpack.c.b16 %v8891, %v8890
        %v8969 = vpack.c.b16 %v8893, %v8892
        %v8970 = vpack.c.b16 %v8895, %v8894
        %v8971 = vpack.c.b16 %v8897, %v8896
        %v8972 = vpack.c.b16 %v8899, %v8898
        %v8973 = vpack.c.b16 %v8901, %v8900
        %v8974 = vpack.c.b16 %v8903, %v8902
        %v8975 = vpack.c.b16 %v8905, %v8904
        %v8976 = vpack.c.b16 %v8907, %v8906
        %v8977 = vpack.c.b16 %v8909, %v8908
        %v8978 = vpack.c.b16 %v8911, %v8910
        %v8979 = vpack.c.b16 %v8913, %v8912
        %v8980 = vpack.c.b16 %v8915, %v8914
        %v8981 = vpack.c.b16 %v8917, %v8916
        %v8982 = vpack.c.b16 %v8919, %v8918
        %v8983 = vpack.c.b16 %v8921, %v8920
        %v8984 = vpack.c.b16 %v8923, %v8922
        %v8985 = vpack.c.b16 %v8925, %v8924
        %v8986 = vpack.c.b16 %v8927, %v8926
        %v8987 = vpack.c.b16 %v8929, %v8928
        %v8988 = vpack.c.b16 %v8931, %v8930
        %v8989 = vpack.c.b16 %v8933, %v8932
        %v8990 = vpack.c.b16 %v8935, %v8934
        %v8991 = vpack.c.b16 %v8937, %v8936
        %v8992 = vpack.c.b16 %v8939, %v8938
        %v8993 = vpack.c.b16 %v8941, %v8940
        %v8994 = vpack.c.b16 %v8943, %v8942
        %v8995 = vpack.c.b16 %v8945, %v8944
        %v8996 = vpack.c.b16 %v8947, %v8946
        %v8997 = vpack.c.b16 %v8949, %v8948
        %v8998 = vpack.c.b16 %v8951, %v8950
        %v8999 = vpack.c.b16 %v8953, %v8952
        %v9000 = vpack.c.b16 %v8955, %v8954
        %vm9046 = vcmask 654336
        %v9048 = vsel %vm9046, %v8643, 0
        %v9051 = vsel %vm9046, %v8649, 0
        %v9054 = vsel %vm9046, %v8655, 0
        %v9057 = vsel %vm9046, %v8661, 0
        %v9060 = vsel %vm9046, %v8667, 0
        %v9063 = vsel %vm9046, %v8673, 0
        %v9066 = vsel %vm9046, %v8679, 0
        %v9069 = vsel %vm9046, %v8685, 0
        %9071 = vmatpush.bf16.msra.mxu0 %v8963
        %9072 = vmatpush.bf16.msra.mxu0 %v8962
        %9073 = vmatpush.bf16.msra.mxu0 %v8961
        %9074 = vmatpush.bf16.msra.mxu0 %v8960
        %9075 = vmatpush.bf16.msra.mxu0 %v8959
        %9076 = vmatpush.bf16.msra.mxu0 %v8958
        %9077 = vmatpush.bf16.msra.mxu0 %v8957
        %9078 = vmatpush.bf16.msra.mxu0 %v8956
        %9079 = vmatmul.bf16.gmra.mxu0 %v8638
        %v9080 = vpop.f32.mrf.mxu0
        %v9081 = vadd.f32 0.0, %v9080
        %v9082 = vpop.f32.mrf.mxu0
        %v9083 = vadd.f32 0.0, %v9082
        %9084 = vmatmul.bf16.gmra.mxu0 %v8644
        %v9085 = vpop.f32.mrf.mxu0
        %v9086 = vadd.f32 0.0, %v9085
        %v9087 = vpop.f32.mrf.mxu0
        %v9088 = vadd.f32 0.0, %v9087
        %9089 = vmatmul.bf16.gmra.mxu0 %v8650
        %v9090 = vpop.f32.mrf.mxu0
        %v9091 = vadd.f32 0.0, %v9090
        %v9092 = vpop.f32.mrf.mxu0
        %v9093 = vadd.f32 0.0, %v9092
        %9094 = vmatmul.bf16.gmra.mxu0 %v8656
        %v9095 = vpop.f32.mrf.mxu0
        %v9096 = vadd.f32 0.0, %v9095
        %v9097 = vpop.f32.mrf.mxu0
        %v9098 = vadd.f32 0.0, %v9097
        %9099 = vmatmul.bf16.gmra.mxu0 %v8662
        %v9100 = vpop.f32.mrf.mxu0
        %v9101 = vadd.f32 0.0, %v9100
        %v9102 = vpop.f32.mrf.mxu0
        %v9103 = vadd.f32 0.0, %v9102
        %9104 = vmatmul.bf16.gmra.mxu0 %v8668
        %v9105 = vpop.f32.mrf.mxu0
        %v9106 = vadd.f32 0.0, %v9105
        %v9107 = vpop.f32.mrf.mxu0
        %v9108 = vadd.f32 0.0, %v9107
        %9109 = vmatmul.bf16.gmra.mxu0 %v8674
        %v9110 = vpop.f32.mrf.mxu0
        %v9111 = vadd.f32 0.0, %v9110
        %v9112 = vpop.f32.mrf.mxu0
        %v9113 = vadd.f32 0.0, %v9112
        %9114 = vmatmul.bf16.gmra.mxu0 %v8680
        %v9115 = vpop.f32.mrf.mxu0
        %v9116 = vadd.f32 0.0, %v9115
        %v9117 = vpop.f32.mrf.mxu0
        %v9118 = vadd.f32 0.0, %v9117
        %9119 = vdwg.mxu0
        %9120 = vmatpush.bf16.msra.mxu0 %v8971
        %9121 = vmatpush.bf16.msra.mxu0 %v8970
        %9122 = vmatpush.bf16.msra.mxu0 %v8969
        %9123 = vmatpush.bf16.msra.mxu0 %v8968
        %9124 = vmatpush.bf16.msra.mxu0 %v8967
        %9125 = vmatpush.bf16.msra.mxu0 %v8966
        %9126 = vmatpush.bf16.msra.mxu0 %v8965
        %9127 = vmatpush.bf16.msra.mxu0 %v8964
        %9128 = vmatmul.bf16.gmra.mxu0 %v8639
        %v9129 = vpop.f32.mrf.mxu0
        %v9130 = vadd.f32 %v9081, %v9129
        %v9131 = vpop.f32.mrf.mxu0
        %v9132 = vadd.f32 %v9083, %v9131
        %9133 = vmatmul.bf16.gmra.mxu0 %v8645
        %v9134 = vpop.f32.mrf.mxu0
        %v9135 = vadd.f32 %v9086, %v9134
        %v9136 = vpop.f32.mrf.mxu0
        %v9137 = vadd.f32 %v9088, %v9136
        %9138 = vmatmul.bf16.gmra.mxu0 %v8651
        %v9139 = vpop.f32.mrf.mxu0
        %v9140 = vadd.f32 %v9091, %v9139
        %v9141 = vpop.f32.mrf.mxu0
        %v9142 = vadd.f32 %v9093, %v9141
        %9143 = vmatmul.bf16.gmra.mxu0 %v8657
        %v9144 = vpop.f32.mrf.mxu0
        %v9145 = vadd.f32 %v9096, %v9144
        %v9146 = vpop.f32.mrf.mxu0
        %v9147 = vadd.f32 %v9098, %v9146
        %9148 = vmatmul.bf16.gmra.mxu0 %v8663
        %v9149 = vpop.f32.mrf.mxu0
        %v9150 = vadd.f32 %v9101, %v9149
        %v9151 = vpop.f32.mrf.mxu0
        %v9152 = vadd.f32 %v9103, %v9151
        %9153 = vmatmul.bf16.gmra.mxu0 %v8669
        %v9154 = vpop.f32.mrf.mxu0
        %v9155 = vadd.f32 %v9106, %v9154
        %v9156 = vpop.f32.mrf.mxu0
        %v9157 = vadd.f32 %v9108, %v9156
        %9158 = vmatmul.bf16.gmra.mxu0 %v8675
        %v9159 = vpop.f32.mrf.mxu0
        %v9160 = vadd.f32 %v9111, %v9159
        %v9161 = vpop.f32.mrf.mxu0
        %v9162 = vadd.f32 %v9113, %v9161
        %9163 = vmatmul.bf16.gmra.mxu0 %v8681
        %v9164 = vpop.f32.mrf.mxu0
        %v9165 = vadd.f32 %v9116, %v9164
        %v9166 = vpop.f32.mrf.mxu0
        %v9167 = vadd.f32 %v9118, %v9166
        %9168 = vdwg.mxu0
        %9169 = vmatpush.bf16.msra.mxu0 %v8979
        %9170 = vmatpush.bf16.msra.mxu0 %v8978
        %9171 = vmatpush.bf16.msra.mxu0 %v8977
        %9172 = vmatpush.bf16.msra.mxu0 %v8976
        %9173 = vmatpush.bf16.msra.mxu0 %v8975
        %9174 = vmatpush.bf16.msra.mxu0 %v8974
        %9175 = vmatpush.bf16.msra.mxu0 %v8973
        %9176 = vmatpush.bf16.msra.mxu0 %v8972
        %9177 = vmatmul.bf16.gmra.mxu0 %v8640
        %v9178 = vpop.f32.mrf.mxu0
        %v9179 = vadd.f32 %v9130, %v9178
        %v9180 = vpop.f32.mrf.mxu0
        %v9181 = vadd.f32 %v9132, %v9180
        %9182 = vmatmul.bf16.gmra.mxu0 %v8646
        %v9183 = vpop.f32.mrf.mxu0
        %v9184 = vadd.f32 %v9135, %v9183
        %v9185 = vpop.f32.mrf.mxu0
        %v9186 = vadd.f32 %v9137, %v9185
        %9187 = vmatmul.bf16.gmra.mxu0 %v8652
        %v9188 = vpop.f32.mrf.mxu0
        %v9189 = vadd.f32 %v9140, %v9188
        %v9190 = vpop.f32.mrf.mxu0
        %v9191 = vadd.f32 %v9142, %v9190
        %9192 = vmatmul.bf16.gmra.mxu0 %v8658
        %v9193 = vpop.f32.mrf.mxu0
        %v9194 = vadd.f32 %v9145, %v9193
        %v9195 = vpop.f32.mrf.mxu0
        %v9196 = vadd.f32 %v9147, %v9195
        %9197 = vmatmul.bf16.gmra.mxu0 %v8664
        %v9198 = vpop.f32.mrf.mxu0
        %v9199 = vadd.f32 %v9150, %v9198
        %v9200 = vpop.f32.mrf.mxu0
        %v9201 = vadd.f32 %v9152, %v9200
        %9202 = vmatmul.bf16.gmra.mxu0 %v8670
        %v9203 = vpop.f32.mrf.mxu0
        %v9204 = vadd.f32 %v9155, %v9203
        %v9205 = vpop.f32.mrf.mxu0
        %v9206 = vadd.f32 %v9157, %v9205
        %9207 = vmatmul.bf16.gmra.mxu0 %v8676
        %v9208 = vpop.f32.mrf.mxu0
        %v9209 = vadd.f32 %v9160, %v9208
        %v9210 = vpop.f32.mrf.mxu0
        %v9211 = vadd.f32 %v9162, %v9210
        %9212 = vmatmul.bf16.gmra.mxu0 %v8682
        %v9213 = vpop.f32.mrf.mxu0
        %v9214 = vadd.f32 %v9165, %v9213
        %v9215 = vpop.f32.mrf.mxu0
        %v9216 = vadd.f32 %v9167, %v9215
        %9217 = vdwg.mxu0
        %9218 = vmatpush.bf16.msra.mxu0 %v8987
        %9219 = vmatpush.bf16.msra.mxu0 %v8986
        %9220 = vmatpush.bf16.msra.mxu0 %v8985
        %9221 = vmatpush.bf16.msra.mxu0 %v8984
        %9222 = vmatpush.bf16.msra.mxu0 %v8983
        %9223 = vmatpush.bf16.msra.mxu0 %v8982
        %9224 = vmatpush.bf16.msra.mxu0 %v8981
        %9225 = vmatpush.bf16.msra.mxu0 %v8980
        %9226 = vmatmul.bf16.gmra.mxu0 %v8641
        %v9227 = vpop.f32.mrf.mxu0
        %v9228 = vadd.f32 %v9179, %v9227
        %v9229 = vpop.f32.mrf.mxu0
        %v9230 = vadd.f32 %v9181, %v9229
        %9231 = vmatmul.bf16.gmra.mxu0 %v8647
        %v9232 = vpop.f32.mrf.mxu0
        %v9233 = vadd.f32 %v9184, %v9232
        %v9234 = vpop.f32.mrf.mxu0
        %v9235 = vadd.f32 %v9186, %v9234
        %9236 = vmatmul.bf16.gmra.mxu0 %v8653
        %v9237 = vpop.f32.mrf.mxu0
        %v9238 = vadd.f32 %v9189, %v9237
        %v9239 = vpop.f32.mrf.mxu0
        %v9240 = vadd.f32 %v9191, %v9239
        %9241 = vmatmul.bf16.gmra.mxu0 %v8659
        %v9242 = vpop.f32.mrf.mxu0
        %v9243 = vadd.f32 %v9194, %v9242
        %v9244 = vpop.f32.mrf.mxu0
        %v9245 = vadd.f32 %v9196, %v9244
        %9246 = vmatmul.bf16.gmra.mxu0 %v8665
        %v9247 = vpop.f32.mrf.mxu0
        %v9248 = vadd.f32 %v9199, %v9247
        %v9249 = vpop.f32.mrf.mxu0
        %v9250 = vadd.f32 %v9201, %v9249
        %9251 = vmatmul.bf16.gmra.mxu0 %v8671
        %v9252 = vpop.f32.mrf.mxu0
        %v9253 = vadd.f32 %v9204, %v9252
        %v9254 = vpop.f32.mrf.mxu0
        %v9255 = vadd.f32 %v9206, %v9254
        %9256 = vmatmul.bf16.gmra.mxu0 %v8677
        %v9257 = vpop.f32.mrf.mxu0
        %v9258 = vadd.f32 %v9209, %v9257
        %v9259 = vpop.f32.mrf.mxu0
        %v9260 = vadd.f32 %v9211, %v9259
        %9261 = vmatmul.bf16.gmra.mxu0 %v8683
        %v9262 = vpop.f32.mrf.mxu0
        %v9263 = vadd.f32 %v9214, %v9262
        %v9264 = vpop.f32.mrf.mxu0
        %v9265 = vadd.f32 %v9216, %v9264
        %9266 = vdwg.mxu0
        %9267 = vmatpush.bf16.msra.mxu0 %v8995
        %9268 = vmatpush.bf16.msra.mxu0 %v8994
        %9269 = vmatpush.bf16.msra.mxu0 %v8993
        %9270 = vmatpush.bf16.msra.mxu0 %v8992
        %9271 = vmatpush.bf16.msra.mxu0 %v8991
        %9272 = vmatpush.bf16.msra.mxu0 %v8990
        %9273 = vmatpush.bf16.msra.mxu0 %v8989
        %9274 = vmatpush.bf16.msra.mxu0 %v8988
        %9275 = vmatmul.bf16.gmra.mxu0 %v8642
        %v9276 = vpop.f32.mrf.mxu0
        %v9277 = vadd.f32 %v9228, %v9276
        %v9278 = vpop.f32.mrf.mxu0
        %v9279 = vadd.f32 %v9230, %v9278
        %9280 = vmatmul.bf16.gmra.mxu0 %v8648
        %v9281 = vpop.f32.mrf.mxu0
        %v9282 = vadd.f32 %v9233, %v9281
        %v9283 = vpop.f32.mrf.mxu0
        %v9284 = vadd.f32 %v9235, %v9283
        %9285 = vmatmul.bf16.gmra.mxu0 %v8654
        %v9286 = vpop.f32.mrf.mxu0
        %v9287 = vadd.f32 %v9238, %v9286
        %v9288 = vpop.f32.mrf.mxu0
        %v9289 = vadd.f32 %v9240, %v9288
        %9290 = vmatmul.bf16.gmra.mxu0 %v8660
        %v9291 = vpop.f32.mrf.mxu0
        %v9292 = vadd.f32 %v9243, %v9291
        %v9293 = vpop.f32.mrf.mxu0
        %v9294 = vadd.f32 %v9245, %v9293
        %9295 = vmatmul.bf16.gmra.mxu0 %v8666
        %v9296 = vpop.f32.mrf.mxu0
        %v9297 = vadd.f32 %v9248, %v9296
        %v9298 = vpop.f32.mrf.mxu0
        %v9299 = vadd.f32 %v9250, %v9298
        %9300 = vmatmul.bf16.gmra.mxu0 %v8672
        %v9301 = vpop.f32.mrf.mxu0
        %v9302 = vadd.f32 %v9253, %v9301
        %v9303 = vpop.f32.mrf.mxu0
        %v9304 = vadd.f32 %v9255, %v9303
        %9305 = vmatmul.bf16.gmra.mxu0 %v8678
        %v9306 = vpop.f32.mrf.mxu0
        %v9307 = vadd.f32 %v9258, %v9306
        %v9308 = vpop.f32.mrf.mxu0
        %v9309 = vadd.f32 %v9260, %v9308
        %9310 = vmatmul.bf16.gmra.mxu0 %v8684
        %v9311 = vpop.f32.mrf.mxu0
        %v9312 = vadd.f32 %v9263, %v9311
        %v9313 = vpop.f32.mrf.mxu0
        %v9314 = vadd.f32 %v9265, %v9313
        %9315 = vdwg.mxu0
        %9316 = vmatpush.bf16.msra.mxu0 0
        %9317 = vmatpush.bf16.msra.mxu0 0
        %9318 = vmatpush.bf16.msra.mxu0 0
        %9319 = vmatpush.bf16.msra.mxu0 %v9000
        %9320 = vmatpush.bf16.msra.mxu0 %v8999
        %9321 = vmatpush.bf16.msra.mxu0 %v8998
        %9322 = vmatpush.bf16.msra.mxu0 %v8997
        %9323 = vmatpush.bf16.msra.mxu0 %v8996
        %9324 = vmatmul.bf16.gmra.mxu0 %v9048
        %v9325 = vpop.f32.mrf.mxu0
        %v9326 = vadd.f32 %v9277, %v9325
        %v9327 = vpop.f32.mrf.mxu0
        %v9328 = vadd.f32 %v9279, %v9327
        %9329 = vmatmul.bf16.gmra.mxu0 %v9051
        %v9330 = vpop.f32.mrf.mxu0
        %v9331 = vadd.f32 %v9282, %v9330
        %v9332 = vpop.f32.mrf.mxu0
        %v9333 = vadd.f32 %v9284, %v9332
        %9334 = vmatmul.bf16.gmra.mxu0 %v9054
        %v9335 = vpop.f32.mrf.mxu0
        %v9336 = vadd.f32 %v9287, %v9335
        %v9337 = vpop.f32.mrf.mxu0
        %v9338 = vadd.f32 %v9289, %v9337
        %9339 = vmatmul.bf16.gmra.mxu0 %v9057
        %v9340 = vpop.f32.mrf.mxu0
        %v9341 = vadd.f32 %v9292, %v9340
        %v9342 = vpop.f32.mrf.mxu0
        %v9343 = vadd.f32 %v9294, %v9342
        %9344 = vmatmul.bf16.gmra.mxu0 %v9060
        %v9345 = vpop.f32.mrf.mxu0
        %v9346 = vadd.f32 %v9297, %v9345
        %v9347 = vpop.f32.mrf.mxu0
        %v9348 = vadd.f32 %v9299, %v9347
        %9349 = vmatmul.bf16.gmra.mxu0 %v9063
        %v9350 = vpop.f32.mrf.mxu0
        %v9351 = vadd.f32 %v9302, %v9350
        %v9352 = vpop.f32.mrf.mxu0
        %v9353 = vadd.f32 %v9304, %v9352
        %9354 = vmatmul.bf16.gmra.mxu0 %v9066
        %v9355 = vpop.f32.mrf.mxu0
        %v9356 = vadd.f32 %v9307, %v9355
        %v9357 = vpop.f32.mrf.mxu0
        %v9358 = vadd.f32 %v9309, %v9357
        %9359 = vmatmul.bf16.gmra.mxu0 %v9069
        %v9360 = vpop.f32.mrf.mxu0
        %v9361 = vadd.f32 %v9312, %v9360
        %v9362 = vpop.f32.mrf.mxu0
        %v9363 = vadd.f32 %v9314, %v9362
        %9364 = vdwg.mxu0
        %v9365 = vmax.f32 %v9326, 0.0
        %v9366 = vmax.f32 %v9328, 0.0
        %v9367 = vmax.f32 %v9331, 0.0
        %v9368 = vmax.f32 %v9333, 0.0
        %v9369 = vmax.f32 %v9336, 0.0
        %v9370 = vmax.f32 %v9338, 0.0
        %v9371 = vmax.f32 %v9341, 0.0
        %v9372 = vmax.f32 %v9343, 0.0
        %v9373 = vmax.f32 %v9346, 0.0
        %v9374 = vmax.f32 %v9348, 0.0
        %v9375 = vmax.f32 %v9351, 0.0
        %v9376 = vmax.f32 %v9353, 0.0
        %v9377 = vmax.f32 %v9356, 0.0
        %v9378 = vmax.f32 %v9358, 0.0
        %v9379 = vmax.f32 %v9361, 0.0
        %v9380 = vmax.f32 %v9363, 0.0
        %v9397 = vrot.slane %v9366, 7
        %v9398 = vsel %vm6835, %v9397, %v9365
        %v9399 = vrot.slane %v9367, 6
        %v9400 = vsel %vm6837, %v9399, %v9398
        %v9401 = vrot.slane %v9368, 5
        %v9402 = vsel %vm6839, %v9401, %v9400
        %v9403 = vrot.slane %v9369, 4
        %v9404 = vsel %vm6841, %v9403, %v9402
        %v9405 = vrot.slane %v9370, 3
        %v9406 = vsel %vm6843, %v9405, %v9404
        %v9407 = vrot.slane %v9371, 2
        %v9408 = vsel %vm6845, %v9407, %v9406
        %v9409 = vrot.slane %v9372, 1
        %v9410 = vsel %vm6847, %v9409, %v9408
        %v9411 = vrot.slane %v9374, 7
        %v9412 = vsel %vm6835, %v9411, %v9373
        %v9413 = vrot.slane %v9375, 6
        %v9414 = vsel %vm6837, %v9413, %v9412
        %v9415 = vrot.slane %v9376, 5
        %v9416 = vsel %vm6839, %v9415, %v9414
        %v9417 = vrot.slane %v9377, 4
        %v9418 = vsel %vm6841, %v9417, %v9416
        %v9419 = vrot.slane %v9378, 3
        %v9420 = vsel %vm6843, %v9419, %v9418
        %v9421 = vrot.slane %v9379, 2
        %v9422 = vsel %vm6845, %v9421, %v9420
        %v9423 = vrot.slane %v9380, 1
        %v9424 = vsel %vm6847, %v9423, %v9422
        %v9427 = vrot.slane %v9365, 1
        %v9428 = vsel %vm6835, %v9366, %v9427
        %v9429 = vrot.slane %v9367, 7
        %v9430 = vsel %vm6837, %v9429, %v9428
        %v9431 = vrot.slane %v9368, 6
        %v9432 = vsel %vm6839, %v9431, %v9430
        %v9433 = vrot.slane %v9369, 5
        %v9434 = vsel %vm6841, %v9433, %v9432
        %v9435 = vrot.slane %v9370, 4
        %v9436 = vsel %vm6843, %v9435, %v9434
        %v9437 = vrot.slane %v9371, 3
        %v9438 = vsel %vm6845, %v9437, %v9436
        %v9439 = vrot.slane %v9372, 2
        %v9440 = vsel %vm6847, %v9439, %v9438
        %v9441 = vrot.slane %v9373, 1
        %v9442 = vsel %vm6835, %v9374, %v9441
        %v9443 = vrot.slane %v9375, 7
        %v9444 = vsel %vm6837, %v9443, %v9442
        %v9445 = vrot.slane %v9376, 6
        %v9446 = vsel %vm6839, %v9445, %v9444
        %v9447 = vrot.slane %v9377, 5
        %v9448 = vsel %vm6841, %v9447, %v9446
        %v9449 = vrot.slane %v9378, 4
        %v9450 = vsel %vm6843, %v9449, %v9448
        %v9451 = vrot.slane %v9379, 3
        %v9452 = vsel %vm6845, %v9451, %v9450
        %v9453 = vrot.slane %v9380, 2
        %v9454 = vsel %vm6847, %v9453, %v9452
        %9455 = vrot.lane.b32.xlu0 %v9440, 96
        %v9456 = vpop.permute.xlu0 %9455
        %9457 = vrot.lane.b32.xlu0 %v9454, 96
        %v9458 = vpop.permute.xlu0 %9457
        %v9461 = vrot.slane %v9365, 2
        %v9462 = vrot.slane %v9366, 1
        %v9463 = vsel %vm6835, %v9462, %v9461
        %v9464 = vsel %vm6837, %v9367, %v9463
        %v9465 = vrot.slane %v9368, 7
        %v9466 = vsel %vm6839, %v9465, %v9464
        %v9467 = vrot.slane %v9369, 6
        %v9468 = vsel %vm6841, %v9467, %v9466
        %v9469 = vrot.slane %v9370, 5
        %v9470 = vsel %vm6843, %v9469, %v9468
        %v9471 = vrot.slane %v9371, 4
        %v9472 = vsel %vm6845, %v9471, %v9470
        %v9473 = vrot.slane %v9372, 3
        %v9474 = vsel %vm6847, %v9473, %v9472
        %v9475 = vrot.slane %v9373, 2
        %v9476 = vrot.slane %v9374, 1
        %v9477 = vsel %vm6835, %v9476, %v9475
        %v9478 = vsel %vm6837, %v9375, %v9477
        %v9479 = vrot.slane %v9376, 7
        %v9480 = vsel %vm6839, %v9479, %v9478
        %v9481 = vrot.slane %v9377, 6
        %v9482 = vsel %vm6841, %v9481, %v9480
        %v9483 = vrot.slane %v9378, 5
        %v9484 = vsel %vm6843, %v9483, %v9482
        %v9485 = vrot.slane %v9379, 4
        %v9486 = vsel %vm6845, %v9485, %v9484
        %v9487 = vrot.slane %v9380, 3
        %v9488 = vsel %vm6847, %v9487, %v9486
        %9489 = vrot.lane.b32.xlu0 %v9474, 64
        %v9490 = vpop.permute.xlu0 %9489
        %9491 = vrot.lane.b32.xlu0 %v9488, 64
        %v9492 = vpop.permute.xlu0 %9491
        %v9495 = vrot.slane %v9365, 3
        %v9496 = vrot.slane %v9366, 2
        %v9497 = vsel %vm6835, %v9496, %v9495
        %v9498 = vrot.slane %v9367, 1
        %v9499 = vsel %vm6837, %v9498, %v9497
        %v9500 = vsel %vm6839, %v9368, %v9499
        %v9501 = vrot.slane %v9369, 7
        %v9502 = vsel %vm6841, %v9501, %v9500
        %v9503 = vrot.slane %v9370, 6
        %v9504 = vsel %vm6843, %v9503, %v9502
        %v9505 = vrot.slane %v9371, 5
        %v9506 = vsel %vm6845, %v9505, %v9504
        %v9507 = vrot.slane %v9372, 4
        %v9508 = vsel %vm6847, %v9507, %v9506
        %v9509 = vrot.slane %v9373, 3
        %v9510 = vrot.slane %v9374, 2
        %v9511 = vsel %vm6835, %v9510, %v9509
        %v9512 = vrot.slane %v9375, 1
        %v9513 = vsel %vm6837, %v9512, %v9511
        %v9514 = vsel %vm6839, %v9376, %v9513
        %v9515 = vrot.slane %v9377, 7
        %v9516 = vsel %vm6841, %v9515, %v9514
        %v9517 = vrot.slane %v9378, 6
        %v9518 = vsel %vm6843, %v9517, %v9516
        %v9519 = vrot.slane %v9379, 5
        %v9520 = vsel %vm6845, %v9519, %v9518
        %v9521 = vrot.slane %v9380, 4
        %v9522 = vsel %vm6847, %v9521, %v9520
        %9523 = vrot.lane.b32.xlu0 %v9508, 32
        %v9524 = vpop.permute.xlu0 %9523
        %9525 = vrot.lane.b32.xlu0 %v9522, 32
        %v9526 = vpop.permute.xlu0 %9525
        %v9529 = vrot.slane %v9365, 4
        %v9530 = vrot.slane %v9366, 3
        %v9531 = vsel %vm6835, %v9530, %v9529
        %v9532 = vrot.slane %v9367, 2
        %v9533 = vsel %vm6837, %v9532, %v9531
        %v9534 = vrot.slane %v9368, 1
        %v9535 = vsel %vm6839, %v9534, %v9533
        %v9536 = vsel %vm6841, %v9369, %v9535
        %v9537 = vrot.slane %v9370, 7
        %v9538 = vsel %vm6843, %v9537, %v9536
        %v9539 = vrot.slane %v9371, 6
        %v9540 = vsel %vm6845, %v9539, %v9538
        %v9541 = vrot.slane %v9372, 5
        %v9542 = vsel %vm6847, %v9541, %v9540
        %v9543 = vrot.slane %v9373, 4
        %v9544 = vrot.slane %v9374, 3
        %v9545 = vsel %vm6835, %v9544, %v9543
        %v9546 = vrot.slane %v9375, 2
        %v9547 = vsel %vm6837, %v9546, %v9545
        %v9548 = vrot.slane %v9376, 1
        %v9549 = vsel %vm6839, %v9548, %v9547
        %v9550 = vsel %vm6841, %v9377, %v9549
        %v9551 = vrot.slane %v9378, 7
        %v9552 = vsel %vm6843, %v9551, %v9550
        %v9553 = vrot.slane %v9379, 6
        %v9554 = vsel %vm6845, %v9553, %v9552
        %v9555 = vrot.slane %v9380, 5
        %v9556 = vsel %vm6847, %v9555, %v9554
        %v9559 = vrot.slane %v9365, 5
        %v9560 = vrot.slane %v9366, 4
        %v9561 = vsel %vm6835, %v9560, %v9559
        %v9562 = vrot.slane %v9367, 3
        %v9563 = vsel %vm6837, %v9562, %v9561
        %v9564 = vrot.slane %v9368, 2
        %v9565 = vsel %vm6839, %v9564, %v9563
        %v9566 = vrot.slane %v9369, 1
        %v9567 = vsel %vm6841, %v9566, %v9565
        %v9568 = vsel %vm6843, %v9370, %v9567
        %v9569 = vrot.slane %v9371, 7
        %v9570 = vsel %vm6845, %v9569, %v9568
        %v9571 = vrot.slane %v9372, 6
        %v9572 = vsel %vm6847, %v9571, %v9570
        %v9573 = vrot.slane %v9373, 5
        %v9574 = vrot.slane %v9374, 4
        %v9575 = vsel %vm6835, %v9574, %v9573
        %v9576 = vrot.slane %v9375, 3
        %v9577 = vsel %vm6837, %v9576, %v9575
        %v9578 = vrot.slane %v9376, 2
        %v9579 = vsel %vm6839, %v9578, %v9577
        %v9580 = vrot.slane %v9377, 1
        %v9581 = vsel %vm6841, %v9580, %v9579
        %v9582 = vsel %vm6843, %v9378, %v9581
        %v9583 = vrot.slane %v9379, 7
        %v9584 = vsel %vm6845, %v9583, %v9582
        %v9585 = vrot.slane %v9380, 6
        %v9586 = vsel %vm6847, %v9585, %v9584
        %9587 = vrot.lane.b32.xlu0 %v9572, 96
        %v9588 = vpop.permute.xlu0 %9587
        %9589 = vrot.lane.b32.xlu0 %v9586, 96
        %v9590 = vpop.permute.xlu0 %9589
        %v9593 = vrot.slane %v9365, 6
        %v9594 = vrot.slane %v9366, 5
        %v9595 = vsel %vm6835, %v9594, %v9593
        %v9596 = vrot.slane %v9367, 4
        %v9597 = vsel %vm6837, %v9596, %v9595
        %v9598 = vrot.slane %v9368, 3
        %v9599 = vsel %vm6839, %v9598, %v9597
        %v9600 = vrot.slane %v9369, 2
        %v9601 = vsel %vm6841, %v9600, %v9599
        %v9602 = vrot.slane %v9370, 1
        %v9603 = vsel %vm6843, %v9602, %v9601
        %v9604 = vsel %vm6845, %v9371, %v9603
        %v9605 = vrot.slane %v9372, 7
        %v9606 = vsel %vm6847, %v9605, %v9604
        %v9607 = vrot.slane %v9373, 6
        %v9608 = vrot.slane %v9374, 5
        %v9609 = vsel %vm6835, %v9608, %v9607
        %v9610 = vrot.slane %v9375, 4
        %v9611 = vsel %vm6837, %v9610, %v9609
        %v9612 = vrot.slane %v9376, 3
        %v9613 = vsel %vm6839, %v9612, %v9611
        %v9614 = vrot.slane %v9377, 2
        %v9615 = vsel %vm6841, %v9614, %v9613
        %v9616 = vrot.slane %v9378, 1
        %v9617 = vsel %vm6843, %v9616, %v9615
        %v9618 = vsel %vm6845, %v9379, %v9617
        %v9619 = vrot.slane %v9380, 7
        %v9620 = vsel %vm6847, %v9619, %v9618
        %9621 = vrot.lane.b32.xlu0 %v9606, 64
        %v9622 = vpop.permute.xlu0 %9621
        %9623 = vrot.lane.b32.xlu0 %v9620, 64
        %v9624 = vpop.permute.xlu0 %9623
        %v9627 = vrot.slane %v9365, 7
        %v9628 = vrot.slane %v9366, 6
        %v9629 = vsel %vm6835, %v9628, %v9627
        %v9630 = vrot.slane %v9367, 5
        %v9631 = vsel %vm6837, %v9630, %v9629
        %v9632 = vrot.slane %v9368, 4
        %v9633 = vsel %vm6839, %v9632, %v9631
        %v9634 = vrot.slane %v9369, 3
        %v9635 = vsel %vm6841, %v9634, %v9633
        %v9636 = vrot.slane %v9370, 2
        %v9637 = vsel %vm6843, %v9636, %v9635
        %v9638 = vrot.slane %v9371, 1
        %v9639 = vsel %vm6845, %v9638, %v9637
        %v9640 = vsel %vm6847, %v9372, %v9639
        %v9641 = vrot.slane %v9373, 7
        %v9642 = vrot.slane %v9374, 6
        %v9643 = vsel %vm6835, %v9642, %v9641
        %v9644 = vrot.slane %v9375, 5
        %v9645 = vsel %vm6837, %v9644, %v9643
        %v9646 = vrot.slane %v9376, 4
        %v9647 = vsel %vm6839, %v9646, %v9645
        %v9648 = vrot.slane %v9377, 3
        %v9649 = vsel %vm6841, %v9648, %v9647
        %v9650 = vrot.slane %v9378, 2
        %v9651 = vsel %vm6843, %v9650, %v9649
        %v9652 = vrot.slane %v9379, 1
        %v9653 = vsel %vm6845, %v9652, %v9651
        %v9654 = vsel %vm6847, %v9380, %v9653
        %9655 = vrot.lane.b32.xlu0 %v9640, 32
        %v9656 = vpop.permute.xlu0 %9655
        %9657 = vrot.lane.b32.xlu0 %v9654, 32
        %v9658 = vpop.permute.xlu0 %9657
        %vm9661 = vcmask 785408
        %v9662 = vsel %vm9661, %v9410, %v9456
        %v9663 = vsel %vm9661, %v9424, %v9458
        %v9664 = vsel %vm8525, %v9456, %v9490
        %v9665 = vsel %vm8525, %v9458, %v9492
        %v9666 = vsel %vm7787, %v9490, %v9524
        %v9667 = vsel %vm7787, %v9492, %v9526
        %v9668 = vsel %vm9661, %v9542, %v9588
        %v9669 = vsel %vm9661, %v9556, %v9590
        %v9670 = vsel %vm8525, %v9588, %v9622
        %v9671 = vsel %vm8525, %v9590, %v9624
        %v9672 = vsel %vm7787, %v9622, %v9656
        %v9673 = vsel %vm7787, %v9624, %v9658
        %v9674 = vpack.c.bf16 %v9663, %v9662
        %v9675 = vpack.c.bf16 %v9665, %v9664
        %v9676 = vpack.c.bf16 %v9667, %v9666
        %v9677 = vpack.c.bf16 %v9669, %v9668
        %v9678 = vpack.c.bf16 %v9671, %v9670
        %v9679 = vpack.c.bf16 %v9673, %v9672
        %v9680 = vld [vmem:[%s3] sm:$0xff]
        %v9681 = vld [vmem:[%s3 + $0x8] sm:$0xff]
        %v9682 = vld [vmem:[%s3 + $0x10] sm:$0xff]
        %v9683 = vld [vmem:[%s3 + $0x18] sm:$0xff]
        %v9684 = vld [vmem:[%s3 + $0x20] sm:$0xff]
        %v9685 = vld [vmem:[%s3 + $0x28] sm:$0xff]
        %v9686 = vld [vmem:[%s3 + $0x30] sm:$0xff]
        %v9687 = vld [vmem:[%s3 + $0x38] sm:$0xff]
        %v9688 = vld [vmem:[%s3 + $0x40] sm:$0xff]
        %v9689 = vld [vmem:[%s3 + $0x48] sm:$0xff]
        %v9690 = vld [vmem:[%s3 + $0x50] sm:$0xff]
        %v9691 = vld [vmem:[%s3 + $0x58] sm:$0xff]
        %v9692 = vld [vmem:[%s3 + $0x60] sm:$0xff]
        %v9693 = vld [vmem:[%s3 + $0x68] sm:$0xff]
        %v9694 = vld [vmem:[%s3 + $0x70] sm:$0xff]
        %v9695 = vld [vmem:[%s3 + $0x78] sm:$0xff]
        %v9696 = vld [vmem:[%s3 + $0x80] sm:$0xff]
        %v9697 = vld [vmem:[%s3 + $0x88] sm:$0xff]
        %v9698 = vld [vmem:[%s3 + $0x90] sm:$0xff]
        %v9699 = vld [vmem:[%s3 + $0x98] sm:$0xff]
        %v9700 = vld [vmem:[%s3 + $0xa0] sm:$0xff]
        %v9701 = vld [vmem:[%s3 + $0xa8] sm:$0xff]
        %v9702 = vld [vmem:[%s3 + $0xb0] sm:$0xff]
        %v9703 = vld [vmem:[%s3 + $0xb8] sm:$0xff]
        %v9704 = vld [vmem:[%s3 + $0xc0] sm:$0xff]
        %v9705 = vld [vmem:[%s3 + $0xc8] sm:$0xff]
        %v9706 = vld [vmem:[%s3 + $0xd0] sm:$0xff]
        %v9707 = vld [vmem:[%s3 + $0xd8] sm:$0xff]
        %v9708 = vld [vmem:[%s3 + $0xe0] sm:$0xff]
        %v9709 = vld [vmem:[%s3 + $0xe8] sm:$0xff]
        %v9710 = vld [vmem:[%s3 + $0xf0] sm:$0xff]
        %v9711 = vld [vmem:[%s3 + $0xf8] sm:$0xff]
        %v9712 = vld [vmem:[%s3 + $0x100] sm:$0xff]
        %v9713 = vld [vmem:[%s3 + $0x108] sm:$0xff]
        %v9714 = vld [vmem:[%s3 + $0x110] sm:$0xff]
        %v9715 = vld [vmem:[%s3 + $0x118] sm:$0xff]
        %v9716 = vld [vmem:[%s3 + $0x120] sm:$0xff]
        %v9717 = vld [vmem:[%s3 + $0x128] sm:$0xff]
        %v9718 = vld [vmem:[%s3 + $0x130] sm:$0xff]
        %v9719 = vld [vmem:[%s3 + $0x138] sm:$0xff]
        %v9720 = vld [vmem:[%s3 + $0x140] sm:$0xff]
        %v9721 = vld [vmem:[%s3 + $0x148] sm:$0xff]
        %v9722 = vld [vmem:[%s3 + $0x150] sm:$0xff]
        %v9723 = vld [vmem:[%s3 + $0x158] sm:$0xff]
        %v9724 = vld [vmem:[%s3 + $0x160] sm:$0xff]
        %v9725 = vld [vmem:[%s3 + $0x168] sm:$0xff]
        %v9726 = vld [vmem:[%s3 + $0x170] sm:$0xff]
        %v9727 = vld [vmem:[%s3 + $0x178] sm:$0xff]
        %v9728 = vld [vmem:[%s3 + $0x180] sm:$0xff]
        %v9729 = vld [vmem:[%s3 + $0x188] sm:$0xff]
        %v9730 = vld [vmem:[%s3 + $0x190] sm:$0xff]
        %v9731 = vld [vmem:[%s3 + $0x198] sm:$0xff]
        %v9732 = vld [vmem:[%s3 + $0x1a0] sm:$0xff]
        %v9733 = vld [vmem:[%s3 + $0x1a8] sm:$0xff]
        %v9734 = vld [vmem:[%s3 + $0x1b0] sm:$0xff]
        %v9735 = vld [vmem:[%s3 + $0x1b8] sm:$0xff]
        %v9736 = vld [vmem:[%s3 + $0x1c0] sm:$0xff]
        %v9737 = vld [vmem:[%s3 + $0x1c8] sm:$0xff]
        %v9738 = vld [vmem:[%s3 + $0x1d0] sm:$0xff]
        %v9739 = vld [vmem:[%s3 + $0x1d8] sm:$0xff]
        %v9740 = vld [vmem:[%s3 + $0x1e0] sm:$0xff]
        %v9741 = vld [vmem:[%s3 + $0x1e8] sm:$0xff]
        %v9742 = vld [vmem:[%s3 + $0x1f0] sm:$0xff]
        %v9743 = vld [vmem:[%s3 + $0x1f8] sm:$0xff]
        %v9744 = vld [vmem:[%s3 + $0x200] sm:$0xff]
        %v9745 = vld [vmem:[%s3 + $0x208] sm:$0xff]
        %v9746 = vld [vmem:[%s3 + $0x210] sm:$0xff]
        %v9747 = vld [vmem:[%s3 + $0x218] sm:$0xff]
        %v9748 = vld [vmem:[%s3 + $0x220] sm:$0xff]
        %v9749 = vld [vmem:[%s3 + $0x228] sm:$0xff]
        %v9750 = vld [vmem:[%s3 + $0x230] sm:$0xff]
        %v9751 = vld [vmem:[%s3 + $0x238] sm:$0xff]
        %v9752 = vld [vmem:[%s3 + $0x240] sm:$0xff]
        %v9753 = vld [vmem:[%s3 + $0x248] sm:$0xff]
        %v9754 = vld [vmem:[%s3 + $0x250] sm:$0xff]
        %v9755 = vld [vmem:[%s3 + $0x258] sm:$0xff]
        %v9756 = vld [vmem:[%s3 + $0x260] sm:$0xff]
        %v9757 = vld [vmem:[%s3 + $0x268] sm:$0xff]
        %v9758 = vld [vmem:[%s3 + $0x270] sm:$0xff]
        %v9759 = vld [vmem:[%s3 + $0x278] sm:$0xff]
        %v9760 = vld [vmem:[%s3 + $0x280] sm:$0xff]
        %v9761 = vld [vmem:[%s3 + $0x288] sm:$0xff]
        %v9762 = vld [vmem:[%s3 + $0x290] sm:$0xff]
        %v9763 = vld [vmem:[%s3 + $0x298] sm:$0xff]
        %v9764 = vld [vmem:[%s3 + $0x2a0] sm:$0xff]
        %v9765 = vld [vmem:[%s3 + $0x2a8] sm:$0xff]
        %v9766 = vld [vmem:[%s3 + $0x2b0] sm:$0xff]
        %v9767 = vld [vmem:[%s3 + $0x2b8] sm:$0xff]
        %v9768 = vld [vmem:[%s3 + $0x2c0] sm:$0xff]
        %v9769 = vld [vmem:[%s3 + $0x2c8] sm:$0xff]
        %v9770 = vld [vmem:[%s3 + $0x2d0] sm:$0xff]
        %v9771 = vld [vmem:[%s3 + $0x2d8] sm:$0xff]
        %v9772 = vld [vmem:[%s3 + $0x2e0] sm:$0xff]
        %v9773 = vld [vmem:[%s3 + $0x2e8] sm:$0xff]
        %v9774 = vld [vmem:[%s3 + $0x2f0] sm:$0xff]
        %v9775 = vld [vmem:[%s3 + $0x2f8] sm:$0xff]
        %v9776 = vld [vmem:[%s3 + $0x300] sm:$0xff]
        %v9777 = vld [vmem:[%s3 + $0x308] sm:$0xff]
        %v9778 = vld [vmem:[%s3 + $0x310] sm:$0xff]
        %v9779 = vld [vmem:[%s3 + $0x318] sm:$0xff]
        %v9780 = vld [vmem:[%s3 + $0x320] sm:$0xff]
        %v9781 = vld [vmem:[%s3 + $0x328] sm:$0xff]
        %v9782 = vld [vmem:[%s3 + $0x330] sm:$0xff]
        %v9783 = vld [vmem:[%s3 + $0x338] sm:$0xff]
        %v9784 = vld [vmem:[%s3 + $0x340] sm:$0xff]
        %v9785 = vld [vmem:[%s3 + $0x348] sm:$0xff]
        %v9786 = vld [vmem:[%s3 + $0x350] sm:$0xff]
        %v9787 = vld [vmem:[%s3 + $0x358] sm:$0xff]
        %v9788 = vld [vmem:[%s3 + $0x360] sm:$0xff]
        %v9789 = vld [vmem:[%s3 + $0x368] sm:$0xff]
        %v9790 = vld [vmem:[%s3 + $0x370] sm:$0xff]
        %v9791 = vld [vmem:[%s3 + $0x378] sm:$0xff]
        %v9792 = vld [vmem:[%s3 + $0x380] sm:$0xff]
        %v9793 = vld [vmem:[%s3 + $0x388] sm:$0xff]
        %v9794 = vld [vmem:[%s3 + $0x390] sm:$0xff]
        %v9795 = vld [vmem:[%s3 + $0x398] sm:$0xff]
        %v9796 = vld [vmem:[%s3 + $0x3a0] sm:$0xff]
        %v9797 = vld [vmem:[%s3 + $0x3a8] sm:$0xff]
        %v9798 = vld [vmem:[%s3 + $0x3b0] sm:$0xff]
        %v9799 = vld [vmem:[%s3 + $0x3b8] sm:$0xff]
        %v9800 = vld [vmem:[%s3 + $0x3c0] sm:$0xff]
        %v9801 = vld [vmem:[%s3 + $0x3c8] sm:$0xff]
        %v9802 = vld [vmem:[%s3 + $0x3d0] sm:$0xff]
        %v9803 = vld [vmem:[%s3 + $0x3d8] sm:$0xff]
        %v9804 = vld [vmem:[%s3 + $0x3e0] sm:$0xff]
        %v9805 = vld [vmem:[%s3 + $0x3e8] sm:$0xff]
        %v9806 = vld [vmem:[%s3 + $0x3f0] sm:$0xff]
        %v9807 = vld [vmem:[%s3 + $0x3f8] sm:$0xff]
        %v9808 = vld [vmem:[%s3 + $0x400] sm:$0xff]
        %v9809 = vld [vmem:[%s3 + $0x408] sm:$0xff]
        %v9810 = vld [vmem:[%s3 + $0x410] sm:$0xff]
        %v9811 = vld [vmem:[%s3 + $0x418] sm:$0xff]
        %v9812 = vld [vmem:[%s3 + $0x420] sm:$0xff]
        %v9813 = vld [vmem:[%s3 + $0x428] sm:$0xff]
        %v9814 = vld [vmem:[%s3 + $0x430] sm:$0xff]
        %v9815 = vld [vmem:[%s3 + $0x438] sm:$0xff]
        %v9816 = vld [vmem:[%s3 + $0x440] sm:$0xff]
        %v9817 = vld [vmem:[%s3 + $0x448] sm:$0xff]
        %v9818 = vld [vmem:[%s3 + $0x450] sm:$0xff]
        %v9819 = vld [vmem:[%s3 + $0x458] sm:$0xff]
        %v9820 = vld [vmem:[%s3 + $0x460] sm:$0xff]
        %v9821 = vld [vmem:[%s3 + $0x468] sm:$0xff]
        %v9822 = vld [vmem:[%s3 + $0x470] sm:$0xff]
        %v9823 = vld [vmem:[%s3 + $0x478] sm:$0xff]
        %v9824 = vld [vmem:[%s3 + $0x480] sm:$0xff]
        %v9825 = vld [vmem:[%s3 + $0x488] sm:$0xff]
        %v9826 = vld [vmem:[%s3 + $0x490] sm:$0xff]
        %v9827 = vld [vmem:[%s3 + $0x498] sm:$0xff]
        %v9828 = vld [vmem:[%s3 + $0x4a0] sm:$0xff]
        %v9829 = vld [vmem:[%s3 + $0x4a8] sm:$0xff]
        %v9830 = vld [vmem:[%s3 + $0x4b0] sm:$0xff]
        %v9831 = vld [vmem:[%s3 + $0x4b8] sm:$0xff]
        %v9832 = vld [vmem:[%s3 + $0x4c0] sm:$0xff]
        %v9833 = vld [vmem:[%s3 + $0x4c8] sm:$0xff]
        %v9834 = vld [vmem:[%s3 + $0x4d0] sm:$0xff]
        %v9835 = vld [vmem:[%s3 + $0x4d8] sm:$0xff]
        %v9836 = vld [vmem:[%s3 + $0x4e0] sm:$0xff]
        %v9837 = vld [vmem:[%s3 + $0x4e8] sm:$0xff]
        %v9838 = vld [vmem:[%s3 + $0x4f0] sm:$0xff]
        %v9839 = vld [vmem:[%s3 + $0x4f8] sm:$0xff]
        %v9840 = vld [vmem:[%s3 + $0x500] sm:$0xff]
        %v9841 = vld [vmem:[%s3 + $0x508] sm:$0xff]
        %v9842 = vld [vmem:[%s3 + $0x510] sm:$0xff]
        %v9843 = vld [vmem:[%s3 + $0x518] sm:$0xff]
        %v9844 = vld [vmem:[%s3 + $0x520] sm:$0xff]
        %v9845 = vld [vmem:[%s3 + $0x528] sm:$0xff]
        %v9846 = vld [vmem:[%s3 + $0x530] sm:$0xff]
        %v9847 = vld [vmem:[%s3 + $0x538] sm:$0xff]
        %v9848 = vld [vmem:[%s3 + $0x540] sm:$0xff]
        %v9849 = vld [vmem:[%s3 + $0x548] sm:$0xff]
        %v9850 = vld [vmem:[%s3 + $0x550] sm:$0xff]
        %v9851 = vld [vmem:[%s3 + $0x558] sm:$0xff]
        %v9852 = vld [vmem:[%s3 + $0x560] sm:$0xff]
        %v9853 = vld [vmem:[%s3 + $0x568] sm:$0xff]
        %v9854 = vld [vmem:[%s3 + $0x570] sm:$0xff]
        %v9855 = vld [vmem:[%s3 + $0x578] sm:$0xff]
        %v9856 = vld [vmem:[%s3 + $0x580] sm:$0xff]
        %v9857 = vld [vmem:[%s3 + $0x588] sm:$0xff]
        %v9858 = vld [vmem:[%s3 + $0x590] sm:$0xff]
        %v9859 = vld [vmem:[%s3 + $0x598] sm:$0xff]
        %v9860 = vld [vmem:[%s3 + $0x5a0] sm:$0xff]
        %v9861 = vld [vmem:[%s3 + $0x5a8] sm:$0xff]
        %v9862 = vld [vmem:[%s3 + $0x5b0] sm:$0xff]
        %v9863 = vld [vmem:[%s3 + $0x5b8] sm:$0xff]
        %v9864 = vld [vmem:[%s3 + $0x5c0] sm:$0xff]
        %v9865 = vld [vmem:[%s3 + $0x5c8] sm:$0xff]
        %v9866 = vld [vmem:[%s3 + $0x5d0] sm:$0xff]
        %v9867 = vld [vmem:[%s3 + $0x5d8] sm:$0xff]
        %v9868 = vld [vmem:[%s3 + $0x5e0] sm:$0xff]
        %v9869 = vld [vmem:[%s3 + $0x5e8] sm:$0xff]
        %v9870 = vld [vmem:[%s3 + $0x5f0] sm:$0xff]
        %v9871 = vld [vmem:[%s3 + $0x5f8] sm:$0xff]
        %v9872 = vld [vmem:[%s3 + $0x600] sm:$0xff]
        %v9873 = vld [vmem:[%s3 + $0x608] sm:$0xff]
        %v9874 = vld [vmem:[%s3 + $0x610] sm:$0xff]
        %v9875 = vld [vmem:[%s3 + $0x618] sm:$0xff]
        %v9876 = vld [vmem:[%s3 + $0x620] sm:$0xff]
        %v9877 = vld [vmem:[%s3 + $0x628] sm:$0xff]
        %v9878 = vld [vmem:[%s3 + $0x630] sm:$0xff]
        %v9879 = vld [vmem:[%s3 + $0x638] sm:$0xff]
        %v9880 = vld [vmem:[%s3 + $0x640] sm:$0xff]
        %v9881 = vld [vmem:[%s3 + $0x648] sm:$0xff]
        %v9882 = vld [vmem:[%s3 + $0x650] sm:$0xff]
        %v9883 = vld [vmem:[%s3 + $0x658] sm:$0xff]
        %v9884 = vld [vmem:[%s3 + $0x660] sm:$0xff]
        %v9885 = vld [vmem:[%s3 + $0x668] sm:$0xff]
        %v9886 = vld [vmem:[%s3 + $0x670] sm:$0xff]
        %v9887 = vld [vmem:[%s3 + $0x678] sm:$0xff]
        %v9888 = vld [vmem:[%s3 + $0x680] sm:$0xff]
        %v9889 = vld [vmem:[%s3 + $0x688] sm:$0xff]
        %v9890 = vld [vmem:[%s3 + $0x690] sm:$0xff]
        %v9891 = vld [vmem:[%s3 + $0x698] sm:$0xff]
        %v9892 = vld [vmem:[%s3 + $0x6a0] sm:$0xff]
        %v9893 = vld [vmem:[%s3 + $0x6a8] sm:$0xff]
        %v9894 = vld [vmem:[%s3 + $0x6b0] sm:$0xff]
        %v9895 = vld [vmem:[%s3 + $0x6b8] sm:$0xff]
        %v9896 = vld [vmem:[%s3 + $0x6c0] sm:$0xff]
        %v9897 = vld [vmem:[%s3 + $0x6c8] sm:$0xff]
        %v9898 = vld [vmem:[%s3 + $0x6d0] sm:$0xff]
        %v9899 = vld [vmem:[%s3 + $0x6d8] sm:$0xff]
        %v9900 = vld [vmem:[%s3 + $0x6e0] sm:$0xff]
        %v9901 = vld [vmem:[%s3 + $0x6e8] sm:$0xff]
        %v9902 = vld [vmem:[%s3 + $0x6f0] sm:$0xff]
        %v9903 = vld [vmem:[%s3 + $0x6f8] sm:$0xff]
        %v9904 = vld [vmem:[%s3 + $0x700] sm:$0xff]
        %v9905 = vld [vmem:[%s3 + $0x708] sm:$0xff]
        %v9906 = vld [vmem:[%s3 + $0x710] sm:$0xff]
        %v9907 = vld [vmem:[%s3 + $0x718] sm:$0xff]
        %v9908 = vld [vmem:[%s3 + $0x720] sm:$0xff]
        %v9909 = vld [vmem:[%s3 + $0x728] sm:$0xff]
        %v9910 = vld [vmem:[%s3 + $0x730] sm:$0xff]
        %v9911 = vld [vmem:[%s3 + $0x738] sm:$0xff]
        %v9912 = vld [vmem:[%s3 + $0x740] sm:$0xff]
        %v9913 = vld [vmem:[%s3 + $0x748] sm:$0xff]
        %v9914 = vld [vmem:[%s3 + $0x750] sm:$0xff]
        %v9915 = vld [vmem:[%s3 + $0x758] sm:$0xff]
        %v9916 = vld [vmem:[%s3 + $0x760] sm:$0xff]
        %v9917 = vld [vmem:[%s3 + $0x768] sm:$0xff]
        %v9918 = vld [vmem:[%s3 + $0x770] sm:$0xff]
        %v9919 = vld [vmem:[%s3 + $0x778] sm:$0xff]
        %v9920 = vld [vmem:[%s3 + $0x780] sm:$0xff]
        %v9921 = vld [vmem:[%s3 + $0x788] sm:$0xff]
        %v9922 = vld [vmem:[%s3 + $0x790] sm:$0xff]
        %v9923 = vld [vmem:[%s3 + $0x798] sm:$0xff]
        %v9924 = vld [vmem:[%s3 + $0x7a0] sm:$0xff]
        %v9925 = vld [vmem:[%s3 + $0x7a8] sm:$0xff]
        %v9926 = vld [vmem:[%s3 + $0x7b0] sm:$0xff]
        %v9927 = vld [vmem:[%s3 + $0x7b8] sm:$0xff]
        %v9928 = vld [vmem:[%s3 + $0x7c0] sm:$0xff]
        %v9929 = vld [vmem:[%s3 + $0x7c8] sm:$0xff]
        %v9930 = vld [vmem:[%s3 + $0x7d0] sm:$0xff]
        %v9931 = vld [vmem:[%s3 + $0x7d8] sm:$0xff]
        %v9932 = vld [vmem:[%s3 + $0x7e0] sm:$0xff]
        %v9933 = vld [vmem:[%s3 + $0x7e8] sm:$0xff]
        %v9934 = vld [vmem:[%s3 + $0x7f0] sm:$0xff]
        %v9935 = vld [vmem:[%s3 + $0x7f8] sm:$0xff]
        %v9936 = vld [vmem:[%s3 + $0x800] sm:$0xff]
        %v9937 = vld [vmem:[%s3 + $0x808] sm:$0xff]
        %v9938 = vld [vmem:[%s3 + $0x810] sm:$0xff]
        %v9939 = vld [vmem:[%s3 + $0x818] sm:$0xff]
        %v9940 = vld [vmem:[%s3 + $0x820] sm:$0xff]
        %v9941 = vld [vmem:[%s3 + $0x828] sm:$0xff]
        %v9942 = vld [vmem:[%s3 + $0x830] sm:$0xff]
        %v9943 = vld [vmem:[%s3 + $0x838] sm:$0xff]
        %v9944 = vld [vmem:[%s3 + $0x840] sm:$0xff]
        %v9945 = vld [vmem:[%s3 + $0x848] sm:$0xff]
        %v9946 = vld [vmem:[%s3 + $0x850] sm:$0xff]
        %v9947 = vld [vmem:[%s3 + $0x858] sm:$0xff]
        %v9948 = vld [vmem:[%s3 + $0x860] sm:$0xff]
        %v9949 = vld [vmem:[%s3 + $0x868] sm:$0xff]
        %v9950 = vld [vmem:[%s3 + $0x870] sm:$0xff]
        %v9951 = vld [vmem:[%s3 + $0x878] sm:$0xff]
        %v9952 = vld [vmem:[%s3 + $0x880] sm:$0xff]
        %v9953 = vld [vmem:[%s3 + $0x888] sm:$0xff]
        %v9954 = vld [vmem:[%s3 + $0x890] sm:$0xff]
        %v9955 = vld [vmem:[%s3 + $0x898] sm:$0xff]
        %v9956 = vld [vmem:[%s3 + $0x8a0] sm:$0xff]
        %v9957 = vld [vmem:[%s3 + $0x8a8] sm:$0xff]
        %v9958 = vld [vmem:[%s3 + $0x8b0] sm:$0xff]
        %v9959 = vld [vmem:[%s3 + $0x8b8] sm:$0xff]
        %v9960 = vld [vmem:[%s3 + $0x8c0] sm:$0xff]
        %v9961 = vld [vmem:[%s3 + $0x8c8] sm:$0xff]
        %v9962 = vld [vmem:[%s3 + $0x8d0] sm:$0xff]
        %v9963 = vld [vmem:[%s3 + $0x8d8] sm:$0xff]
        %v9964 = vld [vmem:[%s3 + $0x8e0] sm:$0xff]
        %v9965 = vld [vmem:[%s3 + $0x8e8] sm:$0xff]
        %v9966 = vld [vmem:[%s3 + $0x8f0] sm:$0xff]
        %v9967 = vld [vmem:[%s3 + $0x8f8] sm:$0xff]
        %v10256 = vunpack.c.l.b16 %v9680
        %v10257 = vunpack.c.h.b16 %v9680
        %v10258 = vunpack.c.l.b16 %v9681
        %v10259 = vunpack.c.h.b16 %v9681
        %v10260 = vunpack.c.l.b16 %v9682
        %v10261 = vunpack.c.h.b16 %v9682
        %v10262 = vunpack.c.l.b16 %v9683
        %v10263 = vunpack.c.h.b16 %v9683
        %v10264 = vunpack.c.l.b16 %v9684
        %v10265 = vunpack.c.h.b16 %v9684
        %v10266 = vunpack.c.l.b16 %v9685
        %v10267 = vunpack.c.h.b16 %v9685
        %v10268 = vunpack.c.l.b16 %v9686
        %v10269 = vunpack.c.h.b16 %v9686
        %v10270 = vunpack.c.l.b16 %v9687
        %v10271 = vunpack.c.h.b16 %v9687
        %v10272 = vunpack.c.l.b16 %v9688
        %v10273 = vunpack.c.h.b16 %v9688
        %v10274 = vunpack.c.l.b16 %v9689
        %v10275 = vunpack.c.h.b16 %v9689
        %v10276 = vunpack.c.l.b16 %v9690
        %v10277 = vunpack.c.h.b16 %v9690
        %v10278 = vunpack.c.l.b16 %v9691
        %v10279 = vunpack.c.h.b16 %v9691
        %v10280 = vunpack.c.l.b16 %v9692
        %v10281 = vunpack.c.h.b16 %v9692
        %v10282 = vunpack.c.l.b16 %v9693
        %v10283 = vunpack.c.h.b16 %v9693
        %v10284 = vunpack.c.l.b16 %v9694
        %v10285 = vunpack.c.h.b16 %v9694
        %v10286 = vunpack.c.l.b16 %v9695
        %v10287 = vunpack.c.h.b16 %v9695
        %v10288 = vunpack.c.l.b16 %v9696
        %v10289 = vunpack.c.h.b16 %v9696
        %v10290 = vunpack.c.l.b16 %v9697
        %v10291 = vunpack.c.h.b16 %v9697
        %v10292 = vunpack.c.l.b16 %v9698
        %v10293 = vunpack.c.h.b16 %v9698
        %v10294 = vunpack.c.l.b16 %v9699
        %v10295 = vunpack.c.h.b16 %v9699
        %v10296 = vunpack.c.l.b16 %v9700
        %v10297 = vunpack.c.h.b16 %v9700
        %v10298 = vunpack.c.l.b16 %v9701
        %v10299 = vunpack.c.h.b16 %v9701
        %v10300 = vunpack.c.l.b16 %v9702
        %v10301 = vunpack.c.h.b16 %v9702
        %v10302 = vunpack.c.l.b16 %v9703
        %v10303 = vunpack.c.h.b16 %v9703
        %v10304 = vunpack.c.l.b16 %v9704
        %v10305 = vunpack.c.h.b16 %v9704
        %v10306 = vunpack.c.l.b16 %v9705
        %v10307 = vunpack.c.h.b16 %v9705
        %v10308 = vunpack.c.l.b16 %v9706
        %v10309 = vunpack.c.h.b16 %v9706
        %v10310 = vunpack.c.l.b16 %v9707
        %v10311 = vunpack.c.h.b16 %v9707
        %v10312 = vunpack.c.l.b16 %v9708
        %v10313 = vunpack.c.h.b16 %v9708
        %v10314 = vunpack.c.l.b16 %v9709
        %v10315 = vunpack.c.h.b16 %v9709
        %v10316 = vunpack.c.l.b16 %v9710
        %v10317 = vunpack.c.h.b16 %v9710
        %v10318 = vunpack.c.l.b16 %v9711
        %v10319 = vunpack.c.h.b16 %v9711
        %v10320 = vunpack.c.l.b16 %v9712
        %v10321 = vunpack.c.h.b16 %v9712
        %v10322 = vunpack.c.l.b16 %v9713
        %v10323 = vunpack.c.h.b16 %v9713
        %v10324 = vunpack.c.l.b16 %v9714
        %v10325 = vunpack.c.h.b16 %v9714
        %v10326 = vunpack.c.l.b16 %v9715
        %v10327 = vunpack.c.h.b16 %v9715
        %v10328 = vunpack.c.l.b16 %v9716
        %v10329 = vunpack.c.h.b16 %v9716
        %v10330 = vunpack.c.l.b16 %v9717
        %v10331 = vunpack.c.h.b16 %v9717
        %v10332 = vunpack.c.l.b16 %v9718
        %v10333 = vunpack.c.h.b16 %v9718
        %v10334 = vunpack.c.l.b16 %v9719
        %v10335 = vunpack.c.h.b16 %v9719
        %v10336 = vunpack.c.l.b16 %v9720
        %v10337 = vunpack.c.h.b16 %v9720
        %v10338 = vunpack.c.l.b16 %v9721
        %v10339 = vunpack.c.h.b16 %v9721
        %v10340 = vunpack.c.l.b16 %v9722
        %v10341 = vunpack.c.h.b16 %v9722
        %v10342 = vunpack.c.l.b16 %v9723
        %v10343 = vunpack.c.h.b16 %v9723
        %v10344 = vunpack.c.l.b16 %v9724
        %v10345 = vunpack.c.h.b16 %v9724
        %v10346 = vunpack.c.l.b16 %v9725
        %v10347 = vunpack.c.h.b16 %v9725
        %v10348 = vunpack.c.l.b16 %v9726
        %v10349 = vunpack.c.h.b16 %v9726
        %v10350 = vunpack.c.l.b16 %v9727
        %v10351 = vunpack.c.h.b16 %v9727
        %v10352 = vunpack.c.l.b16 %v9728
        %v10353 = vunpack.c.h.b16 %v9728
        %v10354 = vunpack.c.l.b16 %v9729
        %v10355 = vunpack.c.h.b16 %v9729
        %v10356 = vunpack.c.l.b16 %v9730
        %v10357 = vunpack.c.h.b16 %v9730
        %v10358 = vunpack.c.l.b16 %v9731
        %v10359 = vunpack.c.h.b16 %v9731
        %v10360 = vunpack.c.l.b16 %v9732
        %v10361 = vunpack.c.h.b16 %v9732
        %v10362 = vunpack.c.l.b16 %v9733
        %v10363 = vunpack.c.h.b16 %v9733
        %v10364 = vunpack.c.l.b16 %v9734
        %v10365 = vunpack.c.h.b16 %v9734
        %v10366 = vunpack.c.l.b16 %v9735
        %v10367 = vunpack.c.h.b16 %v9735
        %v10368 = vunpack.c.l.b16 %v9736
        %v10369 = vunpack.c.h.b16 %v9736
        %v10370 = vunpack.c.l.b16 %v9737
        %v10371 = vunpack.c.h.b16 %v9737
        %v10372 = vunpack.c.l.b16 %v9738
        %v10373 = vunpack.c.h.b16 %v9738
        %v10374 = vunpack.c.l.b16 %v9739
        %v10375 = vunpack.c.h.b16 %v9739
        %v10376 = vunpack.c.l.b16 %v9740
        %v10377 = vunpack.c.h.b16 %v9740
        %v10378 = vunpack.c.l.b16 %v9741
        %v10379 = vunpack.c.h.b16 %v9741
        %v10380 = vunpack.c.l.b16 %v9742
        %v10381 = vunpack.c.h.b16 %v9742
        %v10382 = vunpack.c.l.b16 %v9743
        %v10383 = vunpack.c.h.b16 %v9743
        %v10384 = vunpack.c.l.b16 %v9744
        %v10385 = vunpack.c.h.b16 %v9744
        %v10386 = vunpack.c.l.b16 %v9745
        %v10387 = vunpack.c.h.b16 %v9745
        %v10388 = vunpack.c.l.b16 %v9746
        %v10389 = vunpack.c.h.b16 %v9746
        %v10390 = vunpack.c.l.b16 %v9747
        %v10391 = vunpack.c.h.b16 %v9747
        %v10392 = vunpack.c.l.b16 %v9748
        %v10393 = vunpack.c.h.b16 %v9748
        %v10394 = vunpack.c.l.b16 %v9749
        %v10395 = vunpack.c.h.b16 %v9749
        %v10396 = vunpack.c.l.b16 %v9750
        %v10397 = vunpack.c.h.b16 %v9750
        %v10398 = vunpack.c.l.b16 %v9751
        %v10399 = vunpack.c.h.b16 %v9751
        %v10400 = vunpack.c.l.b16 %v9752
        %v10401 = vunpack.c.h.b16 %v9752
        %v10402 = vunpack.c.l.b16 %v9753
        %v10403 = vunpack.c.h.b16 %v9753
        %v10404 = vunpack.c.l.b16 %v9754
        %v10405 = vunpack.c.h.b16 %v9754
        %v10406 = vunpack.c.l.b16 %v9755
        %v10407 = vunpack.c.h.b16 %v9755
        %v10408 = vunpack.c.l.b16 %v9756
        %v10409 = vunpack.c.h.b16 %v9756
        %v10410 = vunpack.c.l.b16 %v9757
        %v10411 = vunpack.c.h.b16 %v9757
        %v10412 = vunpack.c.l.b16 %v9758
        %v10413 = vunpack.c.h.b16 %v9758
        %v10414 = vunpack.c.l.b16 %v9759
        %v10415 = vunpack.c.h.b16 %v9759
        %v10416 = vunpack.c.l.b16 %v9760
        %v10417 = vunpack.c.h.b16 %v9760
        %v10418 = vunpack.c.l.b16 %v9761
        %v10419 = vunpack.c.h.b16 %v9761
        %v10420 = vunpack.c.l.b16 %v9762
        %v10421 = vunpack.c.h.b16 %v9762
        %v10422 = vunpack.c.l.b16 %v9763
        %v10423 = vunpack.c.h.b16 %v9763
        %v10424 = vunpack.c.l.b16 %v9764
        %v10425 = vunpack.c.h.b16 %v9764
        %v10426 = vunpack.c.l.b16 %v9765
        %v10427 = vunpack.c.h.b16 %v9765
        %v10428 = vunpack.c.l.b16 %v9766
        %v10429 = vunpack.c.h.b16 %v9766
        %v10430 = vunpack.c.l.b16 %v9767
        %v10431 = vunpack.c.h.b16 %v9767
        %v10432 = vunpack.c.l.b16 %v9768
        %v10433 = vunpack.c.h.b16 %v9768
        %v10434 = vunpack.c.l.b16 %v9769
        %v10435 = vunpack.c.h.b16 %v9769
        %v10436 = vunpack.c.l.b16 %v9770
        %v10437 = vunpack.c.h.b16 %v9770
        %v10438 = vunpack.c.l.b16 %v9771
        %v10439 = vunpack.c.h.b16 %v9771
        %v10440 = vunpack.c.l.b16 %v9772
        %v10441 = vunpack.c.h.b16 %v9772
        %v10442 = vunpack.c.l.b16 %v9773
        %v10443 = vunpack.c.h.b16 %v9773
        %v10444 = vunpack.c.l.b16 %v9774
        %v10445 = vunpack.c.h.b16 %v9774
        %v10446 = vunpack.c.l.b16 %v9775
        %v10447 = vunpack.c.h.b16 %v9775
        %v10448 = vunpack.c.l.b16 %v9776
        %v10449 = vunpack.c.h.b16 %v9776
        %v10450 = vunpack.c.l.b16 %v9777
        %v10451 = vunpack.c.h.b16 %v9777
        %v10452 = vunpack.c.l.b16 %v9778
        %v10453 = vunpack.c.h.b16 %v9778
        %v10454 = vunpack.c.l.b16 %v9779
        %v10455 = vunpack.c.h.b16 %v9779
        %v10456 = vunpack.c.l.b16 %v9780
        %v10457 = vunpack.c.h.b16 %v9780
        %v10458 = vunpack.c.l.b16 %v9781
        %v10459 = vunpack.c.h.b16 %v9781
        %v10460 = vunpack.c.l.b16 %v9782
        %v10461 = vunpack.c.h.b16 %v9782
        %v10462 = vunpack.c.l.b16 %v9783
        %v10463 = vunpack.c.h.b16 %v9783
        %v10464 = vunpack.c.l.b16 %v9784
        %v10465 = vunpack.c.h.b16 %v9784
        %v10466 = vunpack.c.l.b16 %v9785
        %v10467 = vunpack.c.h.b16 %v9785
        %v10468 = vunpack.c.l.b16 %v9786
        %v10469 = vunpack.c.h.b16 %v9786
        %v10470 = vunpack.c.l.b16 %v9787
        %v10471 = vunpack.c.h.b16 %v9787
        %v10472 = vunpack.c.l.b16 %v9788
        %v10473 = vunpack.c.h.b16 %v9788
        %v10474 = vunpack.c.l.b16 %v9789
        %v10475 = vunpack.c.h.b16 %v9789
        %v10476 = vunpack.c.l.b16 %v9790
        %v10477 = vunpack.c.h.b16 %v9790
        %v10478 = vunpack.c.l.b16 %v9791
        %v10479 = vunpack.c.h.b16 %v9791
        %v10480 = vunpack.c.l.b16 %v9792
        %v10481 = vunpack.c.h.b16 %v9792
        %v10482 = vunpack.c.l.b16 %v9793
        %v10483 = vunpack.c.h.b16 %v9793
        %v10484 = vunpack.c.l.b16 %v9794
        %v10485 = vunpack.c.h.b16 %v9794
        %v10486 = vunpack.c.l.b16 %v9795
        %v10487 = vunpack.c.h.b16 %v9795
        %v10488 = vunpack.c.l.b16 %v9796
        %v10489 = vunpack.c.h.b16 %v9796
        %v10490 = vunpack.c.l.b16 %v9797
        %v10491 = vunpack.c.h.b16 %v9797
        %v10492 = vunpack.c.l.b16 %v9798
        %v10493 = vunpack.c.h.b16 %v9798
        %v10494 = vunpack.c.l.b16 %v9799
        %v10495 = vunpack.c.h.b16 %v9799
        %v10496 = vunpack.c.l.b16 %v9800
        %v10497 = vunpack.c.h.b16 %v9800
        %v10498 = vunpack.c.l.b16 %v9801
        %v10499 = vunpack.c.h.b16 %v9801
        %v10500 = vunpack.c.l.b16 %v9802
        %v10501 = vunpack.c.h.b16 %v9802
        %v10502 = vunpack.c.l.b16 %v9803
        %v10503 = vunpack.c.h.b16 %v9803
        %v10504 = vunpack.c.l.b16 %v9804
        %v10505 = vunpack.c.h.b16 %v9804
        %v10506 = vunpack.c.l.b16 %v9805
        %v10507 = vunpack.c.h.b16 %v9805
        %v10508 = vunpack.c.l.b16 %v9806
        %v10509 = vunpack.c.h.b16 %v9806
        %v10510 = vunpack.c.l.b16 %v9807
        %v10511 = vunpack.c.h.b16 %v9807
        %v10512 = vunpack.c.l.b16 %v9808
        %v10513 = vunpack.c.h.b16 %v9808
        %v10514 = vunpack.c.l.b16 %v9809
        %v10515 = vunpack.c.h.b16 %v9809
        %v10516 = vunpack.c.l.b16 %v9810
        %v10517 = vunpack.c.h.b16 %v9810
        %v10518 = vunpack.c.l.b16 %v9811
        %v10519 = vunpack.c.h.b16 %v9811
        %v10520 = vunpack.c.l.b16 %v9812
        %v10521 = vunpack.c.h.b16 %v9812
        %v10522 = vunpack.c.l.b16 %v9813
        %v10523 = vunpack.c.h.b16 %v9813
        %v10524 = vunpack.c.l.b16 %v9814
        %v10525 = vunpack.c.h.b16 %v9814
        %v10526 = vunpack.c.l.b16 %v9815
        %v10527 = vunpack.c.h.b16 %v9815
        %v10528 = vunpack.c.l.b16 %v9816
        %v10529 = vunpack.c.h.b16 %v9816
        %v10530 = vunpack.c.l.b16 %v9817
        %v10531 = vunpack.c.h.b16 %v9817
        %v10532 = vunpack.c.l.b16 %v9818
        %v10533 = vunpack.c.h.b16 %v9818
        %v10534 = vunpack.c.l.b16 %v9819
        %v10535 = vunpack.c.h.b16 %v9819
        %v10536 = vunpack.c.l.b16 %v9820
        %v10537 = vunpack.c.h.b16 %v9820
        %v10538 = vunpack.c.l.b16 %v9821
        %v10539 = vunpack.c.h.b16 %v9821
        %v10540 = vunpack.c.l.b16 %v9822
        %v10541 = vunpack.c.h.b16 %v9822
        %v10542 = vunpack.c.l.b16 %v9823
        %v10543 = vunpack.c.h.b16 %v9823
        %v10544 = vunpack.c.l.b16 %v9824
        %v10545 = vunpack.c.h.b16 %v9824
        %v10546 = vunpack.c.l.b16 %v9825
        %v10547 = vunpack.c.h.b16 %v9825
        %v10548 = vunpack.c.l.b16 %v9826
        %v10549 = vunpack.c.h.b16 %v9826
        %v10550 = vunpack.c.l.b16 %v9827
        %v10551 = vunpack.c.h.b16 %v9827
        %v10552 = vunpack.c.l.b16 %v9828
        %v10553 = vunpack.c.h.b16 %v9828
        %v10554 = vunpack.c.l.b16 %v9829
        %v10555 = vunpack.c.h.b16 %v9829
        %v10556 = vunpack.c.l.b16 %v9830
        %v10557 = vunpack.c.h.b16 %v9830
        %v10558 = vunpack.c.l.b16 %v9831
        %v10559 = vunpack.c.h.b16 %v9831
        %v10560 = vunpack.c.l.b16 %v9832
        %v10561 = vunpack.c.h.b16 %v9832
        %v10562 = vunpack.c.l.b16 %v9833
        %v10563 = vunpack.c.h.b16 %v9833
        %v10564 = vunpack.c.l.b16 %v9834
        %v10565 = vunpack.c.h.b16 %v9834
        %v10566 = vunpack.c.l.b16 %v9835
        %v10567 = vunpack.c.h.b16 %v9835
        %v10568 = vunpack.c.l.b16 %v9836
        %v10569 = vunpack.c.h.b16 %v9836
        %v10570 = vunpack.c.l.b16 %v9837
        %v10571 = vunpack.c.h.b16 %v9837
        %v10572 = vunpack.c.l.b16 %v9838
        %v10573 = vunpack.c.h.b16 %v9838
        %v10574 = vunpack.c.l.b16 %v9839
        %v10575 = vunpack.c.h.b16 %v9839
        %v10576 = vunpack.c.l.b16 %v9840
        %v10577 = vunpack.c.h.b16 %v9840
        %v10578 = vunpack.c.l.b16 %v9841
        %v10579 = vunpack.c.h.b16 %v9841
        %v10580 = vunpack.c.l.b16 %v9842
        %v10581 = vunpack.c.h.b16 %v9842
        %v10582 = vunpack.c.l.b16 %v9843
        %v10583 = vunpack.c.h.b16 %v9843
        %v10584 = vunpack.c.l.b16 %v9844
        %v10585 = vunpack.c.h.b16 %v9844
        %v10586 = vunpack.c.l.b16 %v9845
        %v10587 = vunpack.c.h.b16 %v9845
        %v10588 = vunpack.c.l.b16 %v9846
        %v10589 = vunpack.c.h.b16 %v9846
        %v10590 = vunpack.c.l.b16 %v9847
        %v10591 = vunpack.c.h.b16 %v9847
        %v10592 = vunpack.c.l.b16 %v9848
        %v10593 = vunpack.c.h.b16 %v9848
        %v10594 = vunpack.c.l.b16 %v9849
        %v10595 = vunpack.c.h.b16 %v9849
        %v10596 = vunpack.c.l.b16 %v9850
        %v10597 = vunpack.c.h.b16 %v9850
        %v10598 = vunpack.c.l.b16 %v9851
        %v10599 = vunpack.c.h.b16 %v9851
        %v10600 = vunpack.c.l.b16 %v9852
        %v10601 = vunpack.c.h.b16 %v9852
        %v10602 = vunpack.c.l.b16 %v9853
        %v10603 = vunpack.c.h.b16 %v9853
        %v10604 = vunpack.c.l.b16 %v9854
        %v10605 = vunpack.c.h.b16 %v9854
        %v10606 = vunpack.c.l.b16 %v9855
        %v10607 = vunpack.c.h.b16 %v9855
        %v10608 = vunpack.c.l.b16 %v9856
        %v10609 = vunpack.c.h.b16 %v9856
        %v10610 = vunpack.c.l.b16 %v9857
        %v10611 = vunpack.c.h.b16 %v9857
        %v10612 = vunpack.c.l.b16 %v9858
        %v10613 = vunpack.c.h.b16 %v9858
        %v10614 = vunpack.c.l.b16 %v9859
        %v10615 = vunpack.c.h.b16 %v9859
        %v10616 = vunpack.c.l.b16 %v9860
        %v10617 = vunpack.c.h.b16 %v9860
        %v10618 = vunpack.c.l.b16 %v9861
        %v10619 = vunpack.c.h.b16 %v9861
        %v10620 = vunpack.c.l.b16 %v9862
        %v10621 = vunpack.c.h.b16 %v9862
        %v10622 = vunpack.c.l.b16 %v9863
        %v10623 = vunpack.c.h.b16 %v9863
        %v10624 = vunpack.c.l.b16 %v9864
        %v10625 = vunpack.c.h.b16 %v9864
        %v10626 = vunpack.c.l.b16 %v9865
        %v10627 = vunpack.c.h.b16 %v9865
        %v10628 = vunpack.c.l.b16 %v9866
        %v10629 = vunpack.c.h.b16 %v9866
        %v10630 = vunpack.c.l.b16 %v9867
        %v10631 = vunpack.c.h.b16 %v9867
        %v10632 = vunpack.c.l.b16 %v9868
        %v10633 = vunpack.c.h.b16 %v9868
        %v10634 = vunpack.c.l.b16 %v9869
        %v10635 = vunpack.c.h.b16 %v9869
        %v10636 = vunpack.c.l.b16 %v9870
        %v10637 = vunpack.c.h.b16 %v9870
        %v10638 = vunpack.c.l.b16 %v9871
        %v10639 = vunpack.c.h.b16 %v9871
        %v10640 = vunpack.c.l.b16 %v9872
        %v10641 = vunpack.c.h.b16 %v9872
        %v10642 = vunpack.c.l.b16 %v9873
        %v10643 = vunpack.c.h.b16 %v9873
        %v10644 = vunpack.c.l.b16 %v9874
        %v10645 = vunpack.c.h.b16 %v9874
        %v10646 = vunpack.c.l.b16 %v9875
        %v10647 = vunpack.c.h.b16 %v9875
        %v10648 = vunpack.c.l.b16 %v9876
        %v10649 = vunpack.c.h.b16 %v9876
        %v10650 = vunpack.c.l.b16 %v9877
        %v10651 = vunpack.c.h.b16 %v9877
        %v10652 = vunpack.c.l.b16 %v9878
        %v10653 = vunpack.c.h.b16 %v9878
        %v10654 = vunpack.c.l.b16 %v9879
        %v10655 = vunpack.c.h.b16 %v9879
        %v10656 = vunpack.c.l.b16 %v9880
        %v10657 = vunpack.c.h.b16 %v9880
        %v10658 = vunpack.c.l.b16 %v9881
        %v10659 = vunpack.c.h.b16 %v9881
        %v10660 = vunpack.c.l.b16 %v9882
        %v10661 = vunpack.c.h.b16 %v9882
        %v10662 = vunpack.c.l.b16 %v9883
        %v10663 = vunpack.c.h.b16 %v9883
        %v10664 = vunpack.c.l.b16 %v9884
        %v10665 = vunpack.c.h.b16 %v9884
        %v10666 = vunpack.c.l.b16 %v9885
        %v10667 = vunpack.c.h.b16 %v9885
        %v10668 = vunpack.c.l.b16 %v9886
        %v10669 = vunpack.c.h.b16 %v9886
        %v10670 = vunpack.c.l.b16 %v9887
        %v10671 = vunpack.c.h.b16 %v9887
        %v10672 = vunpack.c.l.b16 %v9888
        %v10673 = vunpack.c.h.b16 %v9888
        %v10674 = vunpack.c.l.b16 %v9889
        %v10675 = vunpack.c.h.b16 %v9889
        %v10676 = vunpack.c.l.b16 %v9890
        %v10677 = vunpack.c.h.b16 %v9890
        %v10678 = vunpack.c.l.b16 %v9891
        %v10679 = vunpack.c.h.b16 %v9891
        %v10680 = vunpack.c.l.b16 %v9892
        %v10681 = vunpack.c.h.b16 %v9892
        %v10682 = vunpack.c.l.b16 %v9893
        %v10683 = vunpack.c.h.b16 %v9893
        %v10684 = vunpack.c.l.b16 %v9894
        %v10685 = vunpack.c.h.b16 %v9894
        %v10686 = vunpack.c.l.b16 %v9895
        %v10687 = vunpack.c.h.b16 %v9895
        %v10688 = vunpack.c.l.b16 %v9896
        %v10689 = vunpack.c.h.b16 %v9896
        %v10690 = vunpack.c.l.b16 %v9897
        %v10691 = vunpack.c.h.b16 %v9897
        %v10692 = vunpack.c.l.b16 %v9898
        %v10693 = vunpack.c.h.b16 %v9898
        %v10694 = vunpack.c.l.b16 %v9899
        %v10695 = vunpack.c.h.b16 %v9899
        %v10696 = vunpack.c.l.b16 %v9900
        %v10697 = vunpack.c.h.b16 %v9900
        %v10698 = vunpack.c.l.b16 %v9901
        %v10699 = vunpack.c.h.b16 %v9901
        %v10700 = vunpack.c.l.b16 %v9902
        %v10701 = vunpack.c.h.b16 %v9902
        %v10702 = vunpack.c.l.b16 %v9903
        %v10703 = vunpack.c.h.b16 %v9903
        %v10704 = vunpack.c.l.b16 %v9904
        %v10705 = vunpack.c.h.b16 %v9904
        %v10706 = vunpack.c.l.b16 %v9905
        %v10707 = vunpack.c.h.b16 %v9905
        %v10708 = vunpack.c.l.b16 %v9906
        %v10709 = vunpack.c.h.b16 %v9906
        %v10710 = vunpack.c.l.b16 %v9907
        %v10711 = vunpack.c.h.b16 %v9907
        %v10712 = vunpack.c.l.b16 %v9908
        %v10713 = vunpack.c.h.b16 %v9908
        %v10714 = vunpack.c.l.b16 %v9909
        %v10715 = vunpack.c.h.b16 %v9909
        %v10716 = vunpack.c.l.b16 %v9910
        %v10717 = vunpack.c.h.b16 %v9910
        %v10718 = vunpack.c.l.b16 %v9911
        %v10719 = vunpack.c.h.b16 %v9911
        %v10720 = vunpack.c.l.b16 %v9912
        %v10721 = vunpack.c.h.b16 %v9912
        %v10722 = vunpack.c.l.b16 %v9913
        %v10723 = vunpack.c.h.b16 %v9913
        %v10724 = vunpack.c.l.b16 %v9914
        %v10725 = vunpack.c.h.b16 %v9914
        %v10726 = vunpack.c.l.b16 %v9915
        %v10727 = vunpack.c.h.b16 %v9915
        %v10728 = vunpack.c.l.b16 %v9916
        %v10729 = vunpack.c.h.b16 %v9916
        %v10730 = vunpack.c.l.b16 %v9917
        %v10731 = vunpack.c.h.b16 %v9917
        %v10732 = vunpack.c.l.b16 %v9918
        %v10733 = vunpack.c.h.b16 %v9918
        %v10734 = vunpack.c.l.b16 %v9919
        %v10735 = vunpack.c.h.b16 %v9919
        %v10736 = vunpack.c.l.b16 %v9920
        %v10737 = vunpack.c.h.b16 %v9920
        %v10738 = vunpack.c.l.b16 %v9921
        %v10739 = vunpack.c.h.b16 %v9921
        %v10740 = vunpack.c.l.b16 %v9922
        %v10741 = vunpack.c.h.b16 %v9922
        %v10742 = vunpack.c.l.b16 %v9923
        %v10743 = vunpack.c.h.b16 %v9923
        %v10744 = vunpack.c.l.b16 %v9924
        %v10745 = vunpack.c.h.b16 %v9924
        %v10746 = vunpack.c.l.b16 %v9925
        %v10747 = vunpack.c.h.b16 %v9925
        %v10748 = vunpack.c.l.b16 %v9926
        %v10749 = vunpack.c.h.b16 %v9926
        %v10750 = vunpack.c.l.b16 %v9927
        %v10751 = vunpack.c.h.b16 %v9927
        %v10752 = vunpack.c.l.b16 %v9928
        %v10753 = vunpack.c.h.b16 %v9928
        %v10754 = vunpack.c.l.b16 %v9929
        %v10755 = vunpack.c.h.b16 %v9929
        %v10756 = vunpack.c.l.b16 %v9930
        %v10757 = vunpack.c.h.b16 %v9930
        %v10758 = vunpack.c.l.b16 %v9931
        %v10759 = vunpack.c.h.b16 %v9931
        %v10760 = vunpack.c.l.b16 %v9932
        %v10761 = vunpack.c.h.b16 %v9932
        %v10762 = vunpack.c.l.b16 %v9933
        %v10763 = vunpack.c.h.b16 %v9933
        %v10764 = vunpack.c.l.b16 %v9934
        %v10765 = vunpack.c.h.b16 %v9934
        %v10766 = vunpack.c.l.b16 %v9935
        %v10767 = vunpack.c.h.b16 %v9935
        %v10768 = vunpack.c.l.b16 %v9936
        %v10769 = vunpack.c.h.b16 %v9936
        %v10770 = vunpack.c.l.b16 %v9937
        %v10771 = vunpack.c.h.b16 %v9937
        %v10772 = vunpack.c.l.b16 %v9938
        %v10773 = vunpack.c.h.b16 %v9938
        %v10774 = vunpack.c.l.b16 %v9939
        %v10775 = vunpack.c.h.b16 %v9939
        %v10776 = vunpack.c.l.b16 %v9940
        %v10777 = vunpack.c.h.b16 %v9940
        %v10778 = vunpack.c.l.b16 %v9941
        %v10779 = vunpack.c.h.b16 %v9941
        %v10780 = vunpack.c.l.b16 %v9942
        %v10781 = vunpack.c.h.b16 %v9942
        %v10782 = vunpack.c.l.b16 %v9943
        %v10783 = vunpack.c.h.b16 %v9943
        %v10784 = vunpack.c.l.b16 %v9944
        %v10785 = vunpack.c.h.b16 %v9944
        %v10786 = vunpack.c.l.b16 %v9945
        %v10787 = vunpack.c.h.b16 %v9945
        %v10788 = vunpack.c.l.b16 %v9946
        %v10789 = vunpack.c.h.b16 %v9946
        %v10790 = vunpack.c.l.b16 %v9947
        %v10791 = vunpack.c.h.b16 %v9947
        %v10792 = vunpack.c.l.b16 %v9948
        %v10793 = vunpack.c.h.b16 %v9948
        %v10794 = vunpack.c.l.b16 %v9949
        %v10795 = vunpack.c.h.b16 %v9949
        %v10796 = vunpack.c.l.b16 %v9950
        %v10797 = vunpack.c.h.b16 %v9950
        %v10798 = vunpack.c.l.b16 %v9951
        %v10799 = vunpack.c.h.b16 %v9951
        %v10800 = vunpack.c.l.b16 %v9952
        %v10801 = vunpack.c.h.b16 %v9952
        %v10802 = vunpack.c.l.b16 %v9953
        %v10803 = vunpack.c.h.b16 %v9953
        %v10804 = vunpack.c.l.b16 %v9954
        %v10805 = vunpack.c.h.b16 %v9954
        %v10806 = vunpack.c.l.b16 %v9955
        %v10807 = vunpack.c.h.b16 %v9955
        %v10808 = vunpack.c.l.b16 %v9956
        %v10809 = vunpack.c.h.b16 %v9956
        %v10810 = vunpack.c.l.b16 %v9957
        %v10811 = vunpack.c.h.b16 %v9957
        %v10812 = vunpack.c.l.b16 %v9958
        %v10813 = vunpack.c.h.b16 %v9958
        %v10814 = vunpack.c.l.b16 %v9959
        %v10815 = vunpack.c.h.b16 %v9959
        %v10816 = vunpack.c.l.b16 %v9960
        %v10817 = vunpack.c.h.b16 %v9960
        %v10818 = vunpack.c.l.b16 %v9961
        %v10819 = vunpack.c.h.b16 %v9961
        %v10820 = vunpack.c.l.b16 %v9962
        %v10821 = vunpack.c.h.b16 %v9962
        %v10822 = vunpack.c.l.b16 %v9963
        %v10823 = vunpack.c.h.b16 %v9963
        %v10824 = vunpack.c.l.b16 %v9964
        %v10825 = vunpack.c.h.b16 %v9964
        %v10826 = vunpack.c.l.b16 %v9965
        %v10827 = vunpack.c.h.b16 %v9965
        %v10828 = vunpack.c.l.b16 %v9966
        %v10829 = vunpack.c.h.b16 %v9966
        %v10830 = vunpack.c.l.b16 %v9967
        %v10831 = vunpack.c.h.b16 %v9967
        %v10832 = vpack.c.b16 %v10262, %v10256
        %v10833 = vpack.c.b16 %v10263, %v10257
        %v10834 = vpack.c.b16 %v10264, %v10258
        %v10835 = vpack.c.b16 %v10265, %v10259
        %v10836 = vpack.c.b16 %v10266, %v10260
        %v10837 = vpack.c.b16 %v10267, %v10261
        %v10838 = vpack.c.b16 %v10274, %v10268
        %v10839 = vpack.c.b16 %v10275, %v10269
        %v10840 = vpack.c.b16 %v10276, %v10270
        %v10841 = vpack.c.b16 %v10277, %v10271
        %v10842 = vpack.c.b16 %v10278, %v10272
        %v10843 = vpack.c.b16 %v10279, %v10273
        %v10844 = vpack.c.b16 %v10286, %v10280
        %v10845 = vpack.c.b16 %v10287, %v10281
        %v10846 = vpack.c.b16 %v10288, %v10282
        %v10847 = vpack.c.b16 %v10289, %v10283
        %v10848 = vpack.c.b16 %v10290, %v10284
        %v10849 = vpack.c.b16 %v10291, %v10285
        %v10850 = vpack.c.b16 %v10298, %v10292
        %v10851 = vpack.c.b16 %v10299, %v10293
        %v10852 = vpack.c.b16 %v10300, %v10294
        %v10853 = vpack.c.b16 %v10301, %v10295
        %v10854 = vpack.c.b16 %v10302, %v10296
        %v10855 = vpack.c.b16 %v10303, %v10297
        %v10856 = vpack.c.b16 %v10310, %v10304
        %v10857 = vpack.c.b16 %v10311, %v10305
        %v10858 = vpack.c.b16 %v10312, %v10306
        %v10859 = vpack.c.b16 %v10313, %v10307
        %v10860 = vpack.c.b16 %v10314, %v10308
        %v10861 = vpack.c.b16 %v10315, %v10309
        %v10862 = vpack.c.b16 %v10322, %v10316
        %v10863 = vpack.c.b16 %v10323, %v10317
        %v10864 = vpack.c.b16 %v10324, %v10318
        %v10865 = vpack.c.b16 %v10325, %v10319
        %v10866 = vpack.c.b16 %v10326, %v10320
        %v10867 = vpack.c.b16 %v10327, %v10321
        %v10868 = vpack.c.b16 %v10334, %v10328
        %v10869 = vpack.c.b16 %v10335, %v10329
        %v10870 = vpack.c.b16 %v10336, %v10330
        %v10871 = vpack.c.b16 %v10337, %v10331
        %v10872 = vpack.c.b16 %v10338, %v10332
        %v10873 = vpack.c.b16 %v10339, %v10333
        %v10874 = vpack.c.b16 %v10346, %v10340
        %v10875 = vpack.c.b16 %v10347, %v10341
        %v10876 = vpack.c.b16 %v10348, %v10342
        %v10877 = vpack.c.b16 %v10349, %v10343
        %v10878 = vpack.c.b16 %v10350, %v10344
        %v10879 = vpack.c.b16 %v10351, %v10345
        %v10880 = vpack.c.b16 %v10358, %v10352
        %v10881 = vpack.c.b16 %v10359, %v10353
        %v10882 = vpack.c.b16 %v10360, %v10354
        %v10883 = vpack.c.b16 %v10361, %v10355
        %v10884 = vpack.c.b16 %v10362, %v10356
        %v10885 = vpack.c.b16 %v10363, %v10357
        %v10886 = vpack.c.b16 %v10370, %v10364
        %v10887 = vpack.c.b16 %v10371, %v10365
        %v10888 = vpack.c.b16 %v10372, %v10366
        %v10889 = vpack.c.b16 %v10373, %v10367
        %v10890 = vpack.c.b16 %v10374, %v10368
        %v10891 = vpack.c.b16 %v10375, %v10369
        %v10892 = vpack.c.b16 %v10382, %v10376
        %v10893 = vpack.c.b16 %v10383, %v10377
        %v10894 = vpack.c.b16 %v10384, %v10378
        %v10895 = vpack.c.b16 %v10385, %v10379
        %v10896 = vpack.c.b16 %v10386, %v10380
        %v10897 = vpack.c.b16 %v10387, %v10381
        %v10898 = vpack.c.b16 %v10394, %v10388
        %v10899 = vpack.c.b16 %v10395, %v10389
        %v10900 = vpack.c.b16 %v10396, %v10390
        %v10901 = vpack.c.b16 %v10397, %v10391
        %v10902 = vpack.c.b16 %v10398, %v10392
        %v10903 = vpack.c.b16 %v10399, %v10393
        %v10904 = vpack.c.b16 %v10406, %v10400
        %v10905 = vpack.c.b16 %v10407, %v10401
        %v10906 = vpack.c.b16 %v10408, %v10402
        %v10907 = vpack.c.b16 %v10409, %v10403
        %v10908 = vpack.c.b16 %v10410, %v10404
        %v10909 = vpack.c.b16 %v10411, %v10405
        %v10910 = vpack.c.b16 %v10418, %v10412
        %v10911 = vpack.c.b16 %v10419, %v10413
        %v10912 = vpack.c.b16 %v10420, %v10414
        %v10913 = vpack.c.b16 %v10421, %v10415
        %v10914 = vpack.c.b16 %v10422, %v10416
        %v10915 = vpack.c.b16 %v10423, %v10417
        %v10916 = vpack.c.b16 %v10430, %v10424
        %v10917 = vpack.c.b16 %v10431, %v10425
        %v10918 = vpack.c.b16 %v10432, %v10426
        %v10919 = vpack.c.b16 %v10433, %v10427
        %v10920 = vpack.c.b16 %v10434, %v10428
        %v10921 = vpack.c.b16 %v10435, %v10429
        %v10922 = vpack.c.b16 %v10442, %v10436
        %v10923 = vpack.c.b16 %v10443, %v10437
        %v10924 = vpack.c.b16 %v10444, %v10438
        %v10925 = vpack.c.b16 %v10445, %v10439
        %v10926 = vpack.c.b16 %v10446, %v10440
        %v10927 = vpack.c.b16 %v10447, %v10441
        %v10928 = vpack.c.b16 %v10454, %v10448
        %v10929 = vpack.c.b16 %v10455, %v10449
        %v10930 = vpack.c.b16 %v10456, %v10450
        %v10931 = vpack.c.b16 %v10457, %v10451
        %v10932 = vpack.c.b16 %v10458, %v10452
        %v10933 = vpack.c.b16 %v10459, %v10453
        %v10934 = vpack.c.b16 %v10466, %v10460
        %v10935 = vpack.c.b16 %v10467, %v10461
        %v10936 = vpack.c.b16 %v10468, %v10462
        %v10937 = vpack.c.b16 %v10469, %v10463
        %v10938 = vpack.c.b16 %v10470, %v10464
        %v10939 = vpack.c.b16 %v10471, %v10465
        %v10940 = vpack.c.b16 %v10478, %v10472
        %v10941 = vpack.c.b16 %v10479, %v10473
        %v10942 = vpack.c.b16 %v10480, %v10474
        %v10943 = vpack.c.b16 %v10481, %v10475
        %v10944 = vpack.c.b16 %v10482, %v10476
        %v10945 = vpack.c.b16 %v10483, %v10477
        %v10946 = vpack.c.b16 %v10490, %v10484
        %v10947 = vpack.c.b16 %v10491, %v10485
        %v10948 = vpack.c.b16 %v10492, %v10486
        %v10949 = vpack.c.b16 %v10493, %v10487
        %v10950 = vpack.c.b16 %v10494, %v10488
        %v10951 = vpack.c.b16 %v10495, %v10489
        %v10952 = vpack.c.b16 %v10502, %v10496
        %v10953 = vpack.c.b16 %v10503, %v10497
        %v10954 = vpack.c.b16 %v10504, %v10498
        %v10955 = vpack.c.b16 %v10505, %v10499
        %v10956 = vpack.c.b16 %v10506, %v10500
        %v10957 = vpack.c.b16 %v10507, %v10501
        %v10958 = vpack.c.b16 %v10514, %v10508
        %v10959 = vpack.c.b16 %v10515, %v10509
        %v10960 = vpack.c.b16 %v10516, %v10510
        %v10961 = vpack.c.b16 %v10517, %v10511
        %v10962 = vpack.c.b16 %v10518, %v10512
        %v10963 = vpack.c.b16 %v10519, %v10513
        %v10964 = vpack.c.b16 %v10526, %v10520
        %v10965 = vpack.c.b16 %v10527, %v10521
        %v10966 = vpack.c.b16 %v10528, %v10522
        %v10967 = vpack.c.b16 %v10529, %v10523
        %v10968 = vpack.c.b16 %v10530, %v10524
        %v10969 = vpack.c.b16 %v10531, %v10525
        %v10970 = vpack.c.b16 %v10538, %v10532
        %v10971 = vpack.c.b16 %v10539, %v10533
        %v10972 = vpack.c.b16 %v10540, %v10534
        %v10973 = vpack.c.b16 %v10541, %v10535
        %v10974 = vpack.c.b16 %v10542, %v10536
        %v10975 = vpack.c.b16 %v10543, %v10537
        %v10976 = vpack.c.b16 %v10550, %v10544
        %v10977 = vpack.c.b16 %v10551, %v10545
        %v10978 = vpack.c.b16 %v10552, %v10546
        %v10979 = vpack.c.b16 %v10553, %v10547
        %v10980 = vpack.c.b16 %v10554, %v10548
        %v10981 = vpack.c.b16 %v10555, %v10549
        %v10982 = vpack.c.b16 %v10562, %v10556
        %v10983 = vpack.c.b16 %v10563, %v10557
        %v10984 = vpack.c.b16 %v10564, %v10558
        %v10985 = vpack.c.b16 %v10565, %v10559
        %v10986 = vpack.c.b16 %v10566, %v10560
        %v10987 = vpack.c.b16 %v10567, %v10561
        %v10988 = vpack.c.b16 %v10574, %v10568
        %v10989 = vpack.c.b16 %v10575, %v10569
        %v10990 = vpack.c.b16 %v10576, %v10570
        %v10991 = vpack.c.b16 %v10577, %v10571
        %v10992 = vpack.c.b16 %v10578, %v10572
        %v10993 = vpack.c.b16 %v10579, %v10573
        %v10994 = vpack.c.b16 %v10586, %v10580
        %v10995 = vpack.c.b16 %v10587, %v10581
        %v10996 = vpack.c.b16 %v10588, %v10582
        %v10997 = vpack.c.b16 %v10589, %v10583
        %v10998 = vpack.c.b16 %v10590, %v10584
        %v10999 = vpack.c.b16 %v10591, %v10585
        %v11000 = vpack.c.b16 %v10598, %v10592
        %v11001 = vpack.c.b16 %v10599, %v10593
        %v11002 = vpack.c.b16 %v10600, %v10594
        %v11003 = vpack.c.b16 %v10601, %v10595
        %v11004 = vpack.c.b16 %v10602, %v10596
        %v11005 = vpack.c.b16 %v10603, %v10597
        %v11006 = vpack.c.b16 %v10610, %v10604
        %v11007 = vpack.c.b16 %v10611, %v10605
        %v11008 = vpack.c.b16 %v10612, %v10606
        %v11009 = vpack.c.b16 %v10613, %v10607
        %v11010 = vpack.c.b16 %v10614, %v10608
        %v11011 = vpack.c.b16 %v10615, %v10609
        %v11012 = vpack.c.b16 %v10622, %v10616
        %v11013 = vpack.c.b16 %v10623, %v10617
        %v11014 = vpack.c.b16 %v10624, %v10618
        %v11015 = vpack.c.b16 %v10625, %v10619
        %v11016 = vpack.c.b16 %v10626, %v10620
        %v11017 = vpack.c.b16 %v10627, %v10621
        %v11018 = vpack.c.b16 %v10634, %v10628
        %v11019 = vpack.c.b16 %v10635, %v10629
        %v11020 = vpack.c.b16 %v10636, %v10630
        %v11021 = vpack.c.b16 %v10637, %v10631
        %v11022 = vpack.c.b16 %v10638, %v10632
        %v11023 = vpack.c.b16 %v10639, %v10633
        %v11024 = vpack.c.b16 %v10646, %v10640
        %v11025 = vpack.c.b16 %v10647, %v10641
        %v11026 = vpack.c.b16 %v10648, %v10642
        %v11027 = vpack.c.b16 %v10649, %v10643
        %v11028 = vpack.c.b16 %v10650, %v10644
        %v11029 = vpack.c.b16 %v10651, %v10645
        %v11030 = vpack.c.b16 %v10658, %v10652
        %v11031 = vpack.c.b16 %v10659, %v10653
        %v11032 = vpack.c.b16 %v10660, %v10654
        %v11033 = vpack.c.b16 %v10661, %v10655
        %v11034 = vpack.c.b16 %v10662, %v10656
        %v11035 = vpack.c.b16 %v10663, %v10657
        %v11036 = vpack.c.b16 %v10670, %v10664
        %v11037 = vpack.c.b16 %v10671, %v10665
        %v11038 = vpack.c.b16 %v10672, %v10666
        %v11039 = vpack.c.b16 %v10673, %v10667
        %v11040 = vpack.c.b16 %v10674, %v10668
        %v11041 = vpack.c.b16 %v10675, %v10669
        %v11042 = vpack.c.b16 %v10682, %v10676
        %v11043 = vpack.c.b16 %v10683, %v10677
        %v11044 = vpack.c.b16 %v10684, %v10678
        %v11045 = vpack.c.b16 %v10685, %v10679
        %v11046 = vpack.c.b16 %v10686, %v10680
        %v11047 = vpack.c.b16 %v10687, %v10681
        %v11048 = vpack.c.b16 %v10694, %v10688
        %v11049 = vpack.c.b16 %v10695, %v10689
        %v11050 = vpack.c.b16 %v10696, %v10690
        %v11051 = vpack.c.b16 %v10697, %v10691
        %v11052 = vpack.c.b16 %v10698, %v10692
        %v11053 = vpack.c.b16 %v10699, %v10693
        %v11054 = vpack.c.b16 %v10706, %v10700
        %v11055 = vpack.c.b16 %v10707, %v10701
        %v11056 = vpack.c.b16 %v10708, %v10702
        %v11057 = vpack.c.b16 %v10709, %v10703
        %v11058 = vpack.c.b16 %v10710, %v10704
        %v11059 = vpack.c.b16 %v10711, %v10705
        %v11060 = vpack.c.b16 %v10718, %v10712
        %v11061 = vpack.c.b16 %v10719, %v10713
        %v11062 = vpack.c.b16 %v10720, %v10714
        %v11063 = vpack.c.b16 %v10721, %v10715
        %v11064 = vpack.c.b16 %v10722, %v10716
        %v11065 = vpack.c.b16 %v10723, %v10717
        %v11066 = vpack.c.b16 %v10730, %v10724
        %v11067 = vpack.c.b16 %v10731, %v10725
        %v11068 = vpack.c.b16 %v10732, %v10726
        %v11069 = vpack.c.b16 %v10733, %v10727
        %v11070 = vpack.c.b16 %v10734, %v10728
        %v11071 = vpack.c.b16 %v10735, %v10729
        %v11072 = vpack.c.b16 %v10742, %v10736
        %v11073 = vpack.c.b16 %v10743, %v10737
        %v11074 = vpack.c.b16 %v10744, %v10738
        %v11075 = vpack.c.b16 %v10745, %v10739
        %v11076 = vpack.c.b16 %v10746, %v10740
        %v11077 = vpack.c.b16 %v10747, %v10741
        %v11078 = vpack.c.b16 %v10754, %v10748
        %v11079 = vpack.c.b16 %v10755, %v10749
        %v11080 = vpack.c.b16 %v10756, %v10750
        %v11081 = vpack.c.b16 %v10757, %v10751
        %v11082 = vpack.c.b16 %v10758, %v10752
        %v11083 = vpack.c.b16 %v10759, %v10753
        %v11084 = vpack.c.b16 %v10766, %v10760
        %v11085 = vpack.c.b16 %v10767, %v10761
        %v11086 = vpack.c.b16 %v10768, %v10762
        %v11087 = vpack.c.b16 %v10769, %v10763
        %v11088 = vpack.c.b16 %v10770, %v10764
        %v11089 = vpack.c.b16 %v10771, %v10765
        %v11090 = vpack.c.b16 %v10778, %v10772
        %v11091 = vpack.c.b16 %v10779, %v10773
        %v11092 = vpack.c.b16 %v10780, %v10774
        %v11093 = vpack.c.b16 %v10781, %v10775
        %v11094 = vpack.c.b16 %v10782, %v10776
        %v11095 = vpack.c.b16 %v10783, %v10777
        %v11096 = vpack.c.b16 %v10790, %v10784
        %v11097 = vpack.c.b16 %v10791, %v10785
        %v11098 = vpack.c.b16 %v10792, %v10786
        %v11099 = vpack.c.b16 %v10793, %v10787
        %v11100 = vpack.c.b16 %v10794, %v10788
        %v11101 = vpack.c.b16 %v10795, %v10789
        %v11102 = vpack.c.b16 %v10802, %v10796
        %v11103 = vpack.c.b16 %v10803, %v10797
        %v11104 = vpack.c.b16 %v10804, %v10798
        %v11105 = vpack.c.b16 %v10805, %v10799
        %v11106 = vpack.c.b16 %v10806, %v10800
        %v11107 = vpack.c.b16 %v10807, %v10801
        %v11108 = vpack.c.b16 %v10814, %v10808
        %v11109 = vpack.c.b16 %v10815, %v10809
        %v11110 = vpack.c.b16 %v10816, %v10810
        %v11111 = vpack.c.b16 %v10817, %v10811
        %v11112 = vpack.c.b16 %v10818, %v10812
        %v11113 = vpack.c.b16 %v10819, %v10813
        %v11114 = vpack.c.b16 %v10826, %v10820
        %v11115 = vpack.c.b16 %v10827, %v10821
        %v11116 = vpack.c.b16 %v10828, %v10822
        %v11117 = vpack.c.b16 %v10829, %v10823
        %v11118 = vpack.c.b16 %v10830, %v10824
        %v11119 = vpack.c.b16 %v10831, %v10825
        %11408 = vmatpush.bf16.msra.mxu0 %v10874
        %11409 = vmatpush.bf16.msra.mxu0 %v10868
        %11410 = vmatpush.bf16.msra.mxu0 %v10862
        %11411 = vmatpush.bf16.msra.mxu0 %v10856
        %11412 = vmatpush.bf16.msra.mxu0 %v10850
        %11413 = vmatpush.bf16.msra.mxu0 %v10844
        %11414 = vmatpush.bf16.msra.mxu0 %v10838
        %11415 = vmatpush.bf16.msra.mxu0 %v10832
        %11416 = vmatmul.bf16.gmra.mxu0 %v9674
        %v11417 = vpop.f32.mrf.mxu0
        %v11418 = vadd.f32 0.0, %v11417
        %v11419 = vpop.f32.mrf.mxu0
        %v11420 = vadd.f32 0.0, %v11419
        %11421 = vdwg.mxu0
        %11422 = vmatpush.bf16.msra.mxu0 %v10922
        %11423 = vmatpush.bf16.msra.mxu0 %v10916
        %11424 = vmatpush.bf16.msra.mxu0 %v10910
        %11425 = vmatpush.bf16.msra.mxu0 %v10904
        %11426 = vmatpush.bf16.msra.mxu0 %v10898
        %11427 = vmatpush.bf16.msra.mxu0 %v10892
        %11428 = vmatpush.bf16.msra.mxu0 %v10886
        %11429 = vmatpush.bf16.msra.mxu0 %v10880
        %11430 = vmatmul.bf16.gmra.mxu0 %v9675
        %v11431 = vpop.f32.mrf.mxu0
        %v11432 = vadd.f32 %v11418, %v11431
        %v11433 = vpop.f32.mrf.mxu0
        %v11434 = vadd.f32 %v11420, %v11433
        %11435 = vdwg.mxu0
        %11436 = vmatpush.bf16.msra.mxu0 %v10970
        %11437 = vmatpush.bf16.msra.mxu0 %v10964
        %11438 = vmatpush.bf16.msra.mxu0 %v10958
        %11439 = vmatpush.bf16.msra.mxu0 %v10952
        %11440 = vmatpush.bf16.msra.mxu0 %v10946
        %11441 = vmatpush.bf16.msra.mxu0 %v10940
        %11442 = vmatpush.bf16.msra.mxu0 %v10934
        %11443 = vmatpush.bf16.msra.mxu0 %v10928
        %11444 = vmatmul.bf16.gmra.mxu0 %v9676
        %v11445 = vpop.f32.mrf.mxu0
        %v11446 = vadd.f32 %v11432, %v11445
        %v11447 = vpop.f32.mrf.mxu0
        %v11448 = vadd.f32 %v11434, %v11447
        %11449 = vdwg.mxu0
        %11450 = vmatpush.bf16.msra.mxu0 %v11018
        %11451 = vmatpush.bf16.msra.mxu0 %v11012
        %11452 = vmatpush.bf16.msra.mxu0 %v11006
        %11453 = vmatpush.bf16.msra.mxu0 %v11000
        %11454 = vmatpush.bf16.msra.mxu0 %v10994
        %11455 = vmatpush.bf16.msra.mxu0 %v10988
        %11456 = vmatpush.bf16.msra.mxu0 %v10982
        %11457 = vmatpush.bf16.msra.mxu0 %v10976
        %11458 = vmatmul.bf16.gmra.mxu0 %v9677
        %v11459 = vpop.f32.mrf.mxu0
        %v11460 = vadd.f32 %v11446, %v11459
        %v11461 = vpop.f32.mrf.mxu0
        %v11462 = vadd.f32 %v11448, %v11461
        %11463 = vdwg.mxu0
        %11464 = vmatpush.bf16.msra.mxu0 %v11066
        %11465 = vmatpush.bf16.msra.mxu0 %v11060
        %11466 = vmatpush.bf16.msra.mxu0 %v11054
        %11467 = vmatpush.bf16.msra.mxu0 %v11048
        %11468 = vmatpush.bf16.msra.mxu0 %v11042
        %11469 = vmatpush.bf16.msra.mxu0 %v11036
        %11470 = vmatpush.bf16.msra.mxu0 %v11030
        %11471 = vmatpush.bf16.msra.mxu0 %v11024
        %11472 = vmatmul.bf16.gmra.mxu0 %v9678
        %v11473 = vpop.f32.mrf.mxu0
        %v11474 = vadd.f32 %v11460, %v11473
        %v11475 = vpop.f32.mrf.mxu0
        %v11476 = vadd.f32 %v11462, %v11475
        %11477 = vdwg.mxu0
        %11478 = vmatpush.bf16.msra.mxu0 %v11114
        %11479 = vmatpush.bf16.msra.mxu0 %v11108
        %11480 = vmatpush.bf16.msra.mxu0 %v11102
        %11481 = vmatpush.bf16.msra.mxu0 %v11096
        %11482 = vmatpush.bf16.msra.mxu0 %v11090
        %11483 = vmatpush.bf16.msra.mxu0 %v11084
        %11484 = vmatpush.bf16.msra.mxu0 %v11078
        %11485 = vmatpush.bf16.msra.mxu0 %v11072
        %11486 = vmatmul.bf16.gmra.mxu0 %v9679
        %v11487 = vpop.f32.mrf.mxu0
        %v11488 = vadd.f32 %v11474, %v11487
        %v11489 = vpop.f32.mrf.mxu0
        %v11490 = vadd.f32 %v11476, %v11489
        %11491 = vdwg.mxu0
        %11492 = vmatpush.bf16.msra.mxu0 %v10875
        %11493 = vmatpush.bf16.msra.mxu0 %v10869
        %11494 = vmatpush.bf16.msra.mxu0 %v10863
        %11495 = vmatpush.bf16.msra.mxu0 %v10857
        %11496 = vmatpush.bf16.msra.mxu0 %v10851
        %11497 = vmatpush.bf16.msra.mxu0 %v10845
        %11498 = vmatpush.bf16.msra.mxu0 %v10839
        %11499 = vmatpush.bf16.msra.mxu0 %v10833
        %11500 = vmatmul.bf16.gmra.mxu0 %v9674
        %v11501 = vpop.f32.mrf.mxu0
        %v11502 = vadd.f32 0.0, %v11501
        %v11503 = vpop.f32.mrf.mxu0
        %v11504 = vadd.f32 0.0, %v11503
        %11505 = vdwg.mxu0
        %11506 = vmatpush.bf16.msra.mxu0 %v10923
        %11507 = vmatpush.bf16.msra.mxu0 %v10917
        %11508 = vmatpush.bf16.msra.mxu0 %v10911
        %11509 = vmatpush.bf16.msra.mxu0 %v10905
        %11510 = vmatpush.bf16.msra.mxu0 %v10899
        %11511 = vmatpush.bf16.msra.mxu0 %v10893
        %11512 = vmatpush.bf16.msra.mxu0 %v10887
        %11513 = vmatpush.bf16.msra.mxu0 %v10881
        %11514 = vmatmul.bf16.gmra.mxu0 %v9675
        %v11515 = vpop.f32.mrf.mxu0
        %v11516 = vadd.f32 %v11502, %v11515
        %v11517 = vpop.f32.mrf.mxu0
        %v11518 = vadd.f32 %v11504, %v11517
        %11519 = vdwg.mxu0
        %11520 = vmatpush.bf16.msra.mxu0 %v10971
        %11521 = vmatpush.bf16.msra.mxu0 %v10965
        %11522 = vmatpush.bf16.msra.mxu0 %v10959
        %11523 = vmatpush.bf16.msra.mxu0 %v10953
        %11524 = vmatpush.bf16.msra.mxu0 %v10947
        %11525 = vmatpush.bf16.msra.mxu0 %v10941
        %11526 = vmatpush.bf16.msra.mxu0 %v10935
        %11527 = vmatpush.bf16.msra.mxu0 %v10929
        %11528 = vmatmul.bf16.gmra.mxu0 %v9676
        %v11529 = vpop.f32.mrf.mxu0
        %v11530 = vadd.f32 %v11516, %v11529
        %v11531 = vpop.f32.mrf.mxu0
        %v11532 = vadd.f32 %v11518, %v11531
        %11533 = vdwg.mxu0
        %11534 = vmatpush.bf16.msra.mxu0 %v11019
        %11535 = vmatpush.bf16.msra.mxu0 %v11013
        %11536 = vmatpush.bf16.msra.mxu0 %v11007
        %11537 = vmatpush.bf16.msra.mxu0 %v11001
        %11538 = vmatpush.bf16.msra.mxu0 %v10995
        %11539 = vmatpush.bf16.msra.mxu0 %v10989
        %11540 = vmatpush.bf16.msra.mxu0 %v10983
        %11541 = vmatpush.bf16.msra.mxu0 %v10977
        %11542 = vmatmul.bf16.gmra.mxu0 %v9677
        %v11543 = vpop.f32.mrf.mxu0
        %v11544 = vadd.f32 %v11530, %v11543
        %v11545 = vpop.f32.mrf.mxu0
        %v11546 = vadd.f32 %v11532, %v11545
        %11547 = vdwg.mxu0
        %11548 = vmatpush.bf16.msra.mxu0 %v11067
        %11549 = vmatpush.bf16.msra.mxu0 %v11061
        %11550 = vmatpush.bf16.msra.mxu0 %v11055
        %11551 = vmatpush.bf16.msra.mxu0 %v11049
        %11552 = vmatpush.bf16.msra.mxu0 %v11043
        %11553 = vmatpush.bf16.msra.mxu0 %v11037
        %11554 = vmatpush.bf16.msra.mxu0 %v11031
        %11555 = vmatpush.bf16.msra.mxu0 %v11025
        %11556 = vmatmul.bf16.gmra.mxu0 %v9678
        %v11557 = vpop.f32.mrf.mxu0
        %v11558 = vadd.f32 %v11544, %v11557
        %v11559 = vpop.f32.mrf.mxu0
        %v11560 = vadd.f32 %v11546, %v11559
        %11561 = vdwg.mxu0
        %11562 = vmatpush.bf16.msra.mxu0 %v11115
        %11563 = vmatpush.bf16.msra.mxu0 %v11109
        %11564 = vmatpush.bf16.msra.mxu0 %v11103
        %11565 = vmatpush.bf16.msra.mxu0 %v11097
        %11566 = vmatpush.bf16.msra.mxu0 %v11091
        %11567 = vmatpush.bf16.msra.mxu0 %v11085
        %11568 = vmatpush.bf16.msra.mxu0 %v11079
        %11569 = vmatpush.bf16.msra.mxu0 %v11073
        %11570 = vmatmul.bf16.gmra.mxu0 %v9679
        %v11571 = vpop.f32.mrf.mxu0
        %v11572 = vadd.f32 %v11558, %v11571
        %v11573 = vpop.f32.mrf.mxu0
        %v11574 = vadd.f32 %v11560, %v11573
        %11575 = vdwg.mxu0
        %11576 = vmatpush.bf16.msra.mxu0 %v10876
        %11577 = vmatpush.bf16.msra.mxu0 %v10870
        %11578 = vmatpush.bf16.msra.mxu0 %v10864
        %11579 = vmatpush.bf16.msra.mxu0 %v10858
        %11580 = vmatpush.bf16.msra.mxu0 %v10852
        %11581 = vmatpush.bf16.msra.mxu0 %v10846
        %11582 = vmatpush.bf16.msra.mxu0 %v10840
        %11583 = vmatpush.bf16.msra.mxu0 %v10834
        %11584 = vmatmul.bf16.gmra.mxu0 %v9674
        %v11585 = vpop.f32.mrf.mxu0
        %v11586 = vadd.f32 0.0, %v11585
        %v11587 = vpop.f32.mrf.mxu0
        %v11588 = vadd.f32 0.0, %v11587
        %11589 = vdwg.mxu0
        %11590 = vmatpush.bf16.msra.mxu0 %v10924
        %11591 = vmatpush.bf16.msra.mxu0 %v10918
        %11592 = vmatpush.bf16.msra.mxu0 %v10912
        %11593 = vmatpush.bf16.msra.mxu0 %v10906
        %11594 = vmatpush.bf16.msra.mxu0 %v10900
        %11595 = vmatpush.bf16.msra.mxu0 %v10894
        %11596 = vmatpush.bf16.msra.mxu0 %v10888
        %11597 = vmatpush.bf16.msra.mxu0 %v10882
        %11598 = vmatmul.bf16.gmra.mxu0 %v9675
        %v11599 = vpop.f32.mrf.mxu0
        %v11600 = vadd.f32 %v11586, %v11599
        %v11601 = vpop.f32.mrf.mxu0
        %v11602 = vadd.f32 %v11588, %v11601
        %11603 = vdwg.mxu0
        %11604 = vmatpush.bf16.msra.mxu0 %v10972
        %11605 = vmatpush.bf16.msra.mxu0 %v10966
        %11606 = vmatpush.bf16.msra.mxu0 %v10960
        %11607 = vmatpush.bf16.msra.mxu0 %v10954
        %11608 = vmatpush.bf16.msra.mxu0 %v10948
        %11609 = vmatpush.bf16.msra.mxu0 %v10942
        %11610 = vmatpush.bf16.msra.mxu0 %v10936
        %11611 = vmatpush.bf16.msra.mxu0 %v10930
        %11612 = vmatmul.bf16.gmra.mxu0 %v9676
        %v11613 = vpop.f32.mrf.mxu0
        %v11614 = vadd.f32 %v11600, %v11613
        %v11615 = vpop.f32.mrf.mxu0
        %v11616 = vadd.f32 %v11602, %v11615
        %11617 = vdwg.mxu0
        %11618 = vmatpush.bf16.msra.mxu0 %v11020
        %11619 = vmatpush.bf16.msra.mxu0 %v11014
        %11620 = vmatpush.bf16.msra.mxu0 %v11008
        %11621 = vmatpush.bf16.msra.mxu0 %v11002
        %11622 = vmatpush.bf16.msra.mxu0 %v10996
        %11623 = vmatpush.bf16.msra.mxu0 %v10990
        %11624 = vmatpush.bf16.msra.mxu0 %v10984
        %11625 = vmatpush.bf16.msra.mxu0 %v10978
        %11626 = vmatmul.bf16.gmra.mxu0 %v9677
        %v11627 = vpop.f32.mrf.mxu0
        %v11628 = vadd.f32 %v11614, %v11627
        %v11629 = vpop.f32.mrf.mxu0
        %v11630 = vadd.f32 %v11616, %v11629
        %11631 = vdwg.mxu0
        %11632 = vmatpush.bf16.msra.mxu0 %v11068
        %11633 = vmatpush.bf16.msra.mxu0 %v11062
        %11634 = vmatpush.bf16.msra.mxu0 %v11056
        %11635 = vmatpush.bf16.msra.mxu0 %v11050
        %11636 = vmatpush.bf16.msra.mxu0 %v11044
        %11637 = vmatpush.bf16.msra.mxu0 %v11038
        %11638 = vmatpush.bf16.msra.mxu0 %v11032
        %11639 = vmatpush.bf16.msra.mxu0 %v11026
        %11640 = vmatmul.bf16.gmra.mxu0 %v9678
        %v11641 = vpop.f32.mrf.mxu0
        %v11642 = vadd.f32 %v11628, %v11641
        %v11643 = vpop.f32.mrf.mxu0
        %v11644 = vadd.f32 %v11630, %v11643
        %11645 = vdwg.mxu0
        %11646 = vmatpush.bf16.msra.mxu0 %v11116
        %11647 = vmatpush.bf16.msra.mxu0 %v11110
        %11648 = vmatpush.bf16.msra.mxu0 %v11104
        %11649 = vmatpush.bf16.msra.mxu0 %v11098
        %11650 = vmatpush.bf16.msra.mxu0 %v11092
        %11651 = vmatpush.bf16.msra.mxu0 %v11086
        %11652 = vmatpush.bf16.msra.mxu0 %v11080
        %11653 = vmatpush.bf16.msra.mxu0 %v11074
        %11654 = vmatmul.bf16.gmra.mxu0 %v9679
        %v11655 = vpop.f32.mrf.mxu0
        %v11656 = vadd.f32 %v11642, %v11655
        %v11657 = vpop.f32.mrf.mxu0
        %v11658 = vadd.f32 %v11644, %v11657
        %11659 = vdwg.mxu0
        %11660 = vmatpush.bf16.msra.mxu0 %v10877
        %11661 = vmatpush.bf16.msra.mxu0 %v10871
        %11662 = vmatpush.bf16.msra.mxu0 %v10865
        %11663 = vmatpush.bf16.msra.mxu0 %v10859
        %11664 = vmatpush.bf16.msra.mxu0 %v10853
        %11665 = vmatpush.bf16.msra.mxu0 %v10847
        %11666 = vmatpush.bf16.msra.mxu0 %v10841
        %11667 = vmatpush.bf16.msra.mxu0 %v10835
        %11668 = vmatmul.bf16.gmra.mxu0 %v9674
        %v11669 = vpop.f32.mrf.mxu0
        %v11670 = vadd.f32 0.0, %v11669
        %v11671 = vpop.f32.mrf.mxu0
        %v11672 = vadd.f32 0.0, %v11671
        %11673 = vdwg.mxu0
        %11674 = vmatpush.bf16.msra.mxu0 %v10925
        %11675 = vmatpush.bf16.msra.mxu0 %v10919
        %11676 = vmatpush.bf16.msra.mxu0 %v10913
        %11677 = vmatpush.bf16.msra.mxu0 %v10907
        %11678 = vmatpush.bf16.msra.mxu0 %v10901
        %11679 = vmatpush.bf16.msra.mxu0 %v10895
        %11680 = vmatpush.bf16.msra.mxu0 %v10889
        %11681 = vmatpush.bf16.msra.mxu0 %v10883
        %11682 = vmatmul.bf16.gmra.mxu0 %v9675
        %v11683 = vpop.f32.mrf.mxu0
        %v11684 = vadd.f32 %v11670, %v11683
        %v11685 = vpop.f32.mrf.mxu0
        %v11686 = vadd.f32 %v11672, %v11685
        %11687 = vdwg.mxu0
        %11688 = vmatpush.bf16.msra.mxu0 %v10973
        %11689 = vmatpush.bf16.msra.mxu0 %v10967
        %11690 = vmatpush.bf16.msra.mxu0 %v10961
        %11691 = vmatpush.bf16.msra.mxu0 %v10955
        %11692 = vmatpush.bf16.msra.mxu0 %v10949
        %11693 = vmatpush.bf16.msra.mxu0 %v10943
        %11694 = vmatpush.bf16.msra.mxu0 %v10937
        %11695 = vmatpush.bf16.msra.mxu0 %v10931
        %11696 = vmatmul.bf16.gmra.mxu0 %v9676
        %v11697 = vpop.f32.mrf.mxu0
        %v11698 = vadd.f32 %v11684, %v11697
        %v11699 = vpop.f32.mrf.mxu0
        %v11700 = vadd.f32 %v11686, %v11699
        %11701 = vdwg.mxu0
        %11702 = vmatpush.bf16.msra.mxu0 %v11021
        %11703 = vmatpush.bf16.msra.mxu0 %v11015
        %11704 = vmatpush.bf16.msra.mxu0 %v11009
        %11705 = vmatpush.bf16.msra.mxu0 %v11003
        %11706 = vmatpush.bf16.msra.mxu0 %v10997
        %11707 = vmatpush.bf16.msra.mxu0 %v10991
        %11708 = vmatpush.bf16.msra.mxu0 %v10985
        %11709 = vmatpush.bf16.msra.mxu0 %v10979
        %11710 = vmatmul.bf16.gmra.mxu0 %v9677
        %v11711 = vpop.f32.mrf.mxu0
        %v11712 = vadd.f32 %v11698, %v11711
        %v11713 = vpop.f32.mrf.mxu0
        %v11714 = vadd.f32 %v11700, %v11713
        %11715 = vdwg.mxu0
        %11716 = vmatpush.bf16.msra.mxu0 %v11069
        %11717 = vmatpush.bf16.msra.mxu0 %v11063
        %11718 = vmatpush.bf16.msra.mxu0 %v11057
        %11719 = vmatpush.bf16.msra.mxu0 %v11051
        %11720 = vmatpush.bf16.msra.mxu0 %v11045
        %11721 = vmatpush.bf16.msra.mxu0 %v11039
        %11722 = vmatpush.bf16.msra.mxu0 %v11033
        %11723 = vmatpush.bf16.msra.mxu0 %v11027
        %11724 = vmatmul.bf16.gmra.mxu0 %v9678
        %v11725 = vpop.f32.mrf.mxu0
        %v11726 = vadd.f32 %v11712, %v11725
        %v11727 = vpop.f32.mrf.mxu0
        %v11728 = vadd.f32 %v11714, %v11727
        %11729 = vdwg.mxu0
        %11730 = vmatpush.bf16.msra.mxu0 %v11117
        %11731 = vmatpush.bf16.msra.mxu0 %v11111
        %11732 = vmatpush.bf16.msra.mxu0 %v11105
        %11733 = vmatpush.bf16.msra.mxu0 %v11099
        %11734 = vmatpush.bf16.msra.mxu0 %v11093
        %11735 = vmatpush.bf16.msra.mxu0 %v11087
        %11736 = vmatpush.bf16.msra.mxu0 %v11081
        %11737 = vmatpush.bf16.msra.mxu0 %v11075
        %11738 = vmatmul.bf16.gmra.mxu0 %v9679
        %v11739 = vpop.f32.mrf.mxu0
        %v11740 = vadd.f32 %v11726, %v11739
        %v11741 = vpop.f32.mrf.mxu0
        %v11742 = vadd.f32 %v11728, %v11741
        %11743 = vdwg.mxu0
        %11744 = vmatpush.bf16.msra.mxu0 %v10878
        %11745 = vmatpush.bf16.msra.mxu0 %v10872
        %11746 = vmatpush.bf16.msra.mxu0 %v10866
        %11747 = vmatpush.bf16.msra.mxu0 %v10860
        %11748 = vmatpush.bf16.msra.mxu0 %v10854
        %11749 = vmatpush.bf16.msra.mxu0 %v10848
        %11750 = vmatpush.bf16.msra.mxu0 %v10842
        %11751 = vmatpush.bf16.msra.mxu0 %v10836
        %11752 = vmatmul.bf16.gmra.mxu0 %v9674
        %v11753 = vpop.f32.mrf.mxu0
        %v11754 = vadd.f32 0.0, %v11753
        %v11755 = vpop.f32.mrf.mxu0
        %v11756 = vadd.f32 0.0, %v11755
        %11757 = vdwg.mxu0
        %11758 = vmatpush.bf16.msra.mxu0 %v10926
        %11759 = vmatpush.bf16.msra.mxu0 %v10920
        %11760 = vmatpush.bf16.msra.mxu0 %v10914
        %11761 = vmatpush.bf16.msra.mxu0 %v10908
        %11762 = vmatpush.bf16.msra.mxu0 %v10902
        %11763 = vmatpush.bf16.msra.mxu0 %v10896
        %11764 = vmatpush.bf16.msra.mxu0 %v10890
        %11765 = vmatpush.bf16.msra.mxu0 %v10884
        %11766 = vmatmul.bf16.gmra.mxu0 %v9675
        %v11767 = vpop.f32.mrf.mxu0
        %v11768 = vadd.f32 %v11754, %v11767
        %v11769 = vpop.f32.mrf.mxu0
        %v11770 = vadd.f32 %v11756, %v11769
        %11771 = vdwg.mxu0
        %11772 = vmatpush.bf16.msra.mxu0 %v10974
        %11773 = vmatpush.bf16.msra.mxu0 %v10968
        %11774 = vmatpush.bf16.msra.mxu0 %v10962
        %11775 = vmatpush.bf16.msra.mxu0 %v10956
        %11776 = vmatpush.bf16.msra.mxu0 %v10950
        %11777 = vmatpush.bf16.msra.mxu0 %v10944
        %11778 = vmatpush.bf16.msra.mxu0 %v10938
        %11779 = vmatpush.bf16.msra.mxu0 %v10932
        %11780 = vmatmul.bf16.gmra.mxu0 %v9676
        %v11781 = vpop.f32.mrf.mxu0
        %v11782 = vadd.f32 %v11768, %v11781
        %v11783 = vpop.f32.mrf.mxu0
        %v11784 = vadd.f32 %v11770, %v11783
        %11785 = vdwg.mxu0
        %11786 = vmatpush.bf16.msra.mxu0 %v11022
        %11787 = vmatpush.bf16.msra.mxu0 %v11016
        %11788 = vmatpush.bf16.msra.mxu0 %v11010
        %11789 = vmatpush.bf16.msra.mxu0 %v11004
        %11790 = vmatpush.bf16.msra.mxu0 %v10998
        %11791 = vmatpush.bf16.msra.mxu0 %v10992
        %11792 = vmatpush.bf16.msra.mxu0 %v10986
        %11793 = vmatpush.bf16.msra.mxu0 %v10980
        %11794 = vmatmul.bf16.gmra.mxu0 %v9677
        %v11795 = vpop.f32.mrf.mxu0
        %v11796 = vadd.f32 %v11782, %v11795
        %v11797 = vpop.f32.mrf.mxu0
        %v11798 = vadd.f32 %v11784, %v11797
        %11799 = vdwg.mxu0
        %11800 = vmatpush.bf16.msra.mxu0 %v11070
        %11801 = vmatpush.bf16.msra.mxu0 %v11064
        %11802 = vmatpush.bf16.msra.mxu0 %v11058
        %11803 = vmatpush.bf16.msra.mxu0 %v11052
        %11804 = vmatpush.bf16.msra.mxu0 %v11046
        %11805 = vmatpush.bf16.msra.mxu0 %v11040
        %11806 = vmatpush.bf16.msra.mxu0 %v11034
        %11807 = vmatpush.bf16.msra.mxu0 %v11028
        %11808 = vmatmul.bf16.gmra.mxu0 %v9678
        %v11809 = vpop.f32.mrf.mxu0
        %v11810 = vadd.f32 %v11796, %v11809
        %v11811 = vpop.f32.mrf.mxu0
        %v11812 = vadd.f32 %v11798, %v11811
        %11813 = vdwg.mxu0
        %11814 = vmatpush.bf16.msra.mxu0 %v11118
        %11815 = vmatpush.bf16.msra.mxu0 %v11112
        %11816 = vmatpush.bf16.msra.mxu0 %v11106
        %11817 = vmatpush.bf16.msra.mxu0 %v11100
        %11818 = vmatpush.bf16.msra.mxu0 %v11094
        %11819 = vmatpush.bf16.msra.mxu0 %v11088
        %11820 = vmatpush.bf16.msra.mxu0 %v11082
        %11821 = vmatpush.bf16.msra.mxu0 %v11076
        %11822 = vmatmul.bf16.gmra.mxu0 %v9679
        %v11823 = vpop.f32.mrf.mxu0
        %v11824 = vadd.f32 %v11810, %v11823
        %v11825 = vpop.f32.mrf.mxu0
        %v11826 = vadd.f32 %v11812, %v11825
        %11827 = vdwg.mxu0
        %11828 = vmatpush.bf16.msra.mxu0 %v10879
        %11829 = vmatpush.bf16.msra.mxu0 %v10873
        %11830 = vmatpush.bf16.msra.mxu0 %v10867
        %11831 = vmatpush.bf16.msra.mxu0 %v10861
        %11832 = vmatpush.bf16.msra.mxu0 %v10855
        %11833 = vmatpush.bf16.msra.mxu0 %v10849
        %11834 = vmatpush.bf16.msra.mxu0 %v10843
        %11835 = vmatpush.bf16.msra.mxu0 %v10837
        %11836 = vmatmul.bf16.gmra.mxu0 %v9674
        %v11837 = vpop.f32.mrf.mxu0
        %v11838 = vadd.f32 0.0, %v11837
        %v11839 = vpop.f32.mrf.mxu0
        %v11840 = vadd.f32 0.0, %v11839
        %11841 = vdwg.mxu0
        %11842 = vmatpush.bf16.msra.mxu0 %v10927
        %11843 = vmatpush.bf16.msra.mxu0 %v10921
        %11844 = vmatpush.bf16.msra.mxu0 %v10915
        %11845 = vmatpush.bf16.msra.mxu0 %v10909
        %11846 = vmatpush.bf16.msra.mxu0 %v10903
        %11847 = vmatpush.bf16.msra.mxu0 %v10897
        %11848 = vmatpush.bf16.msra.mxu0 %v10891
        %11849 = vmatpush.bf16.msra.mxu0 %v10885
        %11850 = vmatmul.bf16.gmra.mxu0 %v9675
        %v11851 = vpop.f32.mrf.mxu0
        %v11852 = vadd.f32 %v11838, %v11851
        %v11853 = vpop.f32.mrf.mxu0
        %v11854 = vadd.f32 %v11840, %v11853
        %11855 = vdwg.mxu0
        %11856 = vmatpush.bf16.msra.mxu0 %v10975
        %11857 = vmatpush.bf16.msra.mxu0 %v10969
        %11858 = vmatpush.bf16.msra.mxu0 %v10963
        %11859 = vmatpush.bf16.msra.mxu0 %v10957
        %11860 = vmatpush.bf16.msra.mxu0 %v10951
        %11861 = vmatpush.bf16.msra.mxu0 %v10945
        %11862 = vmatpush.bf16.msra.mxu0 %v10939
        %11863 = vmatpush.bf16.msra.mxu0 %v10933
        %11864 = vmatmul.bf16.gmra.mxu0 %v9676
        %v11865 = vpop.f32.mrf.mxu0
        %v11866 = vadd.f32 %v11852, %v11865
        %v11867 = vpop.f32.mrf.mxu0
        %v11868 = vadd.f32 %v11854, %v11867
        %11869 = vdwg.mxu0
        %11870 = vmatpush.bf16.msra.mxu0 %v11023
        %11871 = vmatpush.bf16.msra.mxu0 %v11017
        %11872 = vmatpush.bf16.msra.mxu0 %v11011
        %11873 = vmatpush.bf16.msra.mxu0 %v11005
        %11874 = vmatpush.bf16.msra.mxu0 %v10999
        %11875 = vmatpush.bf16.msra.mxu0 %v10993
        %11876 = vmatpush.bf16.msra.mxu0 %v10987
        %11877 = vmatpush.bf16.msra.mxu0 %v10981
        %11878 = vmatmul.bf16.gmra.mxu0 %v9677
        %v11879 = vpop.f32.mrf.mxu0
        %v11880 = vadd.f32 %v11866, %v11879
        %v11881 = vpop.f32.mrf.mxu0
        %v11882 = vadd.f32 %v11868, %v11881
        %11883 = vdwg.mxu0
        %11884 = vmatpush.bf16.msra.mxu0 %v11071
        %11885 = vmatpush.bf16.msra.mxu0 %v11065
        %11886 = vmatpush.bf16.msra.mxu0 %v11059
        %11887 = vmatpush.bf16.msra.mxu0 %v11053
        %11888 = vmatpush.bf16.msra.mxu0 %v11047
        %11889 = vmatpush.bf16.msra.mxu0 %v11041
        %11890 = vmatpush.bf16.msra.mxu0 %v11035
        %11891 = vmatpush.bf16.msra.mxu0 %v11029
        %11892 = vmatmul.bf16.gmra.mxu0 %v9678
        %v11893 = vpop.f32.mrf.mxu0
        %v11894 = vadd.f32 %v11880, %v11893
        %v11895 = vpop.f32.mrf.mxu0
        %v11896 = vadd.f32 %v11882, %v11895
        %11897 = vdwg.mxu0
        %11898 = vmatpush.bf16.msra.mxu0 %v11119
        %11899 = vmatpush.bf16.msra.mxu0 %v11113
        %11900 = vmatpush.bf16.msra.mxu0 %v11107
        %11901 = vmatpush.bf16.msra.mxu0 %v11101
        %11902 = vmatpush.bf16.msra.mxu0 %v11095
        %11903 = vmatpush.bf16.msra.mxu0 %v11089
        %11904 = vmatpush.bf16.msra.mxu0 %v11083
        %11905 = vmatpush.bf16.msra.mxu0 %v11077
        %11906 = vmatmul.bf16.gmra.mxu0 %v9679
        %v11907 = vpop.f32.mrf.mxu0
        %v11908 = vadd.f32 %v11894, %v11907
        %v11909 = vpop.f32.mrf.mxu0
        %v11910 = vadd.f32 %v11896, %v11909
        %11911 = vdwg.mxu0
        %v11912 = vmax.f32 %v11488, 0.0
        %v11913 = vmax.f32 %v11572, 0.0
        %v11914 = vmax.f32 %v11656, 0.0
        %v11915 = vmax.f32 %v11740, 0.0
        %v11916 = vmax.f32 %v11824, 0.0
        %v11917 = vmax.f32 %v11908, 0.0
        %v11918 = vmax.f32 %v11490, 0.0
        %v11919 = vmax.f32 %v11574, 0.0
        %v11920 = vmax.f32 %v11658, 0.0
        %v11921 = vmax.f32 %v11742, 0.0
        %v11922 = vmax.f32 %v11826, 0.0
        %v11923 = vmax.f32 %v11910, 0.0
        %v11924 = vpack.c.bf16 %v11918, %v11912
        %v11925 = vpack.c.bf16 %v11919, %v11913
        %v11926 = vpack.c.bf16 %v11920, %v11914
        %v11927 = vpack.c.bf16 %v11921, %v11915
        %v11928 = vpack.c.bf16 %v11922, %v11916
        %v11929 = vpack.c.bf16 %v11923, %v11917
        %v11930 = vld [vmem:[#allocation2] sm:$0xf]
        %v11931 = vld [vmem:[#allocation2 + $0x4] sm:$0xf]
        %v11932 = vld [vmem:[#allocation2 + $0x8] sm:$0xf]
        %v11933 = vld [vmem:[#allocation2 + $0xc] sm:$0xf]
        %v11934 = vld [vmem:[#allocation2 + $0x10] sm:$0xf]
        %v11935 = vld [vmem:[#allocation2 + $0x14] sm:$0xf]
        %v11936 = vld [vmem:[#allocation2 + $0x18] sm:$0xf]
        %v11937 = vld [vmem:[#allocation2 + $0x1c] sm:$0xf]
        %v11938 = vld [vmem:[#allocation2 + $0x20] sm:$0xf]
        %v11939 = vld [vmem:[#allocation2 + $0x24] sm:$0xf]
        %v11940 = vld [vmem:[#allocation2 + $0x28] sm:$0xf]
        %v11941 = vld [vmem:[#allocation2 + $0x2c] sm:$0xf]
        %v11942 = vld [vmem:[#allocation2 + $0x30] sm:$0xf]
        %v11943 = vld [vmem:[#allocation2 + $0x34] sm:$0xf]
        %v11944 = vld [vmem:[#allocation2 + $0x38] sm:$0xf]
        %v11945 = vld [vmem:[#allocation2 + $0x3c] sm:$0xf]
        %v11946 = vld [vmem:[#allocation2 + $0x40] sm:$0xf]
        %v11947 = vld [vmem:[#allocation2 + $0x44] sm:$0xf]
        %v11948 = vld [vmem:[#allocation2 + $0x48] sm:$0xf]
        %v11949 = vld [vmem:[#allocation2 + $0x4c] sm:$0xf]
        %v11950 = vld [vmem:[#allocation2 + $0x50] sm:$0xf]
        %v11951 = vld [vmem:[#allocation2 + $0x54] sm:$0xf]
        %v11952 = vld [vmem:[#allocation2 + $0x58] sm:$0xf]
        %v11953 = vld [vmem:[#allocation2 + $0x5c] sm:$0xf]
        %v11954 = vld [vmem:[#allocation2 + $0x60] sm:$0xf]
        %v11955 = vld [vmem:[#allocation2 + $0x64] sm:$0xf]
        %v11956 = vld [vmem:[#allocation2 + $0x68] sm:$0xf]
        %v11957 = vld [vmem:[#allocation2 + $0x6c] sm:$0xf]
        %v11958 = vld [vmem:[#allocation2 + $0x70] sm:$0xf]
        %v11959 = vld [vmem:[#allocation2 + $0x74] sm:$0xf]
        %v11960 = vld [vmem:[#allocation2 + $0x78] sm:$0xf]
        %v11961 = vld [vmem:[#allocation2 + $0x7c] sm:$0xf]
        %v11962 = vld [vmem:[#allocation2 + $0x80] sm:$0xf]
        %v11963 = vld [vmem:[#allocation2 + $0x84] sm:$0xf]
        %v11964 = vld [vmem:[#allocation2 + $0x88] sm:$0xf]
        %v11965 = vld [vmem:[#allocation2 + $0x8c] sm:$0xf]
        %v11966 = vld [vmem:[#allocation2 + $0x90] sm:$0xf]
        %v11967 = vld [vmem:[#allocation2 + $0x94] sm:$0xf]
        %v11968 = vld [vmem:[#allocation2 + $0x98] sm:$0xf]
        %v11969 = vld [vmem:[#allocation2 + $0x9c] sm:$0xf]
        %v11970 = vld [vmem:[#allocation2 + $0xa0] sm:$0xf]
        %v11971 = vld [vmem:[#allocation2 + $0xa4] sm:$0xf]
        %v11972 = vld [vmem:[#allocation2 + $0xa8] sm:$0xf]
        %v11973 = vld [vmem:[#allocation2 + $0xac] sm:$0xf]
        %v11974 = vld [vmem:[#allocation2 + $0xb0] sm:$0xf]
        %v11975 = vld [vmem:[#allocation2 + $0xb4] sm:$0xf]
        %v11976 = vld [vmem:[#allocation2 + $0xb8] sm:$0xf]
        %v11977 = vld [vmem:[#allocation2 + $0xbc] sm:$0xf]
        %v11978 = vld [vmem:[#allocation2 + $0xc0] sm:$0xf]
        %v11979 = vld [vmem:[#allocation2 + $0xc4] sm:$0xf]
        %v11980 = vld [vmem:[#allocation2 + $0xc8] sm:$0xf]
        %v11981 = vld [vmem:[#allocation2 + $0xcc] sm:$0xf]
        %v11982 = vld [vmem:[#allocation2 + $0xd0] sm:$0xf]
        %v11983 = vld [vmem:[#allocation2 + $0xd4] sm:$0xf]
        %v11984 = vld [vmem:[#allocation2 + $0xd8] sm:$0xf]
        %v11985 = vld [vmem:[#allocation2 + $0xdc] sm:$0xf]
        %v11986 = vld [vmem:[#allocation2 + $0xe0] sm:$0xf]
        %v11987 = vld [vmem:[#allocation2 + $0xe4] sm:$0xf]
        %v11988 = vld [vmem:[#allocation2 + $0xe8] sm:$0xf]
        %v11989 = vld [vmem:[#allocation2 + $0xec] sm:$0xf]
        %v11990 = vld [vmem:[#allocation2 + $0xf0] sm:$0xf]
        %v11991 = vld [vmem:[#allocation2 + $0xf4] sm:$0xf]
        %v11992 = vld [vmem:[#allocation2 + $0xf8] sm:$0xf]
        %v11993 = vld [vmem:[#allocation2 + $0xfc] sm:$0xf]
        %v11994 = vld [vmem:[#allocation2 + $0x100] sm:$0xf]
        %v11995 = vld [vmem:[#allocation2 + $0x104] sm:$0xf]
        %v11996 = vld [vmem:[#allocation2 + $0x108] sm:$0xf]
        %v11997 = vld [vmem:[#allocation2 + $0x10c] sm:$0xf]
        %v11998 = vld [vmem:[#allocation2 + $0x110] sm:$0xf]
        %v11999 = vld [vmem:[#allocation2 + $0x114] sm:$0xf]
        %v12000 = vld [vmem:[#allocation2 + $0x118] sm:$0xf]
        %v12001 = vld [vmem:[#allocation2 + $0x11c] sm:$0xf]
        %v12002 = vld [vmem:[#allocation2 + $0x120] sm:$0xf]
        %v12003 = vld [vmem:[#allocation2 + $0x124] sm:$0xf]
        %v12004 = vld [vmem:[#allocation2 + $0x128] sm:$0xf]
        %v12005 = vld [vmem:[#allocation2 + $0x12c] sm:$0xf]
        %v12006 = vld [vmem:[#allocation2 + $0x130] sm:$0xf]
        %v12007 = vld [vmem:[#allocation2 + $0x134] sm:$0xf]
        %v12008 = vld [vmem:[#allocation2 + $0x138] sm:$0xf]
        %v12009 = vld [vmem:[#allocation2 + $0x13c] sm:$0xf]
        %v12010 = vld [vmem:[#allocation2 + $0x140] sm:$0xf]
        %v12011 = vld [vmem:[#allocation2 + $0x144] sm:$0xf]
        %v12012 = vld [vmem:[#allocation2 + $0x148] sm:$0xf]
        %v12013 = vld [vmem:[#allocation2 + $0x14c] sm:$0xf]
        %v12014 = vld [vmem:[#allocation2 + $0x150] sm:$0xf]
        %v12015 = vld [vmem:[#allocation2 + $0x154] sm:$0xf]
        %v12016 = vld [vmem:[#allocation2 + $0x158] sm:$0xf]
        %v12017 = vld [vmem:[#allocation2 + $0x15c] sm:$0xf]
        %v12018 = vld [vmem:[#allocation2 + $0x160] sm:$0xf]
        %v12019 = vld [vmem:[#allocation2 + $0x164] sm:$0xf]
        %v12020 = vld [vmem:[#allocation2 + $0x168] sm:$0xf]
        %v12021 = vld [vmem:[#allocation2 + $0x16c] sm:$0xf]
        %v12022 = vld [vmem:[#allocation2 + $0x170] sm:$0xf]
        %v12023 = vld [vmem:[#allocation2 + $0x174] sm:$0xf]
        %v12024 = vld [vmem:[#allocation2 + $0x178] sm:$0xf]
        %v12025 = vld [vmem:[#allocation2 + $0x17c] sm:$0xf]
        %v12122 = vunpack.c.l.b16 %v11930
        %v12123 = vunpack.c.l.b16 %v11931
        %v12124 = vunpack.c.l.b16 %v11932
        %v12125 = vunpack.c.l.b16 %v11933
        %v12126 = vunpack.c.l.b16 %v11934
        %v12127 = vunpack.c.l.b16 %v11935
        %v12128 = vunpack.c.l.b16 %v11936
        %v12129 = vunpack.c.l.b16 %v11937
        %v12130 = vunpack.c.l.b16 %v11938
        %v12131 = vunpack.c.l.b16 %v11939
        %v12132 = vunpack.c.l.b16 %v11940
        %v12133 = vunpack.c.l.b16 %v11941
        %v12134 = vunpack.c.l.b16 %v11942
        %v12135 = vunpack.c.l.b16 %v11943
        %v12136 = vunpack.c.l.b16 %v11944
        %v12137 = vunpack.c.l.b16 %v11945
        %v12138 = vunpack.c.l.b16 %v11946
        %v12139 = vunpack.c.l.b16 %v11947
        %v12140 = vunpack.c.l.b16 %v11948
        %v12141 = vunpack.c.l.b16 %v11949
        %v12142 = vunpack.c.l.b16 %v11950
        %v12143 = vunpack.c.l.b16 %v11951
        %v12144 = vunpack.c.l.b16 %v11952
        %v12145 = vunpack.c.l.b16 %v11953
        %v12146 = vunpack.c.l.b16 %v11954
        %v12147 = vunpack.c.l.b16 %v11955
        %v12148 = vunpack.c.l.b16 %v11956
        %v12149 = vunpack.c.l.b16 %v11957
        %v12150 = vunpack.c.l.b16 %v11958
        %v12151 = vunpack.c.l.b16 %v11959
        %v12152 = vunpack.c.l.b16 %v11960
        %v12153 = vunpack.c.l.b16 %v11961
        %v12154 = vunpack.c.l.b16 %v11962
        %v12155 = vunpack.c.l.b16 %v11963
        %v12156 = vunpack.c.l.b16 %v11964
        %v12157 = vunpack.c.l.b16 %v11965
        %v12158 = vunpack.c.l.b16 %v11966
        %v12159 = vunpack.c.l.b16 %v11967
        %v12160 = vunpack.c.l.b16 %v11968
        %v12161 = vunpack.c.l.b16 %v11969
        %v12162 = vunpack.c.l.b16 %v11970
        %v12163 = vunpack.c.l.b16 %v11971
        %v12164 = vunpack.c.l.b16 %v11972
        %v12165 = vunpack.c.l.b16 %v11973
        %v12166 = vunpack.c.l.b16 %v11974
        %v12167 = vunpack.c.l.b16 %v11975
        %v12168 = vunpack.c.l.b16 %v11976
        %v12169 = vunpack.c.l.b16 %v11977
        %v12170 = vunpack.c.l.b16 %v11978
        %v12171 = vunpack.c.l.b16 %v11979
        %v12172 = vunpack.c.l.b16 %v11980
        %v12173 = vunpack.c.l.b16 %v11981
        %v12174 = vunpack.c.l.b16 %v11982
        %v12175 = vunpack.c.l.b16 %v11983
        %v12176 = vunpack.c.l.b16 %v11984
        %v12177 = vunpack.c.l.b16 %v11985
        %v12178 = vunpack.c.l.b16 %v11986
        %v12179 = vunpack.c.l.b16 %v11987
        %v12180 = vunpack.c.l.b16 %v11988
        %v12181 = vunpack.c.l.b16 %v11989
        %v12182 = vunpack.c.l.b16 %v11990
        %v12183 = vunpack.c.l.b16 %v11991
        %v12184 = vunpack.c.l.b16 %v11992
        %v12185 = vunpack.c.l.b16 %v11993
        %v12186 = vunpack.c.l.b16 %v11994
        %v12187 = vunpack.c.l.b16 %v11995
        %v12188 = vunpack.c.l.b16 %v11996
        %v12189 = vunpack.c.l.b16 %v11997
        %v12190 = vunpack.c.l.b16 %v11998
        %v12191 = vunpack.c.l.b16 %v11999
        %v12192 = vunpack.c.l.b16 %v12000
        %v12193 = vunpack.c.l.b16 %v12001
        %v12194 = vunpack.c.l.b16 %v12002
        %v12195 = vunpack.c.l.b16 %v12003
        %v12196 = vunpack.c.l.b16 %v12004
        %v12197 = vunpack.c.l.b16 %v12005
        %v12198 = vunpack.c.l.b16 %v12006
        %v12199 = vunpack.c.l.b16 %v12007
        %v12200 = vunpack.c.l.b16 %v12008
        %v12201 = vunpack.c.l.b16 %v12009
        %v12202 = vunpack.c.l.b16 %v12010
        %v12203 = vunpack.c.l.b16 %v12011
        %v12204 = vunpack.c.l.b16 %v12012
        %v12205 = vunpack.c.l.b16 %v12013
        %v12206 = vunpack.c.l.b16 %v12014
        %v12207 = vunpack.c.l.b16 %v12015
        %v12208 = vunpack.c.l.b16 %v12016
        %v12209 = vunpack.c.l.b16 %v12017
        %v12210 = vunpack.c.l.b16 %v12018
        %v12211 = vunpack.c.l.b16 %v12019
        %v12212 = vunpack.c.l.b16 %v12020
        %v12213 = vunpack.c.l.b16 %v12021
        %v12214 = vunpack.c.l.b16 %v12022
        %v12215 = vunpack.c.l.b16 %v12023
        %v12216 = vunpack.c.l.b16 %v12024
        %v12217 = vunpack.c.l.b16 %v12025
        %v12218 = vpack.c.b16 %v12123, %v12122
        %v12219 = vpack.c.b16 %v12125, %v12124
        %v12220 = vpack.c.b16 %v12127, %v12126
        %v12221 = vpack.c.b16 %v12129, %v12128
        %v12222 = vpack.c.b16 %v12131, %v12130
        %v12223 = vpack.c.b16 %v12133, %v12132
        %v12224 = vpack.c.b16 %v12135, %v12134
        %v12225 = vpack.c.b16 %v12137, %v12136
        %v12226 = vpack.c.b16 %v12139, %v12138
        %v12227 = vpack.c.b16 %v12141, %v12140
        %v12228 = vpack.c.b16 %v12143, %v12142
        %v12229 = vpack.c.b16 %v12145, %v12144
        %v12230 = vpack.c.b16 %v12147, %v12146
        %v12231 = vpack.c.b16 %v12149, %v12148
        %v12232 = vpack.c.b16 %v12151, %v12150
        %v12233 = vpack.c.b16 %v12153, %v12152
        %v12234 = vpack.c.b16 %v12155, %v12154
        %v12235 = vpack.c.b16 %v12157, %v12156
        %v12236 = vpack.c.b16 %v12159, %v12158
        %v12237 = vpack.c.b16 %v12161, %v12160
        %v12238 = vpack.c.b16 %v12163, %v12162
        %v12239 = vpack.c.b16 %v12165, %v12164
        %v12240 = vpack.c.b16 %v12167, %v12166
        %v12241 = vpack.c.b16 %v12169, %v12168
        %v12242 = vpack.c.b16 %v12171, %v12170
        %v12243 = vpack.c.b16 %v12173, %v12172
        %v12244 = vpack.c.b16 %v12175, %v12174
        %v12245 = vpack.c.b16 %v12177, %v12176
        %v12246 = vpack.c.b16 %v12179, %v12178
        %v12247 = vpack.c.b16 %v12181, %v12180
        %v12248 = vpack.c.b16 %v12183, %v12182
        %v12249 = vpack.c.b16 %v12185, %v12184
        %v12250 = vpack.c.b16 %v12187, %v12186
        %v12251 = vpack.c.b16 %v12189, %v12188
        %v12252 = vpack.c.b16 %v12191, %v12190
        %v12253 = vpack.c.b16 %v12193, %v12192
        %v12254 = vpack.c.b16 %v12195, %v12194
        %v12255 = vpack.c.b16 %v12197, %v12196
        %v12256 = vpack.c.b16 %v12199, %v12198
        %v12257 = vpack.c.b16 %v12201, %v12200
        %v12258 = vpack.c.b16 %v12203, %v12202
        %v12259 = vpack.c.b16 %v12205, %v12204
        %v12260 = vpack.c.b16 %v12207, %v12206
        %v12261 = vpack.c.b16 %v12209, %v12208
        %v12262 = vpack.c.b16 %v12211, %v12210
        %v12263 = vpack.c.b16 %v12213, %v12212
        %v12264 = vpack.c.b16 %v12215, %v12214
        %v12265 = vpack.c.b16 %v12217, %v12216
        %12314 = vmatpush.bf16.msra.mxu0 %v12225
        %12315 = vmatpush.bf16.msra.mxu0 %v12224
        %12316 = vmatpush.bf16.msra.mxu0 %v12223
        %12317 = vmatpush.bf16.msra.mxu0 %v12222
        %12318 = vmatpush.bf16.msra.mxu0 %v12221
        %12319 = vmatpush.bf16.msra.mxu0 %v12220
        %12320 = vmatpush.bf16.msra.mxu0 %v12219
        %12321 = vmatpush.bf16.msra.mxu0 %v12218
        %12322 = vmatmul.bf16.gmra.mxu0 %v11924
        %v12323 = vpop.f32.mrf.mxu0
        %v12324 = vadd.f32 0.0, %v12323
        %v12325 = vpop.f32.mrf.mxu0
        %v12326 = vadd.f32 0.0, %v12325
        %12327 = vdwg.mxu0
        %12328 = vmatpush.bf16.msra.mxu0 %v12233
        %12329 = vmatpush.bf16.msra.mxu0 %v12232
        %12330 = vmatpush.bf16.msra.mxu0 %v12231
        %12331 = vmatpush.bf16.msra.mxu0 %v12230
        %12332 = vmatpush.bf16.msra.mxu0 %v12229
        %12333 = vmatpush.bf16.msra.mxu0 %v12228
        %12334 = vmatpush.bf16.msra.mxu0 %v12227
        %12335 = vmatpush.bf16.msra.mxu0 %v12226
        %12336 = vmatmul.bf16.gmra.mxu0 %v11925
        %v12337 = vpop.f32.mrf.mxu0
        %v12338 = vadd.f32 %v12324, %v12337
        %v12339 = vpop.f32.mrf.mxu0
        %v12340 = vadd.f32 %v12326, %v12339
        %12341 = vdwg.mxu0
        %12342 = vmatpush.bf16.msra.mxu0 %v12241
        %12343 = vmatpush.bf16.msra.mxu0 %v12240
        %12344 = vmatpush.bf16.msra.mxu0 %v12239
        %12345 = vmatpush.bf16.msra.mxu0 %v12238
        %12346 = vmatpush.bf16.msra.mxu0 %v12237
        %12347 = vmatpush.bf16.msra.mxu0 %v12236
        %12348 = vmatpush.bf16.msra.mxu0 %v12235
        %12349 = vmatpush.bf16.msra.mxu0 %v12234
        %12350 = vmatmul.bf16.gmra.mxu0 %v11926
        %v12351 = vpop.f32.mrf.mxu0
        %v12352 = vadd.f32 %v12338, %v12351
        %v12353 = vpop.f32.mrf.mxu0
        %v12354 = vadd.f32 %v12340, %v12353
        %12355 = vdwg.mxu0
        %12356 = vmatpush.bf16.msra.mxu0 %v12249
        %12357 = vmatpush.bf16.msra.mxu0 %v12248
        %12358 = vmatpush.bf16.msra.mxu0 %v12247
        %12359 = vmatpush.bf16.msra.mxu0 %v12246
        %12360 = vmatpush.bf16.msra.mxu0 %v12245
        %12361 = vmatpush.bf16.msra.mxu0 %v12244
        %12362 = vmatpush.bf16.msra.mxu0 %v12243
        %12363 = vmatpush.bf16.msra.mxu0 %v12242
        %12364 = vmatmul.bf16.gmra.mxu0 %v11927
        %v12365 = vpop.f32.mrf.mxu0
        %v12366 = vadd.f32 %v12352, %v12365
        %v12367 = vpop.f32.mrf.mxu0
        %v12368 = vadd.f32 %v12354, %v12367
        %12369 = vdwg.mxu0
        %12370 = vmatpush.bf16.msra.mxu0 %v12257
        %12371 = vmatpush.bf16.msra.mxu0 %v12256
        %12372 = vmatpush.bf16.msra.mxu0 %v12255
        %12373 = vmatpush.bf16.msra.mxu0 %v12254
        %12374 = vmatpush.bf16.msra.mxu0 %v12253
        %12375 = vmatpush.bf16.msra.mxu0 %v12252
        %12376 = vmatpush.bf16.msra.mxu0 %v12251
        %12377 = vmatpush.bf16.msra.mxu0 %v12250
        %12378 = vmatmul.bf16.gmra.mxu0 %v11928
        %v12379 = vpop.f32.mrf.mxu0
        %v12380 = vadd.f32 %v12366, %v12379
        %v12381 = vpop.f32.mrf.mxu0
        %v12382 = vadd.f32 %v12368, %v12381
        %12383 = vdwg.mxu0
        %12384 = vmatpush.bf16.msra.mxu0 %v12265
        %12385 = vmatpush.bf16.msra.mxu0 %v12264
        %12386 = vmatpush.bf16.msra.mxu0 %v12263
        %12387 = vmatpush.bf16.msra.mxu0 %v12262
        %12388 = vmatpush.bf16.msra.mxu0 %v12261
        %12389 = vmatpush.bf16.msra.mxu0 %v12260
        %12390 = vmatpush.bf16.msra.mxu0 %v12259
        %12391 = vmatpush.bf16.msra.mxu0 %v12258
        %12392 = vmatmul.bf16.gmra.mxu0 %v11929
        %v12393 = vpop.f32.mrf.mxu0
        %v12394 = vadd.f32 %v12380, %v12393
        %v12395 = vpop.f32.mrf.mxu0
        %v12396 = vadd.f32 %v12382, %v12395
        %12397 = vdwg.mxu0
        %v12398 = vlaneseq
        %v12399 = vand.u32 %v12398, 127
        %vm12400 = vcmp.lt.s32.totalorder %v12399, 10
        %v12401 = vsel %vm12400, %v12394, -1e+30
        %v12402 = vsel %vm12400, %v12396, -1e+30
        %12403 = vmax.xlane.f32.xlu0 %v12401
        %v12404 = vpop.xlane.xlu0 %12403
        %12405 = vmax.xlane.f32.xlu0 %v12402
        %v12406 = vpop.xlane.xlu0 %12405
        %v12407 = vsub.f32 %v12401, %v12404
        %v12408 = vsub.f32 %v12402, %v12406
        %v12409 = vmul.f32 %v12407, 1.442695
        %v12410 = vpow.pop %v12409
        %v12411 = vmul.f32 %v12408, 1.442695
        %v12412 = vpow.pop %v12411
        %12413 = vadd.xlane.f32.xlu0 %v12410
        %v12414 = vpop.xlane.xlu0 %12413
        %12415 = vadd.xlane.f32.xlu0 %v12412
        %v12416 = vpop.xlane.xlu0 %12415
        %v12417 = vrcp.pop %v12414
        %v12418 = vmul.f32 %v12414, %v12417
        %v12419 = vsub.f32 1.0, %v12418
        %v12420 = vmul.f32 %v12417, %v12419
        %v12421 = vadd.f32 %v12417, %v12420
        %vm12422 = vweird.f32 %v12414
        %vm12423 = vweird.f32 %v12417
        %vm12424 = vmor %vm12422, %vm12423
        %v12425 = vsel %vm12424, %v12417, %v12421
        %v12426 = vand.u32 2147483647, %v12414
        %vm12427 = vcmp.eq.f32.partialorder %v12426, 8.507059e+37
        %v12428 = vand.u32 %v12414, 2147483648
        %v12429 = vor.u32 1.1754944e-38, %v12428
        %v12430 = vsel %vm12427, %v12429, %v12425
        %v12431 = vmul.f32 %v12410, %v12430
        %v12432 = vrcp.pop %v12416
        %v12433 = vmul.f32 %v12416, %v12432
        %v12434 = vsub.f32 1.0, %v12433
        %v12435 = vmul.f32 %v12432, %v12434
        %v12436 = vadd.f32 %v12432, %v12435
        %vm12437 = vweird.f32 %v12416
        %vm12438 = vweird.f32 %v12432
        %vm12439 = vmor %vm12437, %vm12438
        %v12440 = vsel %vm12439, %v12432, %v12436
        %v12441 = vand.u32 2147483647, %v12416
        %vm12442 = vcmp.eq.f32.partialorder %v12441, 8.507059e+37
        %v12443 = vand.u32 %v12416, 2147483648
        %v12444 = vor.u32 1.1754944e-38, %v12443
        %v12445 = vsel %vm12442, %v12444, %v12440
        %v12446 = vmul.f32 %v12412, %v12445
        %12447 = vst [vmem:[%s246] sm:$0xff] %v12431
        %12448 = vst [vmem:[%s246 + $0x8] sm:$0xff] %v12446
        %s12449 = smul.u32 2, %s17
        %p12450 = scmp.lt.s32.totalorder %s12449, 3
        %s12451 = scalar_select %p12450, %s12449, 3
        %s12452 = smul.addr %s12451, 8
        %s12453 = scalar_lea.vmem %s5, %s12452
        // Predicated region
        $region45: #{forward.1} parent=39 // pred_check
          %p12454 = pneg %p145
        $region46: #{forward.1} parent=39 // pred_check_branch
          %12456 = sbr.rel (%p12454) target = $region48
        $region47: #{forward.1} parent=39 // pred_region
          %s12457 = smul.u32 2, %s17
        $region48: #{forward.1} parent=39 // pred_fallthru
          _
      $region40: #{forward.1} parent=5 // pred_fallthru
        _
      %p12458 = scmp.le.s32.totalorder 2, %s12
      // Predicated region
      $region49: #{forward.1} parent=5 // pred_check
        %p12459 = pneg %p12458
      $region50: #{forward.1} parent=5 // pred_check_branch
        %12461 = sbr.rel (%p12459) target = $region52
      $region51: #{forward.1} parent=5 // pred_region
        %s12462 = ssub.s32 %s12, 2
        // Predicated region
        $region53: #{forward.1} parent=51 // pred_check
          %p12463 = pneg %p151
        $region54: #{forward.1} parent=51 // pred_check_branch
          %12465 = sbr.rel (%p12463) target = $region56
        $region55: #{forward.1} parent=51 // pred_region
          %s12466 = smul.u32 2, %s18
          %p12467 = scmp.lt.s32.totalorder %s12466, 3
          %s12468 = scalar_select %p12467, %s12466, 3
          %s12469 = smul.addr %s12468, 8
          %s12470 = scalar_lea.vmem %s5, %s12469
        $region56: #{forward.1} parent=51 // pred_fallthru
          _
      $region52: #{forward.1} parent=5 // pred_fallthru
        _
    $region6: #{forward.1} parent=1 // loop_footer
      %s16 = sadd.s32 1, %s12
    $region7: #{forward.1} parent=1 // loop_footer_branch
      %11 = sbr.rel target = $region3
    $region8: #{forward.1} parent=1 // loop_exit
      _
    %12471 = vsyncpa [#allocation3], 1
    %s12472 = scalar_lea.sflag [#allocation3], 1
    %12473 = vsyncpa %s12472, 1

</llo_original>
